<compile_context>
chip_gen: v5e
topology: v5e:2x2
jax: 0.10.0
libtpu: 0.0.40
codegen_flags: <defaults>
</compile_context>

<pallas_src>
import functools

import jax
import jax.numpy as jnp
from jax.experimental import pallas as pl
from jax.experimental.pallas import tpu as pltpu

NEG_SLOPE = 0.2
N_LAYERS = 8
DIM = 512


# ------------------------------ Pallas kernel ------------------------------

def _mapping_kernel(x_ref, w_ref, b_ref, o_ref, *, n_layers, unroll):
    """Fused 8-layer MLP on one row-tile of the batch.

    x_ref : (TM, DIM)          bf16  activation tile
    w_ref : (L, DIM, DIM)      bf16  all layer weights, resident in VMEM
    b_ref : (L, 1, DIM)        f32   all layer biases
    o_ref : (TM, DIM)          f32
    """
    def layer(l, h_f32):
        acc = jnp.dot(h_f32.astype(jnp.bfloat16), w_ref[l],
                      preferred_element_type=jnp.float32)          # MXU, f32 acc
        acc = acc + b_ref[l]                                        # (1, DIM) bcast
        return jnp.maximum(acc, NEG_SLOPE * acc)                    # LeakyReLU(0.2)

    h = x_ref[...].astype(jnp.float32)
    if unroll:
        for l in range(n_layers):                                   # static unroll
            h = layer(l, h)
    else:
        h = jax.lax.fori_loop(0, n_layers, layer, h)                # bounded live ranges
    o_ref[...] = h


# ------------------------------ param packing ------------------------------

def pack_params(params):
    """One-time preprocessing (keep OUTSIDE the jitted forward).

    PyTorch Linear weight is (out, in); pre-transpose so `h @ W` is the layer.
    Returns (w_packed, b_packed) = ((L, DIM, DIM) bf16, (L, 1, DIM) f32).
    """
    n_layers = len(params)
    w = jnp.stack([p["w"].T for p in params], axis=0).astype(jnp.bfloat16)
    b = jnp.stack([p["b"] for p in params], axis=0).astype(jnp.float32)
    return w, b.reshape(n_layers, 1, DIM)


# ------------------------------ host wrapper -------------------------------

def _ceil_to(a, b):
    return -(-a // b) * b


def mapping_forward(w_packed, b_packed, x, *, tm_max=1024):
    """x: (B, 512) -> (B, 512); 8 x (Linear + LeakyReLU(0.2)) fused in one call."""
    n_layers = w_packed.shape[0]
    m, d = x.shape
    assert d == DIM, d

    # Row tile: small batches -> 8-sublane granule, single step.
    # Larger batches -> multiples of 256 (MXU tile on v6e/v7x, 2x128 on v5e)
    # and >= 2 grid steps so v7x's two TensorCores both get work.
    if m <= 256:
        tm = max(8, _ceil_to(m, 8))
    else:
        tm = min(tm_max, _ceil_to(pl.cdiv(m, 2), 256))
    mp = _ceil_to(m, tm)
    unroll = tm < 1024

    xp = jnp.pad(x, ((0, mp - m), (0, 0))).astype(jnp.bfloat16)

    out = pl.pallas_call(
        functools.partial(_mapping_kernel, n_layers=n_layers, unroll=unroll),
        out_shape=jax.ShapeDtypeStruct((mp, DIM), jnp.float32),
        grid=(mp // tm,),
        in_specs=[
            # Activation tile: pipelined (double-buffered by default).
            pl.BlockSpec((tm, DIM), lambda i: (i, 0)),
            # Weights/biases are grid-invariant: single-buffer to save VMEM.
            pl.BlockSpec((n_layers, DIM, DIM), lambda i: (0, 0, 0),
                         pipeline_mode=pl.Buffered(1)),
            pl.BlockSpec((n_layers, 1, DIM), lambda i: (0, 0, 0),
                         pipeline_mode=pl.Buffered(1)),
        ],
        out_specs=pl.BlockSpec((tm, DIM), lambda i: (i, 0)),
        compiler_params=pltpu.CompilerParams(
            dimension_semantics=("parallel",),
            # weights 4 MiB (single-buffered) + act tiles + per-layer scratch;
            # 48 MiB fits v7x's 64 MiB/TC and is well under v5e/v6e physical.
            vmem_limit_bytes=48 * 1024 * 1024,
        ),
    )(xp, w_packed, b_packed)
    return out[:m]


# ---------------------- pure-JAX reference (same math) ---------------------

def mapping_reference(params, x):
    h = x.astype(jnp.float32)
    for p in params:
        acc = jnp.dot(h.astype(jnp.bfloat16), p["w"].T.astype(jnp.bfloat16),
                      preferred_element_type=jnp.float32) + p["b"]
        h = jnp.maximum(acc, NEG_SLOPE * acc)
    return h


# ------------------------------- parameters --------------------------------

def make_params(key, n_layers=N_LAYERS, dim=DIM):
    """PyTorch nn.Linear default init: U(-1/sqrt(fan_in), 1/sqrt(fan_in))."""
    bound = 1.0 / (dim ** 0.5)
    params = []
    for k in jax.random.split(key, n_layers):
        kw, kb = jax.random.split(k)
        params.append({
            "w": jax.random.uniform(kw, (dim, dim), jnp.float32, -bound, bound),
            "b": jax.random.uniform(kb, (dim,), jnp.float32, -bound, bound),
        })
    return params


# ---------------------------------- main ------------------------------------

if __name__ == "__main__":
    key = jax.random.PRNGKey(0)
    pkey, xkey = jax.random.split(key)
    params = make_params(pkey)

    # One-time packing (outside jit) — no per-call transpose/stack/cast.
    w_packed, b_packed = pack_params(params)

    B = 2
    x = jax.random.normal(xkey, (B, DIM), jnp.float32)

    fwd = jax.jit(mapping_forward)
    out = jax.block_until_ready(fwd(w_packed, b_packed, x))

    assert out.shape == (B, DIM), out.shape
    assert bool(jnp.all(jnp.isfinite(out)))

    # NOTE: like the kernel, the reference casts activations to bf16 at each
    # matmul (f32 accumulation); vs a pure-f32 PyTorch run there is small,
    # expected drift from the cascaded bf16 casts.
    ref = jax.block_until_ready(jax.jit(mapping_reference)(params, x))
    max_err = float(jnp.max(jnp.abs(out - ref)))
    assert max_err < 5e-2, max_err

    print("KERNEL_OK")
</pallas_src>

<mosaic_0001>
module attributes {stable_mosaic.version = 11 : i64} {
  func.func @_mapping_kernel(%arg0: i32, %arg1: memref<8x512xbf16, #tpu.memory_space<vmem>>, %arg2: memref<8x512x512xbf16, #tpu.memory_space<vmem>>, %arg3: memref<8x1x512xf32, #tpu.memory_space<vmem>>, %arg4: memref<8x512xf32, #tpu.memory_space<vmem>>) attributes {dimension_semantics = [#tpu.dimension_semantics<parallel>], iteration_bounds = array<i64: 1>, scalar_prefetch = 0 : i64, scratch_operands = 0 : i64, tpu.core_type = #tpu.core_type<tc>, window_params = [{transform_indices = @transform_0, window_bounds = array<i64: 8, 512>}, {pipeline_mode = #tpu.pipeline_mode<synchronous>, transform_indices = @transform_1, window_bounds = array<i64: 8, 512, 512>}, {pipeline_mode = #tpu.pipeline_mode<synchronous>, transform_indices = @transform_2, window_bounds = array<i64: 8, 1, 512>}, {transform_indices = @transform_3, window_bounds = array<i64: 8, 512>}]} {
    %c0 = arith.constant 0 : index
    %c0_0 = arith.constant 0 : index
    %0 = vector.load %arg1[%c0, %c0_0] : memref<8x512xbf16, #tpu.memory_space<vmem>>, vector<8x512xbf16>
    %1 = arith.extf %0 : vector<8x512xbf16> to vector<8x512xf32>
    %2 = arith.truncf %1 : vector<8x512xf32> to vector<8x512xbf16>
    %c0_1 = arith.constant 0 : index
    %c0_2 = arith.constant 0 : index
    %c0_3 = arith.constant 0 : index
    %3 = vector.load %arg2[%c0_1, %c0_2, %c0_3] : memref<8x512x512xbf16, #tpu.memory_space<vmem>>, vector<1x512x512xbf16>
    %4 = vector.shape_cast %3 : vector<1x512x512xbf16> to vector<512x512xbf16>
    %cst = arith.constant dense<0.000000e+00> : vector<8x512xf32>
    %5 = tpu.matmul %2, %4, %cst {dimension_numbers = #tpu.dot_dimension_numbers<[1], [0], [0], [1], [0, 0, 1, 1], [], []>} : vector<8x512xbf16>, vector<512x512xbf16>, vector<8x512xf32> -> vector<8x512xf32>
    %c0_4 = arith.constant 0 : index
    %c0_5 = arith.constant 0 : index
    %c0_6 = arith.constant 0 : index
    %6 = vector.load %arg3[%c0_4, %c0_5, %c0_6] : memref<8x1x512xf32, #tpu.memory_space<vmem>>, vector<1x1x512xf32>
    %7 = vector.shape_cast %6 : vector<1x1x512xf32> to vector<1x512xf32>
    %8 = vector.broadcast %7 : vector<1x512xf32> to vector<8x512xf32>
    %9 = arith.addf %5, %8 : vector<8x512xf32>
    %cst_7 = arith.constant 2.000000e-01 : f32
    %10 = vector.broadcast %cst_7 : f32 to vector<8x512xf32>
    %11 = arith.mulf %10, %9 : vector<8x512xf32>
    %12 = arith.maximumf %9, %11 : vector<8x512xf32>
    %13 = arith.truncf %12 : vector<8x512xf32> to vector<8x512xbf16>
    %c1 = arith.constant 1 : index
    %c0_8 = arith.constant 0 : index
    %c0_9 = arith.constant 0 : index
    %14 = vector.load %arg2[%c1, %c0_8, %c0_9] : memref<8x512x512xbf16, #tpu.memory_space<vmem>>, vector<1x512x512xbf16>
    %15 = vector.shape_cast %14 : vector<1x512x512xbf16> to vector<512x512xbf16>
    %cst_10 = arith.constant dense<0.000000e+00> : vector<8x512xf32>
    %16 = tpu.matmul %13, %15, %cst_10 {dimension_numbers = #tpu.dot_dimension_numbers<[1], [0], [0], [1], [0, 0, 1, 1], [], []>} : vector<8x512xbf16>, vector<512x512xbf16>, vector<8x512xf32> -> vector<8x512xf32>
    %c1_11 = arith.constant 1 : index
    %c0_12 = arith.constant 0 : index
    %c0_13 = arith.constant 0 : index
    %17 = vector.load %arg3[%c1_11, %c0_12, %c0_13] : memref<8x1x512xf32, #tpu.memory_space<vmem>>, vector<1x1x512xf32>
    %18 = vector.shape_cast %17 : vector<1x1x512xf32> to vector<1x512xf32>
    %19 = vector.broadcast %18 : vector<1x512xf32> to vector<8x512xf32>
    %20 = arith.addf %16, %19 : vector<8x512xf32>
    %cst_14 = arith.constant 2.000000e-01 : f32
    %21 = vector.broadcast %cst_14 : f32 to vector<8x512xf32>
    %22 = arith.mulf %21, %20 : vector<8x512xf32>
    %23 = arith.maximumf %20, %22 : vector<8x512xf32>
    %24 = arith.truncf %23 : vector<8x512xf32> to vector<8x512xbf16>
    %c2 = arith.constant 2 : index
    %c0_15 = arith.constant 0 : index
    %c0_16 = arith.constant 0 : index
    %25 = vector.load %arg2[%c2, %c0_15, %c0_16] : memref<8x512x512xbf16, #tpu.memory_space<vmem>>, vector<1x512x512xbf16>
    %26 = vector.shape_cast %25 : vector<1x512x512xbf16> to vector<512x512xbf16>
    %cst_17 = arith.constant dense<0.000000e+00> : vector<8x512xf32>
    %27 = tpu.matmul %24, %26, %cst_17 {dimension_numbers = #tpu.dot_dimension_numbers<[1], [0], [0], [1], [0, 0, 1, 1], [], []>} : vector<8x512xbf16>, vector<512x512xbf16>, vector<8x512xf32> -> vector<8x512xf32>
    %c2_18 = arith.constant 2 : index
    %c0_19 = arith.constant 0 : index
    %c0_20 = arith.constant 0 : index
    %28 = vector.load %arg3[%c2_18, %c0_19, %c0_20] : memref<8x1x512xf32, #tpu.memory_space<vmem>>, vector<1x1x512xf32>
    %29 = vector.shape_cast %28 : vector<1x1x512xf32> to vector<1x512xf32>
    %30 = vector.broadcast %29 : vector<1x512xf32> to vector<8x512xf32>
    %31 = arith.addf %27, %30 : vector<8x512xf32>
    %cst_21 = arith.constant 2.000000e-01 : f32
    %32 = vector.broadcast %cst_21 : f32 to vector<8x512xf32>
    %33 = arith.mulf %32, %31 : vector<8x512xf32>
    %34 = arith.maximumf %31, %33 : vector<8x512xf32>
    %35 = arith.truncf %34 : vector<8x512xf32> to vector<8x512xbf16>
    %c3 = arith.constant 3 : index
    %c0_22 = arith.constant 0 : index
    %c0_23 = arith.constant 0 : index
    %36 = vector.load %arg2[%c3, %c0_22, %c0_23] : memref<8x512x512xbf16, #tpu.memory_space<vmem>>, vector<1x512x512xbf16>
    %37 = vector.shape_cast %36 : vector<1x512x512xbf16> to vector<512x512xbf16>
    %cst_24 = arith.constant dense<0.000000e+00> : vector<8x512xf32>
    %38 = tpu.matmul %35, %37, %cst_24 {dimension_numbers = #tpu.dot_dimension_numbers<[1], [0], [0], [1], [0, 0, 1, 1], [], []>} : vector<8x512xbf16>, vector<512x512xbf16>, vector<8x512xf32> -> vector<8x512xf32>
    %c3_25 = arith.constant 3 : index
    %c0_26 = arith.constant 0 : index
    %c0_27 = arith.constant 0 : index
    %39 = vector.load %arg3[%c3_25, %c0_26, %c0_27] : memref<8x1x512xf32, #tpu.memory_space<vmem>>, vector<1x1x512xf32>
    %40 = vector.shape_cast %39 : vector<1x1x512xf32> to vector<1x512xf32>
    %41 = vector.broadcast %40 : vector<1x512xf32> to vector<8x512xf32>
    %42 = arith.addf %38, %41 : vector<8x512xf32>
    %cst_28 = arith.constant 2.000000e-01 : f32
    %43 = vector.broadcast %cst_28 : f32 to vector<8x512xf32>
    %44 = arith.mulf %43, %42 : vector<8x512xf32>
    %45 = arith.maximumf %42, %44 : vector<8x512xf32>
    %46 = arith.truncf %45 : vector<8x512xf32> to vector<8x512xbf16>
    %c4 = arith.constant 4 : index
    %c0_29 = arith.constant 0 : index
    %c0_30 = arith.constant 0 : index
    %47 = vector.load %arg2[%c4, %c0_29, %c0_30] : memref<8x512x512xbf16, #tpu.memory_space<vmem>>, vector<1x512x512xbf16>
    %48 = vector.shape_cast %47 : vector<1x512x512xbf16> to vector<512x512xbf16>
    %cst_31 = arith.constant dense<0.000000e+00> : vector<8x512xf32>
    %49 = tpu.matmul %46, %48, %cst_31 {dimension_numbers = #tpu.dot_dimension_numbers<[1], [0], [0], [1], [0, 0, 1, 1], [], []>} : vector<8x512xbf16>, vector<512x512xbf16>, vector<8x512xf32> -> vector<8x512xf32>
    %c4_32 = arith.constant 4 : index
    %c0_33 = arith.constant 0 : index
    %c0_34 = arith.constant 0 : index
    %50 = vector.load %arg3[%c4_32, %c0_33, %c0_34] : memref<8x1x512xf32, #tpu.memory_space<vmem>>, vector<1x1x512xf32>
    %51 = vector.shape_cast %50 : vector<1x1x512xf32> to vector<1x512xf32>
    %52 = vector.broadcast %51 : vector<1x512xf32> to vector<8x512xf32>
    %53 = arith.addf %49, %52 : vector<8x512xf32>
    %cst_35 = arith.constant 2.000000e-01 : f32
    %54 = vector.broadcast %cst_35 : f32 to vector<8x512xf32>
    %55 = arith.mulf %54, %53 : vector<8x512xf32>
    %56 = arith.maximumf %53, %55 : vector<8x512xf32>
    %57 = arith.truncf %56 : vector<8x512xf32> to vector<8x512xbf16>
    %c5 = arith.constant 5 : index
    %c0_36 = arith.constant 0 : index
    %c0_37 = arith.constant 0 : index
    %58 = vector.load %arg2[%c5, %c0_36, %c0_37] : memref<8x512x512xbf16, #tpu.memory_space<vmem>>, vector<1x512x512xbf16>
    %59 = vector.shape_cast %58 : vector<1x512x512xbf16> to vector<512x512xbf16>
    %cst_38 = arith.constant dense<0.000000e+00> : vector<8x512xf32>
    %60 = tpu.matmul %57, %59, %cst_38 {dimension_numbers = #tpu.dot_dimension_numbers<[1], [0], [0], [1], [0, 0, 1, 1], [], []>} : vector<8x512xbf16>, vector<512x512xbf16>, vector<8x512xf32> -> vector<8x512xf32>
    %c5_39 = arith.constant 5 : index
    %c0_40 = arith.constant 0 : index
    %c0_41 = arith.constant 0 : index
    %61 = vector.load %arg3[%c5_39, %c0_40, %c0_41] : memref<8x1x512xf32, #tpu.memory_space<vmem>>, vector<1x1x512xf32>
    %62 = vector.shape_cast %61 : vector<1x1x512xf32> to vector<1x512xf32>
    %63 = vector.broadcast %62 : vector<1x512xf32> to vector<8x512xf32>
    %64 = arith.addf %60, %63 : vector<8x512xf32>
    %cst_42 = arith.constant 2.000000e-01 : f32
    %65 = vector.broadcast %cst_42 : f32 to vector<8x512xf32>
    %66 = arith.mulf %65, %64 : vector<8x512xf32>
    %67 = arith.maximumf %64, %66 : vector<8x512xf32>
    %68 = arith.truncf %67 : vector<8x512xf32> to vector<8x512xbf16>
    %c6 = arith.constant 6 : index
    %c0_43 = arith.constant 0 : index
    %c0_44 = arith.constant 0 : index
    %69 = vector.load %arg2[%c6, %c0_43, %c0_44] : memref<8x512x512xbf16, #tpu.memory_space<vmem>>, vector<1x512x512xbf16>
    %70 = vector.shape_cast %69 : vector<1x512x512xbf16> to vector<512x512xbf16>
    %cst_45 = arith.constant dense<0.000000e+00> : vector<8x512xf32>
    %71 = tpu.matmul %68, %70, %cst_45 {dimension_numbers = #tpu.dot_dimension_numbers<[1], [0], [0], [1], [0, 0, 1, 1], [], []>} : vector<8x512xbf16>, vector<512x512xbf16>, vector<8x512xf32> -> vector<8x512xf32>
    %c6_46 = arith.constant 6 : index
    %c0_47 = arith.constant 0 : index
    %c0_48 = arith.constant 0 : index
    %72 = vector.load %arg3[%c6_46, %c0_47, %c0_48] : memref<8x1x512xf32, #tpu.memory_space<vmem>>, vector<1x1x512xf32>
    %73 = vector.shape_cast %72 : vector<1x1x512xf32> to vector<1x512xf32>
    %74 = vector.broadcast %73 : vector<1x512xf32> to vector<8x512xf32>
    %75 = arith.addf %71, %74 : vector<8x512xf32>
    %cst_49 = arith.constant 2.000000e-01 : f32
    %76 = vector.broadcast %cst_49 : f32 to vector<8x512xf32>
    %77 = arith.mulf %76, %75 : vector<8x512xf32>
    %78 = arith.maximumf %75, %77 : vector<8x512xf32>
    %79 = arith.truncf %78 : vector<8x512xf32> to vector<8x512xbf16>
    %c7 = arith.constant 7 : index
    %c0_50 = arith.constant 0 : index
    %c0_51 = arith.constant 0 : index
    %80 = vector.load %arg2[%c7, %c0_50, %c0_51] : memref<8x512x512xbf16, #tpu.memory_space<vmem>>, vector<1x512x512xbf16>
    %81 = vector.shape_cast %80 : vector<1x512x512xbf16> to vector<512x512xbf16>
    %cst_52 = arith.constant dense<0.000000e+00> : vector<8x512xf32>
    %82 = tpu.matmul %79, %81, %cst_52 {dimension_numbers = #tpu.dot_dimension_numbers<[1], [0], [0], [1], [0, 0, 1, 1], [], []>} : vector<8x512xbf16>, vector<512x512xbf16>, vector<8x512xf32> -> vector<8x512xf32>
    %c7_53 = arith.constant 7 : index
    %c0_54 = arith.constant 0 : index
    %c0_55 = arith.constant 0 : index
    %83 = vector.load %arg3[%c7_53, %c0_54, %c0_55] : memref<8x1x512xf32, #tpu.memory_space<vmem>>, vector<1x1x512xf32>
    %84 = vector.shape_cast %83 : vector<1x1x512xf32> to vector<1x512xf32>
    %85 = vector.broadcast %84 : vector<1x512xf32> to vector<8x512xf32>
    %86 = arith.addf %82, %85 : vector<8x512xf32>
    %cst_56 = arith.constant 2.000000e-01 : f32
    %87 = vector.broadcast %cst_56 : f32 to vector<8x512xf32>
    %88 = arith.mulf %87, %86 : vector<8x512xf32>
    %89 = arith.maximumf %86, %88 : vector<8x512xf32>
    %c0_57 = arith.constant 0 : index
    %c0_58 = arith.constant 0 : index
    %90 = vector.load %arg4[%c0_57, %c0_58] : memref<8x512xf32, #tpu.memory_space<vmem>>, vector<8x512xf32>
    tpu.vector_store %arg4[%c0_57, %c0_58], %89 {strides = array<i32>} : memref<8x512xf32, #tpu.memory_space<vmem>>, vector<8x512xf32>,
    return
  }
  func.func @transform_0(%arg0: i32) -> (i32, i32) {
    %c0_i32 = arith.constant 0 : i32
    %c0_i32_0 = arith.constant 0 : i32
    return %arg0, %c0_i32 : i32, i32
  }
  func.func @transform_1(%arg0: i32) -> (i32, i32, i32) {
    %c0_i32 = arith.constant 0 : i32
    %c0_i32_0 = arith.constant 0 : i32
    %c0_i32_1 = arith.constant 0 : i32
    %c0_i32_2 = arith.constant 0 : i32
    return %c0_i32, %c0_i32_0, %c0_i32_1 : i32, i32, i32
  }
  func.func @transform_2(%arg0: i32) -> (i32, i32, i32) {
    %c0_i32 = arith.constant 0 : i32
    %c0_i32_0 = arith.constant 0 : i32
    %c0_i32_1 = arith.constant 0 : i32
    %c0_i32_2 = arith.constant 0 : i32
    return %c0_i32, %c0_i32_0, %c0_i32_1 : i32, i32, i32
  }
  func.func @transform_3(%arg0: i32) -> (i32, i32) {
    %c0_i32 = arith.constant 0 : i32
    %c0_i32_0 = arith.constant 0 : i32
    return %arg0, %c0_i32 : i32, i32
  }
}

</mosaic_0001>

<llo_original>
// kernel: mapping_forward.1
$region0: #{mapping_forward.1}
  #allocation0 [shape = 'u32[]', space=smem, size = 0x4, offset = 0x4, fixed_abs, tag = 'smem constant byte address 0x4 - core index']
  #allocation1 [shape = 'u32[72,128]{1,0:T(1,128)}', space=vmem, size = 0x9000, scoped, tag = 'internal scratch']
  %s0 = inlined_call_operand.vmem [shape: bf16[8,512], index: 0, kind: input, shape index: {}]
  %s1 = inlined_call_operand.hbm [shape: bf16[8,512,512], index: 1, kind: input, shape index: {}]
  %s2 = inlined_call_operand.hbm [shape: f32[8,1,512], index: 2, kind: input, shape index: {}]
  %s3 = inlined_call_operand.vmem [shape: f32[8,512], index: 3, kind: output, shape index: {}]
  %s4 = sld [smem:[#allocation0]]
  $region30: #{mapping_forward.1} parent=0
    _
  %s6 = ssub.s32 1, %s4
  %s7 = scalar_select 0, %s6, %s4
  $region1: #{mapping_forward.1} parent=0
    #allocation2 [shape = 'u8[4194304]{0}', space=vmem, size = 0x400000, scoped, tag = 'input window, operand 1, single buffered']
    #allocation3 [shape = 's32[1]{0}', space=sflag, size = 0x4, scoped, tag = 'scoped memory for mapping_forward.1']
    #allocation4 [shape = 'u8[16384]{0}', space=vmem, size = 0x4000, scoped, tag = 'input window, operand 2, single buffered']
    #allocation5 [shape = 's32[1]{0}', space=sflag, size = 0x4, scoped, tag = 'scoped memory for mapping_forward.1']
    %8 = vsyncpa [#allocation3], 0
    %9 = vsyncpa [#allocation5], 0
    // Predicated region
    $region2: #{mapping_forward.1} parent=1 // pred_check
      _
    $region3: #{mapping_forward.1} parent=1 // pred_check_branch
      %11 = sbr.rel (0) target = $region5
    $region4: #{mapping_forward.1} parent=1 // pred_region
      _
    $region5: #{mapping_forward.1} parent=1 // pred_fallthru
      _
    // Predicated region
    $region6: #{mapping_forward.1} parent=1 // pred_check
      _
    $region7: #{mapping_forward.1} parent=1 // pred_check_branch
      %13 = sbr.rel (0) target = $region9
    $region8: #{mapping_forward.1} parent=1 // pred_region
      %15 = vsyncadd [#allocation3], 0
      %s16 = sshll.u32 %s1, 4
      %s17 = int_to_ptr.hbm [resolvable:$true] %s16
      %s18 = sshll.u32 [#allocation2], 4
      %s19 = int_to_ptr.vmem [resolvable:$true] %s18
      %24 = dma.hbm_to_vmem [thread:$0]  %s17, 131072, %s19, [#allocation3], 256, 256, 16
    $region9: #{mapping_forward.1} parent=1 // pred_fallthru
      _
    // Predicated region
    $region10: #{mapping_forward.1} parent=1 // pred_check
      _
    $region11: #{mapping_forward.1} parent=1 // pred_check_branch
      %26 = sbr.rel (0) target = $region13
    $region12: #{mapping_forward.1} parent=1 // pred_region
      %28 = vsyncadd [#allocation5], 0
      %s29 = sshll.u32 %s2, 4
      %s30 = int_to_ptr.hbm [resolvable:$true] %s29
      %s31 = sshll.u32 [#allocation4], 4
      %s32 = int_to_ptr.vmem [resolvable:$true] %s31
      %37 = dma.hbm_to_vmem [thread:$0]  %s30, 512, %s32, [#allocation5], 64, 64, 4
    $region13: #{mapping_forward.1} parent=1 // pred_fallthru
      _
    // Predicated region
    $region14: #{mapping_forward.1} parent=1 // pred_check
      _
    $region15: #{mapping_forward.1} parent=1 // pred_check_branch
      %39 = sbr.rel (0) target = $region17
    $region16: #{mapping_forward.1} parent=1 // pred_region
      %41 = dma.done [#allocation3], 131072
    $region17: #{mapping_forward.1} parent=1 // pred_fallthru
      _
    // Predicated region
    $region18: #{mapping_forward.1} parent=1 // pred_check
      _
    $region19: #{mapping_forward.1} parent=1 // pred_check_branch
      %43 = sbr.rel (0) target = $region21
    $region20: #{mapping_forward.1} parent=1 // pred_region
      %45 = dma.done [#allocation5], 512
    $region21: #{mapping_forward.1} parent=1 // pred_fallthru
      _
    %v46 = vld [vmem:[%s0] sm:$0xff]
    %v47 = vld [vmem:[%s0 + $0x8] sm:$0xff]
    %v48 = vld [vmem:[#allocation2] sm:$0xff]
    %v49 = vld [vmem:[#allocation2 + $0x8] sm:$0xff]
    %v50 = vld [vmem:[#allocation2 + $0x10] sm:$0xff]
    %v51 = vld [vmem:[#allocation2 + $0x18] sm:$0xff]
    %v52 = vld [vmem:[#allocation2 + $0x20] sm:$0xff]
    %v53 = vld [vmem:[#allocation2 + $0x28] sm:$0xff]
    %v54 = vld [vmem:[#allocation2 + $0x30] sm:$0xff]
    %v55 = vld [vmem:[#allocation2 + $0x38] sm:$0xff]
    %v56 = vld [vmem:[#allocation2 + $0x40] sm:$0xff]
    %v57 = vld [vmem:[#allocation2 + $0x48] sm:$0xff]
    %v58 = vld [vmem:[#allocation2 + $0x50] sm:$0xff]
    %v59 = vld [vmem:[#allocation2 + $0x58] sm:$0xff]
    %v60 = vld [vmem:[#allocation2 + $0x60] sm:$0xff]
    %v61 = vld [vmem:[#allocation2 + $0x68] sm:$0xff]
    %v62 = vld [vmem:[#allocation2 + $0x70] sm:$0xff]
    %v63 = vld [vmem:[#allocation2 + $0x78] sm:$0xff]
    %v64 = vld [vmem:[#allocation2 + $0x80] sm:$0xff]
    %v65 = vld [vmem:[#allocation2 + $0x88] sm:$0xff]
    %v66 = vld [vmem:[#allocation2 + $0x90] sm:$0xff]
    %v67 = vld [vmem:[#allocation2 + $0x98] sm:$0xff]
    %v68 = vld [vmem:[#allocation2 + $0xa0] sm:$0xff]
    %v69 = vld [vmem:[#allocation2 + $0xa8] sm:$0xff]
    %v70 = vld [vmem:[#allocation2 + $0xb0] sm:$0xff]
    %v71 = vld [vmem:[#allocation2 + $0xb8] sm:$0xff]
    %v72 = vld [vmem:[#allocation2 + $0xc0] sm:$0xff]
    %v73 = vld [vmem:[#allocation2 + $0xc8] sm:$0xff]
    %v74 = vld [vmem:[#allocation2 + $0xd0] sm:$0xff]
    %v75 = vld [vmem:[#allocation2 + $0xd8] sm:$0xff]
    %v76 = vld [vmem:[#allocation2 + $0xe0] sm:$0xff]
    %v77 = vld [vmem:[#allocation2 + $0xe8] sm:$0xff]
    %v78 = vld [vmem:[#allocation2 + $0xf0] sm:$0xff]
    %v79 = vld [vmem:[#allocation2 + $0xf8] sm:$0xff]
    %v80 = vld [vmem:[#allocation2 + $0x100] sm:$0xff]
    %v81 = vld [vmem:[#allocation2 + $0x108] sm:$0xff]
    %v82 = vld [vmem:[#allocation2 + $0x110] sm:$0xff]
    %v83 = vld [vmem:[#allocation2 + $0x118] sm:$0xff]
    %v84 = vld [vmem:[#allocation2 + $0x120] sm:$0xff]
    %v85 = vld [vmem:[#allocation2 + $0x128] sm:$0xff]
    %v86 = vld [vmem:[#allocation2 + $0x130] sm:$0xff]
    %v87 = vld [vmem:[#allocation2 + $0x138] sm:$0xff]
    %v88 = vld [vmem:[#allocation2 + $0x140] sm:$0xff]
    %v89 = vld [vmem:[#allocation2 + $0x148] sm:$0xff]
    %v90 = vld [vmem:[#allocation2 + $0x150] sm:$0xff]
    %v91 = vld [vmem:[#allocation2 + $0x158] sm:$0xff]
    %v92 = vld [vmem:[#allocation2 + $0x160] sm:$0xff]
    %v93 = vld [vmem:[#allocation2 + $0x168] sm:$0xff]
    %v94 = vld [vmem:[#allocation2 + $0x170] sm:$0xff]
    %v95 = vld [vmem:[#allocation2 + $0x178] sm:$0xff]
    %v96 = vld [vmem:[#allocation2 + $0x180] sm:$0xff]
    %v97 = vld [vmem:[#allocation2 + $0x188] sm:$0xff]
    %v98 = vld [vmem:[#allocation2 + $0x190] sm:$0xff]
    %v99 = vld [vmem:[#allocation2 + $0x198] sm:$0xff]
    %v100 = vld [vmem:[#allocation2 + $0x1a0] sm:$0xff]
    %v101 = vld [vmem:[#allocation2 + $0x1a8] sm:$0xff]
    %v102 = vld [vmem:[#allocation2 + $0x1b0] sm:$0xff]
    %v103 = vld [vmem:[#allocation2 + $0x1b8] sm:$0xff]
    %v104 = vld [vmem:[#allocation2 + $0x1c0] sm:$0xff]
    %v105 = vld [vmem:[#allocation2 + $0x1c8] sm:$0xff]
    %v106 = vld [vmem:[#allocation2 + $0x1d0] sm:$0xff]
    %v107 = vld [vmem:[#allocation2 + $0x1d8] sm:$0xff]
    %v108 = vld [vmem:[#allocation2 + $0x1e0] sm:$0xff]
    %v109 = vld [vmem:[#allocation2 + $0x1e8] sm:$0xff]
    %v110 = vld [vmem:[#allocation2 + $0x1f0] sm:$0xff]
    %v111 = vld [vmem:[#allocation2 + $0x1f8] sm:$0xff]
    %v112 = vld [vmem:[#allocation2 + $0x200] sm:$0xff]
    %v113 = vld [vmem:[#allocation2 + $0x208] sm:$0xff]
    %v114 = vld [vmem:[#allocation2 + $0x210] sm:$0xff]
    %v115 = vld [vmem:[#allocation2 + $0x218] sm:$0xff]
    %v116 = vld [vmem:[#allocation2 + $0x220] sm:$0xff]
    %v117 = vld [vmem:[#allocation2 + $0x228] sm:$0xff]
    %v118 = vld [vmem:[#allocation2 + $0x230] sm:$0xff]
    %v119 = vld [vmem:[#allocation2 + $0x238] sm:$0xff]
    %v120 = vld [vmem:[#allocation2 + $0x240] sm:$0xff]
    %v121 = vld [vmem:[#allocation2 + $0x248] sm:$0xff]
    %v122 = vld [vmem:[#allocation2 + $0x250] sm:$0xff]
    %v123 = vld [vmem:[#allocation2 + $0x258] sm:$0xff]
    %v124 = vld [vmem:[#allocation2 + $0x260] sm:$0xff]
    %v125 = vld [vmem:[#allocation2 + $0x268] sm:$0xff]
    %v126 = vld [vmem:[#allocation2 + $0x270] sm:$0xff]
    %v127 = vld [vmem:[#allocation2 + $0x278] sm:$0xff]
    %v128 = vld [vmem:[#allocation2 + $0x280] sm:$0xff]
    %v129 = vld [vmem:[#allocation2 + $0x288] sm:$0xff]
    %v130 = vld [vmem:[#allocation2 + $0x290] sm:$0xff]
    %v131 = vld [vmem:[#allocation2 + $0x298] sm:$0xff]
    %v132 = vld [vmem:[#allocation2 + $0x2a0] sm:$0xff]
    %v133 = vld [vmem:[#allocation2 + $0x2a8] sm:$0xff]
    %v134 = vld [vmem:[#allocation2 + $0x2b0] sm:$0xff]
    %v135 = vld [vmem:[#allocation2 + $0x2b8] sm:$0xff]
    %v136 = vld [vmem:[#allocation2 + $0x2c0] sm:$0xff]
    %v137 = vld [vmem:[#allocation2 + $0x2c8] sm:$0xff]
    %v138 = vld [vmem:[#allocation2 + $0x2d0] sm:$0xff]
    %v139 = vld [vmem:[#allocation2 + $0x2d8] sm:$0xff]
    %v140 = vld [vmem:[#allocation2 + $0x2e0] sm:$0xff]
    %v141 = vld [vmem:[#allocation2 + $0x2e8] sm:$0xff]
    %v142 = vld [vmem:[#allocation2 + $0x2f0] sm:$0xff]
    %v143 = vld [vmem:[#allocation2 + $0x2f8] sm:$0xff]
    %v144 = vld [vmem:[#allocation2 + $0x300] sm:$0xff]
    %v145 = vld [vmem:[#allocation2 + $0x308] sm:$0xff]
    %v146 = vld [vmem:[#allocation2 + $0x310] sm:$0xff]
    %v147 = vld [vmem:[#allocation2 + $0x318] sm:$0xff]
    %v148 = vld [vmem:[#allocation2 + $0x320] sm:$0xff]
    %v149 = vld [vmem:[#allocation2 + $0x328] sm:$0xff]
    %v150 = vld [vmem:[#allocation2 + $0x330] sm:$0xff]
    %v151 = vld [vmem:[#allocation2 + $0x338] sm:$0xff]
    %v152 = vld [vmem:[#allocation2 + $0x340] sm:$0xff]
    %v153 = vld [vmem:[#allocation2 + $0x348] sm:$0xff]
    %v154 = vld [vmem:[#allocation2 + $0x350] sm:$0xff]
    %v155 = vld [vmem:[#allocation2 + $0x358] sm:$0xff]
    %v156 = vld [vmem:[#allocation2 + $0x360] sm:$0xff]
    %v157 = vld [vmem:[#allocation2 + $0x368] sm:$0xff]
    %v158 = vld [vmem:[#allocation2 + $0x370] sm:$0xff]
    %v159 = vld [vmem:[#allocation2 + $0x378] sm:$0xff]
    %v160 = vld [vmem:[#allocation2 + $0x380] sm:$0xff]
    %v161 = vld [vmem:[#allocation2 + $0x388] sm:$0xff]
    %v162 = vld [vmem:[#allocation2 + $0x390] sm:$0xff]
    %v163 = vld [vmem:[#allocation2 + $0x398] sm:$0xff]
    %v164 = vld [vmem:[#allocation2 + $0x3a0] sm:$0xff]
    %v165 = vld [vmem:[#allocation2 + $0x3a8] sm:$0xff]
    %v166 = vld [vmem:[#allocation2 + $0x3b0] sm:$0xff]
    %v167 = vld [vmem:[#allocation2 + $0x3b8] sm:$0xff]
    %v168 = vld [vmem:[#allocation2 + $0x3c0] sm:$0xff]
    %v169 = vld [vmem:[#allocation2 + $0x3c8] sm:$0xff]
    %v170 = vld [vmem:[#allocation2 + $0x3d0] sm:$0xff]
    %v171 = vld [vmem:[#allocation2 + $0x3d8] sm:$0xff]
    %v172 = vld [vmem:[#allocation2 + $0x3e0] sm:$0xff]
    %v173 = vld [vmem:[#allocation2 + $0x3e8] sm:$0xff]
    %v174 = vld [vmem:[#allocation2 + $0x3f0] sm:$0xff]
    %v175 = vld [vmem:[#allocation2 + $0x3f8] sm:$0xff]
    %v176 = vld [vmem:[#allocation4] sm:$0xf]
    %v178 = vperm.slane %v176, 0
    %v179 = vperm.slane %v176, 1
    %v180 = vperm.slane %v176, 2
    %v181 = vperm.slane %v176, 3
    %v188 = vunpack.c.l.b16 %v46
    %v189 = vunpack.c.h.b16 %v46
    %v190 = vunpack.c.l.b16 %v47
    %v191 = vunpack.c.h.b16 %v47
    %v192 = vpack.c.b16 %v188, %v188
    %v193 = vpack.c.b16 %v189, %v189
    %v194 = vpack.c.b16 %v190, %v190
    %v195 = vpack.c.b16 %v191, %v191
    %v328 = vunpack.c.l.b16 %v48
    %v329 = vunpack.c.h.b16 %v48
    %v330 = vunpack.c.l.b16 %v49
    %v331 = vunpack.c.h.b16 %v49
    %v332 = vunpack.c.l.b16 %v50
    %v333 = vunpack.c.h.b16 %v50
    %v334 = vunpack.c.l.b16 %v51
    %v335 = vunpack.c.h.b16 %v51
    %v336 = vunpack.c.l.b16 %v52
    %v337 = vunpack.c.h.b16 %v52
    %v338 = vunpack.c.l.b16 %v53
    %v339 = vunpack.c.h.b16 %v53
    %v340 = vunpack.c.l.b16 %v54
    %v341 = vunpack.c.h.b16 %v54
    %v342 = vunpack.c.l.b16 %v55
    %v343 = vunpack.c.h.b16 %v55
    %v344 = vunpack.c.l.b16 %v56
    %v345 = vunpack.c.h.b16 %v56
    %v346 = vunpack.c.l.b16 %v57
    %v347 = vunpack.c.h.b16 %v57
    %v348 = vunpack.c.l.b16 %v58
    %v349 = vunpack.c.h.b16 %v58
    %v350 = vunpack.c.l.b16 %v59
    %v351 = vunpack.c.h.b16 %v59
    %v352 = vunpack.c.l.b16 %v60
    %v353 = vunpack.c.h.b16 %v60
    %v354 = vunpack.c.l.b16 %v61
    %v355 = vunpack.c.h.b16 %v61
    %v356 = vunpack.c.l.b16 %v62
    %v357 = vunpack.c.h.b16 %v62
    %v358 = vunpack.c.l.b16 %v63
    %v359 = vunpack.c.h.b16 %v63
    %v360 = vunpack.c.l.b16 %v64
    %v361 = vunpack.c.h.b16 %v64
    %v362 = vunpack.c.l.b16 %v65
    %v363 = vunpack.c.h.b16 %v65
    %v364 = vunpack.c.l.b16 %v66
    %v365 = vunpack.c.h.b16 %v66
    %v366 = vunpack.c.l.b16 %v67
    %v367 = vunpack.c.h.b16 %v67
    %v368 = vunpack.c.l.b16 %v68
    %v369 = vunpack.c.h.b16 %v68
    %v370 = vunpack.c.l.b16 %v69
    %v371 = vunpack.c.h.b16 %v69
    %v372 = vunpack.c.l.b16 %v70
    %v373 = vunpack.c.h.b16 %v70
    %v374 = vunpack.c.l.b16 %v71
    %v375 = vunpack.c.h.b16 %v71
    %v376 = vunpack.c.l.b16 %v72
    %v377 = vunpack.c.h.b16 %v72
    %v378 = vunpack.c.l.b16 %v73
    %v379 = vunpack.c.h.b16 %v73
    %v380 = vunpack.c.l.b16 %v74
    %v381 = vunpack.c.h.b16 %v74
    %v382 = vunpack.c.l.b16 %v75
    %v383 = vunpack.c.h.b16 %v75
    %v384 = vunpack.c.l.b16 %v76
    %v385 = vunpack.c.h.b16 %v76
    %v386 = vunpack.c.l.b16 %v77
    %v387 = vunpack.c.h.b16 %v77
    %v388 = vunpack.c.l.b16 %v78
    %v389 = vunpack.c.h.b16 %v78
    %v390 = vunpack.c.l.b16 %v79
    %v391 = vunpack.c.h.b16 %v79
    %v392 = vunpack.c.l.b16 %v80
    %v393 = vunpack.c.h.b16 %v80
    %v394 = vunpack.c.l.b16 %v81
    %v395 = vunpack.c.h.b16 %v81
    %v396 = vunpack.c.l.b16 %v82
    %v397 = vunpack.c.h.b16 %v82
    %v398 = vunpack.c.l.b16 %v83
    %v399 = vunpack.c.h.b16 %v83
    %v400 = vunpack.c.l.b16 %v84
    %v401 = vunpack.c.h.b16 %v84
    %v402 = vunpack.c.l.b16 %v85
    %v403 = vunpack.c.h.b16 %v85
    %v404 = vunpack.c.l.b16 %v86
    %v405 = vunpack.c.h.b16 %v86
    %v406 = vunpack.c.l.b16 %v87
    %v407 = vunpack.c.h.b16 %v87
    %v408 = vunpack.c.l.b16 %v88
    %v409 = vunpack.c.h.b16 %v88
    %v410 = vunpack.c.l.b16 %v89
    %v411 = vunpack.c.h.b16 %v89
    %v412 = vunpack.c.l.b16 %v90
    %v413 = vunpack.c.h.b16 %v90
    %v414 = vunpack.c.l.b16 %v91
    %v415 = vunpack.c.h.b16 %v91
    %v416 = vunpack.c.l.b16 %v92
    %v417 = vunpack.c.h.b16 %v92
    %v418 = vunpack.c.l.b16 %v93
    %v419 = vunpack.c.h.b16 %v93
    %v420 = vunpack.c.l.b16 %v94
    %v421 = vunpack.c.h.b16 %v94
    %v422 = vunpack.c.l.b16 %v95
    %v423 = vunpack.c.h.b16 %v95
    %v424 = vunpack.c.l.b16 %v96
    %v425 = vunpack.c.h.b16 %v96
    %v426 = vunpack.c.l.b16 %v97
    %v427 = vunpack.c.h.b16 %v97
    %v428 = vunpack.c.l.b16 %v98
    %v429 = vunpack.c.h.b16 %v98
    %v430 = vunpack.c.l.b16 %v99
    %v431 = vunpack.c.h.b16 %v99
    %v432 = vunpack.c.l.b16 %v100
    %v433 = vunpack.c.h.b16 %v100
    %v434 = vunpack.c.l.b16 %v101
    %v435 = vunpack.c.h.b16 %v101
    %v436 = vunpack.c.l.b16 %v102
    %v437 = vunpack.c.h.b16 %v102
    %v438 = vunpack.c.l.b16 %v103
    %v439 = vunpack.c.h.b16 %v103
    %v440 = vunpack.c.l.b16 %v104
    %v441 = vunpack.c.h.b16 %v104
    %v442 = vunpack.c.l.b16 %v105
    %v443 = vunpack.c.h.b16 %v105
    %v444 = vunpack.c.l.b16 %v106
    %v445 = vunpack.c.h.b16 %v106
    %v446 = vunpack.c.l.b16 %v107
    %v447 = vunpack.c.h.b16 %v107
    %v448 = vunpack.c.l.b16 %v108
    %v449 = vunpack.c.h.b16 %v108
    %v450 = vunpack.c.l.b16 %v109
    %v451 = vunpack.c.h.b16 %v109
    %v452 = vunpack.c.l.b16 %v110
    %v453 = vunpack.c.h.b16 %v110
    %v454 = vunpack.c.l.b16 %v111
    %v455 = vunpack.c.h.b16 %v111
    %v456 = vunpack.c.l.b16 %v112
    %v457 = vunpack.c.h.b16 %v112
    %v458 = vunpack.c.l.b16 %v113
    %v459 = vunpack.c.h.b16 %v113
    %v460 = vunpack.c.l.b16 %v114
    %v461 = vunpack.c.h.b16 %v114
    %v462 = vunpack.c.l.b16 %v115
    %v463 = vunpack.c.h.b16 %v115
    %v464 = vunpack.c.l.b16 %v116
    %v465 = vunpack.c.h.b16 %v116
    %v466 = vunpack.c.l.b16 %v117
    %v467 = vunpack.c.h.b16 %v117
    %v468 = vunpack.c.l.b16 %v118
    %v469 = vunpack.c.h.b16 %v118
    %v470 = vunpack.c.l.b16 %v119
    %v471 = vunpack.c.h.b16 %v119
    %v472 = vunpack.c.l.b16 %v120
    %v473 = vunpack.c.h.b16 %v120
    %v474 = vunpack.c.l.b16 %v121
    %v475 = vunpack.c.h.b16 %v121
    %v476 = vunpack.c.l.b16 %v122
    %v477 = vunpack.c.h.b16 %v122
    %v478 = vunpack.c.l.b16 %v123
    %v479 = vunpack.c.h.b16 %v123
    %v480 = vunpack.c.l.b16 %v124
    %v481 = vunpack.c.h.b16 %v124
    %v482 = vunpack.c.l.b16 %v125
    %v483 = vunpack.c.h.b16 %v125
    %v484 = vunpack.c.l.b16 %v126
    %v485 = vunpack.c.h.b16 %v126
    %v486 = vunpack.c.l.b16 %v127
    %v487 = vunpack.c.h.b16 %v127
    %v488 = vunpack.c.l.b16 %v128
    %v489 = vunpack.c.h.b16 %v128
    %v490 = vunpack.c.l.b16 %v129
    %v491 = vunpack.c.h.b16 %v129
    %v492 = vunpack.c.l.b16 %v130
    %v493 = vunpack.c.h.b16 %v130
    %v494 = vunpack.c.l.b16 %v131
    %v495 = vunpack.c.h.b16 %v131
    %v496 = vunpack.c.l.b16 %v132
    %v497 = vunpack.c.h.b16 %v132
    %v498 = vunpack.c.l.b16 %v133
    %v499 = vunpack.c.h.b16 %v133
    %v500 = vunpack.c.l.b16 %v134
    %v501 = vunpack.c.h.b16 %v134
    %v502 = vunpack.c.l.b16 %v135
    %v503 = vunpack.c.h.b16 %v135
    %v504 = vunpack.c.l.b16 %v136
    %v505 = vunpack.c.h.b16 %v136
    %v506 = vunpack.c.l.b16 %v137
    %v507 = vunpack.c.h.b16 %v137
    %v508 = vunpack.c.l.b16 %v138
    %v509 = vunpack.c.h.b16 %v138
    %v510 = vunpack.c.l.b16 %v139
    %v511 = vunpack.c.h.b16 %v139
    %v512 = vunpack.c.l.b16 %v140
    %v513 = vunpack.c.h.b16 %v140
    %v514 = vunpack.c.l.b16 %v141
    %v515 = vunpack.c.h.b16 %v141
    %v516 = vunpack.c.l.b16 %v142
    %v517 = vunpack.c.h.b16 %v142
    %v518 = vunpack.c.l.b16 %v143
    %v519 = vunpack.c.h.b16 %v143
    %v520 = vunpack.c.l.b16 %v144
    %v521 = vunpack.c.h.b16 %v144
    %v522 = vunpack.c.l.b16 %v145
    %v523 = vunpack.c.h.b16 %v145
    %v524 = vunpack.c.l.b16 %v146
    %v525 = vunpack.c.h.b16 %v146
    %v526 = vunpack.c.l.b16 %v147
    %v527 = vunpack.c.h.b16 %v147
    %v528 = vunpack.c.l.b16 %v148
    %v529 = vunpack.c.h.b16 %v148
    %v530 = vunpack.c.l.b16 %v149
    %v531 = vunpack.c.h.b16 %v149
    %v532 = vunpack.c.l.b16 %v150
    %v533 = vunpack.c.h.b16 %v150
    %v534 = vunpack.c.l.b16 %v151
    %v535 = vunpack.c.h.b16 %v151
    %v536 = vunpack.c.l.b16 %v152
    %v537 = vunpack.c.h.b16 %v152
    %v538 = vunpack.c.l.b16 %v153
    %v539 = vunpack.c.h.b16 %v153
    %v540 = vunpack.c.l.b16 %v154
    %v541 = vunpack.c.h.b16 %v154
    %v542 = vunpack.c.l.b16 %v155
    %v543 = vunpack.c.h.b16 %v155
    %v544 = vunpack.c.l.b16 %v156
    %v545 = vunpack.c.h.b16 %v156
    %v546 = vunpack.c.l.b16 %v157
    %v547 = vunpack.c.h.b16 %v157
    %v548 = vunpack.c.l.b16 %v158
    %v549 = vunpack.c.h.b16 %v158
    %v550 = vunpack.c.l.b16 %v159
    %v551 = vunpack.c.h.b16 %v159
    %v552 = vunpack.c.l.b16 %v160
    %v553 = vunpack.c.h.b16 %v160
    %v554 = vunpack.c.l.b16 %v161
    %v555 = vunpack.c.h.b16 %v161
    %v556 = vunpack.c.l.b16 %v162
    %v557 = vunpack.c.h.b16 %v162
    %v558 = vunpack.c.l.b16 %v163
    %v559 = vunpack.c.h.b16 %v163
    %v560 = vunpack.c.l.b16 %v164
    %v561 = vunpack.c.h.b16 %v164
    %v562 = vunpack.c.l.b16 %v165
    %v563 = vunpack.c.h.b16 %v165
    %v564 = vunpack.c.l.b16 %v166
    %v565 = vunpack.c.h.b16 %v166
    %v566 = vunpack.c.l.b16 %v167
    %v567 = vunpack.c.h.b16 %v167
    %v568 = vunpack.c.l.b16 %v168
    %v569 = vunpack.c.h.b16 %v168
    %v570 = vunpack.c.l.b16 %v169
    %v571 = vunpack.c.h.b16 %v169
    %v572 = vunpack.c.l.b16 %v170
    %v573 = vunpack.c.h.b16 %v170
    %v574 = vunpack.c.l.b16 %v171
    %v575 = vunpack.c.h.b16 %v171
    %v576 = vunpack.c.l.b16 %v172
    %v577 = vunpack.c.h.b16 %v172
    %v578 = vunpack.c.l.b16 %v173
    %v579 = vunpack.c.h.b16 %v173
    %v580 = vunpack.c.l.b16 %v174
    %v581 = vunpack.c.h.b16 %v174
    %v582 = vunpack.c.l.b16 %v175
    %v583 = vunpack.c.h.b16 %v175
    %v584 = vpack.c.b16 %v332, %v328
    %v585 = vpack.c.b16 %v333, %v329
    %v586 = vpack.c.b16 %v334, %v330
    %v587 = vpack.c.b16 %v335, %v331
    %v588 = vpack.c.b16 %v340, %v336
    %v589 = vpack.c.b16 %v341, %v337
    %v590 = vpack.c.b16 %v342, %v338
    %v591 = vpack.c.b16 %v343, %v339
    %v592 = vpack.c.b16 %v348, %v344
    %v593 = vpack.c.b16 %v349, %v345
    %v594 = vpack.c.b16 %v350, %v346
    %v595 = vpack.c.b16 %v351, %v347
    %v596 = vpack.c.b16 %v356, %v352
    %v597 = vpack.c.b16 %v357, %v353
    %v598 = vpack.c.b16 %v358, %v354
    %v599 = vpack.c.b16 %v359, %v355
    %v600 = vpack.c.b16 %v364, %v360
    %v601 = vpack.c.b16 %v365, %v361
    %v602 = vpack.c.b16 %v366, %v362
    %v603 = vpack.c.b16 %v367, %v363
    %v604 = vpack.c.b16 %v372, %v368
    %v605 = vpack.c.b16 %v373, %v369
    %v606 = vpack.c.b16 %v374, %v370
    %v607 = vpack.c.b16 %v375, %v371
    %v608 = vpack.c.b16 %v380, %v376
    %v609 = vpack.c.b16 %v381, %v377
    %v610 = vpack.c.b16 %v382, %v378
    %v611 = vpack.c.b16 %v383, %v379
    %v612 = vpack.c.b16 %v388, %v384
    %v613 = vpack.c.b16 %v389, %v385
    %v614 = vpack.c.b16 %v390, %v386
    %v615 = vpack.c.b16 %v391, %v387
    %v616 = vpack.c.b16 %v396, %v392
    %v617 = vpack.c.b16 %v397, %v393
    %v618 = vpack.c.b16 %v398, %v394
    %v619 = vpack.c.b16 %v399, %v395
    %v620 = vpack.c.b16 %v404, %v400
    %v621 = vpack.c.b16 %v405, %v401
    %v622 = vpack.c.b16 %v406, %v402
    %v623 = vpack.c.b16 %v407, %v403
    %v624 = vpack.c.b16 %v412, %v408
    %v625 = vpack.c.b16 %v413, %v409
    %v626 = vpack.c.b16 %v414, %v410
    %v627 = vpack.c.b16 %v415, %v411
    %v628 = vpack.c.b16 %v420, %v416
    %v629 = vpack.c.b16 %v421, %v417
    %v630 = vpack.c.b16 %v422, %v418
    %v631 = vpack.c.b16 %v423, %v419
    %v632 = vpack.c.b16 %v428, %v424
    %v633 = vpack.c.b16 %v429, %v425
    %v634 = vpack.c.b16 %v430, %v426
    %v635 = vpack.c.b16 %v431, %v427
    %v636 = vpack.c.b16 %v436, %v432
    %v637 = vpack.c.b16 %v437, %v433
    %v638 = vpack.c.b16 %v438, %v434
    %v639 = vpack.c.b16 %v439, %v435
    %v640 = vpack.c.b16 %v444, %v440
    %v641 = vpack.c.b16 %v445, %v441
    %v642 = vpack.c.b16 %v446, %v442
    %v643 = vpack.c.b16 %v447, %v443
    %v644 = vpack.c.b16 %v452, %v448
    %v645 = vpack.c.b16 %v453, %v449
    %v646 = vpack.c.b16 %v454, %v450
    %v647 = vpack.c.b16 %v455, %v451
    %v648 = vpack.c.b16 %v460, %v456
    %v649 = vpack.c.b16 %v461, %v457
    %v650 = vpack.c.b16 %v462, %v458
    %v651 = vpack.c.b16 %v463, %v459
    %v652 = vpack.c.b16 %v468, %v464
    %v653 = vpack.c.b16 %v469, %v465
    %v654 = vpack.c.b16 %v470, %v466
    %v655 = vpack.c.b16 %v471, %v467
    %v656 = vpack.c.b16 %v476, %v472
    %v657 = vpack.c.b16 %v477, %v473
    %v658 = vpack.c.b16 %v478, %v474
    %v659 = vpack.c.b16 %v479, %v475
    %v660 = vpack.c.b16 %v484, %v480
    %v661 = vpack.c.b16 %v485, %v481
    %v662 = vpack.c.b16 %v486, %v482
    %v663 = vpack.c.b16 %v487, %v483
    %v664 = vpack.c.b16 %v492, %v488
    %v665 = vpack.c.b16 %v493, %v489
    %v666 = vpack.c.b16 %v494, %v490
    %v667 = vpack.c.b16 %v495, %v491
    %v668 = vpack.c.b16 %v500, %v496
    %v669 = vpack.c.b16 %v501, %v497
    %v670 = vpack.c.b16 %v502, %v498
    %v671 = vpack.c.b16 %v503, %v499
    %v672 = vpack.c.b16 %v508, %v504
    %v673 = vpack.c.b16 %v509, %v505
    %v674 = vpack.c.b16 %v510, %v506
    %v675 = vpack.c.b16 %v511, %v507
    %v676 = vpack.c.b16 %v516, %v512
    %v677 = vpack.c.b16 %v517, %v513
    %v678 = vpack.c.b16 %v518, %v514
    %v679 = vpack.c.b16 %v519, %v515
    %v680 = vpack.c.b16 %v524, %v520
    %v681 = vpack.c.b16 %v525, %v521
    %v682 = vpack.c.b16 %v526, %v522
    %v683 = vpack.c.b16 %v527, %v523
    %v684 = vpack.c.b16 %v532, %v528
    %v685 = vpack.c.b16 %v533, %v529
    %v686 = vpack.c.b16 %v534, %v530
    %v687 = vpack.c.b16 %v535, %v531
    %v688 = vpack.c.b16 %v540, %v536
    %v689 = vpack.c.b16 %v541, %v537
    %v690 = vpack.c.b16 %v542, %v538
    %v691 = vpack.c.b16 %v543, %v539
    %v692 = vpack.c.b16 %v548, %v544
    %v693 = vpack.c.b16 %v549, %v545
    %v694 = vpack.c.b16 %v550, %v546
    %v695 = vpack.c.b16 %v551, %v547
    %v696 = vpack.c.b16 %v556, %v552
    %v697 = vpack.c.b16 %v557, %v553
    %v698 = vpack.c.b16 %v558, %v554
    %v699 = vpack.c.b16 %v559, %v555
    %v700 = vpack.c.b16 %v564, %v560
    %v701 = vpack.c.b16 %v565, %v561
    %v702 = vpack.c.b16 %v566, %v562
    %v703 = vpack.c.b16 %v567, %v563
    %v704 = vpack.c.b16 %v572, %v568
    %v705 = vpack.c.b16 %v573, %v569
    %v706 = vpack.c.b16 %v574, %v570
    %v707 = vpack.c.b16 %v575, %v571
    %v708 = vpack.c.b16 %v580, %v576
    %v709 = vpack.c.b16 %v581, %v577
    %v710 = vpack.c.b16 %v582, %v578
    %v711 = vpack.c.b16 %v583, %v579
    %840 = vmatpush.bf16.msra.mxu0 %v612
    %841 = vmatpush.bf16.msra.mxu0 %v608
    %842 = vmatpush.bf16.msra.mxu0 %v604
    %843 = vmatpush.bf16.msra.mxu0 %v600
    %844 = vmatpush.bf16.msra.mxu0 %v596
    %845 = vmatpush.bf16.msra.mxu0 %v592
    %846 = vmatpush.bf16.msra.mxu0 %v588
    %847 = vmatpush.bf16.msra.mxu0 %v584
    %848 = vmatmul.bf16.gmra.mxu0 %v192
    %v849 = vpop.f32.mrf.mxu0
    %v850 = vadd.f32 %v178, %v849
    %v851 = vpop.f32.mrf.mxu0
    %852 = vdwg.mxu0
    %853 = vmatpush.bf16.msra.mxu0 %v644
    %854 = vmatpush.bf16.msra.mxu0 %v640
    %855 = vmatpush.bf16.msra.mxu0 %v636
    %856 = vmatpush.bf16.msra.mxu0 %v632
    %857 = vmatpush.bf16.msra.mxu0 %v628
    %858 = vmatpush.bf16.msra.mxu0 %v624
    %859 = vmatpush.bf16.msra.mxu0 %v620
    %860 = vmatpush.bf16.msra.mxu0 %v616
    %861 = vmatmul.bf16.gmra.mxu0 %v193
    %v862 = vpop.f32.mrf.mxu0
    %v863 = vadd.f32 %v850, %v862
    %v864 = vpop.f32.mrf.mxu0
    %865 = vdwg.mxu0
    %866 = vmatpush.bf16.msra.mxu0 %v676
    %867 = vmatpush.bf16.msra.mxu0 %v672
    %868 = vmatpush.bf16.msra.mxu0 %v668
    %869 = vmatpush.bf16.msra.mxu0 %v664
    %870 = vmatpush.bf16.msra.mxu0 %v660
    %871 = vmatpush.bf16.msra.mxu0 %v656
    %872 = vmatpush.bf16.msra.mxu0 %v652
    %873 = vmatpush.bf16.msra.mxu0 %v648
    %874 = vmatmul.bf16.gmra.mxu0 %v194
    %v875 = vpop.f32.mrf.mxu0
    %v876 = vadd.f32 %v863, %v875
    %v877 = vpop.f32.mrf.mxu0
    %878 = vdwg.mxu0
    %879 = vmatpush.bf16.msra.mxu0 %v708
    %880 = vmatpush.bf16.msra.mxu0 %v704
    %881 = vmatpush.bf16.msra.mxu0 %v700
    %882 = vmatpush.bf16.msra.mxu0 %v696
    %883 = vmatpush.bf16.msra.mxu0 %v692
    %884 = vmatpush.bf16.msra.mxu0 %v688
    %885 = vmatpush.bf16.msra.mxu0 %v684
    %886 = vmatpush.bf16.msra.mxu0 %v680
    %887 = vmatmul.bf16.gmra.mxu0 %v195
    %v888 = vpop.f32.mrf.mxu0
    %v889 = vadd.f32 %v876, %v888
    %v890 = vpop.f32.mrf.mxu0
    %891 = vdwg.mxu0
    %892 = vmatpush.bf16.msra.mxu0 %v613
    %893 = vmatpush.bf16.msra.mxu0 %v609
    %894 = vmatpush.bf16.msra.mxu0 %v605
    %895 = vmatpush.bf16.msra.mxu0 %v601
    %896 = vmatpush.bf16.msra.mxu0 %v597
    %897 = vmatpush.bf16.msra.mxu0 %v593
    %898 = vmatpush.bf16.msra.mxu0 %v589
    %899 = vmatpush.bf16.msra.mxu0 %v585
    %900 = vmatmul.bf16.gmra.mxu0 %v192
    %v901 = vpop.f32.mrf.mxu0
    %v902 = vadd.f32 %v179, %v901
    %v903 = vpop.f32.mrf.mxu0
    %904 = vdwg.mxu0
    %905 = vmatpush.bf16.msra.mxu0 %v645
    %906 = vmatpush.bf16.msra.mxu0 %v641
    %907 = vmatpush.bf16.msra.mxu0 %v637
    %908 = vmatpush.bf16.msra.mxu0 %v633
    %909 = vmatpush.bf16.msra.mxu0 %v629
    %910 = vmatpush.bf16.msra.mxu0 %v625
    %911 = vmatpush.bf16.msra.mxu0 %v621
    %912 = vmatpush.bf16.msra.mxu0 %v617
    %913 = vmatmul.bf16.gmra.mxu0 %v193
    %v914 = vpop.f32.mrf.mxu0
    %v915 = vadd.f32 %v902, %v914
    %v916 = vpop.f32.mrf.mxu0
    %917 = vdwg.mxu0
    %918 = vmatpush.bf16.msra.mxu0 %v677
    %919 = vmatpush.bf16.msra.mxu0 %v673
    %920 = vmatpush.bf16.msra.mxu0 %v669
    %921 = vmatpush.bf16.msra.mxu0 %v665
    %922 = vmatpush.bf16.msra.mxu0 %v661
    %923 = vmatpush.bf16.msra.mxu0 %v657
    %924 = vmatpush.bf16.msra.mxu0 %v653
    %925 = vmatpush.bf16.msra.mxu0 %v649
    %926 = vmatmul.bf16.gmra.mxu0 %v194
    %v927 = vpop.f32.mrf.mxu0
    %v928 = vadd.f32 %v915, %v927
    %v929 = vpop.f32.mrf.mxu0
    %930 = vdwg.mxu0
    %931 = vmatpush.bf16.msra.mxu0 %v709
    %932 = vmatpush.bf16.msra.mxu0 %v705
    %933 = vmatpush.bf16.msra.mxu0 %v701
    %934 = vmatpush.bf16.msra.mxu0 %v697
    %935 = vmatpush.bf16.msra.mxu0 %v693
    %936 = vmatpush.bf16.msra.mxu0 %v689
    %937 = vmatpush.bf16.msra.mxu0 %v685
    %938 = vmatpush.bf16.msra.mxu0 %v681
    %939 = vmatmul.bf16.gmra.mxu0 %v195
    %v940 = vpop.f32.mrf.mxu0
    %v941 = vadd.f32 %v928, %v940
    %v942 = vpop.f32.mrf.mxu0
    %943 = vdwg.mxu0
    %944 = vmatpush.bf16.msra.mxu0 %v614
    %945 = vmatpush.bf16.msra.mxu0 %v610
    %946 = vmatpush.bf16.msra.mxu0 %v606
    %947 = vmatpush.bf16.msra.mxu0 %v602
    %948 = vmatpush.bf16.msra.mxu0 %v598
    %949 = vmatpush.bf16.msra.mxu0 %v594
    %950 = vmatpush.bf16.msra.mxu0 %v590
    %951 = vmatpush.bf16.msra.mxu0 %v586
    %952 = vmatmul.bf16.gmra.mxu0 %v192
    %v953 = vpop.f32.mrf.mxu0
    %v954 = vadd.f32 %v180, %v953
    %v955 = vpop.f32.mrf.mxu0
    %956 = vdwg.mxu0
    %957 = vmatpush.bf16.msra.mxu0 %v646
    %958 = vmatpush.bf16.msra.mxu0 %v642
    %959 = vmatpush.bf16.msra.mxu0 %v638
    %960 = vmatpush.bf16.msra.mxu0 %v634
    %961 = vmatpush.bf16.msra.mxu0 %v630
    %962 = vmatpush.bf16.msra.mxu0 %v626
    %963 = vmatpush.bf16.msra.mxu0 %v622
    %964 = vmatpush.bf16.msra.mxu0 %v618
    %965 = vmatmul.bf16.gmra.mxu0 %v193
    %v966 = vpop.f32.mrf.mxu0
    %v967 = vadd.f32 %v954, %v966
    %v968 = vpop.f32.mrf.mxu0
    %969 = vdwg.mxu0
    %970 = vmatpush.bf16.msra.mxu0 %v678
    %971 = vmatpush.bf16.msra.mxu0 %v674
    %972 = vmatpush.bf16.msra.mxu0 %v670
    %973 = vmatpush.bf16.msra.mxu0 %v666
    %974 = vmatpush.bf16.msra.mxu0 %v662
    %975 = vmatpush.bf16.msra.mxu0 %v658
    %976 = vmatpush.bf16.msra.mxu0 %v654
    %977 = vmatpush.bf16.msra.mxu0 %v650
    %978 = vmatmul.bf16.gmra.mxu0 %v194
    %v979 = vpop.f32.mrf.mxu0
    %v980 = vadd.f32 %v967, %v979
    %v981 = vpop.f32.mrf.mxu0
    %982 = vdwg.mxu0
    %983 = vmatpush.bf16.msra.mxu0 %v710
    %984 = vmatpush.bf16.msra.mxu0 %v706
    %985 = vmatpush.bf16.msra.mxu0 %v702
    %986 = vmatpush.bf16.msra.mxu0 %v698
    %987 = vmatpush.bf16.msra.mxu0 %v694
    %988 = vmatpush.bf16.msra.mxu0 %v690
    %989 = vmatpush.bf16.msra.mxu0 %v686
    %990 = vmatpush.bf16.msra.mxu0 %v682
    %991 = vmatmul.bf16.gmra.mxu0 %v195
    %v992 = vpop.f32.mrf.mxu0
    %v993 = vadd.f32 %v980, %v992
    %v994 = vpop.f32.mrf.mxu0
    %995 = vdwg.mxu0
    %996 = vmatpush.bf16.msra.mxu0 %v615
    %997 = vmatpush.bf16.msra.mxu0 %v611
    %998 = vmatpush.bf16.msra.mxu0 %v607
    %999 = vmatpush.bf16.msra.mxu0 %v603
    %1000 = vmatpush.bf16.msra.mxu0 %v599
    %1001 = vmatpush.bf16.msra.mxu0 %v595
    %1002 = vmatpush.bf16.msra.mxu0 %v591
    %1003 = vmatpush.bf16.msra.mxu0 %v587
    %1004 = vmatmul.bf16.gmra.mxu0 %v192
    %v1005 = vpop.f32.mrf.mxu0
    %v1006 = vadd.f32 %v181, %v1005
    %v1007 = vpop.f32.mrf.mxu0
    %1008 = vdwg.mxu0
    %1009 = vmatpush.bf16.msra.mxu0 %v647
    %1010 = vmatpush.bf16.msra.mxu0 %v643
    %1011 = vmatpush.bf16.msra.mxu0 %v639
    %1012 = vmatpush.bf16.msra.mxu0 %v635
    %1013 = vmatpush.bf16.msra.mxu0 %v631
    %1014 = vmatpush.bf16.msra.mxu0 %v627
    %1015 = vmatpush.bf16.msra.mxu0 %v623
    %1016 = vmatpush.bf16.msra.mxu0 %v619
    %1017 = vmatmul.bf16.gmra.mxu0 %v193
    %v1018 = vpop.f32.mrf.mxu0
    %v1019 = vadd.f32 %v1006, %v1018
    %v1020 = vpop.f32.mrf.mxu0
    %1021 = vdwg.mxu0
    %1022 = vmatpush.bf16.msra.mxu0 %v679
    %1023 = vmatpush.bf16.msra.mxu0 %v675
    %1024 = vmatpush.bf16.msra.mxu0 %v671
    %1025 = vmatpush.bf16.msra.mxu0 %v667
    %1026 = vmatpush.bf16.msra.mxu0 %v663
    %1027 = vmatpush.bf16.msra.mxu0 %v659
    %1028 = vmatpush.bf16.msra.mxu0 %v655
    %1029 = vmatpush.bf16.msra.mxu0 %v651
    %1030 = vmatmul.bf16.gmra.mxu0 %v194
    %v1031 = vpop.f32.mrf.mxu0
    %v1032 = vadd.f32 %v1019, %v1031
    %v1033 = vpop.f32.mrf.mxu0
    %1034 = vdwg.mxu0
    %1035 = vmatpush.bf16.msra.mxu0 %v711
    %1036 = vmatpush.bf16.msra.mxu0 %v707
    %1037 = vmatpush.bf16.msra.mxu0 %v703
    %1038 = vmatpush.bf16.msra.mxu0 %v699
    %1039 = vmatpush.bf16.msra.mxu0 %v695
    %1040 = vmatpush.bf16.msra.mxu0 %v691
    %1041 = vmatpush.bf16.msra.mxu0 %v687
    %1042 = vmatpush.bf16.msra.mxu0 %v683
    %1043 = vmatmul.bf16.gmra.mxu0 %v195
    %v1044 = vpop.f32.mrf.mxu0
    %v1045 = vadd.f32 %v1032, %v1044
    %v1046 = vpop.f32.mrf.mxu0
    %1047 = vdwg.mxu0
    %v1048 = vmul.f32 %v889, 0.2
    %v1049 = vmul.f32 %v941, 0.2
    %v1050 = vmul.f32 %v993, 0.2
    %v1051 = vmul.f32 %v1045, 0.2
    %v1052 = vmax.f32 %v889, %v1048
    %v1053 = vmax.f32 %v941, %v1049
    %v1054 = vmax.f32 %v993, %v1050
    %v1055 = vmax.f32 %v1045, %v1051
    %v1056 = vpack.c.bf16 %v1052, %v1052
    %v1057 = vpack.c.bf16 %v1053, %v1053
    %v1058 = vpack.c.bf16 %v1054, %v1054
    %v1059 = vpack.c.bf16 %v1055, %v1055
    %s1060 = scalar_lea.vmem [#allocation2], 1024
    %v1061 = vld [vmem:[%s1060] sm:$0xff]
    %v1062 = vld [vmem:[%s1060 + $0x8] sm:$0xff]
    %v1063 = vld [vmem:[%s1060 + $0x10] sm:$0xff]
    %v1064 = vld [vmem:[%s1060 + $0x18] sm:$0xff]
    %v1065 = vld [vmem:[%s1060 + $0x20] sm:$0xff]
    %v1066 = vld [vmem:[%s1060 + $0x28] sm:$0xff]
    %v1067 = vld [vmem:[%s1060 + $0x30] sm:$0xff]
    %v1068 = vld [vmem:[%s1060 + $0x38] sm:$0xff]
    %v1069 = vld [vmem:[%s1060 + $0x40] sm:$0xff]
    %v1070 = vld [vmem:[%s1060 + $0x48] sm:$0xff]
    %v1071 = vld [vmem:[%s1060 + $0x50] sm:$0xff]
    %v1072 = vld [vmem:[%s1060 + $0x58] sm:$0xff]
    %v1073 = vld [vmem:[%s1060 + $0x60] sm:$0xff]
    %v1074 = vld [vmem:[%s1060 + $0x68] sm:$0xff]
    %v1075 = vld [vmem:[%s1060 + $0x70] sm:$0xff]
    %v1076 = vld [vmem:[%s1060 + $0x78] sm:$0xff]
    %v1077 = vld [vmem:[%s1060 + $0x80] sm:$0xff]
    %v1078 = vld [vmem:[%s1060 + $0x88] sm:$0xff]
    %v1079 = vld [vmem:[%s1060 + $0x90] sm:$0xff]
    %v1080 = vld [vmem:[%s1060 + $0x98] sm:$0xff]
    %v1081 = vld [vmem:[%s1060 + $0xa0] sm:$0xff]
    %v1082 = vld [vmem:[%s1060 + $0xa8] sm:$0xff]
    %v1083 = vld [vmem:[%s1060 + $0xb0] sm:$0xff]
    %v1084 = vld [vmem:[%s1060 + $0xb8] sm:$0xff]
    %v1085 = vld [vmem:[%s1060 + $0xc0] sm:$0xff]
    %v1086 = vld [vmem:[%s1060 + $0xc8] sm:$0xff]
    %v1087 = vld [vmem:[%s1060 + $0xd0] sm:$0xff]
    %v1088 = vld [vmem:[%s1060 + $0xd8] sm:$0xff]
    %v1089 = vld [vmem:[%s1060 + $0xe0] sm:$0xff]
    %v1090 = vld [vmem:[%s1060 + $0xe8] sm:$0xff]
    %v1091 = vld [vmem:[%s1060 + $0xf0] sm:$0xff]
    %v1092 = vld [vmem:[%s1060 + $0xf8] sm:$0xff]
    %v1093 = vld [vmem:[%s1060 + $0x100] sm:$0xff]
    %v1094 = vld [vmem:[%s1060 + $0x108] sm:$0xff]
    %v1095 = vld [vmem:[%s1060 + $0x110] sm:$0xff]
    %v1096 = vld [vmem:[%s1060 + $0x118] sm:$0xff]
    %v1097 = vld [vmem:[%s1060 + $0x120] sm:$0xff]
    %v1098 = vld [vmem:[%s1060 + $0x128] sm:$0xff]
    %v1099 = vld [vmem:[%s1060 + $0x130] sm:$0xff]
    %v1100 = vld [vmem:[%s1060 + $0x138] sm:$0xff]
    %v1101 = vld [vmem:[%s1060 + $0x140] sm:$0xff]
    %v1102 = vld [vmem:[%s1060 + $0x148] sm:$0xff]
    %v1103 = vld [vmem:[%s1060 + $0x150] sm:$0xff]
    %v1104 = vld [vmem:[%s1060 + $0x158] sm:$0xff]
    %v1105 = vld [vmem:[%s1060 + $0x160] sm:$0xff]
    %v1106 = vld [vmem:[%s1060 + $0x168] sm:$0xff]
    %v1107 = vld [vmem:[%s1060 + $0x170] sm:$0xff]
    %v1108 = vld [vmem:[%s1060 + $0x178] sm:$0xff]
    %v1109 = vld [vmem:[%s1060 + $0x180] sm:$0xff]
    %v1110 = vld [vmem:[%s1060 + $0x188] sm:$0xff]
    %v1111 = vld [vmem:[%s1060 + $0x190] sm:$0xff]
    %v1112 = vld [vmem:[%s1060 + $0x198] sm:$0xff]
    %v1113 = vld [vmem:[%s1060 + $0x1a0] sm:$0xff]
    %v1114 = vld [vmem:[%s1060 + $0x1a8] sm:$0xff]
    %v1115 = vld [vmem:[%s1060 + $0x1b0] sm:$0xff]
    %v1116 = vld [vmem:[%s1060 + $0x1b8] sm:$0xff]
    %v1117 = vld [vmem:[%s1060 + $0x1c0] sm:$0xff]
    %v1118 = vld [vmem:[%s1060 + $0x1c8] sm:$0xff]
    %v1119 = vld [vmem:[%s1060 + $0x1d0] sm:$0xff]
    %v1120 = vld [vmem:[%s1060 + $0x1d8] sm:$0xff]
    %v1121 = vld [vmem:[%s1060 + $0x1e0] sm:$0xff]
    %v1122 = vld [vmem:[%s1060 + $0x1e8] sm:$0xff]
    %v1123 = vld [vmem:[%s1060 + $0x1f0] sm:$0xff]
    %v1124 = vld [vmem:[%s1060 + $0x1f8] sm:$0xff]
    %v1125 = vld [vmem:[%s1060 + $0x200] sm:$0xff]
    %v1126 = vld [vmem:[%s1060 + $0x208] sm:$0xff]
    %v1127 = vld [vmem:[%s1060 + $0x210] sm:$0xff]
    %v1128 = vld [vmem:[%s1060 + $0x218] sm:$0xff]
    %v1129 = vld [vmem:[%s1060 + $0x220] sm:$0xff]
    %v1130 = vld [vmem:[%s1060 + $0x228] sm:$0xff]
    %v1131 = vld [vmem:[%s1060 + $0x230] sm:$0xff]
    %v1132 = vld [vmem:[%s1060 + $0x238] sm:$0xff]
    %v1133 = vld [vmem:[%s1060 + $0x240] sm:$0xff]
    %v1134 = vld [vmem:[%s1060 + $0x248] sm:$0xff]
    %v1135 = vld [vmem:[%s1060 + $0x250] sm:$0xff]
    %v1136 = vld [vmem:[%s1060 + $0x258] sm:$0xff]
    %v1137 = vld [vmem:[%s1060 + $0x260] sm:$0xff]
    %v1138 = vld [vmem:[%s1060 + $0x268] sm:$0xff]
    %v1139 = vld [vmem:[%s1060 + $0x270] sm:$0xff]
    %v1140 = vld [vmem:[%s1060 + $0x278] sm:$0xff]
    %v1141 = vld [vmem:[%s1060 + $0x280] sm:$0xff]
    %v1142 = vld [vmem:[%s1060 + $0x288] sm:$0xff]
    %v1143 = vld [vmem:[%s1060 + $0x290] sm:$0xff]
    %v1144 = vld [vmem:[%s1060 + $0x298] sm:$0xff]
    %v1145 = vld [vmem:[%s1060 + $0x2a0] sm:$0xff]
    %v1146 = vld [vmem:[%s1060 + $0x2a8] sm:$0xff]
    %v1147 = vld [vmem:[%s1060 + $0x2b0] sm:$0xff]
    %v1148 = vld [vmem:[%s1060 + $0x2b8] sm:$0xff]
    %v1149 = vld [vmem:[%s1060 + $0x2c0] sm:$0xff]
    %v1150 = vld [vmem:[%s1060 + $0x2c8] sm:$0xff]
    %v1151 = vld [vmem:[%s1060 + $0x2d0] sm:$0xff]
    %v1152 = vld [vmem:[%s1060 + $0x2d8] sm:$0xff]
    %v1153 = vld [vmem:[%s1060 + $0x2e0] sm:$0xff]
    %v1154 = vld [vmem:[%s1060 + $0x2e8] sm:$0xff]
    %v1155 = vld [vmem:[%s1060 + $0x2f0] sm:$0xff]
    %v1156 = vld [vmem:[%s1060 + $0x2f8] sm:$0xff]
    %v1157 = vld [vmem:[%s1060 + $0x300] sm:$0xff]
    %v1158 = vld [vmem:[%s1060 + $0x308] sm:$0xff]
    %v1159 = vld [vmem:[%s1060 + $0x310] sm:$0xff]
    %v1160 = vld [vmem:[%s1060 + $0x318] sm:$0xff]
    %v1161 = vld [vmem:[%s1060 + $0x320] sm:$0xff]
    %v1162 = vld [vmem:[%s1060 + $0x328] sm:$0xff]
    %v1163 = vld [vmem:[%s1060 + $0x330] sm:$0xff]
    %v1164 = vld [vmem:[%s1060 + $0x338] sm:$0xff]
    %v1165 = vld [vmem:[%s1060 + $0x340] sm:$0xff]
    %v1166 = vld [vmem:[%s1060 + $0x348] sm:$0xff]
    %v1167 = vld [vmem:[%s1060 + $0x350] sm:$0xff]
    %v1168 = vld [vmem:[%s1060 + $0x358] sm:$0xff]
    %v1169 = vld [vmem:[%s1060 + $0x360] sm:$0xff]
    %v1170 = vld [vmem:[%s1060 + $0x368] sm:$0xff]
    %v1171 = vld [vmem:[%s1060 + $0x370] sm:$0xff]
    %v1172 = vld [vmem:[%s1060 + $0x378] sm:$0xff]
    %v1173 = vld [vmem:[%s1060 + $0x380] sm:$0xff]
    %v1174 = vld [vmem:[%s1060 + $0x388] sm:$0xff]
    %v1175 = vld [vmem:[%s1060 + $0x390] sm:$0xff]
    %v1176 = vld [vmem:[%s1060 + $0x398] sm:$0xff]
    %v1177 = vld [vmem:[%s1060 + $0x3a0] sm:$0xff]
    %v1178 = vld [vmem:[%s1060 + $0x3a8] sm:$0xff]
    %v1179 = vld [vmem:[%s1060 + $0x3b0] sm:$0xff]
    %v1180 = vld [vmem:[%s1060 + $0x3b8] sm:$0xff]
    %v1181 = vld [vmem:[%s1060 + $0x3c0] sm:$0xff]
    %v1182 = vld [vmem:[%s1060 + $0x3c8] sm:$0xff]
    %v1183 = vld [vmem:[%s1060 + $0x3d0] sm:$0xff]
    %v1184 = vld [vmem:[%s1060 + $0x3d8] sm:$0xff]
    %v1185 = vld [vmem:[%s1060 + $0x3e0] sm:$0xff]
    %v1186 = vld [vmem:[%s1060 + $0x3e8] sm:$0xff]
    %v1187 = vld [vmem:[%s1060 + $0x3f0] sm:$0xff]
    %v1188 = vld [vmem:[%s1060 + $0x3f8] sm:$0xff]
    %s1189 = scalar_lea.vmem [#allocation4], 4
    %v1190 = vld [vmem:[%s1189] sm:$0xf]
    %v1192 = vperm.slane %v1190, 0
    %v1193 = vperm.slane %v1190, 1
    %v1194 = vperm.slane %v1190, 2
    %v1195 = vperm.slane %v1190, 3
    %v1328 = vunpack.c.l.b16 %v1061
    %v1329 = vunpack.c.h.b16 %v1061
    %v1330 = vunpack.c.l.b16 %v1062
    %v1331 = vunpack.c.h.b16 %v1062
    %v1332 = vunpack.c.l.b16 %v1063
    %v1333 = vunpack.c.h.b16 %v1063
    %v1334 = vunpack.c.l.b16 %v1064
    %v1335 = vunpack.c.h.b16 %v1064
    %v1336 = vunpack.c.l.b16 %v1065
    %v1337 = vunpack.c.h.b16 %v1065
    %v1338 = vunpack.c.l.b16 %v1066
    %v1339 = vunpack.c.h.b16 %v1066
    %v1340 = vunpack.c.l.b16 %v1067
    %v1341 = vunpack.c.h.b16 %v1067
    %v1342 = vunpack.c.l.b16 %v1068
    %v1343 = vunpack.c.h.b16 %v1068
    %v1344 = vunpack.c.l.b16 %v1069
    %v1345 = vunpack.c.h.b16 %v1069
    %v1346 = vunpack.c.l.b16 %v1070
    %v1347 = vunpack.c.h.b16 %v1070
    %v1348 = vunpack.c.l.b16 %v1071
    %v1349 = vunpack.c.h.b16 %v1071
    %v1350 = vunpack.c.l.b16 %v1072
    %v1351 = vunpack.c.h.b16 %v1072
    %v1352 = vunpack.c.l.b16 %v1073
    %v1353 = vunpack.c.h.b16 %v1073
    %v1354 = vunpack.c.l.b16 %v1074
    %v1355 = vunpack.c.h.b16 %v1074
    %v1356 = vunpack.c.l.b16 %v1075
    %v1357 = vunpack.c.h.b16 %v1075
    %v1358 = vunpack.c.l.b16 %v1076
    %v1359 = vunpack.c.h.b16 %v1076
    %v1360 = vunpack.c.l.b16 %v1077
    %v1361 = vunpack.c.h.b16 %v1077
    %v1362 = vunpack.c.l.b16 %v1078
    %v1363 = vunpack.c.h.b16 %v1078
    %v1364 = vunpack.c.l.b16 %v1079
    %v1365 = vunpack.c.h.b16 %v1079
    %v1366 = vunpack.c.l.b16 %v1080
    %v1367 = vunpack.c.h.b16 %v1080
    %v1368 = vunpack.c.l.b16 %v1081
    %v1369 = vunpack.c.h.b16 %v1081
    %v1370 = vunpack.c.l.b16 %v1082
    %v1371 = vunpack.c.h.b16 %v1082
    %v1372 = vunpack.c.l.b16 %v1083
    %v1373 = vunpack.c.h.b16 %v1083
    %v1374 = vunpack.c.l.b16 %v1084
    %v1375 = vunpack.c.h.b16 %v1084
    %v1376 = vunpack.c.l.b16 %v1085
    %v1377 = vunpack.c.h.b16 %v1085
    %v1378 = vunpack.c.l.b16 %v1086
    %v1379 = vunpack.c.h.b16 %v1086
    %v1380 = vunpack.c.l.b16 %v1087
    %v1381 = vunpack.c.h.b16 %v1087
    %v1382 = vunpack.c.l.b16 %v1088
    %v1383 = vunpack.c.h.b16 %v1088
    %v1384 = vunpack.c.l.b16 %v1089
    %v1385 = vunpack.c.h.b16 %v1089
    %v1386 = vunpack.c.l.b16 %v1090
    %v1387 = vunpack.c.h.b16 %v1090
    %v1388 = vunpack.c.l.b16 %v1091
    %v1389 = vunpack.c.h.b16 %v1091
    %v1390 = vunpack.c.l.b16 %v1092
    %v1391 = vunpack.c.h.b16 %v1092
    %v1392 = vunpack.c.l.b16 %v1093
    %v1393 = vunpack.c.h.b16 %v1093
    %v1394 = vunpack.c.l.b16 %v1094
    %v1395 = vunpack.c.h.b16 %v1094
    %v1396 = vunpack.c.l.b16 %v1095
    %v1397 = vunpack.c.h.b16 %v1095
    %v1398 = vunpack.c.l.b16 %v1096
    %v1399 = vunpack.c.h.b16 %v1096
    %v1400 = vunpack.c.l.b16 %v1097
    %v1401 = vunpack.c.h.b16 %v1097
    %v1402 = vunpack.c.l.b16 %v1098
    %v1403 = vunpack.c.h.b16 %v1098
    %v1404 = vunpack.c.l.b16 %v1099
    %v1405 = vunpack.c.h.b16 %v1099
    %v1406 = vunpack.c.l.b16 %v1100
    %v1407 = vunpack.c.h.b16 %v1100
    %v1408 = vunpack.c.l.b16 %v1101
    %v1409 = vunpack.c.h.b16 %v1101
    %v1410 = vunpack.c.l.b16 %v1102
    %v1411 = vunpack.c.h.b16 %v1102
    %v1412 = vunpack.c.l.b16 %v1103
    %v1413 = vunpack.c.h.b16 %v1103
    %v1414 = vunpack.c.l.b16 %v1104
    %v1415 = vunpack.c.h.b16 %v1104
    %v1416 = vunpack.c.l.b16 %v1105
    %v1417 = vunpack.c.h.b16 %v1105
    %v1418 = vunpack.c.l.b16 %v1106
    %v1419 = vunpack.c.h.b16 %v1106
    %v1420 = vunpack.c.l.b16 %v1107
    %v1421 = vunpack.c.h.b16 %v1107
    %v1422 = vunpack.c.l.b16 %v1108
    %v1423 = vunpack.c.h.b16 %v1108
    %v1424 = vunpack.c.l.b16 %v1109
    %v1425 = vunpack.c.h.b16 %v1109
    %v1426 = vunpack.c.l.b16 %v1110
    %v1427 = vunpack.c.h.b16 %v1110
    %v1428 = vunpack.c.l.b16 %v1111
    %v1429 = vunpack.c.h.b16 %v1111
    %v1430 = vunpack.c.l.b16 %v1112
    %v1431 = vunpack.c.h.b16 %v1112
    %v1432 = vunpack.c.l.b16 %v1113
    %v1433 = vunpack.c.h.b16 %v1113
    %v1434 = vunpack.c.l.b16 %v1114
    %v1435 = vunpack.c.h.b16 %v1114
    %v1436 = vunpack.c.l.b16 %v1115
    %v1437 = vunpack.c.h.b16 %v1115
    %v1438 = vunpack.c.l.b16 %v1116
    %v1439 = vunpack.c.h.b16 %v1116
    %v1440 = vunpack.c.l.b16 %v1117
    %v1441 = vunpack.c.h.b16 %v1117
    %v1442 = vunpack.c.l.b16 %v1118
    %v1443 = vunpack.c.h.b16 %v1118
    %v1444 = vunpack.c.l.b16 %v1119
    %v1445 = vunpack.c.h.b16 %v1119
    %v1446 = vunpack.c.l.b16 %v1120
    %v1447 = vunpack.c.h.b16 %v1120
    %v1448 = vunpack.c.l.b16 %v1121
    %v1449 = vunpack.c.h.b16 %v1121
    %v1450 = vunpack.c.l.b16 %v1122
    %v1451 = vunpack.c.h.b16 %v1122
    %v1452 = vunpack.c.l.b16 %v1123
    %v1453 = vunpack.c.h.b16 %v1123
    %v1454 = vunpack.c.l.b16 %v1124
    %v1455 = vunpack.c.h.b16 %v1124
    %v1456 = vunpack.c.l.b16 %v1125
    %v1457 = vunpack.c.h.b16 %v1125
    %v1458 = vunpack.c.l.b16 %v1126
    %v1459 = vunpack.c.h.b16 %v1126
    %v1460 = vunpack.c.l.b16 %v1127
    %v1461 = vunpack.c.h.b16 %v1127
    %v1462 = vunpack.c.l.b16 %v1128
    %v1463 = vunpack.c.h.b16 %v1128
    %v1464 = vunpack.c.l.b16 %v1129
    %v1465 = vunpack.c.h.b16 %v1129
    %v1466 = vunpack.c.l.b16 %v1130
    %v1467 = vunpack.c.h.b16 %v1130
    %v1468 = vunpack.c.l.b16 %v1131
    %v1469 = vunpack.c.h.b16 %v1131
    %v1470 = vunpack.c.l.b16 %v1132
    %v1471 = vunpack.c.h.b16 %v1132
    %v1472 = vunpack.c.l.b16 %v1133
    %v1473 = vunpack.c.h.b16 %v1133
    %v1474 = vunpack.c.l.b16 %v1134
    %v1475 = vunpack.c.h.b16 %v1134
    %v1476 = vunpack.c.l.b16 %v1135
    %v1477 = vunpack.c.h.b16 %v1135
    %v1478 = vunpack.c.l.b16 %v1136
    %v1479 = vunpack.c.h.b16 %v1136
    %v1480 = vunpack.c.l.b16 %v1137
    %v1481 = vunpack.c.h.b16 %v1137
    %v1482 = vunpack.c.l.b16 %v1138
    %v1483 = vunpack.c.h.b16 %v1138
    %v1484 = vunpack.c.l.b16 %v1139
    %v1485 = vunpack.c.h.b16 %v1139
    %v1486 = vunpack.c.l.b16 %v1140
    %v1487 = vunpack.c.h.b16 %v1140
    %v1488 = vunpack.c.l.b16 %v1141
    %v1489 = vunpack.c.h.b16 %v1141
    %v1490 = vunpack.c.l.b16 %v1142
    %v1491 = vunpack.c.h.b16 %v1142
    %v1492 = vunpack.c.l.b16 %v1143
    %v1493 = vunpack.c.h.b16 %v1143
    %v1494 = vunpack.c.l.b16 %v1144
    %v1495 = vunpack.c.h.b16 %v1144
    %v1496 = vunpack.c.l.b16 %v1145
    %v1497 = vunpack.c.h.b16 %v1145
    %v1498 = vunpack.c.l.b16 %v1146
    %v1499 = vunpack.c.h.b16 %v1146
    %v1500 = vunpack.c.l.b16 %v1147
    %v1501 = vunpack.c.h.b16 %v1147
    %v1502 = vunpack.c.l.b16 %v1148
    %v1503 = vunpack.c.h.b16 %v1148
    %v1504 = vunpack.c.l.b16 %v1149
    %v1505 = vunpack.c.h.b16 %v1149
    %v1506 = vunpack.c.l.b16 %v1150
    %v1507 = vunpack.c.h.b16 %v1150
    %v1508 = vunpack.c.l.b16 %v1151
    %v1509 = vunpack.c.h.b16 %v1151
    %v1510 = vunpack.c.l.b16 %v1152
    %v1511 = vunpack.c.h.b16 %v1152
    %v1512 = vunpack.c.l.b16 %v1153
    %v1513 = vunpack.c.h.b16 %v1153
    %v1514 = vunpack.c.l.b16 %v1154
    %v1515 = vunpack.c.h.b16 %v1154
    %v1516 = vunpack.c.l.b16 %v1155
    %v1517 = vunpack.c.h.b16 %v1155
    %v1518 = vunpack.c.l.b16 %v1156
    %v1519 = vunpack.c.h.b16 %v1156
    %v1520 = vunpack.c.l.b16 %v1157
    %v1521 = vunpack.c.h.b16 %v1157
    %v1522 = vunpack.c.l.b16 %v1158
    %v1523 = vunpack.c.h.b16 %v1158
    %v1524 = vunpack.c.l.b16 %v1159
    %v1525 = vunpack.c.h.b16 %v1159
    %v1526 = vunpack.c.l.b16 %v1160
    %v1527 = vunpack.c.h.b16 %v1160
    %v1528 = vunpack.c.l.b16 %v1161
    %v1529 = vunpack.c.h.b16 %v1161
    %v1530 = vunpack.c.l.b16 %v1162
    %v1531 = vunpack.c.h.b16 %v1162
    %v1532 = vunpack.c.l.b16 %v1163
    %v1533 = vunpack.c.h.b16 %v1163
    %v1534 = vunpack.c.l.b16 %v1164
    %v1535 = vunpack.c.h.b16 %v1164
    %v1536 = vunpack.c.l.b16 %v1165
    %v1537 = vunpack.c.h.b16 %v1165
    %v1538 = vunpack.c.l.b16 %v1166
    %v1539 = vunpack.c.h.b16 %v1166
    %v1540 = vunpack.c.l.b16 %v1167
    %v1541 = vunpack.c.h.b16 %v1167
    %v1542 = vunpack.c.l.b16 %v1168
    %v1543 = vunpack.c.h.b16 %v1168
    %v1544 = vunpack.c.l.b16 %v1169
    %v1545 = vunpack.c.h.b16 %v1169
    %v1546 = vunpack.c.l.b16 %v1170
    %v1547 = vunpack.c.h.b16 %v1170
    %v1548 = vunpack.c.l.b16 %v1171
    %v1549 = vunpack.c.h.b16 %v1171
    %v1550 = vunpack.c.l.b16 %v1172
    %v1551 = vunpack.c.h.b16 %v1172
    %v1552 = vunpack.c.l.b16 %v1173
    %v1553 = vunpack.c.h.b16 %v1173
    %v1554 = vunpack.c.l.b16 %v1174
    %v1555 = vunpack.c.h.b16 %v1174
    %v1556 = vunpack.c.l.b16 %v1175
    %v1557 = vunpack.c.h.b16 %v1175
    %v1558 = vunpack.c.l.b16 %v1176
    %v1559 = vunpack.c.h.b16 %v1176
    %v1560 = vunpack.c.l.b16 %v1177
    %v1561 = vunpack.c.h.b16 %v1177
    %v1562 = vunpack.c.l.b16 %v1178
    %v1563 = vunpack.c.h.b16 %v1178
    %v1564 = vunpack.c.l.b16 %v1179
    %v1565 = vunpack.c.h.b16 %v1179
    %v1566 = vunpack.c.l.b16 %v1180
    %v1567 = vunpack.c.h.b16 %v1180
    %v1568 = vunpack.c.l.b16 %v1181
    %v1569 = vunpack.c.h.b16 %v1181
    %v1570 = vunpack.c.l.b16 %v1182
    %v1571 = vunpack.c.h.b16 %v1182
    %v1572 = vunpack.c.l.b16 %v1183
    %v1573 = vunpack.c.h.b16 %v1183
    %v1574 = vunpack.c.l.b16 %v1184
    %v1575 = vunpack.c.h.b16 %v1184
    %v1576 = vunpack.c.l.b16 %v1185
    %v1577 = vunpack.c.h.b16 %v1185
    %v1578 = vunpack.c.l.b16 %v1186
    %v1579 = vunpack.c.h.b16 %v1186
    %v1580 = vunpack.c.l.b16 %v1187
    %v1581 = vunpack.c.h.b16 %v1187
    %v1582 = vunpack.c.l.b16 %v1188
    %v1583 = vunpack.c.h.b16 %v1188
    %v1584 = vpack.c.b16 %v1332, %v1328
    %v1585 = vpack.c.b16 %v1333, %v1329
    %v1586 = vpack.c.b16 %v1334, %v1330
    %v1587 = vpack.c.b16 %v1335, %v1331
    %v1588 = vpack.c.b16 %v1340, %v1336
    %v1589 = vpack.c.b16 %v1341, %v1337
    %v1590 = vpack.c.b16 %v1342, %v1338
    %v1591 = vpack.c.b16 %v1343, %v1339
    %v1592 = vpack.c.b16 %v1348, %v1344
    %v1593 = vpack.c.b16 %v1349, %v1345
    %v1594 = vpack.c.b16 %v1350, %v1346
    %v1595 = vpack.c.b16 %v1351, %v1347
    %v1596 = vpack.c.b16 %v1356, %v1352
    %v1597 = vpack.c.b16 %v1357, %v1353
    %v1598 = vpack.c.b16 %v1358, %v1354
    %v1599 = vpack.c.b16 %v1359, %v1355
    %v1600 = vpack.c.b16 %v1364, %v1360
    %v1601 = vpack.c.b16 %v1365, %v1361
    %v1602 = vpack.c.b16 %v1366, %v1362
    %v1603 = vpack.c.b16 %v1367, %v1363
    %v1604 = vpack.c.b16 %v1372, %v1368
    %v1605 = vpack.c.b16 %v1373, %v1369
    %v1606 = vpack.c.b16 %v1374, %v1370
    %v1607 = vpack.c.b16 %v1375, %v1371
    %v1608 = vpack.c.b16 %v1380, %v1376
    %v1609 = vpack.c.b16 %v1381, %v1377
    %v1610 = vpack.c.b16 %v1382, %v1378
    %v1611 = vpack.c.b16 %v1383, %v1379
    %v1612 = vpack.c.b16 %v1388, %v1384
    %v1613 = vpack.c.b16 %v1389, %v1385
    %v1614 = vpack.c.b16 %v1390, %v1386
    %v1615 = vpack.c.b16 %v1391, %v1387
    %v1616 = vpack.c.b16 %v1396, %v1392
    %v1617 = vpack.c.b16 %v1397, %v1393
    %v1618 = vpack.c.b16 %v1398, %v1394
    %v1619 = vpack.c.b16 %v1399, %v1395
    %v1620 = vpack.c.b16 %v1404, %v1400
    %v1621 = vpack.c.b16 %v1405, %v1401
    %v1622 = vpack.c.b16 %v1406, %v1402
    %v1623 = vpack.c.b16 %v1407, %v1403
    %v1624 = vpack.c.b16 %v1412, %v1408
    %v1625 = vpack.c.b16 %v1413, %v1409
    %v1626 = vpack.c.b16 %v1414, %v1410
    %v1627 = vpack.c.b16 %v1415, %v1411
    %v1628 = vpack.c.b16 %v1420, %v1416
    %v1629 = vpack.c.b16 %v1421, %v1417
    %v1630 = vpack.c.b16 %v1422, %v1418
    %v1631 = vpack.c.b16 %v1423, %v1419
    %v1632 = vpack.c.b16 %v1428, %v1424
    %v1633 = vpack.c.b16 %v1429, %v1425
    %v1634 = vpack.c.b16 %v1430, %v1426
    %v1635 = vpack.c.b16 %v1431, %v1427
    %v1636 = vpack.c.b16 %v1436, %v1432
    %v1637 = vpack.c.b16 %v1437, %v1433
    %v1638 = vpack.c.b16 %v1438, %v1434
    %v1639 = vpack.c.b16 %v1439, %v1435
    %v1640 = vpack.c.b16 %v1444, %v1440
    %v1641 = vpack.c.b16 %v1445, %v1441
    %v1642 = vpack.c.b16 %v1446, %v1442
    %v1643 = vpack.c.b16 %v1447, %v1443
    %v1644 = vpack.c.b16 %v1452, %v1448
    %v1645 = vpack.c.b16 %v1453, %v1449
    %v1646 = vpack.c.b16 %v1454, %v1450
    %v1647 = vpack.c.b16 %v1455, %v1451
    %v1648 = vpack.c.b16 %v1460, %v1456
    %v1649 = vpack.c.b16 %v1461, %v1457
    %v1650 = vpack.c.b16 %v1462, %v1458
    %v1651 = vpack.c.b16 %v1463, %v1459
    %v1652 = vpack.c.b16 %v1468, %v1464
    %v1653 = vpack.c.b16 %v1469, %v1465
    %v1654 = vpack.c.b16 %v1470, %v1466
    %v1655 = vpack.c.b16 %v1471, %v1467
    %v1656 = vpack.c.b16 %v1476, %v1472
    %v1657 = vpack.c.b16 %v1477, %v1473
    %v1658 = vpack.c.b16 %v1478, %v1474
    %v1659 = vpack.c.b16 %v1479, %v1475
    %v1660 = vpack.c.b16 %v1484, %v1480
    %v1661 = vpack.c.b16 %v1485, %v1481
    %v1662 = vpack.c.b16 %v1486, %v1482
    %v1663 = vpack.c.b16 %v1487, %v1483
    %v1664 = vpack.c.b16 %v1492, %v1488
    %v1665 = vpack.c.b16 %v1493, %v1489
    %v1666 = vpack.c.b16 %v1494, %v1490
    %v1667 = vpack.c.b16 %v1495, %v1491
    %v1668 = vpack.c.b16 %v1500, %v1496
    %v1669 = vpack.c.b16 %v1501, %v1497
    %v1670 = vpack.c.b16 %v1502, %v1498
    %v1671 = vpack.c.b16 %v1503, %v1499
    %v1672 = vpack.c.b16 %v1508, %v1504
    %v1673 = vpack.c.b16 %v1509, %v1505
    %v1674 = vpack.c.b16 %v1510, %v1506
    %v1675 = vpack.c.b16 %v1511, %v1507
    %v1676 = vpack.c.b16 %v1516, %v1512
    %v1677 = vpack.c.b16 %v1517, %v1513
    %v1678 = vpack.c.b16 %v1518, %v1514
    %v1679 = vpack.c.b16 %v1519, %v1515
    %v1680 = vpack.c.b16 %v1524, %v1520
    %v1681 = vpack.c.b16 %v1525, %v1521
    %v1682 = vpack.c.b16 %v1526, %v1522
    %v1683 = vpack.c.b16 %v1527, %v1523
    %v1684 = vpack.c.b16 %v1532, %v1528
    %v1685 = vpack.c.b16 %v1533, %v1529
    %v1686 = vpack.c.b16 %v1534, %v1530
    %v1687 = vpack.c.b16 %v1535, %v1531
    %v1688 = vpack.c.b16 %v1540, %v1536
    %v1689 = vpack.c.b16 %v1541, %v1537
    %v1690 = vpack.c.b16 %v1542, %v1538
    %v1691 = vpack.c.b16 %v1543, %v1539
    %v1692 = vpack.c.b16 %v1548, %v1544
    %v1693 = vpack.c.b16 %v1549, %v1545
    %v1694 = vpack.c.b16 %v1550, %v1546
    %v1695 = vpack.c.b16 %v1551, %v1547
    %v1696 = vpack.c.b16 %v1556, %v1552
    %v1697 = vpack.c.b16 %v1557, %v1553
    %v1698 = vpack.c.b16 %v1558, %v1554
    %v1699 = vpack.c.b16 %v1559, %v1555
    %v1700 = vpack.c.b16 %v1564, %v1560
    %v1701 = vpack.c.b16 %v1565, %v1561
    %v1702 = vpack.c.b16 %v1566, %v1562
    %v1703 = vpack.c.b16 %v1567, %v1563
    %v1704 = vpack.c.b16 %v1572, %v1568
    %v1705 = vpack.c.b16 %v1573, %v1569
    %v1706 = vpack.c.b16 %v1574, %v1570
    %v1707 = vpack.c.b16 %v1575, %v1571
    %v1708 = vpack.c.b16 %v1580, %v1576
    %v1709 = vpack.c.b16 %v1581, %v1577
    %v1710 = vpack.c.b16 %v1582, %v1578
    %v1711 = vpack.c.b16 %v1583, %v1579
    %1840 = vmatpush.bf16.msra.mxu0 %v1612
    %1841 = vmatpush.bf16.msra.mxu0 %v1608
    %1842 = vmatpush.bf16.msra.mxu0 %v1604
    %1843 = vmatpush.bf16.msra.mxu0 %v1600
    %1844 = vmatpush.bf16.msra.mxu0 %v1596
    %1845 = vmatpush.bf16.msra.mxu0 %v1592
    %1846 = vmatpush.bf16.msra.mxu0 %v1588
    %1847 = vmatpush.bf16.msra.mxu0 %v1584
    %1848 = vmatmul.bf16.gmra.mxu0 %v1056
    %v1849 = vpop.f32.mrf.mxu0
    %v1850 = vadd.f32 %v1192, %v1849
    %v1851 = vpop.f32.mrf.mxu0
    %1852 = vdwg.mxu0
    %1853 = vmatpush.bf16.msra.mxu0 %v1644
    %1854 = vmatpush.bf16.msra.mxu0 %v1640
    %1855 = vmatpush.bf16.msra.mxu0 %v1636
    %1856 = vmatpush.bf16.msra.mxu0 %v1632
    %1857 = vmatpush.bf16.msra.mxu0 %v1628
    %1858 = vmatpush.bf16.msra.mxu0 %v1624
    %1859 = vmatpush.bf16.msra.mxu0 %v1620
    %1860 = vmatpush.bf16.msra.mxu0 %v1616
    %1861 = vmatmul.bf16.gmra.mxu0 %v1057
    %v1862 = vpop.f32.mrf.mxu0
    %v1863 = vadd.f32 %v1850, %v1862
    %v1864 = vpop.f32.mrf.mxu0
    %1865 = vdwg.mxu0
    %1866 = vmatpush.bf16.msra.mxu0 %v1676
    %1867 = vmatpush.bf16.msra.mxu0 %v1672
    %1868 = vmatpush.bf16.msra.mxu0 %v1668
    %1869 = vmatpush.bf16.msra.mxu0 %v1664
    %1870 = vmatpush.bf16.msra.mxu0 %v1660
    %1871 = vmatpush.bf16.msra.mxu0 %v1656
    %1872 = vmatpush.bf16.msra.mxu0 %v1652
    %1873 = vmatpush.bf16.msra.mxu0 %v1648
    %1874 = vmatmul.bf16.gmra.mxu0 %v1058
    %v1875 = vpop.f32.mrf.mxu0
    %v1876 = vadd.f32 %v1863, %v1875
    %v1877 = vpop.f32.mrf.mxu0
    %1878 = vdwg.mxu0
    %1879 = vmatpush.bf16.msra.mxu0 %v1708
    %1880 = vmatpush.bf16.msra.mxu0 %v1704
    %1881 = vmatpush.bf16.msra.mxu0 %v1700
    %1882 = vmatpush.bf16.msra.mxu0 %v1696
    %1883 = vmatpush.bf16.msra.mxu0 %v1692
    %1884 = vmatpush.bf16.msra.mxu0 %v1688
    %1885 = vmatpush.bf16.msra.mxu0 %v1684
    %1886 = vmatpush.bf16.msra.mxu0 %v1680
    %1887 = vmatmul.bf16.gmra.mxu0 %v1059
    %v1888 = vpop.f32.mrf.mxu0
    %v1889 = vadd.f32 %v1876, %v1888
    %v1890 = vpop.f32.mrf.mxu0
    %1891 = vdwg.mxu0
    %1892 = vmatpush.bf16.msra.mxu0 %v1613
    %1893 = vmatpush.bf16.msra.mxu0 %v1609
    %1894 = vmatpush.bf16.msra.mxu0 %v1605
    %1895 = vmatpush.bf16.msra.mxu0 %v1601
    %1896 = vmatpush.bf16.msra.mxu0 %v1597
    %1897 = vmatpush.bf16.msra.mxu0 %v1593
    %1898 = vmatpush.bf16.msra.mxu0 %v1589
    %1899 = vmatpush.bf16.msra.mxu0 %v1585
    %1900 = vmatmul.bf16.gmra.mxu0 %v1056
    %v1901 = vpop.f32.mrf.mxu0
    %v1902 = vadd.f32 %v1193, %v1901
    %v1903 = vpop.f32.mrf.mxu0
    %1904 = vdwg.mxu0
    %1905 = vmatpush.bf16.msra.mxu0 %v1645
    %1906 = vmatpush.bf16.msra.mxu0 %v1641
    %1907 = vmatpush.bf16.msra.mxu0 %v1637
    %1908 = vmatpush.bf16.msra.mxu0 %v1633
    %1909 = vmatpush.bf16.msra.mxu0 %v1629
    %1910 = vmatpush.bf16.msra.mxu0 %v1625
    %1911 = vmatpush.bf16.msra.mxu0 %v1621
    %1912 = vmatpush.bf16.msra.mxu0 %v1617
    %1913 = vmatmul.bf16.gmra.mxu0 %v1057
    %v1914 = vpop.f32.mrf.mxu0
    %v1915 = vadd.f32 %v1902, %v1914
    %v1916 = vpop.f32.mrf.mxu0
    %1917 = vdwg.mxu0
    %1918 = vmatpush.bf16.msra.mxu0 %v1677
    %1919 = vmatpush.bf16.msra.mxu0 %v1673
    %1920 = vmatpush.bf16.msra.mxu0 %v1669
    %1921 = vmatpush.bf16.msra.mxu0 %v1665
    %1922 = vmatpush.bf16.msra.mxu0 %v1661
    %1923 = vmatpush.bf16.msra.mxu0 %v1657
    %1924 = vmatpush.bf16.msra.mxu0 %v1653
    %1925 = vmatpush.bf16.msra.mxu0 %v1649
    %1926 = vmatmul.bf16.gmra.mxu0 %v1058
    %v1927 = vpop.f32.mrf.mxu0
    %v1928 = vadd.f32 %v1915, %v1927
    %v1929 = vpop.f32.mrf.mxu0
    %1930 = vdwg.mxu0
    %1931 = vmatpush.bf16.msra.mxu0 %v1709
    %1932 = vmatpush.bf16.msra.mxu0 %v1705
    %1933 = vmatpush.bf16.msra.mxu0 %v1701
    %1934 = vmatpush.bf16.msra.mxu0 %v1697
    %1935 = vmatpush.bf16.msra.mxu0 %v1693
    %1936 = vmatpush.bf16.msra.mxu0 %v1689
    %1937 = vmatpush.bf16.msra.mxu0 %v1685
    %1938 = vmatpush.bf16.msra.mxu0 %v1681
    %1939 = vmatmul.bf16.gmra.mxu0 %v1059
    %v1940 = vpop.f32.mrf.mxu0
    %v1941 = vadd.f32 %v1928, %v1940
    %v1942 = vpop.f32.mrf.mxu0
    %1943 = vdwg.mxu0
    %1944 = vmatpush.bf16.msra.mxu0 %v1614
    %1945 = vmatpush.bf16.msra.mxu0 %v1610
    %1946 = vmatpush.bf16.msra.mxu0 %v1606
    %1947 = vmatpush.bf16.msra.mxu0 %v1602
    %1948 = vmatpush.bf16.msra.mxu0 %v1598
    %1949 = vmatpush.bf16.msra.mxu0 %v1594
    %1950 = vmatpush.bf16.msra.mxu0 %v1590
    %1951 = vmatpush.bf16.msra.mxu0 %v1586
    %1952 = vmatmul.bf16.gmra.mxu0 %v1056
    %v1953 = vpop.f32.mrf.mxu0
    %v1954 = vadd.f32 %v1194, %v1953
    %v1955 = vpop.f32.mrf.mxu0
    %1956 = vdwg.mxu0
    %1957 = vmatpush.bf16.msra.mxu0 %v1646
    %1958 = vmatpush.bf16.msra.mxu0 %v1642
    %1959 = vmatpush.bf16.msra.mxu0 %v1638
    %1960 = vmatpush.bf16.msra.mxu0 %v1634
    %1961 = vmatpush.bf16.msra.mxu0 %v1630
    %1962 = vmatpush.bf16.msra.mxu0 %v1626
    %1963 = vmatpush.bf16.msra.mxu0 %v1622
    %1964 = vmatpush.bf16.msra.mxu0 %v1618
    %1965 = vmatmul.bf16.gmra.mxu0 %v1057
    %v1966 = vpop.f32.mrf.mxu0
    %v1967 = vadd.f32 %v1954, %v1966
    %v1968 = vpop.f32.mrf.mxu0
    %1969 = vdwg.mxu0
    %1970 = vmatpush.bf16.msra.mxu0 %v1678
    %1971 = vmatpush.bf16.msra.mxu0 %v1674
    %1972 = vmatpush.bf16.msra.mxu0 %v1670
    %1973 = vmatpush.bf16.msra.mxu0 %v1666
    %1974 = vmatpush.bf16.msra.mxu0 %v1662
    %1975 = vmatpush.bf16.msra.mxu0 %v1658
    %1976 = vmatpush.bf16.msra.mxu0 %v1654
    %1977 = vmatpush.bf16.msra.mxu0 %v1650
    %1978 = vmatmul.bf16.gmra.mxu0 %v1058
    %v1979 = vpop.f32.mrf.mxu0
    %v1980 = vadd.f32 %v1967, %v1979
    %v1981 = vpop.f32.mrf.mxu0
    %1982 = vdwg.mxu0
    %1983 = vmatpush.bf16.msra.mxu0 %v1710
    %1984 = vmatpush.bf16.msra.mxu0 %v1706
    %1985 = vmatpush.bf16.msra.mxu0 %v1702
    %1986 = vmatpush.bf16.msra.mxu0 %v1698
    %1987 = vmatpush.bf16.msra.mxu0 %v1694
    %1988 = vmatpush.bf16.msra.mxu0 %v1690
    %1989 = vmatpush.bf16.msra.mxu0 %v1686
    %1990 = vmatpush.bf16.msra.mxu0 %v1682
    %1991 = vmatmul.bf16.gmra.mxu0 %v1059
    %v1992 = vpop.f32.mrf.mxu0
    %v1993 = vadd.f32 %v1980, %v1992
    %v1994 = vpop.f32.mrf.mxu0
    %1995 = vdwg.mxu0
    %1996 = vmatpush.bf16.msra.mxu0 %v1615
    %1997 = vmatpush.bf16.msra.mxu0 %v1611
    %1998 = vmatpush.bf16.msra.mxu0 %v1607
    %1999 = vmatpush.bf16.msra.mxu0 %v1603
    %2000 = vmatpush.bf16.msra.mxu0 %v1599
    %2001 = vmatpush.bf16.msra.mxu0 %v1595
    %2002 = vmatpush.bf16.msra.mxu0 %v1591
    %2003 = vmatpush.bf16.msra.mxu0 %v1587
    %2004 = vmatmul.bf16.gmra.mxu0 %v1056
    %v2005 = vpop.f32.mrf.mxu0
    %v2006 = vadd.f32 %v1195, %v2005
    %v2007 = vpop.f32.mrf.mxu0
    %2008 = vdwg.mxu0
    %2009 = vmatpush.bf16.msra.mxu0 %v1647
    %2010 = vmatpush.bf16.msra.mxu0 %v1643
    %2011 = vmatpush.bf16.msra.mxu0 %v1639
    %2012 = vmatpush.bf16.msra.mxu0 %v1635
    %2013 = vmatpush.bf16.msra.mxu0 %v1631
    %2014 = vmatpush.bf16.msra.mxu0 %v1627
    %2015 = vmatpush.bf16.msra.mxu0 %v1623
    %2016 = vmatpush.bf16.msra.mxu0 %v1619
    %2017 = vmatmul.bf16.gmra.mxu0 %v1057
    %v2018 = vpop.f32.mrf.mxu0
    %v2019 = vadd.f32 %v2006, %v2018
    %v2020 = vpop.f32.mrf.mxu0
    %2021 = vdwg.mxu0
    %2022 = vmatpush.bf16.msra.mxu0 %v1679
    %2023 = vmatpush.bf16.msra.mxu0 %v1675
    %2024 = vmatpush.bf16.msra.mxu0 %v1671
    %2025 = vmatpush.bf16.msra.mxu0 %v1667
    %2026 = vmatpush.bf16.msra.mxu0 %v1663
    %2027 = vmatpush.bf16.msra.mxu0 %v1659
    %2028 = vmatpush.bf16.msra.mxu0 %v1655
    %2029 = vmatpush.bf16.msra.mxu0 %v1651
    %2030 = vmatmul.bf16.gmra.mxu0 %v1058
    %v2031 = vpop.f32.mrf.mxu0
    %v2032 = vadd.f32 %v2019, %v2031
    %v2033 = vpop.f32.mrf.mxu0
    %2034 = vdwg.mxu0
    %2035 = vmatpush.bf16.msra.mxu0 %v1711
    %2036 = vmatpush.bf16.msra.mxu0 %v1707
    %2037 = vmatpush.bf16.msra.mxu0 %v1703
    %2038 = vmatpush.bf16.msra.mxu0 %v1699
    %2039 = vmatpush.bf16.msra.mxu0 %v1695
    %2040 = vmatpush.bf16.msra.mxu0 %v1691
    %2041 = vmatpush.bf16.msra.mxu0 %v1687
    %2042 = vmatpush.bf16.msra.mxu0 %v1683
    %2043 = vmatmul.bf16.gmra.mxu0 %v1059
    %v2044 = vpop.f32.mrf.mxu0
    %v2045 = vadd.f32 %v2032, %v2044
    %v2046 = vpop.f32.mrf.mxu0
    %2047 = vdwg.mxu0
    %v2048 = vmul.f32 %v1889, 0.2
    %v2049 = vmul.f32 %v1941, 0.2
    %v2050 = vmul.f32 %v1993, 0.2
    %v2051 = vmul.f32 %v2045, 0.2
    %v2052 = vmax.f32 %v1889, %v2048
    %v2053 = vmax.f32 %v1941, %v2049
    %v2054 = vmax.f32 %v1993, %v2050
    %v2055 = vmax.f32 %v2045, %v2051
    %v2056 = vpack.c.bf16 %v2052, %v2052
    %v2057 = vpack.c.bf16 %v2053, %v2053
    %v2058 = vpack.c.bf16 %v2054, %v2054
    %v2059 = vpack.c.bf16 %v2055, %v2055
    %s2060 = scalar_lea.vmem [#allocation2], 2048
    %v2061 = vld [vmem:[%s2060] sm:$0xff]
    %v2062 = vld [vmem:[%s2060 + $0x8] sm:$0xff]
    %v2063 = vld [vmem:[%s2060 + $0x10] sm:$0xff]
    %v2064 = vld [vmem:[%s2060 + $0x18] sm:$0xff]
    %v2065 = vld [vmem:[%s2060 + $0x20] sm:$0xff]
    %v2066 = vld [vmem:[%s2060 + $0x28] sm:$0xff]
    %v2067 = vld [vmem:[%s2060 + $0x30] sm:$0xff]
    %v2068 = vld [vmem:[%s2060 + $0x38] sm:$0xff]
    %v2069 = vld [vmem:[%s2060 + $0x40] sm:$0xff]
    %v2070 = vld [vmem:[%s2060 + $0x48] sm:$0xff]
    %v2071 = vld [vmem:[%s2060 + $0x50] sm:$0xff]
    %v2072 = vld [vmem:[%s2060 + $0x58] sm:$0xff]
    %v2073 = vld [vmem:[%s2060 + $0x60] sm:$0xff]
    %v2074 = vld [vmem:[%s2060 + $0x68] sm:$0xff]
    %v2075 = vld [vmem:[%s2060 + $0x70] sm:$0xff]
    %v2076 = vld [vmem:[%s2060 + $0x78] sm:$0xff]
    %v2077 = vld [vmem:[%s2060 + $0x80] sm:$0xff]
    %v2078 = vld [vmem:[%s2060 + $0x88] sm:$0xff]
    %v2079 = vld [vmem:[%s2060 + $0x90] sm:$0xff]
    %v2080 = vld [vmem:[%s2060 + $0x98] sm:$0xff]
    %v2081 = vld [vmem:[%s2060 + $0xa0] sm:$0xff]
    %v2082 = vld [vmem:[%s2060 + $0xa8] sm:$0xff]
    %v2083 = vld [vmem:[%s2060 + $0xb0] sm:$0xff]
    %v2084 = vld [vmem:[%s2060 + $0xb8] sm:$0xff]
    %v2085 = vld [vmem:[%s2060 + $0xc0] sm:$0xff]
    %v2086 = vld [vmem:[%s2060 + $0xc8] sm:$0xff]
    %v2087 = vld [vmem:[%s2060 + $0xd0] sm:$0xff]
    %v2088 = vld [vmem:[%s2060 + $0xd8] sm:$0xff]
    %v2089 = vld [vmem:[%s2060 + $0xe0] sm:$0xff]
    %v2090 = vld [vmem:[%s2060 + $0xe8] sm:$0xff]
    %v2091 = vld [vmem:[%s2060 + $0xf0] sm:$0xff]
    %v2092 = vld [vmem:[%s2060 + $0xf8] sm:$0xff]
    %v2093 = vld [vmem:[%s2060 + $0x100] sm:$0xff]
    %v2094 = vld [vmem:[%s2060 + $0x108] sm:$0xff]
    %v2095 = vld [vmem:[%s2060 + $0x110] sm:$0xff]
    %v2096 = vld [vmem:[%s2060 + $0x118] sm:$0xff]
    %v2097 = vld [vmem:[%s2060 + $0x120] sm:$0xff]
    %v2098 = vld [vmem:[%s2060 + $0x128] sm:$0xff]
    %v2099 = vld [vmem:[%s2060 + $0x130] sm:$0xff]
    %v2100 = vld [vmem:[%s2060 + $0x138] sm:$0xff]
    %v2101 = vld [vmem:[%s2060 + $0x140] sm:$0xff]
    %v2102 = vld [vmem:[%s2060 + $0x148] sm:$0xff]
    %v2103 = vld [vmem:[%s2060 + $0x150] sm:$0xff]
    %v2104 = vld [vmem:[%s2060 + $0x158] sm:$0xff]
    %v2105 = vld [vmem:[%s2060 + $0x160] sm:$0xff]
    %v2106 = vld [vmem:[%s2060 + $0x168] sm:$0xff]
    %v2107 = vld [vmem:[%s2060 + $0x170] sm:$0xff]
    %v2108 = vld [vmem:[%s2060 + $0x178] sm:$0xff]
    %v2109 = vld [vmem:[%s2060 + $0x180] sm:$0xff]
    %v2110 = vld [vmem:[%s2060 + $0x188] sm:$0xff]
    %v2111 = vld [vmem:[%s2060 + $0x190] sm:$0xff]
    %v2112 = vld [vmem:[%s2060 + $0x198] sm:$0xff]
    %v2113 = vld [vmem:[%s2060 + $0x1a0] sm:$0xff]
    %v2114 = vld [vmem:[%s2060 + $0x1a8] sm:$0xff]
    %v2115 = vld [vmem:[%s2060 + $0x1b0] sm:$0xff]
    %v2116 = vld [vmem:[%s2060 + $0x1b8] sm:$0xff]
    %v2117 = vld [vmem:[%s2060 + $0x1c0] sm:$0xff]
    %v2118 = vld [vmem:[%s2060 + $0x1c8] sm:$0xff]
    %v2119 = vld [vmem:[%s2060 + $0x1d0] sm:$0xff]
    %v2120 = vld [vmem:[%s2060 + $0x1d8] sm:$0xff]
    %v2121 = vld [vmem:[%s2060 + $0x1e0] sm:$0xff]
    %v2122 = vld [vmem:[%s2060 + $0x1e8] sm:$0xff]
    %v2123 = vld [vmem:[%s2060 + $0x1f0] sm:$0xff]
    %v2124 = vld [vmem:[%s2060 + $0x1f8] sm:$0xff]
    %v2125 = vld [vmem:[%s2060 + $0x200] sm:$0xff]
    %v2126 = vld [vmem:[%s2060 + $0x208] sm:$0xff]
    %v2127 = vld [vmem:[%s2060 + $0x210] sm:$0xff]
    %v2128 = vld [vmem:[%s2060 + $0x218] sm:$0xff]
    %v2129 = vld [vmem:[%s2060 + $0x220] sm:$0xff]
    %v2130 = vld [vmem:[%s2060 + $0x228] sm:$0xff]
    %v2131 = vld [vmem:[%s2060 + $0x230] sm:$0xff]
    %v2132 = vld [vmem:[%s2060 + $0x238] sm:$0xff]
    %v2133 = vld [vmem:[%s2060 + $0x240] sm:$0xff]
    %v2134 = vld [vmem:[%s2060 + $0x248] sm:$0xff]
    %v2135 = vld [vmem:[%s2060 + $0x250] sm:$0xff]
    %v2136 = vld [vmem:[%s2060 + $0x258] sm:$0xff]
    %v2137 = vld [vmem:[%s2060 + $0x260] sm:$0xff]
    %v2138 = vld [vmem:[%s2060 + $0x268] sm:$0xff]
    %v2139 = vld [vmem:[%s2060 + $0x270] sm:$0xff]
    %v2140 = vld [vmem:[%s2060 + $0x278] sm:$0xff]
    %v2141 = vld [vmem:[%s2060 + $0x280] sm:$0xff]
    %v2142 = vld [vmem:[%s2060 + $0x288] sm:$0xff]
    %v2143 = vld [vmem:[%s2060 + $0x290] sm:$0xff]
    %v2144 = vld [vmem:[%s2060 + $0x298] sm:$0xff]
    %v2145 = vld [vmem:[%s2060 + $0x2a0] sm:$0xff]
    %v2146 = vld [vmem:[%s2060 + $0x2a8] sm:$0xff]
    %v2147 = vld [vmem:[%s2060 + $0x2b0] sm:$0xff]
    %v2148 = vld [vmem:[%s2060 + $0x2b8] sm:$0xff]
    %v2149 = vld [vmem:[%s2060 + $0x2c0] sm:$0xff]
    %v2150 = vld [vmem:[%s2060 + $0x2c8] sm:$0xff]
    %v2151 = vld [vmem:[%s2060 + $0x2d0] sm:$0xff]
    %v2152 = vld [vmem:[%s2060 + $0x2d8] sm:$0xff]
    %v2153 = vld [vmem:[%s2060 + $0x2e0] sm:$0xff]
    %v2154 = vld [vmem:[%s2060 + $0x2e8] sm:$0xff]
    %v2155 = vld [vmem:[%s2060 + $0x2f0] sm:$0xff]
    %v2156 = vld [vmem:[%s2060 + $0x2f8] sm:$0xff]
    %v2157 = vld [vmem:[%s2060 + $0x300] sm:$0xff]
    %v2158 = vld [vmem:[%s2060 + $0x308] sm:$0xff]
    %v2159 = vld [vmem:[%s2060 + $0x310] sm:$0xff]
    %v2160 = vld [vmem:[%s2060 + $0x318] sm:$0xff]
    %v2161 = vld [vmem:[%s2060 + $0x320] sm:$0xff]
    %v2162 = vld [vmem:[%s2060 + $0x328] sm:$0xff]
    %v2163 = vld [vmem:[%s2060 + $0x330] sm:$0xff]
    %v2164 = vld [vmem:[%s2060 + $0x338] sm:$0xff]
    %v2165 = vld [vmem:[%s2060 + $0x340] sm:$0xff]
    %v2166 = vld [vmem:[%s2060 + $0x348] sm:$0xff]
    %v2167 = vld [vmem:[%s2060 + $0x350] sm:$0xff]
    %v2168 = vld [vmem:[%s2060 + $0x358] sm:$0xff]
    %v2169 = vld [vmem:[%s2060 + $0x360] sm:$0xff]
    %v2170 = vld [vmem:[%s2060 + $0x368] sm:$0xff]
    %v2171 = vld [vmem:[%s2060 + $0x370] sm:$0xff]
    %v2172 = vld [vmem:[%s2060 + $0x378] sm:$0xff]
    %v2173 = vld [vmem:[%s2060 + $0x380] sm:$0xff]
    %v2174 = vld [vmem:[%s2060 + $0x388] sm:$0xff]
    %v2175 = vld [vmem:[%s2060 + $0x390] sm:$0xff]
    %v2176 = vld [vmem:[%s2060 + $0x398] sm:$0xff]
    %v2177 = vld [vmem:[%s2060 + $0x3a0] sm:$0xff]
    %v2178 = vld [vmem:[%s2060 + $0x3a8] sm:$0xff]
    %v2179 = vld [vmem:[%s2060 + $0x3b0] sm:$0xff]
    %v2180 = vld [vmem:[%s2060 + $0x3b8] sm:$0xff]
    %v2181 = vld [vmem:[%s2060 + $0x3c0] sm:$0xff]
    %v2182 = vld [vmem:[%s2060 + $0x3c8] sm:$0xff]
    %v2183 = vld [vmem:[%s2060 + $0x3d0] sm:$0xff]
    %v2184 = vld [vmem:[%s2060 + $0x3d8] sm:$0xff]
    %v2185 = vld [vmem:[%s2060 + $0x3e0] sm:$0xff]
    %v2186 = vld [vmem:[%s2060 + $0x3e8] sm:$0xff]
    %v2187 = vld [vmem:[%s2060 + $0x3f0] sm:$0xff]
    %v2188 = vld [vmem:[%s2060 + $0x3f8] sm:$0xff]
    %s2189 = scalar_lea.vmem [#allocation4], 8
    %v2190 = vld [vmem:[%s2189] sm:$0xf]
    %v2192 = vperm.slane %v2190, 0
    %v2193 = vperm.slane %v2190, 1
    %v2194 = vperm.slane %v2190, 2
    %v2195 = vperm.slane %v2190, 3
    %v2328 = vunpack.c.l.b16 %v2061
    %v2329 = vunpack.c.h.b16 %v2061
    %v2330 = vunpack.c.l.b16 %v2062
    %v2331 = vunpack.c.h.b16 %v2062
    %v2332 = vunpack.c.l.b16 %v2063
    %v2333 = vunpack.c.h.b16 %v2063
    %v2334 = vunpack.c.l.b16 %v2064
    %v2335 = vunpack.c.h.b16 %v2064
    %v2336 = vunpack.c.l.b16 %v2065
    %v2337 = vunpack.c.h.b16 %v2065
    %v2338 = vunpack.c.l.b16 %v2066
    %v2339 = vunpack.c.h.b16 %v2066
    %v2340 = vunpack.c.l.b16 %v2067
    %v2341 = vunpack.c.h.b16 %v2067
    %v2342 = vunpack.c.l.b16 %v2068
    %v2343 = vunpack.c.h.b16 %v2068
    %v2344 = vunpack.c.l.b16 %v2069
    %v2345 = vunpack.c.h.b16 %v2069
    %v2346 = vunpack.c.l.b16 %v2070
    %v2347 = vunpack.c.h.b16 %v2070
    %v2348 = vunpack.c.l.b16 %v2071
    %v2349 = vunpack.c.h.b16 %v2071
    %v2350 = vunpack.c.l.b16 %v2072
    %v2351 = vunpack.c.h.b16 %v2072
    %v2352 = vunpack.c.l.b16 %v2073
    %v2353 = vunpack.c.h.b16 %v2073
    %v2354 = vunpack.c.l.b16 %v2074
    %v2355 = vunpack.c.h.b16 %v2074
    %v2356 = vunpack.c.l.b16 %v2075
    %v2357 = vunpack.c.h.b16 %v2075
    %v2358 = vunpack.c.l.b16 %v2076
    %v2359 = vunpack.c.h.b16 %v2076
    %v2360 = vunpack.c.l.b16 %v2077
    %v2361 = vunpack.c.h.b16 %v2077
    %v2362 = vunpack.c.l.b16 %v2078
    %v2363 = vunpack.c.h.b16 %v2078
    %v2364 = vunpack.c.l.b16 %v2079
    %v2365 = vunpack.c.h.b16 %v2079
    %v2366 = vunpack.c.l.b16 %v2080
    %v2367 = vunpack.c.h.b16 %v2080
    %v2368 = vunpack.c.l.b16 %v2081
    %v2369 = vunpack.c.h.b16 %v2081
    %v2370 = vunpack.c.l.b16 %v2082
    %v2371 = vunpack.c.h.b16 %v2082
    %v2372 = vunpack.c.l.b16 %v2083
    %v2373 = vunpack.c.h.b16 %v2083
    %v2374 = vunpack.c.l.b16 %v2084
    %v2375 = vunpack.c.h.b16 %v2084
    %v2376 = vunpack.c.l.b16 %v2085
    %v2377 = vunpack.c.h.b16 %v2085
    %v2378 = vunpack.c.l.b16 %v2086
    %v2379 = vunpack.c.h.b16 %v2086
    %v2380 = vunpack.c.l.b16 %v2087
    %v2381 = vunpack.c.h.b16 %v2087
    %v2382 = vunpack.c.l.b16 %v2088
    %v2383 = vunpack.c.h.b16 %v2088
    %v2384 = vunpack.c.l.b16 %v2089
    %v2385 = vunpack.c.h.b16 %v2089
    %v2386 = vunpack.c.l.b16 %v2090
    %v2387 = vunpack.c.h.b16 %v2090
    %v2388 = vunpack.c.l.b16 %v2091
    %v2389 = vunpack.c.h.b16 %v2091
    %v2390 = vunpack.c.l.b16 %v2092
    %v2391 = vunpack.c.h.b16 %v2092
    %v2392 = vunpack.c.l.b16 %v2093
    %v2393 = vunpack.c.h.b16 %v2093
    %v2394 = vunpack.c.l.b16 %v2094
    %v2395 = vunpack.c.h.b16 %v2094
    %v2396 = vunpack.c.l.b16 %v2095
    %v2397 = vunpack.c.h.b16 %v2095
    %v2398 = vunpack.c.l.b16 %v2096
    %v2399 = vunpack.c.h.b16 %v2096
    %v2400 = vunpack.c.l.b16 %v2097
    %v2401 = vunpack.c.h.b16 %v2097
    %v2402 = vunpack.c.l.b16 %v2098
    %v2403 = vunpack.c.h.b16 %v2098
    %v2404 = vunpack.c.l.b16 %v2099
    %v2405 = vunpack.c.h.b16 %v2099
    %v2406 = vunpack.c.l.b16 %v2100
    %v2407 = vunpack.c.h.b16 %v2100
    %v2408 = vunpack.c.l.b16 %v2101
    %v2409 = vunpack.c.h.b16 %v2101
    %v2410 = vunpack.c.l.b16 %v2102
    %v2411 = vunpack.c.h.b16 %v2102
    %v2412 = vunpack.c.l.b16 %v2103
    %v2413 = vunpack.c.h.b16 %v2103
    %v2414 = vunpack.c.l.b16 %v2104
    %v2415 = vunpack.c.h.b16 %v2104
    %v2416 = vunpack.c.l.b16 %v2105
    %v2417 = vunpack.c.h.b16 %v2105
    %v2418 = vunpack.c.l.b16 %v2106
    %v2419 = vunpack.c.h.b16 %v2106
    %v2420 = vunpack.c.l.b16 %v2107
    %v2421 = vunpack.c.h.b16 %v2107
    %v2422 = vunpack.c.l.b16 %v2108
    %v2423 = vunpack.c.h.b16 %v2108
    %v2424 = vunpack.c.l.b16 %v2109
    %v2425 = vunpack.c.h.b16 %v2109
    %v2426 = vunpack.c.l.b16 %v2110
    %v2427 = vunpack.c.h.b16 %v2110
    %v2428 = vunpack.c.l.b16 %v2111
    %v2429 = vunpack.c.h.b16 %v2111
    %v2430 = vunpack.c.l.b16 %v2112
    %v2431 = vunpack.c.h.b16 %v2112
    %v2432 = vunpack.c.l.b16 %v2113
    %v2433 = vunpack.c.h.b16 %v2113
    %v2434 = vunpack.c.l.b16 %v2114
    %v2435 = vunpack.c.h.b16 %v2114
    %v2436 = vunpack.c.l.b16 %v2115
    %v2437 = vunpack.c.h.b16 %v2115
    %v2438 = vunpack.c.l.b16 %v2116
    %v2439 = vunpack.c.h.b16 %v2116
    %v2440 = vunpack.c.l.b16 %v2117
    %v2441 = vunpack.c.h.b16 %v2117
    %v2442 = vunpack.c.l.b16 %v2118
    %v2443 = vunpack.c.h.b16 %v2118
    %v2444 = vunpack.c.l.b16 %v2119
    %v2445 = vunpack.c.h.b16 %v2119
    %v2446 = vunpack.c.l.b16 %v2120
    %v2447 = vunpack.c.h.b16 %v2120
    %v2448 = vunpack.c.l.b16 %v2121
    %v2449 = vunpack.c.h.b16 %v2121
    %v2450 = vunpack.c.l.b16 %v2122
    %v2451 = vunpack.c.h.b16 %v2122
    %v2452 = vunpack.c.l.b16 %v2123
    %v2453 = vunpack.c.h.b16 %v2123
    %v2454 = vunpack.c.l.b16 %v2124
    %v2455 = vunpack.c.h.b16 %v2124
    %v2456 = vunpack.c.l.b16 %v2125
    %v2457 = vunpack.c.h.b16 %v2125
    %v2458 = vunpack.c.l.b16 %v2126
    %v2459 = vunpack.c.h.b16 %v2126
    %v2460 = vunpack.c.l.b16 %v2127
    %v2461 = vunpack.c.h.b16 %v2127
    %v2462 = vunpack.c.l.b16 %v2128
    %v2463 = vunpack.c.h.b16 %v2128
    %v2464 = vunpack.c.l.b16 %v2129
    %v2465 = vunpack.c.h.b16 %v2129
    %v2466 = vunpack.c.l.b16 %v2130
    %v2467 = vunpack.c.h.b16 %v2130
    %v2468 = vunpack.c.l.b16 %v2131
    %v2469 = vunpack.c.h.b16 %v2131
    %v2470 = vunpack.c.l.b16 %v2132
    %v2471 = vunpack.c.h.b16 %v2132
    %v2472 = vunpack.c.l.b16 %v2133
    %v2473 = vunpack.c.h.b16 %v2133
    %v2474 = vunpack.c.l.b16 %v2134
    %v2475 = vunpack.c.h.b16 %v2134
    %v2476 = vunpack.c.l.b16 %v2135
    %v2477 = vunpack.c.h.b16 %v2135
    %v2478 = vunpack.c.l.b16 %v2136
    %v2479 = vunpack.c.h.b16 %v2136
    %v2480 = vunpack.c.l.b16 %v2137
    %v2481 = vunpack.c.h.b16 %v2137
    %v2482 = vunpack.c.l.b16 %v2138
    %v2483 = vunpack.c.h.b16 %v2138
    %v2484 = vunpack.c.l.b16 %v2139
    %v2485 = vunpack.c.h.b16 %v2139
    %v2486 = vunpack.c.l.b16 %v2140
    %v2487 = vunpack.c.h.b16 %v2140
    %v2488 = vunpack.c.l.b16 %v2141
    %v2489 = vunpack.c.h.b16 %v2141
    %v2490 = vunpack.c.l.b16 %v2142
    %v2491 = vunpack.c.h.b16 %v2142
    %v2492 = vunpack.c.l.b16 %v2143
    %v2493 = vunpack.c.h.b16 %v2143
    %v2494 = vunpack.c.l.b16 %v2144
    %v2495 = vunpack.c.h.b16 %v2144
    %v2496 = vunpack.c.l.b16 %v2145
    %v2497 = vunpack.c.h.b16 %v2145
    %v2498 = vunpack.c.l.b16 %v2146
    %v2499 = vunpack.c.h.b16 %v2146
    %v2500 = vunpack.c.l.b16 %v2147
    %v2501 = vunpack.c.h.b16 %v2147
    %v2502 = vunpack.c.l.b16 %v2148
    %v2503 = vunpack.c.h.b16 %v2148
    %v2504 = vunpack.c.l.b16 %v2149
    %v2505 = vunpack.c.h.b16 %v2149
    %v2506 = vunpack.c.l.b16 %v2150
    %v2507 = vunpack.c.h.b16 %v2150
    %v2508 = vunpack.c.l.b16 %v2151
    %v2509 = vunpack.c.h.b16 %v2151
    %v2510 = vunpack.c.l.b16 %v2152
    %v2511 = vunpack.c.h.b16 %v2152
    %v2512 = vunpack.c.l.b16 %v2153
    %v2513 = vunpack.c.h.b16 %v2153
    %v2514 = vunpack.c.l.b16 %v2154
    %v2515 = vunpack.c.h.b16 %v2154
    %v2516 = vunpack.c.l.b16 %v2155
    %v2517 = vunpack.c.h.b16 %v2155
    %v2518 = vunpack.c.l.b16 %v2156
    %v2519 = vunpack.c.h.b16 %v2156
    %v2520 = vunpack.c.l.b16 %v2157
    %v2521 = vunpack.c.h.b16 %v2157
    %v2522 = vunpack.c.l.b16 %v2158
    %v2523 = vunpack.c.h.b16 %v2158
    %v2524 = vunpack.c.l.b16 %v2159
    %v2525 = vunpack.c.h.b16 %v2159
    %v2526 = vunpack.c.l.b16 %v2160
    %v2527 = vunpack.c.h.b16 %v2160
    %v2528 = vunpack.c.l.b16 %v2161
    %v2529 = vunpack.c.h.b16 %v2161
    %v2530 = vunpack.c.l.b16 %v2162
    %v2531 = vunpack.c.h.b16 %v2162
    %v2532 = vunpack.c.l.b16 %v2163
    %v2533 = vunpack.c.h.b16 %v2163
    %v2534 = vunpack.c.l.b16 %v2164
    %v2535 = vunpack.c.h.b16 %v2164
    %v2536 = vunpack.c.l.b16 %v2165
    %v2537 = vunpack.c.h.b16 %v2165
    %v2538 = vunpack.c.l.b16 %v2166
    %v2539 = vunpack.c.h.b16 %v2166
    %v2540 = vunpack.c.l.b16 %v2167
    %v2541 = vunpack.c.h.b16 %v2167
    %v2542 = vunpack.c.l.b16 %v2168
    %v2543 = vunpack.c.h.b16 %v2168
    %v2544 = vunpack.c.l.b16 %v2169
    %v2545 = vunpack.c.h.b16 %v2169
    %v2546 = vunpack.c.l.b16 %v2170
    %v2547 = vunpack.c.h.b16 %v2170
    %v2548 = vunpack.c.l.b16 %v2171
    %v2549 = vunpack.c.h.b16 %v2171
    %v2550 = vunpack.c.l.b16 %v2172
    %v2551 = vunpack.c.h.b16 %v2172
    %v2552 = vunpack.c.l.b16 %v2173
    %v2553 = vunpack.c.h.b16 %v2173
    %v2554 = vunpack.c.l.b16 %v2174
    %v2555 = vunpack.c.h.b16 %v2174
    %v2556 = vunpack.c.l.b16 %v2175
    %v2557 = vunpack.c.h.b16 %v2175
    %v2558 = vunpack.c.l.b16 %v2176
    %v2559 = vunpack.c.h.b16 %v2176
    %v2560 = vunpack.c.l.b16 %v2177
    %v2561 = vunpack.c.h.b16 %v2177
    %v2562 = vunpack.c.l.b16 %v2178
    %v2563 = vunpack.c.h.b16 %v2178
    %v2564 = vunpack.c.l.b16 %v2179
    %v2565 = vunpack.c.h.b16 %v2179
    %v2566 = vunpack.c.l.b16 %v2180
    %v2567 = vunpack.c.h.b16 %v2180
    %v2568 = vunpack.c.l.b16 %v2181
    %v2569 = vunpack.c.h.b16 %v2181
    %v2570 = vunpack.c.l.b16 %v2182
    %v2571 = vunpack.c.h.b16 %v2182
    %v2572 = vunpack.c.l.b16 %v2183
    %v2573 = vunpack.c.h.b16 %v2183
    %v2574 = vunpack.c.l.b16 %v2184
    %v2575 = vunpack.c.h.b16 %v2184
    %v2576 = vunpack.c.l.b16 %v2185
    %v2577 = vunpack.c.h.b16 %v2185
    %v2578 = vunpack.c.l.b16 %v2186
    %v2579 = vunpack.c.h.b16 %v2186
    %v2580 = vunpack.c.l.b16 %v2187
    %v2581 = vunpack.c.h.b16 %v2187
    %v2582 = vunpack.c.l.b16 %v2188
    %v2583 = vunpack.c.h.b16 %v2188
    %v2584 = vpack.c.b16 %v2332, %v2328
    %v2585 = vpack.c.b16 %v2333, %v2329
    %v2586 = vpack.c.b16 %v2334, %v2330
    %v2587 = vpack.c.b16 %v2335, %v2331
    %v2588 = vpack.c.b16 %v2340, %v2336
    %v2589 = vpack.c.b16 %v2341, %v2337
    %v2590 = vpack.c.b16 %v2342, %v2338
    %v2591 = vpack.c.b16 %v2343, %v2339
    %v2592 = vpack.c.b16 %v2348, %v2344
    %v2593 = vpack.c.b16 %v2349, %v2345
    %v2594 = vpack.c.b16 %v2350, %v2346
    %v2595 = vpack.c.b16 %v2351, %v2347
    %v2596 = vpack.c.b16 %v2356, %v2352
    %v2597 = vpack.c.b16 %v2357, %v2353
    %v2598 = vpack.c.b16 %v2358, %v2354
    %v2599 = vpack.c.b16 %v2359, %v2355
    %v2600 = vpack.c.b16 %v2364, %v2360
    %v2601 = vpack.c.b16 %v2365, %v2361
    %v2602 = vpack.c.b16 %v2366, %v2362
    %v2603 = vpack.c.b16 %v2367, %v2363
    %v2604 = vpack.c.b16 %v2372, %v2368
    %v2605 = vpack.c.b16 %v2373, %v2369
    %v2606 = vpack.c.b16 %v2374, %v2370
    %v2607 = vpack.c.b16 %v2375, %v2371
    %v2608 = vpack.c.b16 %v2380, %v2376
    %v2609 = vpack.c.b16 %v2381, %v2377
    %v2610 = vpack.c.b16 %v2382, %v2378
    %v2611 = vpack.c.b16 %v2383, %v2379
    %v2612 = vpack.c.b16 %v2388, %v2384
    %v2613 = vpack.c.b16 %v2389, %v2385
    %v2614 = vpack.c.b16 %v2390, %v2386
    %v2615 = vpack.c.b16 %v2391, %v2387
    %v2616 = vpack.c.b16 %v2396, %v2392
    %v2617 = vpack.c.b16 %v2397, %v2393
    %v2618 = vpack.c.b16 %v2398, %v2394
    %v2619 = vpack.c.b16 %v2399, %v2395
    %v2620 = vpack.c.b16 %v2404, %v2400
    %v2621 = vpack.c.b16 %v2405, %v2401
    %v2622 = vpack.c.b16 %v2406, %v2402
    %v2623 = vpack.c.b16 %v2407, %v2403
    %v2624 = vpack.c.b16 %v2412, %v2408
    %v2625 = vpack.c.b16 %v2413, %v2409
    %v2626 = vpack.c.b16 %v2414, %v2410
    %v2627 = vpack.c.b16 %v2415, %v2411
    %v2628 = vpack.c.b16 %v2420, %v2416
    %v2629 = vpack.c.b16 %v2421, %v2417
    %v2630 = vpack.c.b16 %v2422, %v2418
    %v2631 = vpack.c.b16 %v2423, %v2419
    %v2632 = vpack.c.b16 %v2428, %v2424
    %v2633 = vpack.c.b16 %v2429, %v2425
    %v2634 = vpack.c.b16 %v2430, %v2426
    %v2635 = vpack.c.b16 %v2431, %v2427
    %v2636 = vpack.c.b16 %v2436, %v2432
    %v2637 = vpack.c.b16 %v2437, %v2433
    %v2638 = vpack.c.b16 %v2438, %v2434
    %v2639 = vpack.c.b16 %v2439, %v2435
    %v2640 = vpack.c.b16 %v2444, %v2440
    %v2641 = vpack.c.b16 %v2445, %v2441
    %v2642 = vpack.c.b16 %v2446, %v2442
    %v2643 = vpack.c.b16 %v2447, %v2443
    %v2644 = vpack.c.b16 %v2452, %v2448
    %v2645 = vpack.c.b16 %v2453, %v2449
    %v2646 = vpack.c.b16 %v2454, %v2450
    %v2647 = vpack.c.b16 %v2455, %v2451
    %v2648 = vpack.c.b16 %v2460, %v2456
    %v2649 = vpack.c.b16 %v2461, %v2457
    %v2650 = vpack.c.b16 %v2462, %v2458
    %v2651 = vpack.c.b16 %v2463, %v2459
    %v2652 = vpack.c.b16 %v2468, %v2464
    %v2653 = vpack.c.b16 %v2469, %v2465
    %v2654 = vpack.c.b16 %v2470, %v2466
    %v2655 = vpack.c.b16 %v2471, %v2467
    %v2656 = vpack.c.b16 %v2476, %v2472
    %v2657 = vpack.c.b16 %v2477, %v2473
    %v2658 = vpack.c.b16 %v2478, %v2474
    %v2659 = vpack.c.b16 %v2479, %v2475
    %v2660 = vpack.c.b16 %v2484, %v2480
    %v2661 = vpack.c.b16 %v2485, %v2481
    %v2662 = vpack.c.b16 %v2486, %v2482
    %v2663 = vpack.c.b16 %v2487, %v2483
    %v2664 = vpack.c.b16 %v2492, %v2488
    %v2665 = vpack.c.b16 %v2493, %v2489
    %v2666 = vpack.c.b16 %v2494, %v2490
    %v2667 = vpack.c.b16 %v2495, %v2491
    %v2668 = vpack.c.b16 %v2500, %v2496
    %v2669 = vpack.c.b16 %v2501, %v2497
    %v2670 = vpack.c.b16 %v2502, %v2498
    %v2671 = vpack.c.b16 %v2503, %v2499
    %v2672 = vpack.c.b16 %v2508, %v2504
    %v2673 = vpack.c.b16 %v2509, %v2505
    %v2674 = vpack.c.b16 %v2510, %v2506
    %v2675 = vpack.c.b16 %v2511, %v2507
    %v2676 = vpack.c.b16 %v2516, %v2512
    %v2677 = vpack.c.b16 %v2517, %v2513
    %v2678 = vpack.c.b16 %v2518, %v2514
    %v2679 = vpack.c.b16 %v2519, %v2515
    %v2680 = vpack.c.b16 %v2524, %v2520
    %v2681 = vpack.c.b16 %v2525, %v2521
    %v2682 = vpack.c.b16 %v2526, %v2522
    %v2683 = vpack.c.b16 %v2527, %v2523
    %v2684 = vpack.c.b16 %v2532, %v2528
    %v2685 = vpack.c.b16 %v2533, %v2529
    %v2686 = vpack.c.b16 %v2534, %v2530
    %v2687 = vpack.c.b16 %v2535, %v2531
    %v2688 = vpack.c.b16 %v2540, %v2536
    %v2689 = vpack.c.b16 %v2541, %v2537
    %v2690 = vpack.c.b16 %v2542, %v2538
    %v2691 = vpack.c.b16 %v2543, %v2539
    %v2692 = vpack.c.b16 %v2548, %v2544
    %v2693 = vpack.c.b16 %v2549, %v2545
    %v2694 = vpack.c.b16 %v2550, %v2546
    %v2695 = vpack.c.b16 %v2551, %v2547
    %v2696 = vpack.c.b16 %v2556, %v2552
    %v2697 = vpack.c.b16 %v2557, %v2553
    %v2698 = vpack.c.b16 %v2558, %v2554
    %v2699 = vpack.c.b16 %v2559, %v2555
    %v2700 = vpack.c.b16 %v2564, %v2560
    %v2701 = vpack.c.b16 %v2565, %v2561
    %v2702 = vpack.c.b16 %v2566, %v2562
    %v2703 = vpack.c.b16 %v2567, %v2563
    %v2704 = vpack.c.b16 %v2572, %v2568
    %v2705 = vpack.c.b16 %v2573, %v2569
    %v2706 = vpack.c.b16 %v2574, %v2570
    %v2707 = vpack.c.b16 %v2575, %v2571
    %v2708 = vpack.c.b16 %v2580, %v2576
    %v2709 = vpack.c.b16 %v2581, %v2577
    %v2710 = vpack.c.b16 %v2582, %v2578
    %v2711 = vpack.c.b16 %v2583, %v2579
    %2840 = vmatpush.bf16.msra.mxu0 %v2612
    %2841 = vmatpush.bf16.msra.mxu0 %v2608
    %2842 = vmatpush.bf16.msra.mxu0 %v2604
    %2843 = vmatpush.bf16.msra.mxu0 %v2600
    %2844 = vmatpush.bf16.msra.mxu0 %v2596
    %2845 = vmatpush.bf16.msra.mxu0 %v2592
    %2846 = vmatpush.bf16.msra.mxu0 %v2588
    %2847 = vmatpush.bf16.msra.mxu0 %v2584
    %2848 = vmatmul.bf16.gmra.mxu0 %v2056
    %v2849 = vpop.f32.mrf.mxu0
    %v2850 = vadd.f32 %v2192, %v2849
    %v2851 = vpop.f32.mrf.mxu0
    %2852 = vdwg.mxu0
    %2853 = vmatpush.bf16.msra.mxu0 %v2644
    %2854 = vmatpush.bf16.msra.mxu0 %v2640
    %2855 = vmatpush.bf16.msra.mxu0 %v2636
    %2856 = vmatpush.bf16.msra.mxu0 %v2632
    %2857 = vmatpush.bf16.msra.mxu0 %v2628
    %2858 = vmatpush.bf16.msra.mxu0 %v2624
    %2859 = vmatpush.bf16.msra.mxu0 %v2620
    %2860 = vmatpush.bf16.msra.mxu0 %v2616
    %2861 = vmatmul.bf16.gmra.mxu0 %v2057
    %v2862 = vpop.f32.mrf.mxu0
    %v2863 = vadd.f32 %v2850, %v2862
    %v2864 = vpop.f32.mrf.mxu0
    %2865 = vdwg.mxu0
    %2866 = vmatpush.bf16.msra.mxu0 %v2676
    %2867 = vmatpush.bf16.msra.mxu0 %v2672
    %2868 = vmatpush.bf16.msra.mxu0 %v2668
    %2869 = vmatpush.bf16.msra.mxu0 %v2664
    %2870 = vmatpush.bf16.msra.mxu0 %v2660
    %2871 = vmatpush.bf16.msra.mxu0 %v2656
    %2872 = vmatpush.bf16.msra.mxu0 %v2652
    %2873 = vmatpush.bf16.msra.mxu0 %v2648
    %2874 = vmatmul.bf16.gmra.mxu0 %v2058
    %v2875 = vpop.f32.mrf.mxu0
    %v2876 = vadd.f32 %v2863, %v2875
    %v2877 = vpop.f32.mrf.mxu0
    %2878 = vdwg.mxu0
    %2879 = vmatpush.bf16.msra.mxu0 %v2708
    %2880 = vmatpush.bf16.msra.mxu0 %v2704
    %2881 = vmatpush.bf16.msra.mxu0 %v2700
    %2882 = vmatpush.bf16.msra.mxu0 %v2696
    %2883 = vmatpush.bf16.msra.mxu0 %v2692
    %2884 = vmatpush.bf16.msra.mxu0 %v2688
    %2885 = vmatpush.bf16.msra.mxu0 %v2684
    %2886 = vmatpush.bf16.msra.mxu0 %v2680
    %2887 = vmatmul.bf16.gmra.mxu0 %v2059
    %v2888 = vpop.f32.mrf.mxu0
    %v2889 = vadd.f32 %v2876, %v2888
    %v2890 = vpop.f32.mrf.mxu0
    %2891 = vdwg.mxu0
    %2892 = vmatpush.bf16.msra.mxu0 %v2613
    %2893 = vmatpush.bf16.msra.mxu0 %v2609
    %2894 = vmatpush.bf16.msra.mxu0 %v2605
    %2895 = vmatpush.bf16.msra.mxu0 %v2601
    %2896 = vmatpush.bf16.msra.mxu0 %v2597
    %2897 = vmatpush.bf16.msra.mxu0 %v2593
    %2898 = vmatpush.bf16.msra.mxu0 %v2589
    %2899 = vmatpush.bf16.msra.mxu0 %v2585
    %2900 = vmatmul.bf16.gmra.mxu0 %v2056
    %v2901 = vpop.f32.mrf.mxu0
    %v2902 = vadd.f32 %v2193, %v2901
    %v2903 = vpop.f32.mrf.mxu0
    %2904 = vdwg.mxu0
    %2905 = vmatpush.bf16.msra.mxu0 %v2645
    %2906 = vmatpush.bf16.msra.mxu0 %v2641
    %2907 = vmatpush.bf16.msra.mxu0 %v2637
    %2908 = vmatpush.bf16.msra.mxu0 %v2633
    %2909 = vmatpush.bf16.msra.mxu0 %v2629
    %2910 = vmatpush.bf16.msra.mxu0 %v2625
    %2911 = vmatpush.bf16.msra.mxu0 %v2621
    %2912 = vmatpush.bf16.msra.mxu0 %v2617
    %2913 = vmatmul.bf16.gmra.mxu0 %v2057
    %v2914 = vpop.f32.mrf.mxu0
    %v2915 = vadd.f32 %v2902, %v2914
    %v2916 = vpop.f32.mrf.mxu0
    %2917 = vdwg.mxu0
    %2918 = vmatpush.bf16.msra.mxu0 %v2677
    %2919 = vmatpush.bf16.msra.mxu0 %v2673
    %2920 = vmatpush.bf16.msra.mxu0 %v2669
    %2921 = vmatpush.bf16.msra.mxu0 %v2665
    %2922 = vmatpush.bf16.msra.mxu0 %v2661
    %2923 = vmatpush.bf16.msra.mxu0 %v2657
    %2924 = vmatpush.bf16.msra.mxu0 %v2653
    %2925 = vmatpush.bf16.msra.mxu0 %v2649
    %2926 = vmatmul.bf16.gmra.mxu0 %v2058
    %v2927 = vpop.f32.mrf.mxu0
    %v2928 = vadd.f32 %v2915, %v2927
    %v2929 = vpop.f32.mrf.mxu0
    %2930 = vdwg.mxu0
    %2931 = vmatpush.bf16.msra.mxu0 %v2709
    %2932 = vmatpush.bf16.msra.mxu0 %v2705
    %2933 = vmatpush.bf16.msra.mxu0 %v2701
    %2934 = vmatpush.bf16.msra.mxu0 %v2697
    %2935 = vmatpush.bf16.msra.mxu0 %v2693
    %2936 = vmatpush.bf16.msra.mxu0 %v2689
    %2937 = vmatpush.bf16.msra.mxu0 %v2685
    %2938 = vmatpush.bf16.msra.mxu0 %v2681
    %2939 = vmatmul.bf16.gmra.mxu0 %v2059
    %v2940 = vpop.f32.mrf.mxu0
    %v2941 = vadd.f32 %v2928, %v2940
    %v2942 = vpop.f32.mrf.mxu0
    %2943 = vdwg.mxu0
    %2944 = vmatpush.bf16.msra.mxu0 %v2614
    %2945 = vmatpush.bf16.msra.mxu0 %v2610
    %2946 = vmatpush.bf16.msra.mxu0 %v2606
    %2947 = vmatpush.bf16.msra.mxu0 %v2602
    %2948 = vmatpush.bf16.msra.mxu0 %v2598
    %2949 = vmatpush.bf16.msra.mxu0 %v2594
    %2950 = vmatpush.bf16.msra.mxu0 %v2590
    %2951 = vmatpush.bf16.msra.mxu0 %v2586
    %2952 = vmatmul.bf16.gmra.mxu0 %v2056
    %v2953 = vpop.f32.mrf.mxu0
    %v2954 = vadd.f32 %v2194, %v2953
    %v2955 = vpop.f32.mrf.mxu0
    %2956 = vdwg.mxu0
    %2957 = vmatpush.bf16.msra.mxu0 %v2646
    %2958 = vmatpush.bf16.msra.mxu0 %v2642
    %2959 = vmatpush.bf16.msra.mxu0 %v2638
    %2960 = vmatpush.bf16.msra.mxu0 %v2634
    %2961 = vmatpush.bf16.msra.mxu0 %v2630
    %2962 = vmatpush.bf16.msra.mxu0 %v2626
    %2963 = vmatpush.bf16.msra.mxu0 %v2622
    %2964 = vmatpush.bf16.msra.mxu0 %v2618
    %2965 = vmatmul.bf16.gmra.mxu0 %v2057
    %v2966 = vpop.f32.mrf.mxu0
    %v2967 = vadd.f32 %v2954, %v2966
    %v2968 = vpop.f32.mrf.mxu0
    %2969 = vdwg.mxu0
    %2970 = vmatpush.bf16.msra.mxu0 %v2678
    %2971 = vmatpush.bf16.msra.mxu0 %v2674
    %2972 = vmatpush.bf16.msra.mxu0 %v2670
    %2973 = vmatpush.bf16.msra.mxu0 %v2666
    %2974 = vmatpush.bf16.msra.mxu0 %v2662
    %2975 = vmatpush.bf16.msra.mxu0 %v2658
    %2976 = vmatpush.bf16.msra.mxu0 %v2654
    %2977 = vmatpush.bf16.msra.mxu0 %v2650
    %2978 = vmatmul.bf16.gmra.mxu0 %v2058
    %v2979 = vpop.f32.mrf.mxu0
    %v2980 = vadd.f32 %v2967, %v2979
    %v2981 = vpop.f32.mrf.mxu0
    %2982 = vdwg.mxu0
    %2983 = vmatpush.bf16.msra.mxu0 %v2710
    %2984 = vmatpush.bf16.msra.mxu0 %v2706
    %2985 = vmatpush.bf16.msra.mxu0 %v2702
    %2986 = vmatpush.bf16.msra.mxu0 %v2698
    %2987 = vmatpush.bf16.msra.mxu0 %v2694
    %2988 = vmatpush.bf16.msra.mxu0 %v2690
    %2989 = vmatpush.bf16.msra.mxu0 %v2686
    %2990 = vmatpush.bf16.msra.mxu0 %v2682
    %2991 = vmatmul.bf16.gmra.mxu0 %v2059
    %v2992 = vpop.f32.mrf.mxu0
    %v2993 = vadd.f32 %v2980, %v2992
    %v2994 = vpop.f32.mrf.mxu0
    %2995 = vdwg.mxu0
    %2996 = vmatpush.bf16.msra.mxu0 %v2615
    %2997 = vmatpush.bf16.msra.mxu0 %v2611
    %2998 = vmatpush.bf16.msra.mxu0 %v2607
    %2999 = vmatpush.bf16.msra.mxu0 %v2603
    %3000 = vmatpush.bf16.msra.mxu0 %v2599
    %3001 = vmatpush.bf16.msra.mxu0 %v2595
    %3002 = vmatpush.bf16.msra.mxu0 %v2591
    %3003 = vmatpush.bf16.msra.mxu0 %v2587
    %3004 = vmatmul.bf16.gmra.mxu0 %v2056
    %v3005 = vpop.f32.mrf.mxu0
    %v3006 = vadd.f32 %v2195, %v3005
    %v3007 = vpop.f32.mrf.mxu0
    %3008 = vdwg.mxu0
    %3009 = vmatpush.bf16.msra.mxu0 %v2647
    %3010 = vmatpush.bf16.msra.mxu0 %v2643
    %3011 = vmatpush.bf16.msra.mxu0 %v2639
    %3012 = vmatpush.bf16.msra.mxu0 %v2635
    %3013 = vmatpush.bf16.msra.mxu0 %v2631
    %3014 = vmatpush.bf16.msra.mxu0 %v2627
    %3015 = vmatpush.bf16.msra.mxu0 %v2623
    %3016 = vmatpush.bf16.msra.mxu0 %v2619
    %3017 = vmatmul.bf16.gmra.mxu0 %v2057
    %v3018 = vpop.f32.mrf.mxu0
    %v3019 = vadd.f32 %v3006, %v3018
    %v3020 = vpop.f32.mrf.mxu0
    %3021 = vdwg.mxu0
    %3022 = vmatpush.bf16.msra.mxu0 %v2679
    %3023 = vmatpush.bf16.msra.mxu0 %v2675
    %3024 = vmatpush.bf16.msra.mxu0 %v2671
    %3025 = vmatpush.bf16.msra.mxu0 %v2667
    %3026 = vmatpush.bf16.msra.mxu0 %v2663
    %3027 = vmatpush.bf16.msra.mxu0 %v2659
    %3028 = vmatpush.bf16.msra.mxu0 %v2655
    %3029 = vmatpush.bf16.msra.mxu0 %v2651
    %3030 = vmatmul.bf16.gmra.mxu0 %v2058
    %v3031 = vpop.f32.mrf.mxu0
    %v3032 = vadd.f32 %v3019, %v3031
    %v3033 = vpop.f32.mrf.mxu0
    %3034 = vdwg.mxu0
    %3035 = vmatpush.bf16.msra.mxu0 %v2711
    %3036 = vmatpush.bf16.msra.mxu0 %v2707
    %3037 = vmatpush.bf16.msra.mxu0 %v2703
    %3038 = vmatpush.bf16.msra.mxu0 %v2699
    %3039 = vmatpush.bf16.msra.mxu0 %v2695
    %3040 = vmatpush.bf16.msra.mxu0 %v2691
    %3041 = vmatpush.bf16.msra.mxu0 %v2687
    %3042 = vmatpush.bf16.msra.mxu0 %v2683
    %3043 = vmatmul.bf16.gmra.mxu0 %v2059
    %v3044 = vpop.f32.mrf.mxu0
    %v3045 = vadd.f32 %v3032, %v3044
    %v3046 = vpop.f32.mrf.mxu0
    %3047 = vdwg.mxu0
    %v3048 = vmul.f32 %v2889, 0.2
    %v3049 = vmul.f32 %v2941, 0.2
    %v3050 = vmul.f32 %v2993, 0.2
    %v3051 = vmul.f32 %v3045, 0.2
    %v3052 = vmax.f32 %v2889, %v3048
    %v3053 = vmax.f32 %v2941, %v3049
    %v3054 = vmax.f32 %v2993, %v3050
    %v3055 = vmax.f32 %v3045, %v3051
    %v3056 = vpack.c.bf16 %v3052, %v3052
    %v3057 = vpack.c.bf16 %v3053, %v3053
    %v3058 = vpack.c.bf16 %v3054, %v3054
    %v3059 = vpack.c.bf16 %v3055, %v3055
    %s3060 = scalar_lea.vmem [#allocation2], 3072
    %v3061 = vld [vmem:[%s3060] sm:$0xff]
    %v3062 = vld [vmem:[%s3060 + $0x8] sm:$0xff]
    %v3063 = vld [vmem:[%s3060 + $0x10] sm:$0xff]
    %v3064 = vld [vmem:[%s3060 + $0x18] sm:$0xff]
    %v3065 = vld [vmem:[%s3060 + $0x20] sm:$0xff]
    %v3066 = vld [vmem:[%s3060 + $0x28] sm:$0xff]
    %v3067 = vld [vmem:[%s3060 + $0x30] sm:$0xff]
    %v3068 = vld [vmem:[%s3060 + $0x38] sm:$0xff]
    %v3069 = vld [vmem:[%s3060 + $0x40] sm:$0xff]
    %v3070 = vld [vmem:[%s3060 + $0x48] sm:$0xff]
    %v3071 = vld [vmem:[%s3060 + $0x50] sm:$0xff]
    %v3072 = vld [vmem:[%s3060 + $0x58] sm:$0xff]
    %v3073 = vld [vmem:[%s3060 + $0x60] sm:$0xff]
    %v3074 = vld [vmem:[%s3060 + $0x68] sm:$0xff]
    %v3075 = vld [vmem:[%s3060 + $0x70] sm:$0xff]
    %v3076 = vld [vmem:[%s3060 + $0x78] sm:$0xff]
    %v3077 = vld [vmem:[%s3060 + $0x80] sm:$0xff]
    %v3078 = vld [vmem:[%s3060 + $0x88] sm:$0xff]
    %v3079 = vld [vmem:[%s3060 + $0x90] sm:$0xff]
    %v3080 = vld [vmem:[%s3060 + $0x98] sm:$0xff]
    %v3081 = vld [vmem:[%s3060 + $0xa0] sm:$0xff]
    %v3082 = vld [vmem:[%s3060 + $0xa8] sm:$0xff]
    %v3083 = vld [vmem:[%s3060 + $0xb0] sm:$0xff]
    %v3084 = vld [vmem:[%s3060 + $0xb8] sm:$0xff]
    %v3085 = vld [vmem:[%s3060 + $0xc0] sm:$0xff]
    %v3086 = vld [vmem:[%s3060 + $0xc8] sm:$0xff]
    %v3087 = vld [vmem:[%s3060 + $0xd0] sm:$0xff]
    %v3088 = vld [vmem:[%s3060 + $0xd8] sm:$0xff]
    %v3089 = vld [vmem:[%s3060 + $0xe0] sm:$0xff]
    %v3090 = vld [vmem:[%s3060 + $0xe8] sm:$0xff]
    %v3091 = vld [vmem:[%s3060 + $0xf0] sm:$0xff]
    %v3092 = vld [vmem:[%s3060 + $0xf8] sm:$0xff]
    %v3093 = vld [vmem:[%s3060 + $0x100] sm:$0xff]
    %v3094 = vld [vmem:[%s3060 + $0x108] sm:$0xff]
    %v3095 = vld [vmem:[%s3060 + $0x110] sm:$0xff]
    %v3096 = vld [vmem:[%s3060 + $0x118] sm:$0xff]
    %v3097 = vld [vmem:[%s3060 + $0x120] sm:$0xff]
    %v3098 = vld [vmem:[%s3060 + $0x128] sm:$0xff]
    %v3099 = vld [vmem:[%s3060 + $0x130] sm:$0xff]
    %v3100 = vld [vmem:[%s3060 + $0x138] sm:$0xff]
    %v3101 = vld [vmem:[%s3060 + $0x140] sm:$0xff]
    %v3102 = vld [vmem:[%s3060 + $0x148] sm:$0xff]
    %v3103 = vld [vmem:[%s3060 + $0x150] sm:$0xff]
    %v3104 = vld [vmem:[%s3060 + $0x158] sm:$0xff]
    %v3105 = vld [vmem:[%s3060 + $0x160] sm:$0xff]
    %v3106 = vld [vmem:[%s3060 + $0x168] sm:$0xff]
    %v3107 = vld [vmem:[%s3060 + $0x170] sm:$0xff]
    %v3108 = vld [vmem:[%s3060 + $0x178] sm:$0xff]
    %v3109 = vld [vmem:[%s3060 + $0x180] sm:$0xff]
    %v3110 = vld [vmem:[%s3060 + $0x188] sm:$0xff]
    %v3111 = vld [vmem:[%s3060 + $0x190] sm:$0xff]
    %v3112 = vld [vmem:[%s3060 + $0x198] sm:$0xff]
    %v3113 = vld [vmem:[%s3060 + $0x1a0] sm:$0xff]
    %v3114 = vld [vmem:[%s3060 + $0x1a8] sm:$0xff]
    %v3115 = vld [vmem:[%s3060 + $0x1b0] sm:$0xff]
    %v3116 = vld [vmem:[%s3060 + $0x1b8] sm:$0xff]
    %v3117 = vld [vmem:[%s3060 + $0x1c0] sm:$0xff]
    %v3118 = vld [vmem:[%s3060 + $0x1c8] sm:$0xff]
    %v3119 = vld [vmem:[%s3060 + $0x1d0] sm:$0xff]
    %v3120 = vld [vmem:[%s3060 + $0x1d8] sm:$0xff]
    %v3121 = vld [vmem:[%s3060 + $0x1e0] sm:$0xff]
    %v3122 = vld [vmem:[%s3060 + $0x1e8] sm:$0xff]
    %v3123 = vld [vmem:[%s3060 + $0x1f0] sm:$0xff]
    %v3124 = vld [vmem:[%s3060 + $0x1f8] sm:$0xff]
    %v3125 = vld [vmem:[%s3060 + $0x200] sm:$0xff]
    %v3126 = vld [vmem:[%s3060 + $0x208] sm:$0xff]
    %v3127 = vld [vmem:[%s3060 + $0x210] sm:$0xff]
    %v3128 = vld [vmem:[%s3060 + $0x218] sm:$0xff]
    %v3129 = vld [vmem:[%s3060 + $0x220] sm:$0xff]
    %v3130 = vld [vmem:[%s3060 + $0x228] sm:$0xff]
    %v3131 = vld [vmem:[%s3060 + $0x230] sm:$0xff]
    %v3132 = vld [vmem:[%s3060 + $0x238] sm:$0xff]
    %v3133 = vld [vmem:[%s3060 + $0x240] sm:$0xff]
    %v3134 = vld [vmem:[%s3060 + $0x248] sm:$0xff]
    %v3135 = vld [vmem:[%s3060 + $0x250] sm:$0xff]
    %v3136 = vld [vmem:[%s3060 + $0x258] sm:$0xff]
    %v3137 = vld [vmem:[%s3060 + $0x260] sm:$0xff]
    %v3138 = vld [vmem:[%s3060 + $0x268] sm:$0xff]
    %v3139 = vld [vmem:[%s3060 + $0x270] sm:$0xff]
    %v3140 = vld [vmem:[%s3060 + $0x278] sm:$0xff]
    %v3141 = vld [vmem:[%s3060 + $0x280] sm:$0xff]
    %v3142 = vld [vmem:[%s3060 + $0x288] sm:$0xff]
    %v3143 = vld [vmem:[%s3060 + $0x290] sm:$0xff]
    %v3144 = vld [vmem:[%s3060 + $0x298] sm:$0xff]
    %v3145 = vld [vmem:[%s3060 + $0x2a0] sm:$0xff]
    %v3146 = vld [vmem:[%s3060 + $0x2a8] sm:$0xff]
    %v3147 = vld [vmem:[%s3060 + $0x2b0] sm:$0xff]
    %v3148 = vld [vmem:[%s3060 + $0x2b8] sm:$0xff]
    %v3149 = vld [vmem:[%s3060 + $0x2c0] sm:$0xff]
    %v3150 = vld [vmem:[%s3060 + $0x2c8] sm:$0xff]
    %v3151 = vld [vmem:[%s3060 + $0x2d0] sm:$0xff]
    %v3152 = vld [vmem:[%s3060 + $0x2d8] sm:$0xff]
    %v3153 = vld [vmem:[%s3060 + $0x2e0] sm:$0xff]
    %v3154 = vld [vmem:[%s3060 + $0x2e8] sm:$0xff]
    %v3155 = vld [vmem:[%s3060 + $0x2f0] sm:$0xff]
    %v3156 = vld [vmem:[%s3060 + $0x2f8] sm:$0xff]
    %v3157 = vld [vmem:[%s3060 + $0x300] sm:$0xff]
    %v3158 = vld [vmem:[%s3060 + $0x308] sm:$0xff]
    %v3159 = vld [vmem:[%s3060 + $0x310] sm:$0xff]
    %v3160 = vld [vmem:[%s3060 + $0x318] sm:$0xff]
    %v3161 = vld [vmem:[%s3060 + $0x320] sm:$0xff]
    %v3162 = vld [vmem:[%s3060 + $0x328] sm:$0xff]
    %v3163 = vld [vmem:[%s3060 + $0x330] sm:$0xff]
    %v3164 = vld [vmem:[%s3060 + $0x338] sm:$0xff]
    %v3165 = vld [vmem:[%s3060 + $0x340] sm:$0xff]
    %v3166 = vld [vmem:[%s3060 + $0x348] sm:$0xff]
    %v3167 = vld [vmem:[%s3060 + $0x350] sm:$0xff]
    %v3168 = vld [vmem:[%s3060 + $0x358] sm:$0xff]
    %v3169 = vld [vmem:[%s3060 + $0x360] sm:$0xff]
    %v3170 = vld [vmem:[%s3060 + $0x368] sm:$0xff]
    %v3171 = vld [vmem:[%s3060 + $0x370] sm:$0xff]
    %v3172 = vld [vmem:[%s3060 + $0x378] sm:$0xff]
    %v3173 = vld [vmem:[%s3060 + $0x380] sm:$0xff]
    %v3174 = vld [vmem:[%s3060 + $0x388] sm:$0xff]
    %v3175 = vld [vmem:[%s3060 + $0x390] sm:$0xff]
    %v3176 = vld [vmem:[%s3060 + $0x398] sm:$0xff]
    %v3177 = vld [vmem:[%s3060 + $0x3a0] sm:$0xff]
    %v3178 = vld [vmem:[%s3060 + $0x3a8] sm:$0xff]
    %v3179 = vld [vmem:[%s3060 + $0x3b0] sm:$0xff]
    %v3180 = vld [vmem:[%s3060 + $0x3b8] sm:$0xff]
    %v3181 = vld [vmem:[%s3060 + $0x3c0] sm:$0xff]
    %v3182 = vld [vmem:[%s3060 + $0x3c8] sm:$0xff]
    %v3183 = vld [vmem:[%s3060 + $0x3d0] sm:$0xff]
    %v3184 = vld [vmem:[%s3060 + $0x3d8] sm:$0xff]
    %v3185 = vld [vmem:[%s3060 + $0x3e0] sm:$0xff]
    %v3186 = vld [vmem:[%s3060 + $0x3e8] sm:$0xff]
    %v3187 = vld [vmem:[%s3060 + $0x3f0] sm:$0xff]
    %v3188 = vld [vmem:[%s3060 + $0x3f8] sm:$0xff]
    %s3189 = scalar_lea.vmem [#allocation4], 12
    %v3190 = vld [vmem:[%s3189] sm:$0xf]
    %v3192 = vperm.slane %v3190, 0
    %v3193 = vperm.slane %v3190, 1
    %v3194 = vperm.slane %v3190, 2
    %v3195 = vperm.slane %v3190, 3
    %v3328 = vunpack.c.l.b16 %v3061
    %v3329 = vunpack.c.h.b16 %v3061
    %v3330 = vunpack.c.l.b16 %v3062
    %v3331 = vunpack.c.h.b16 %v3062
    %v3332 = vunpack.c.l.b16 %v3063
    %v3333 = vunpack.c.h.b16 %v3063
    %v3334 = vunpack.c.l.b16 %v3064
    %v3335 = vunpack.c.h.b16 %v3064
    %v3336 = vunpack.c.l.b16 %v3065
    %v3337 = vunpack.c.h.b16 %v3065
    %v3338 = vunpack.c.l.b16 %v3066
    %v3339 = vunpack.c.h.b16 %v3066
    %v3340 = vunpack.c.l.b16 %v3067
    %v3341 = vunpack.c.h.b16 %v3067
    %v3342 = vunpack.c.l.b16 %v3068
    %v3343 = vunpack.c.h.b16 %v3068
    %v3344 = vunpack.c.l.b16 %v3069
    %v3345 = vunpack.c.h.b16 %v3069
    %v3346 = vunpack.c.l.b16 %v3070
    %v3347 = vunpack.c.h.b16 %v3070
    %v3348 = vunpack.c.l.b16 %v3071
    %v3349 = vunpack.c.h.b16 %v3071
    %v3350 = vunpack.c.l.b16 %v3072
    %v3351 = vunpack.c.h.b16 %v3072
    %v3352 = vunpack.c.l.b16 %v3073
    %v3353 = vunpack.c.h.b16 %v3073
    %v3354 = vunpack.c.l.b16 %v3074
    %v3355 = vunpack.c.h.b16 %v3074
    %v3356 = vunpack.c.l.b16 %v3075
    %v3357 = vunpack.c.h.b16 %v3075
    %v3358 = vunpack.c.l.b16 %v3076
    %v3359 = vunpack.c.h.b16 %v3076
    %v3360 = vunpack.c.l.b16 %v3077
    %v3361 = vunpack.c.h.b16 %v3077
    %v3362 = vunpack.c.l.b16 %v3078
    %v3363 = vunpack.c.h.b16 %v3078
    %v3364 = vunpack.c.l.b16 %v3079
    %v3365 = vunpack.c.h.b16 %v3079
    %v3366 = vunpack.c.l.b16 %v3080
    %v3367 = vunpack.c.h.b16 %v3080
    %v3368 = vunpack.c.l.b16 %v3081
    %v3369 = vunpack.c.h.b16 %v3081
    %v3370 = vunpack.c.l.b16 %v3082
    %v3371 = vunpack.c.h.b16 %v3082
    %v3372 = vunpack.c.l.b16 %v3083
    %v3373 = vunpack.c.h.b16 %v3083
    %v3374 = vunpack.c.l.b16 %v3084
    %v3375 = vunpack.c.h.b16 %v3084
    %v3376 = vunpack.c.l.b16 %v3085
    %v3377 = vunpack.c.h.b16 %v3085
    %v3378 = vunpack.c.l.b16 %v3086
    %v3379 = vunpack.c.h.b16 %v3086
    %v3380 = vunpack.c.l.b16 %v3087
    %v3381 = vunpack.c.h.b16 %v3087
    %v3382 = vunpack.c.l.b16 %v3088
    %v3383 = vunpack.c.h.b16 %v3088
    %v3384 = vunpack.c.l.b16 %v3089
    %v3385 = vunpack.c.h.b16 %v3089
    %v3386 = vunpack.c.l.b16 %v3090
    %v3387 = vunpack.c.h.b16 %v3090
    %v3388 = vunpack.c.l.b16 %v3091
    %v3389 = vunpack.c.h.b16 %v3091
    %v3390 = vunpack.c.l.b16 %v3092
    %v3391 = vunpack.c.h.b16 %v3092
    %v3392 = vunpack.c.l.b16 %v3093
    %v3393 = vunpack.c.h.b16 %v3093
    %v3394 = vunpack.c.l.b16 %v3094
    %v3395 = vunpack.c.h.b16 %v3094
    %v3396 = vunpack.c.l.b16 %v3095
    %v3397 = vunpack.c.h.b16 %v3095
    %v3398 = vunpack.c.l.b16 %v3096
    %v3399 = vunpack.c.h.b16 %v3096
    %v3400 = vunpack.c.l.b16 %v3097
    %v3401 = vunpack.c.h.b16 %v3097
    %v3402 = vunpack.c.l.b16 %v3098
    %v3403 = vunpack.c.h.b16 %v3098
    %v3404 = vunpack.c.l.b16 %v3099
    %v3405 = vunpack.c.h.b16 %v3099
    %v3406 = vunpack.c.l.b16 %v3100
    %v3407 = vunpack.c.h.b16 %v3100
    %v3408 = vunpack.c.l.b16 %v3101
    %v3409 = vunpack.c.h.b16 %v3101
    %v3410 = vunpack.c.l.b16 %v3102
    %v3411 = vunpack.c.h.b16 %v3102
    %v3412 = vunpack.c.l.b16 %v3103
    %v3413 = vunpack.c.h.b16 %v3103
    %v3414 = vunpack.c.l.b16 %v3104
    %v3415 = vunpack.c.h.b16 %v3104
    %v3416 = vunpack.c.l.b16 %v3105
    %v3417 = vunpack.c.h.b16 %v3105
    %v3418 = vunpack.c.l.b16 %v3106
    %v3419 = vunpack.c.h.b16 %v3106
    %v3420 = vunpack.c.l.b16 %v3107
    %v3421 = vunpack.c.h.b16 %v3107
    %v3422 = vunpack.c.l.b16 %v3108
    %v3423 = vunpack.c.h.b16 %v3108
    %v3424 = vunpack.c.l.b16 %v3109
    %v3425 = vunpack.c.h.b16 %v3109
    %v3426 = vunpack.c.l.b16 %v3110
    %v3427 = vunpack.c.h.b16 %v3110
    %v3428 = vunpack.c.l.b16 %v3111
    %v3429 = vunpack.c.h.b16 %v3111
    %v3430 = vunpack.c.l.b16 %v3112
    %v3431 = vunpack.c.h.b16 %v3112
    %v3432 = vunpack.c.l.b16 %v3113
    %v3433 = vunpack.c.h.b16 %v3113
    %v3434 = vunpack.c.l.b16 %v3114
    %v3435 = vunpack.c.h.b16 %v3114
    %v3436 = vunpack.c.l.b16 %v3115
    %v3437 = vunpack.c.h.b16 %v3115
    %v3438 = vunpack.c.l.b16 %v3116
    %v3439 = vunpack.c.h.b16 %v3116
    %v3440 = vunpack.c.l.b16 %v3117
    %v3441 = vunpack.c.h.b16 %v3117
    %v3442 = vunpack.c.l.b16 %v3118
    %v3443 = vunpack.c.h.b16 %v3118
    %v3444 = vunpack.c.l.b16 %v3119
    %v3445 = vunpack.c.h.b16 %v3119
    %v3446 = vunpack.c.l.b16 %v3120
    %v3447 = vunpack.c.h.b16 %v3120
    %v3448 = vunpack.c.l.b16 %v3121
    %v3449 = vunpack.c.h.b16 %v3121
    %v3450 = vunpack.c.l.b16 %v3122
    %v3451 = vunpack.c.h.b16 %v3122
    %v3452 = vunpack.c.l.b16 %v3123
    %v3453 = vunpack.c.h.b16 %v3123
    %v3454 = vunpack.c.l.b16 %v3124
    %v3455 = vunpack.c.h.b16 %v3124
    %v3456 = vunpack.c.l.b16 %v3125
    %v3457 = vunpack.c.h.b16 %v3125
    %v3458 = vunpack.c.l.b16 %v3126
    %v3459 = vunpack.c.h.b16 %v3126
    %v3460 = vunpack.c.l.b16 %v3127
    %v3461 = vunpack.c.h.b16 %v3127
    %v3462 = vunpack.c.l.b16 %v3128
    %v3463 = vunpack.c.h.b16 %v3128
    %v3464 = vunpack.c.l.b16 %v3129
    %v3465 = vunpack.c.h.b16 %v3129
    %v3466 = vunpack.c.l.b16 %v3130
    %v3467 = vunpack.c.h.b16 %v3130
    %v3468 = vunpack.c.l.b16 %v3131
    %v3469 = vunpack.c.h.b16 %v3131
    %v3470 = vunpack.c.l.b16 %v3132
    %v3471 = vunpack.c.h.b16 %v3132
    %v3472 = vunpack.c.l.b16 %v3133
    %v3473 = vunpack.c.h.b16 %v3133
    %v3474 = vunpack.c.l.b16 %v3134
    %v3475 = vunpack.c.h.b16 %v3134
    %v3476 = vunpack.c.l.b16 %v3135
    %v3477 = vunpack.c.h.b16 %v3135
    %v3478 = vunpack.c.l.b16 %v3136
    %v3479 = vunpack.c.h.b16 %v3136
    %v3480 = vunpack.c.l.b16 %v3137
    %v3481 = vunpack.c.h.b16 %v3137
    %v3482 = vunpack.c.l.b16 %v3138
    %v3483 = vunpack.c.h.b16 %v3138
    %v3484 = vunpack.c.l.b16 %v3139
    %v3485 = vunpack.c.h.b16 %v3139
    %v3486 = vunpack.c.l.b16 %v3140
    %v3487 = vunpack.c.h.b16 %v3140
    %v3488 = vunpack.c.l.b16 %v3141
    %v3489 = vunpack.c.h.b16 %v3141
    %v3490 = vunpack.c.l.b16 %v3142
    %v3491 = vunpack.c.h.b16 %v3142
    %v3492 = vunpack.c.l.b16 %v3143
    %v3493 = vunpack.c.h.b16 %v3143
    %v3494 = vunpack.c.l.b16 %v3144
    %v3495 = vunpack.c.h.b16 %v3144
    %v3496 = vunpack.c.l.b16 %v3145
    %v3497 = vunpack.c.h.b16 %v3145
    %v3498 = vunpack.c.l.b16 %v3146
    %v3499 = vunpack.c.h.b16 %v3146
    %v3500 = vunpack.c.l.b16 %v3147
    %v3501 = vunpack.c.h.b16 %v3147
    %v3502 = vunpack.c.l.b16 %v3148
    %v3503 = vunpack.c.h.b16 %v3148
    %v3504 = vunpack.c.l.b16 %v3149
    %v3505 = vunpack.c.h.b16 %v3149
    %v3506 = vunpack.c.l.b16 %v3150
    %v3507 = vunpack.c.h.b16 %v3150
    %v3508 = vunpack.c.l.b16 %v3151
    %v3509 = vunpack.c.h.b16 %v3151
    %v3510 = vunpack.c.l.b16 %v3152
    %v3511 = vunpack.c.h.b16 %v3152
    %v3512 = vunpack.c.l.b16 %v3153
    %v3513 = vunpack.c.h.b16 %v3153
    %v3514 = vunpack.c.l.b16 %v3154
    %v3515 = vunpack.c.h.b16 %v3154
    %v3516 = vunpack.c.l.b16 %v3155
    %v3517 = vunpack.c.h.b16 %v3155
    %v3518 = vunpack.c.l.b16 %v3156
    %v3519 = vunpack.c.h.b16 %v3156
    %v3520 = vunpack.c.l.b16 %v3157
    %v3521 = vunpack.c.h.b16 %v3157
    %v3522 = vunpack.c.l.b16 %v3158
    %v3523 = vunpack.c.h.b16 %v3158
    %v3524 = vunpack.c.l.b16 %v3159
    %v3525 = vunpack.c.h.b16 %v3159
    %v3526 = vunpack.c.l.b16 %v3160
    %v3527 = vunpack.c.h.b16 %v3160
    %v3528 = vunpack.c.l.b16 %v3161
    %v3529 = vunpack.c.h.b16 %v3161
    %v3530 = vunpack.c.l.b16 %v3162
    %v3531 = vunpack.c.h.b16 %v3162
    %v3532 = vunpack.c.l.b16 %v3163
    %v3533 = vunpack.c.h.b16 %v3163
    %v3534 = vunpack.c.l.b16 %v3164
    %v3535 = vunpack.c.h.b16 %v3164
    %v3536 = vunpack.c.l.b16 %v3165
    %v3537 = vunpack.c.h.b16 %v3165
    %v3538 = vunpack.c.l.b16 %v3166
    %v3539 = vunpack.c.h.b16 %v3166
    %v3540 = vunpack.c.l.b16 %v3167
    %v3541 = vunpack.c.h.b16 %v3167
    %v3542 = vunpack.c.l.b16 %v3168
    %v3543 = vunpack.c.h.b16 %v3168
    %v3544 = vunpack.c.l.b16 %v3169
    %v3545 = vunpack.c.h.b16 %v3169
    %v3546 = vunpack.c.l.b16 %v3170
    %v3547 = vunpack.c.h.b16 %v3170
    %v3548 = vunpack.c.l.b16 %v3171
    %v3549 = vunpack.c.h.b16 %v3171
    %v3550 = vunpack.c.l.b16 %v3172
    %v3551 = vunpack.c.h.b16 %v3172
    %v3552 = vunpack.c.l.b16 %v3173
    %v3553 = vunpack.c.h.b16 %v3173
    %v3554 = vunpack.c.l.b16 %v3174
    %v3555 = vunpack.c.h.b16 %v3174
    %v3556 = vunpack.c.l.b16 %v3175
    %v3557 = vunpack.c.h.b16 %v3175
    %v3558 = vunpack.c.l.b16 %v3176
    %v3559 = vunpack.c.h.b16 %v3176
    %v3560 = vunpack.c.l.b16 %v3177
    %v3561 = vunpack.c.h.b16 %v3177
    %v3562 = vunpack.c.l.b16 %v3178
    %v3563 = vunpack.c.h.b16 %v3178
    %v3564 = vunpack.c.l.b16 %v3179
    %v3565 = vunpack.c.h.b16 %v3179
    %v3566 = vunpack.c.l.b16 %v3180
    %v3567 = vunpack.c.h.b16 %v3180
    %v3568 = vunpack.c.l.b16 %v3181
    %v3569 = vunpack.c.h.b16 %v3181
    %v3570 = vunpack.c.l.b16 %v3182
    %v3571 = vunpack.c.h.b16 %v3182
    %v3572 = vunpack.c.l.b16 %v3183
    %v3573 = vunpack.c.h.b16 %v3183
    %v3574 = vunpack.c.l.b16 %v3184
    %v3575 = vunpack.c.h.b16 %v3184
    %v3576 = vunpack.c.l.b16 %v3185
    %v3577 = vunpack.c.h.b16 %v3185
    %v3578 = vunpack.c.l.b16 %v3186
    %v3579 = vunpack.c.h.b16 %v3186
    %v3580 = vunpack.c.l.b16 %v3187
    %v3581 = vunpack.c.h.b16 %v3187
    %v3582 = vunpack.c.l.b16 %v3188
    %v3583 = vunpack.c.h.b16 %v3188
    %v3584 = vpack.c.b16 %v3332, %v3328
    %v3585 = vpack.c.b16 %v3333, %v3329
    %v3586 = vpack.c.b16 %v3334, %v3330
    %v3587 = vpack.c.b16 %v3335, %v3331
    %v3588 = vpack.c.b16 %v3340, %v3336
    %v3589 = vpack.c.b16 %v3341, %v3337
    %v3590 = vpack.c.b16 %v3342, %v3338
    %v3591 = vpack.c.b16 %v3343, %v3339
    %v3592 = vpack.c.b16 %v3348, %v3344
    %v3593 = vpack.c.b16 %v3349, %v3345
    %v3594 = vpack.c.b16 %v3350, %v3346
    %v3595 = vpack.c.b16 %v3351, %v3347
    %v3596 = vpack.c.b16 %v3356, %v3352
    %v3597 = vpack.c.b16 %v3357, %v3353
    %v3598 = vpack.c.b16 %v3358, %v3354
    %v3599 = vpack.c.b16 %v3359, %v3355
    %v3600 = vpack.c.b16 %v3364, %v3360
    %v3601 = vpack.c.b16 %v3365, %v3361
    %v3602 = vpack.c.b16 %v3366, %v3362
    %v3603 = vpack.c.b16 %v3367, %v3363
    %v3604 = vpack.c.b16 %v3372, %v3368
    %v3605 = vpack.c.b16 %v3373, %v3369
    %v3606 = vpack.c.b16 %v3374, %v3370
    %v3607 = vpack.c.b16 %v3375, %v3371
    %v3608 = vpack.c.b16 %v3380, %v3376
    %v3609 = vpack.c.b16 %v3381, %v3377
    %v3610 = vpack.c.b16 %v3382, %v3378
    %v3611 = vpack.c.b16 %v3383, %v3379
    %v3612 = vpack.c.b16 %v3388, %v3384
    %v3613 = vpack.c.b16 %v3389, %v3385
    %v3614 = vpack.c.b16 %v3390, %v3386
    %v3615 = vpack.c.b16 %v3391, %v3387
    %v3616 = vpack.c.b16 %v3396, %v3392
    %v3617 = vpack.c.b16 %v3397, %v3393
    %v3618 = vpack.c.b16 %v3398, %v3394
    %v3619 = vpack.c.b16 %v3399, %v3395
    %v3620 = vpack.c.b16 %v3404, %v3400
    %v3621 = vpack.c.b16 %v3405, %v3401
    %v3622 = vpack.c.b16 %v3406, %v3402
    %v3623 = vpack.c.b16 %v3407, %v3403
    %v3624 = vpack.c.b16 %v3412, %v3408
    %v3625 = vpack.c.b16 %v3413, %v3409
    %v3626 = vpack.c.b16 %v3414, %v3410
    %v3627 = vpack.c.b16 %v3415, %v3411
    %v3628 = vpack.c.b16 %v3420, %v3416
    %v3629 = vpack.c.b16 %v3421, %v3417
    %v3630 = vpack.c.b16 %v3422, %v3418
    %v3631 = vpack.c.b16 %v3423, %v3419
    %v3632 = vpack.c.b16 %v3428, %v3424
    %v3633 = vpack.c.b16 %v3429, %v3425
    %v3634 = vpack.c.b16 %v3430, %v3426
    %v3635 = vpack.c.b16 %v3431, %v3427
    %v3636 = vpack.c.b16 %v3436, %v3432
    %v3637 = vpack.c.b16 %v3437, %v3433
    %v3638 = vpack.c.b16 %v3438, %v3434
    %v3639 = vpack.c.b16 %v3439, %v3435
    %v3640 = vpack.c.b16 %v3444, %v3440
    %v3641 = vpack.c.b16 %v3445, %v3441
    %v3642 = vpack.c.b16 %v3446, %v3442
    %v3643 = vpack.c.b16 %v3447, %v3443
    %v3644 = vpack.c.b16 %v3452, %v3448
    %v3645 = vpack.c.b16 %v3453, %v3449
    %v3646 = vpack.c.b16 %v3454, %v3450
    %v3647 = vpack.c.b16 %v3455, %v3451
    %v3648 = vpack.c.b16 %v3460, %v3456
    %v3649 = vpack.c.b16 %v3461, %v3457
    %v3650 = vpack.c.b16 %v3462, %v3458
    %v3651 = vpack.c.b16 %v3463, %v3459
    %v3652 = vpack.c.b16 %v3468, %v3464
    %v3653 = vpack.c.b16 %v3469, %v3465
    %v3654 = vpack.c.b16 %v3470, %v3466
    %v3655 = vpack.c.b16 %v3471, %v3467
    %v3656 = vpack.c.b16 %v3476, %v3472
    %v3657 = vpack.c.b16 %v3477, %v3473
    %v3658 = vpack.c.b16 %v3478, %v3474
    %v3659 = vpack.c.b16 %v3479, %v3475
    %v3660 = vpack.c.b16 %v3484, %v3480
    %v3661 = vpack.c.b16 %v3485, %v3481
    %v3662 = vpack.c.b16 %v3486, %v3482
    %v3663 = vpack.c.b16 %v3487, %v3483
    %v3664 = vpack.c.b16 %v3492, %v3488
    %v3665 = vpack.c.b16 %v3493, %v3489
    %v3666 = vpack.c.b16 %v3494, %v3490
    %v3667 = vpack.c.b16 %v3495, %v3491
    %v3668 = vpack.c.b16 %v3500, %v3496
    %v3669 = vpack.c.b16 %v3501, %v3497
    %v3670 = vpack.c.b16 %v3502, %v3498
    %v3671 = vpack.c.b16 %v3503, %v3499
    %v3672 = vpack.c.b16 %v3508, %v3504
    %v3673 = vpack.c.b16 %v3509, %v3505
    %v3674 = vpack.c.b16 %v3510, %v3506
    %v3675 = vpack.c.b16 %v3511, %v3507
    %v3676 = vpack.c.b16 %v3516, %v3512
    %v3677 = vpack.c.b16 %v3517, %v3513
    %v3678 = vpack.c.b16 %v3518, %v3514
    %v3679 = vpack.c.b16 %v3519, %v3515
    %v3680 = vpack.c.b16 %v3524, %v3520
    %v3681 = vpack.c.b16 %v3525, %v3521
    %v3682 = vpack.c.b16 %v3526, %v3522
    %v3683 = vpack.c.b16 %v3527, %v3523
    %v3684 = vpack.c.b16 %v3532, %v3528
    %v3685 = vpack.c.b16 %v3533, %v3529
    %v3686 = vpack.c.b16 %v3534, %v3530
    %v3687 = vpack.c.b16 %v3535, %v3531
    %v3688 = vpack.c.b16 %v3540, %v3536
    %v3689 = vpack.c.b16 %v3541, %v3537
    %v3690 = vpack.c.b16 %v3542, %v3538
    %v3691 = vpack.c.b16 %v3543, %v3539
    %v3692 = vpack.c.b16 %v3548, %v3544
    %v3693 = vpack.c.b16 %v3549, %v3545
    %v3694 = vpack.c.b16 %v3550, %v3546
    %v3695 = vpack.c.b16 %v3551, %v3547
    %v3696 = vpack.c.b16 %v3556, %v3552
    %v3697 = vpack.c.b16 %v3557, %v3553
    %v3698 = vpack.c.b16 %v3558, %v3554
    %v3699 = vpack.c.b16 %v3559, %v3555
    %v3700 = vpack.c.b16 %v3564, %v3560
    %v3701 = vpack.c.b16 %v3565, %v3561
    %v3702 = vpack.c.b16 %v3566, %v3562
    %v3703 = vpack.c.b16 %v3567, %v3563
    %v3704 = vpack.c.b16 %v3572, %v3568
    %v3705 = vpack.c.b16 %v3573, %v3569
    %v3706 = vpack.c.b16 %v3574, %v3570
    %v3707 = vpack.c.b16 %v3575, %v3571
    %v3708 = vpack.c.b16 %v3580, %v3576
    %v3709 = vpack.c.b16 %v3581, %v3577
    %v3710 = vpack.c.b16 %v3582, %v3578
    %v3711 = vpack.c.b16 %v3583, %v3579
    %3840 = vmatpush.bf16.msra.mxu0 %v3612
    %3841 = vmatpush.bf16.msra.mxu0 %v3608
    %3842 = vmatpush.bf16.msra.mxu0 %v3604
    %3843 = vmatpush.bf16.msra.mxu0 %v3600
    %3844 = vmatpush.bf16.msra.mxu0 %v3596
    %3845 = vmatpush.bf16.msra.mxu0 %v3592
    %3846 = vmatpush.bf16.msra.mxu0 %v3588
    %3847 = vmatpush.bf16.msra.mxu0 %v3584
    %3848 = vmatmul.bf16.gmra.mxu0 %v3056
    %v3849 = vpop.f32.mrf.mxu0
    %v3850 = vadd.f32 %v3192, %v3849
    %v3851 = vpop.f32.mrf.mxu0
    %3852 = vdwg.mxu0
    %3853 = vmatpush.bf16.msra.mxu0 %v3644
    %3854 = vmatpush.bf16.msra.mxu0 %v3640
    %3855 = vmatpush.bf16.msra.mxu0 %v3636
    %3856 = vmatpush.bf16.msra.mxu0 %v3632
    %3857 = vmatpush.bf16.msra.mxu0 %v3628
    %3858 = vmatpush.bf16.msra.mxu0 %v3624
    %3859 = vmatpush.bf16.msra.mxu0 %v3620
    %3860 = vmatpush.bf16.msra.mxu0 %v3616
    %3861 = vmatmul.bf16.gmra.mxu0 %v3057
    %v3862 = vpop.f32.mrf.mxu0
    %v3863 = vadd.f32 %v3850, %v3862
    %v3864 = vpop.f32.mrf.mxu0
    %3865 = vdwg.mxu0
    %3866 = vmatpush.bf16.msra.mxu0 %v3676
    %3867 = vmatpush.bf16.msra.mxu0 %v3672
    %3868 = vmatpush.bf16.msra.mxu0 %v3668
    %3869 = vmatpush.bf16.msra.mxu0 %v3664
    %3870 = vmatpush.bf16.msra.mxu0 %v3660
    %3871 = vmatpush.bf16.msra.mxu0 %v3656
    %3872 = vmatpush.bf16.msra.mxu0 %v3652
    %3873 = vmatpush.bf16.msra.mxu0 %v3648
    %3874 = vmatmul.bf16.gmra.mxu0 %v3058
    %v3875 = vpop.f32.mrf.mxu0
    %v3876 = vadd.f32 %v3863, %v3875
    %v3877 = vpop.f32.mrf.mxu0
    %3878 = vdwg.mxu0
    %3879 = vmatpush.bf16.msra.mxu0 %v3708
    %3880 = vmatpush.bf16.msra.mxu0 %v3704
    %3881 = vmatpush.bf16.msra.mxu0 %v3700
    %3882 = vmatpush.bf16.msra.mxu0 %v3696
    %3883 = vmatpush.bf16.msra.mxu0 %v3692
    %3884 = vmatpush.bf16.msra.mxu0 %v3688
    %3885 = vmatpush.bf16.msra.mxu0 %v3684
    %3886 = vmatpush.bf16.msra.mxu0 %v3680
    %3887 = vmatmul.bf16.gmra.mxu0 %v3059
    %v3888 = vpop.f32.mrf.mxu0
    %v3889 = vadd.f32 %v3876, %v3888
    %v3890 = vpop.f32.mrf.mxu0
    %3891 = vdwg.mxu0
    %3892 = vmatpush.bf16.msra.mxu0 %v3613
    %3893 = vmatpush.bf16.msra.mxu0 %v3609
    %3894 = vmatpush.bf16.msra.mxu0 %v3605
    %3895 = vmatpush.bf16.msra.mxu0 %v3601
    %3896 = vmatpush.bf16.msra.mxu0 %v3597
    %3897 = vmatpush.bf16.msra.mxu0 %v3593
    %3898 = vmatpush.bf16.msra.mxu0 %v3589
    %3899 = vmatpush.bf16.msra.mxu0 %v3585
    %3900 = vmatmul.bf16.gmra.mxu0 %v3056
    %v3901 = vpop.f32.mrf.mxu0
    %v3902 = vadd.f32 %v3193, %v3901
    %v3903 = vpop.f32.mrf.mxu0
    %3904 = vdwg.mxu0
    %3905 = vmatpush.bf16.msra.mxu0 %v3645
    %3906 = vmatpush.bf16.msra.mxu0 %v3641
    %3907 = vmatpush.bf16.msra.mxu0 %v3637
    %3908 = vmatpush.bf16.msra.mxu0 %v3633
    %3909 = vmatpush.bf16.msra.mxu0 %v3629
    %3910 = vmatpush.bf16.msra.mxu0 %v3625
    %3911 = vmatpush.bf16.msra.mxu0 %v3621
    %3912 = vmatpush.bf16.msra.mxu0 %v3617
    %3913 = vmatmul.bf16.gmra.mxu0 %v3057
    %v3914 = vpop.f32.mrf.mxu0
    %v3915 = vadd.f32 %v3902, %v3914
    %v3916 = vpop.f32.mrf.mxu0
    %3917 = vdwg.mxu0
    %3918 = vmatpush.bf16.msra.mxu0 %v3677
    %3919 = vmatpush.bf16.msra.mxu0 %v3673
    %3920 = vmatpush.bf16.msra.mxu0 %v3669
    %3921 = vmatpush.bf16.msra.mxu0 %v3665
    %3922 = vmatpush.bf16.msra.mxu0 %v3661
    %3923 = vmatpush.bf16.msra.mxu0 %v3657
    %3924 = vmatpush.bf16.msra.mxu0 %v3653
    %3925 = vmatpush.bf16.msra.mxu0 %v3649
    %3926 = vmatmul.bf16.gmra.mxu0 %v3058
    %v3927 = vpop.f32.mrf.mxu0
    %v3928 = vadd.f32 %v3915, %v3927
    %v3929 = vpop.f32.mrf.mxu0
    %3930 = vdwg.mxu0
    %3931 = vmatpush.bf16.msra.mxu0 %v3709
    %3932 = vmatpush.bf16.msra.mxu0 %v3705
    %3933 = vmatpush.bf16.msra.mxu0 %v3701
    %3934 = vmatpush.bf16.msra.mxu0 %v3697
    %3935 = vmatpush.bf16.msra.mxu0 %v3693
    %3936 = vmatpush.bf16.msra.mxu0 %v3689
    %3937 = vmatpush.bf16.msra.mxu0 %v3685
    %3938 = vmatpush.bf16.msra.mxu0 %v3681
    %3939 = vmatmul.bf16.gmra.mxu0 %v3059
    %v3940 = vpop.f32.mrf.mxu0
    %v3941 = vadd.f32 %v3928, %v3940
    %v3942 = vpop.f32.mrf.mxu0
    %3943 = vdwg.mxu0
    %3944 = vmatpush.bf16.msra.mxu0 %v3614
    %3945 = vmatpush.bf16.msra.mxu0 %v3610
    %3946 = vmatpush.bf16.msra.mxu0 %v3606
    %3947 = vmatpush.bf16.msra.mxu0 %v3602
    %3948 = vmatpush.bf16.msra.mxu0 %v3598
    %3949 = vmatpush.bf16.msra.mxu0 %v3594
    %3950 = vmatpush.bf16.msra.mxu0 %v3590
    %3951 = vmatpush.bf16.msra.mxu0 %v3586
    %3952 = vmatmul.bf16.gmra.mxu0 %v3056
    %v3953 = vpop.f32.mrf.mxu0
    %v3954 = vadd.f32 %v3194, %v3953
    %v3955 = vpop.f32.mrf.mxu0
    %3956 = vdwg.mxu0
    %3957 = vmatpush.bf16.msra.mxu0 %v3646
    %3958 = vmatpush.bf16.msra.mxu0 %v3642
    %3959 = vmatpush.bf16.msra.mxu0 %v3638
    %3960 = vmatpush.bf16.msra.mxu0 %v3634
    %3961 = vmatpush.bf16.msra.mxu0 %v3630
    %3962 = vmatpush.bf16.msra.mxu0 %v3626
    %3963 = vmatpush.bf16.msra.mxu0 %v3622
    %3964 = vmatpush.bf16.msra.mxu0 %v3618
    %3965 = vmatmul.bf16.gmra.mxu0 %v3057
    %v3966 = vpop.f32.mrf.mxu0
    %v3967 = vadd.f32 %v3954, %v3966
    %v3968 = vpop.f32.mrf.mxu0
    %3969 = vdwg.mxu0
    %3970 = vmatpush.bf16.msra.mxu0 %v3678
    %3971 = vmatpush.bf16.msra.mxu0 %v3674
    %3972 = vmatpush.bf16.msra.mxu0 %v3670
    %3973 = vmatpush.bf16.msra.mxu0 %v3666
    %3974 = vmatpush.bf16.msra.mxu0 %v3662
    %3975 = vmatpush.bf16.msra.mxu0 %v3658
    %3976 = vmatpush.bf16.msra.mxu0 %v3654
    %3977 = vmatpush.bf16.msra.mxu0 %v3650
    %3978 = vmatmul.bf16.gmra.mxu0 %v3058
    %v3979 = vpop.f32.mrf.mxu0
    %v3980 = vadd.f32 %v3967, %v3979
    %v3981 = vpop.f32.mrf.mxu0
    %3982 = vdwg.mxu0
    %3983 = vmatpush.bf16.msra.mxu0 %v3710
    %3984 = vmatpush.bf16.msra.mxu0 %v3706
    %3985 = vmatpush.bf16.msra.mxu0 %v3702
    %3986 = vmatpush.bf16.msra.mxu0 %v3698
    %3987 = vmatpush.bf16.msra.mxu0 %v3694
    %3988 = vmatpush.bf16.msra.mxu0 %v3690
    %3989 = vmatpush.bf16.msra.mxu0 %v3686
    %3990 = vmatpush.bf16.msra.mxu0 %v3682
    %3991 = vmatmul.bf16.gmra.mxu0 %v3059
    %v3992 = vpop.f32.mrf.mxu0
    %v3993 = vadd.f32 %v3980, %v3992
    %v3994 = vpop.f32.mrf.mxu0
    %3995 = vdwg.mxu0
    %3996 = vmatpush.bf16.msra.mxu0 %v3615
    %3997 = vmatpush.bf16.msra.mxu0 %v3611
    %3998 = vmatpush.bf16.msra.mxu0 %v3607
    %3999 = vmatpush.bf16.msra.mxu0 %v3603
    %4000 = vmatpush.bf16.msra.mxu0 %v3599
    %4001 = vmatpush.bf16.msra.mxu0 %v3595
    %4002 = vmatpush.bf16.msra.mxu0 %v3591
    %4003 = vmatpush.bf16.msra.mxu0 %v3587
    %4004 = vmatmul.bf16.gmra.mxu0 %v3056
    %v4005 = vpop.f32.mrf.mxu0
    %v4006 = vadd.f32 %v3195, %v4005
    %v4007 = vpop.f32.mrf.mxu0
    %4008 = vdwg.mxu0
    %4009 = vmatpush.bf16.msra.mxu0 %v3647
    %4010 = vmatpush.bf16.msra.mxu0 %v3643
    %4011 = vmatpush.bf16.msra.mxu0 %v3639
    %4012 = vmatpush.bf16.msra.mxu0 %v3635
    %4013 = vmatpush.bf16.msra.mxu0 %v3631
    %4014 = vmatpush.bf16.msra.mxu0 %v3627
    %4015 = vmatpush.bf16.msra.mxu0 %v3623
    %4016 = vmatpush.bf16.msra.mxu0 %v3619
    %4017 = vmatmul.bf16.gmra.mxu0 %v3057
    %v4018 = vpop.f32.mrf.mxu0
    %v4019 = vadd.f32 %v4006, %v4018
    %v4020 = vpop.f32.mrf.mxu0
    %4021 = vdwg.mxu0
    %4022 = vmatpush.bf16.msra.mxu0 %v3679
    %4023 = vmatpush.bf16.msra.mxu0 %v3675
    %4024 = vmatpush.bf16.msra.mxu0 %v3671
    %4025 = vmatpush.bf16.msra.mxu0 %v3667
    %4026 = vmatpush.bf16.msra.mxu0 %v3663
    %4027 = vmatpush.bf16.msra.mxu0 %v3659
    %4028 = vmatpush.bf16.msra.mxu0 %v3655
    %4029 = vmatpush.bf16.msra.mxu0 %v3651
    %4030 = vmatmul.bf16.gmra.mxu0 %v3058
    %v4031 = vpop.f32.mrf.mxu0
    %v4032 = vadd.f32 %v4019, %v4031
    %v4033 = vpop.f32.mrf.mxu0
    %4034 = vdwg.mxu0
    %4035 = vmatpush.bf16.msra.mxu0 %v3711
    %4036 = vmatpush.bf16.msra.mxu0 %v3707
    %4037 = vmatpush.bf16.msra.mxu0 %v3703
    %4038 = vmatpush.bf16.msra.mxu0 %v3699
    %4039 = vmatpush.bf16.msra.mxu0 %v3695
    %4040 = vmatpush.bf16.msra.mxu0 %v3691
    %4041 = vmatpush.bf16.msra.mxu0 %v3687
    %4042 = vmatpush.bf16.msra.mxu0 %v3683
    %4043 = vmatmul.bf16.gmra.mxu0 %v3059
    %v4044 = vpop.f32.mrf.mxu0
    %v4045 = vadd.f32 %v4032, %v4044
    %v4046 = vpop.f32.mrf.mxu0
    %4047 = vdwg.mxu0
    %v4048 = vmul.f32 %v3889, 0.2
    %v4049 = vmul.f32 %v3941, 0.2
    %v4050 = vmul.f32 %v3993, 0.2
    %v4051 = vmul.f32 %v4045, 0.2
    %v4052 = vmax.f32 %v3889, %v4048
    %v4053 = vmax.f32 %v3941, %v4049
    %v4054 = vmax.f32 %v3993, %v4050
    %v4055 = vmax.f32 %v4045, %v4051
    %v4056 = vpack.c.bf16 %v4052, %v4052
    %v4057 = vpack.c.bf16 %v4053, %v4053
    %v4058 = vpack.c.bf16 %v4054, %v4054
    %v4059 = vpack.c.bf16 %v4055, %v4055
    %s4060 = scalar_lea.vmem [#allocation2], 4096
    %v4061 = vld [vmem:[%s4060] sm:$0xff]
    %v4062 = vld [vmem:[%s4060 + $0x8] sm:$0xff]
    %v4063 = vld [vmem:[%s4060 + $0x10] sm:$0xff]
    %v4064 = vld [vmem:[%s4060 + $0x18] sm:$0xff]
    %v4065 = vld [vmem:[%s4060 + $0x20] sm:$0xff]
    %v4066 = vld [vmem:[%s4060 + $0x28] sm:$0xff]
    %v4067 = vld [vmem:[%s4060 + $0x30] sm:$0xff]
    %v4068 = vld [vmem:[%s4060 + $0x38] sm:$0xff]
    %v4069 = vld [vmem:[%s4060 + $0x40] sm:$0xff]
    %v4070 = vld [vmem:[%s4060 + $0x48] sm:$0xff]
    %v4071 = vld [vmem:[%s4060 + $0x50] sm:$0xff]
    %v4072 = vld [vmem:[%s4060 + $0x58] sm:$0xff]
    %v4073 = vld [vmem:[%s4060 + $0x60] sm:$0xff]
    %v4074 = vld [vmem:[%s4060 + $0x68] sm:$0xff]
    %v4075 = vld [vmem:[%s4060 + $0x70] sm:$0xff]
    %v4076 = vld [vmem:[%s4060 + $0x78] sm:$0xff]
    %v4077 = vld [vmem:[%s4060 + $0x80] sm:$0xff]
    %v4078 = vld [vmem:[%s4060 + $0x88] sm:$0xff]
    %v4079 = vld [vmem:[%s4060 + $0x90] sm:$0xff]
    %v4080 = vld [vmem:[%s4060 + $0x98] sm:$0xff]
    %v4081 = vld [vmem:[%s4060 + $0xa0] sm:$0xff]
    %v4082 = vld [vmem:[%s4060 + $0xa8] sm:$0xff]
    %v4083 = vld [vmem:[%s4060 + $0xb0] sm:$0xff]
    %v4084 = vld [vmem:[%s4060 + $0xb8] sm:$0xff]
    %v4085 = vld [vmem:[%s4060 + $0xc0] sm:$0xff]
    %v4086 = vld [vmem:[%s4060 + $0xc8] sm:$0xff]
    %v4087 = vld [vmem:[%s4060 + $0xd0] sm:$0xff]
    %v4088 = vld [vmem:[%s4060 + $0xd8] sm:$0xff]
    %v4089 = vld [vmem:[%s4060 + $0xe0] sm:$0xff]
    %v4090 = vld [vmem:[%s4060 + $0xe8] sm:$0xff]
    %v4091 = vld [vmem:[%s4060 + $0xf0] sm:$0xff]
    %v4092 = vld [vmem:[%s4060 + $0xf8] sm:$0xff]
    %v4093 = vld [vmem:[%s4060 + $0x100] sm:$0xff]
    %v4094 = vld [vmem:[%s4060 + $0x108] sm:$0xff]
    %v4095 = vld [vmem:[%s4060 + $0x110] sm:$0xff]
    %v4096 = vld [vmem:[%s4060 + $0x118] sm:$0xff]
    %v4097 = vld [vmem:[%s4060 + $0x120] sm:$0xff]
    %v4098 = vld [vmem:[%s4060 + $0x128] sm:$0xff]
    %v4099 = vld [vmem:[%s4060 + $0x130] sm:$0xff]
    %v4100 = vld [vmem:[%s4060 + $0x138] sm:$0xff]
    %v4101 = vld [vmem:[%s4060 + $0x140] sm:$0xff]
    %v4102 = vld [vmem:[%s4060 + $0x148] sm:$0xff]
    %v4103 = vld [vmem:[%s4060 + $0x150] sm:$0xff]
    %v4104 = vld [vmem:[%s4060 + $0x158] sm:$0xff]
    %v4105 = vld [vmem:[%s4060 + $0x160] sm:$0xff]
    %v4106 = vld [vmem:[%s4060 + $0x168] sm:$0xff]
    %v4107 = vld [vmem:[%s4060 + $0x170] sm:$0xff]
    %v4108 = vld [vmem:[%s4060 + $0x178] sm:$0xff]
    %v4109 = vld [vmem:[%s4060 + $0x180] sm:$0xff]
    %v4110 = vld [vmem:[%s4060 + $0x188] sm:$0xff]
    %v4111 = vld [vmem:[%s4060 + $0x190] sm:$0xff]
    %v4112 = vld [vmem:[%s4060 + $0x198] sm:$0xff]
    %v4113 = vld [vmem:[%s4060 + $0x1a0] sm:$0xff]
    %v4114 = vld [vmem:[%s4060 + $0x1a8] sm:$0xff]
    %v4115 = vld [vmem:[%s4060 + $0x1b0] sm:$0xff]
    %v4116 = vld [vmem:[%s4060 + $0x1b8] sm:$0xff]
    %v4117 = vld [vmem:[%s4060 + $0x1c0] sm:$0xff]
    %v4118 = vld [vmem:[%s4060 + $0x1c8] sm:$0xff]
    %v4119 = vld [vmem:[%s4060 + $0x1d0] sm:$0xff]
    %v4120 = vld [vmem:[%s4060 + $0x1d8] sm:$0xff]
    %v4121 = vld [vmem:[%s4060 + $0x1e0] sm:$0xff]
    %v4122 = vld [vmem:[%s4060 + $0x1e8] sm:$0xff]
    %v4123 = vld [vmem:[%s4060 + $0x1f0] sm:$0xff]
    %v4124 = vld [vmem:[%s4060 + $0x1f8] sm:$0xff]
    %v4125 = vld [vmem:[%s4060 + $0x200] sm:$0xff]
    %v4126 = vld [vmem:[%s4060 + $0x208] sm:$0xff]
    %v4127 = vld [vmem:[%s4060 + $0x210] sm:$0xff]
    %v4128 = vld [vmem:[%s4060 + $0x218] sm:$0xff]
    %v4129 = vld [vmem:[%s4060 + $0x220] sm:$0xff]
    %v4130 = vld [vmem:[%s4060 + $0x228] sm:$0xff]
    %v4131 = vld [vmem:[%s4060 + $0x230] sm:$0xff]
    %v4132 = vld [vmem:[%s4060 + $0x238] sm:$0xff]
    %v4133 = vld [vmem:[%s4060 + $0x240] sm:$0xff]
    %v4134 = vld [vmem:[%s4060 + $0x248] sm:$0xff]
    %v4135 = vld [vmem:[%s4060 + $0x250] sm:$0xff]
    %v4136 = vld [vmem:[%s4060 + $0x258] sm:$0xff]
    %v4137 = vld [vmem:[%s4060 + $0x260] sm:$0xff]
    %v4138 = vld [vmem:[%s4060 + $0x268] sm:$0xff]
    %v4139 = vld [vmem:[%s4060 + $0x270] sm:$0xff]
    %v4140 = vld [vmem:[%s4060 + $0x278] sm:$0xff]
    %v4141 = vld [vmem:[%s4060 + $0x280] sm:$0xff]
    %v4142 = vld [vmem:[%s4060 + $0x288] sm:$0xff]
    %v4143 = vld [vmem:[%s4060 + $0x290] sm:$0xff]
    %v4144 = vld [vmem:[%s4060 + $0x298] sm:$0xff]
    %v4145 = vld [vmem:[%s4060 + $0x2a0] sm:$0xff]
    %v4146 = vld [vmem:[%s4060 + $0x2a8] sm:$0xff]
    %v4147 = vld [vmem:[%s4060 + $0x2b0] sm:$0xff]
    %v4148 = vld [vmem:[%s4060 + $0x2b8] sm:$0xff]
    %v4149 = vld [vmem:[%s4060 + $0x2c0] sm:$0xff]
    %v4150 = vld [vmem:[%s4060 + $0x2c8] sm:$0xff]
    %v4151 = vld [vmem:[%s4060 + $0x2d0] sm:$0xff]
    %v4152 = vld [vmem:[%s4060 + $0x2d8] sm:$0xff]
    %v4153 = vld [vmem:[%s4060 + $0x2e0] sm:$0xff]
    %v4154 = vld [vmem:[%s4060 + $0x2e8] sm:$0xff]
    %v4155 = vld [vmem:[%s4060 + $0x2f0] sm:$0xff]
    %v4156 = vld [vmem:[%s4060 + $0x2f8] sm:$0xff]
    %v4157 = vld [vmem:[%s4060 + $0x300] sm:$0xff]
    %v4158 = vld [vmem:[%s4060 + $0x308] sm:$0xff]
    %v4159 = vld [vmem:[%s4060 + $0x310] sm:$0xff]
    %v4160 = vld [vmem:[%s4060 + $0x318] sm:$0xff]
    %v4161 = vld [vmem:[%s4060 + $0x320] sm:$0xff]
    %v4162 = vld [vmem:[%s4060 + $0x328] sm:$0xff]
    %v4163 = vld [vmem:[%s4060 + $0x330] sm:$0xff]
    %v4164 = vld [vmem:[%s4060 + $0x338] sm:$0xff]
    %v4165 = vld [vmem:[%s4060 + $0x340] sm:$0xff]
    %v4166 = vld [vmem:[%s4060 + $0x348] sm:$0xff]
    %v4167 = vld [vmem:[%s4060 + $0x350] sm:$0xff]
    %v4168 = vld [vmem:[%s4060 + $0x358] sm:$0xff]
    %v4169 = vld [vmem:[%s4060 + $0x360] sm:$0xff]
    %v4170 = vld [vmem:[%s4060 + $0x368] sm:$0xff]
    %v4171 = vld [vmem:[%s4060 + $0x370] sm:$0xff]
    %v4172 = vld [vmem:[%s4060 + $0x378] sm:$0xff]
    %v4173 = vld [vmem:[%s4060 + $0x380] sm:$0xff]
    %v4174 = vld [vmem:[%s4060 + $0x388] sm:$0xff]
    %v4175 = vld [vmem:[%s4060 + $0x390] sm:$0xff]
    %v4176 = vld [vmem:[%s4060 + $0x398] sm:$0xff]
    %v4177 = vld [vmem:[%s4060 + $0x3a0] sm:$0xff]
    %v4178 = vld [vmem:[%s4060 + $0x3a8] sm:$0xff]
    %v4179 = vld [vmem:[%s4060 + $0x3b0] sm:$0xff]
    %v4180 = vld [vmem:[%s4060 + $0x3b8] sm:$0xff]
    %v4181 = vld [vmem:[%s4060 + $0x3c0] sm:$0xff]
    %v4182 = vld [vmem:[%s4060 + $0x3c8] sm:$0xff]
    %v4183 = vld [vmem:[%s4060 + $0x3d0] sm:$0xff]
    %v4184 = vld [vmem:[%s4060 + $0x3d8] sm:$0xff]
    %v4185 = vld [vmem:[%s4060 + $0x3e0] sm:$0xff]
    %v4186 = vld [vmem:[%s4060 + $0x3e8] sm:$0xff]
    %v4187 = vld [vmem:[%s4060 + $0x3f0] sm:$0xff]
    %v4188 = vld [vmem:[%s4060 + $0x3f8] sm:$0xff]
    %s4189 = scalar_lea.vmem [#allocation4], 16
    %v4190 = vld [vmem:[%s4189] sm:$0xf]
    %v4192 = vperm.slane %v4190, 0
    %v4193 = vperm.slane %v4190, 1
    %v4194 = vperm.slane %v4190, 2
    %v4195 = vperm.slane %v4190, 3
    %v4328 = vunpack.c.l.b16 %v4061
    %v4329 = vunpack.c.h.b16 %v4061
    %v4330 = vunpack.c.l.b16 %v4062
    %v4331 = vunpack.c.h.b16 %v4062
    %v4332 = vunpack.c.l.b16 %v4063
    %v4333 = vunpack.c.h.b16 %v4063
    %v4334 = vunpack.c.l.b16 %v4064
    %v4335 = vunpack.c.h.b16 %v4064
    %v4336 = vunpack.c.l.b16 %v4065
    %v4337 = vunpack.c.h.b16 %v4065
    %v4338 = vunpack.c.l.b16 %v4066
    %v4339 = vunpack.c.h.b16 %v4066
    %v4340 = vunpack.c.l.b16 %v4067
    %v4341 = vunpack.c.h.b16 %v4067
    %v4342 = vunpack.c.l.b16 %v4068
    %v4343 = vunpack.c.h.b16 %v4068
    %v4344 = vunpack.c.l.b16 %v4069
    %v4345 = vunpack.c.h.b16 %v4069
    %v4346 = vunpack.c.l.b16 %v4070
    %v4347 = vunpack.c.h.b16 %v4070
    %v4348 = vunpack.c.l.b16 %v4071
    %v4349 = vunpack.c.h.b16 %v4071
    %v4350 = vunpack.c.l.b16 %v4072
    %v4351 = vunpack.c.h.b16 %v4072
    %v4352 = vunpack.c.l.b16 %v4073
    %v4353 = vunpack.c.h.b16 %v4073
    %v4354 = vunpack.c.l.b16 %v4074
    %v4355 = vunpack.c.h.b16 %v4074
    %v4356 = vunpack.c.l.b16 %v4075
    %v4357 = vunpack.c.h.b16 %v4075
    %v4358 = vunpack.c.l.b16 %v4076
    %v4359 = vunpack.c.h.b16 %v4076
    %v4360 = vunpack.c.l.b16 %v4077
    %v4361 = vunpack.c.h.b16 %v4077
    %v4362 = vunpack.c.l.b16 %v4078
    %v4363 = vunpack.c.h.b16 %v4078
    %v4364 = vunpack.c.l.b16 %v4079
    %v4365 = vunpack.c.h.b16 %v4079
    %v4366 = vunpack.c.l.b16 %v4080
    %v4367 = vunpack.c.h.b16 %v4080
    %v4368 = vunpack.c.l.b16 %v4081
    %v4369 = vunpack.c.h.b16 %v4081
    %v4370 = vunpack.c.l.b16 %v4082
    %v4371 = vunpack.c.h.b16 %v4082
    %v4372 = vunpack.c.l.b16 %v4083
    %v4373 = vunpack.c.h.b16 %v4083
    %v4374 = vunpack.c.l.b16 %v4084
    %v4375 = vunpack.c.h.b16 %v4084
    %v4376 = vunpack.c.l.b16 %v4085
    %v4377 = vunpack.c.h.b16 %v4085
    %v4378 = vunpack.c.l.b16 %v4086
    %v4379 = vunpack.c.h.b16 %v4086
    %v4380 = vunpack.c.l.b16 %v4087
    %v4381 = vunpack.c.h.b16 %v4087
    %v4382 = vunpack.c.l.b16 %v4088
    %v4383 = vunpack.c.h.b16 %v4088
    %v4384 = vunpack.c.l.b16 %v4089
    %v4385 = vunpack.c.h.b16 %v4089
    %v4386 = vunpack.c.l.b16 %v4090
    %v4387 = vunpack.c.h.b16 %v4090
    %v4388 = vunpack.c.l.b16 %v4091
    %v4389 = vunpack.c.h.b16 %v4091
    %v4390 = vunpack.c.l.b16 %v4092
    %v4391 = vunpack.c.h.b16 %v4092
    %v4392 = vunpack.c.l.b16 %v4093
    %v4393 = vunpack.c.h.b16 %v4093
    %v4394 = vunpack.c.l.b16 %v4094
    %v4395 = vunpack.c.h.b16 %v4094
    %v4396 = vunpack.c.l.b16 %v4095
    %v4397 = vunpack.c.h.b16 %v4095
    %v4398 = vunpack.c.l.b16 %v4096
    %v4399 = vunpack.c.h.b16 %v4096
    %v4400 = vunpack.c.l.b16 %v4097
    %v4401 = vunpack.c.h.b16 %v4097
    %v4402 = vunpack.c.l.b16 %v4098
    %v4403 = vunpack.c.h.b16 %v4098
    %v4404 = vunpack.c.l.b16 %v4099
    %v4405 = vunpack.c.h.b16 %v4099
    %v4406 = vunpack.c.l.b16 %v4100
    %v4407 = vunpack.c.h.b16 %v4100
    %v4408 = vunpack.c.l.b16 %v4101
    %v4409 = vunpack.c.h.b16 %v4101
    %v4410 = vunpack.c.l.b16 %v4102
    %v4411 = vunpack.c.h.b16 %v4102
    %v4412 = vunpack.c.l.b16 %v4103
    %v4413 = vunpack.c.h.b16 %v4103
    %v4414 = vunpack.c.l.b16 %v4104
    %v4415 = vunpack.c.h.b16 %v4104
    %v4416 = vunpack.c.l.b16 %v4105
    %v4417 = vunpack.c.h.b16 %v4105
    %v4418 = vunpack.c.l.b16 %v4106
    %v4419 = vunpack.c.h.b16 %v4106
    %v4420 = vunpack.c.l.b16 %v4107
    %v4421 = vunpack.c.h.b16 %v4107
    %v4422 = vunpack.c.l.b16 %v4108
    %v4423 = vunpack.c.h.b16 %v4108
    %v4424 = vunpack.c.l.b16 %v4109
    %v4425 = vunpack.c.h.b16 %v4109
    %v4426 = vunpack.c.l.b16 %v4110
    %v4427 = vunpack.c.h.b16 %v4110
    %v4428 = vunpack.c.l.b16 %v4111
    %v4429 = vunpack.c.h.b16 %v4111
    %v4430 = vunpack.c.l.b16 %v4112
    %v4431 = vunpack.c.h.b16 %v4112
    %v4432 = vunpack.c.l.b16 %v4113
    %v4433 = vunpack.c.h.b16 %v4113
    %v4434 = vunpack.c.l.b16 %v4114
    %v4435 = vunpack.c.h.b16 %v4114
    %v4436 = vunpack.c.l.b16 %v4115
    %v4437 = vunpack.c.h.b16 %v4115
    %v4438 = vunpack.c.l.b16 %v4116
    %v4439 = vunpack.c.h.b16 %v4116
    %v4440 = vunpack.c.l.b16 %v4117
    %v4441 = vunpack.c.h.b16 %v4117
    %v4442 = vunpack.c.l.b16 %v4118
    %v4443 = vunpack.c.h.b16 %v4118
    %v4444 = vunpack.c.l.b16 %v4119
    %v4445 = vunpack.c.h.b16 %v4119
    %v4446 = vunpack.c.l.b16 %v4120
    %v4447 = vunpack.c.h.b16 %v4120
    %v4448 = vunpack.c.l.b16 %v4121
    %v4449 = vunpack.c.h.b16 %v4121
    %v4450 = vunpack.c.l.b16 %v4122
    %v4451 = vunpack.c.h.b16 %v4122
    %v4452 = vunpack.c.l.b16 %v4123
    %v4453 = vunpack.c.h.b16 %v4123
    %v4454 = vunpack.c.l.b16 %v4124
    %v4455 = vunpack.c.h.b16 %v4124
    %v4456 = vunpack.c.l.b16 %v4125
    %v4457 = vunpack.c.h.b16 %v4125
    %v4458 = vunpack.c.l.b16 %v4126
    %v4459 = vunpack.c.h.b16 %v4126
    %v4460 = vunpack.c.l.b16 %v4127
    %v4461 = vunpack.c.h.b16 %v4127
    %v4462 = vunpack.c.l.b16 %v4128
    %v4463 = vunpack.c.h.b16 %v4128
    %v4464 = vunpack.c.l.b16 %v4129
    %v4465 = vunpack.c.h.b16 %v4129
    %v4466 = vunpack.c.l.b16 %v4130
    %v4467 = vunpack.c.h.b16 %v4130
    %v4468 = vunpack.c.l.b16 %v4131
    %v4469 = vunpack.c.h.b16 %v4131
    %v4470 = vunpack.c.l.b16 %v4132
    %v4471 = vunpack.c.h.b16 %v4132
    %v4472 = vunpack.c.l.b16 %v4133
    %v4473 = vunpack.c.h.b16 %v4133
    %v4474 = vunpack.c.l.b16 %v4134
    %v4475 = vunpack.c.h.b16 %v4134
    %v4476 = vunpack.c.l.b16 %v4135
    %v4477 = vunpack.c.h.b16 %v4135
    %v4478 = vunpack.c.l.b16 %v4136
    %v4479 = vunpack.c.h.b16 %v4136
    %v4480 = vunpack.c.l.b16 %v4137
    %v4481 = vunpack.c.h.b16 %v4137
    %v4482 = vunpack.c.l.b16 %v4138
    %v4483 = vunpack.c.h.b16 %v4138
    %v4484 = vunpack.c.l.b16 %v4139
    %v4485 = vunpack.c.h.b16 %v4139
    %v4486 = vunpack.c.l.b16 %v4140
    %v4487 = vunpack.c.h.b16 %v4140
    %v4488 = vunpack.c.l.b16 %v4141
    %v4489 = vunpack.c.h.b16 %v4141
    %v4490 = vunpack.c.l.b16 %v4142
    %v4491 = vunpack.c.h.b16 %v4142
    %v4492 = vunpack.c.l.b16 %v4143
    %v4493 = vunpack.c.h.b16 %v4143
    %v4494 = vunpack.c.l.b16 %v4144
    %v4495 = vunpack.c.h.b16 %v4144
    %v4496 = vunpack.c.l.b16 %v4145
    %v4497 = vunpack.c.h.b16 %v4145
    %v4498 = vunpack.c.l.b16 %v4146
    %v4499 = vunpack.c.h.b16 %v4146
    %v4500 = vunpack.c.l.b16 %v4147
    %v4501 = vunpack.c.h.b16 %v4147
    %v4502 = vunpack.c.l.b16 %v4148
    %v4503 = vunpack.c.h.b16 %v4148
    %v4504 = vunpack.c.l.b16 %v4149
    %v4505 = vunpack.c.h.b16 %v4149
    %v4506 = vunpack.c.l.b16 %v4150
    %v4507 = vunpack.c.h.b16 %v4150
    %v4508 = vunpack.c.l.b16 %v4151
    %v4509 = vunpack.c.h.b16 %v4151
    %v4510 = vunpack.c.l.b16 %v4152
    %v4511 = vunpack.c.h.b16 %v4152
    %v4512 = vunpack.c.l.b16 %v4153
    %v4513 = vunpack.c.h.b16 %v4153
    %v4514 = vunpack.c.l.b16 %v4154
    %v4515 = vunpack.c.h.b16 %v4154
    %v4516 = vunpack.c.l.b16 %v4155
    %v4517 = vunpack.c.h.b16 %v4155
    %v4518 = vunpack.c.l.b16 %v4156
    %v4519 = vunpack.c.h.b16 %v4156
    %v4520 = vunpack.c.l.b16 %v4157
    %v4521 = vunpack.c.h.b16 %v4157
    %v4522 = vunpack.c.l.b16 %v4158
    %v4523 = vunpack.c.h.b16 %v4158
    %v4524 = vunpack.c.l.b16 %v4159
    %v4525 = vunpack.c.h.b16 %v4159
    %v4526 = vunpack.c.l.b16 %v4160
    %v4527 = vunpack.c.h.b16 %v4160
    %v4528 = vunpack.c.l.b16 %v4161
    %v4529 = vunpack.c.h.b16 %v4161
    %v4530 = vunpack.c.l.b16 %v4162
    %v4531 = vunpack.c.h.b16 %v4162
    %v4532 = vunpack.c.l.b16 %v4163
    %v4533 = vunpack.c.h.b16 %v4163
    %v4534 = vunpack.c.l.b16 %v4164
    %v4535 = vunpack.c.h.b16 %v4164
    %v4536 = vunpack.c.l.b16 %v4165
    %v4537 = vunpack.c.h.b16 %v4165
    %v4538 = vunpack.c.l.b16 %v4166
    %v4539 = vunpack.c.h.b16 %v4166
    %v4540 = vunpack.c.l.b16 %v4167
    %v4541 = vunpack.c.h.b16 %v4167
    %v4542 = vunpack.c.l.b16 %v4168
    %v4543 = vunpack.c.h.b16 %v4168
    %v4544 = vunpack.c.l.b16 %v4169
    %v4545 = vunpack.c.h.b16 %v4169
    %v4546 = vunpack.c.l.b16 %v4170
    %v4547 = vunpack.c.h.b16 %v4170
    %v4548 = vunpack.c.l.b16 %v4171
    %v4549 = vunpack.c.h.b16 %v4171
    %v4550 = vunpack.c.l.b16 %v4172
    %v4551 = vunpack.c.h.b16 %v4172
    %v4552 = vunpack.c.l.b16 %v4173
    %v4553 = vunpack.c.h.b16 %v4173
    %v4554 = vunpack.c.l.b16 %v4174
    %v4555 = vunpack.c.h.b16 %v4174
    %v4556 = vunpack.c.l.b16 %v4175
    %v4557 = vunpack.c.h.b16 %v4175
    %v4558 = vunpack.c.l.b16 %v4176
    %v4559 = vunpack.c.h.b16 %v4176
    %v4560 = vunpack.c.l.b16 %v4177
    %v4561 = vunpack.c.h.b16 %v4177
    %v4562 = vunpack.c.l.b16 %v4178
    %v4563 = vunpack.c.h.b16 %v4178
    %v4564 = vunpack.c.l.b16 %v4179
    %v4565 = vunpack.c.h.b16 %v4179
    %v4566 = vunpack.c.l.b16 %v4180
    %v4567 = vunpack.c.h.b16 %v4180
    %v4568 = vunpack.c.l.b16 %v4181
    %v4569 = vunpack.c.h.b16 %v4181
    %v4570 = vunpack.c.l.b16 %v4182
    %v4571 = vunpack.c.h.b16 %v4182
    %v4572 = vunpack.c.l.b16 %v4183
    %v4573 = vunpack.c.h.b16 %v4183
    %v4574 = vunpack.c.l.b16 %v4184
    %v4575 = vunpack.c.h.b16 %v4184
    %v4576 = vunpack.c.l.b16 %v4185
    %v4577 = vunpack.c.h.b16 %v4185
    %v4578 = vunpack.c.l.b16 %v4186
    %v4579 = vunpack.c.h.b16 %v4186
    %v4580 = vunpack.c.l.b16 %v4187
    %v4581 = vunpack.c.h.b16 %v4187
    %v4582 = vunpack.c.l.b16 %v4188
    %v4583 = vunpack.c.h.b16 %v4188
    %v4584 = vpack.c.b16 %v4332, %v4328
    %v4585 = vpack.c.b16 %v4333, %v4329
    %v4586 = vpack.c.b16 %v4334, %v4330
    %v4587 = vpack.c.b16 %v4335, %v4331
    %v4588 = vpack.c.b16 %v4340, %v4336
    %v4589 = vpack.c.b16 %v4341, %v4337
    %v4590 = vpack.c.b16 %v4342, %v4338
    %v4591 = vpack.c.b16 %v4343, %v4339
    %v4592 = vpack.c.b16 %v4348, %v4344
    %v4593 = vpack.c.b16 %v4349, %v4345
    %v4594 = vpack.c.b16 %v4350, %v4346
    %v4595 = vpack.c.b16 %v4351, %v4347
    %v4596 = vpack.c.b16 %v4356, %v4352
    %v4597 = vpack.c.b16 %v4357, %v4353
    %v4598 = vpack.c.b16 %v4358, %v4354
    %v4599 = vpack.c.b16 %v4359, %v4355
    %v4600 = vpack.c.b16 %v4364, %v4360
    %v4601 = vpack.c.b16 %v4365, %v4361
    %v4602 = vpack.c.b16 %v4366, %v4362
    %v4603 = vpack.c.b16 %v4367, %v4363
    %v4604 = vpack.c.b16 %v4372, %v4368
    %v4605 = vpack.c.b16 %v4373, %v4369
    %v4606 = vpack.c.b16 %v4374, %v4370
    %v4607 = vpack.c.b16 %v4375, %v4371
    %v4608 = vpack.c.b16 %v4380, %v4376
    %v4609 = vpack.c.b16 %v4381, %v4377
    %v4610 = vpack.c.b16 %v4382, %v4378
    %v4611 = vpack.c.b16 %v4383, %v4379
    %v4612 = vpack.c.b16 %v4388, %v4384
    %v4613 = vpack.c.b16 %v4389, %v4385
    %v4614 = vpack.c.b16 %v4390, %v4386
    %v4615 = vpack.c.b16 %v4391, %v4387
    %v4616 = vpack.c.b16 %v4396, %v4392
    %v4617 = vpack.c.b16 %v4397, %v4393
    %v4618 = vpack.c.b16 %v4398, %v4394
    %v4619 = vpack.c.b16 %v4399, %v4395
    %v4620 = vpack.c.b16 %v4404, %v4400
    %v4621 = vpack.c.b16 %v4405, %v4401
    %v4622 = vpack.c.b16 %v4406, %v4402
    %v4623 = vpack.c.b16 %v4407, %v4403
    %v4624 = vpack.c.b16 %v4412, %v4408
    %v4625 = vpack.c.b16 %v4413, %v4409
    %v4626 = vpack.c.b16 %v4414, %v4410
    %v4627 = vpack.c.b16 %v4415, %v4411
    %v4628 = vpack.c.b16 %v4420, %v4416
    %v4629 = vpack.c.b16 %v4421, %v4417
    %v4630 = vpack.c.b16 %v4422, %v4418
    %v4631 = vpack.c.b16 %v4423, %v4419
    %v4632 = vpack.c.b16 %v4428, %v4424
    %v4633 = vpack.c.b16 %v4429, %v4425
    %v4634 = vpack.c.b16 %v4430, %v4426
    %v4635 = vpack.c.b16 %v4431, %v4427
    %v4636 = vpack.c.b16 %v4436, %v4432
    %v4637 = vpack.c.b16 %v4437, %v4433
    %v4638 = vpack.c.b16 %v4438, %v4434
    %v4639 = vpack.c.b16 %v4439, %v4435
    %v4640 = vpack.c.b16 %v4444, %v4440
    %v4641 = vpack.c.b16 %v4445, %v4441
    %v4642 = vpack.c.b16 %v4446, %v4442
    %v4643 = vpack.c.b16 %v4447, %v4443
    %v4644 = vpack.c.b16 %v4452, %v4448
    %v4645 = vpack.c.b16 %v4453, %v4449
    %v4646 = vpack.c.b16 %v4454, %v4450
    %v4647 = vpack.c.b16 %v4455, %v4451
    %v4648 = vpack.c.b16 %v4460, %v4456
    %v4649 = vpack.c.b16 %v4461, %v4457
    %v4650 = vpack.c.b16 %v4462, %v4458
    %v4651 = vpack.c.b16 %v4463, %v4459
    %v4652 = vpack.c.b16 %v4468, %v4464
    %v4653 = vpack.c.b16 %v4469, %v4465
    %v4654 = vpack.c.b16 %v4470, %v4466
    %v4655 = vpack.c.b16 %v4471, %v4467
    %v4656 = vpack.c.b16 %v4476, %v4472
    %v4657 = vpack.c.b16 %v4477, %v4473
    %v4658 = vpack.c.b16 %v4478, %v4474
    %v4659 = vpack.c.b16 %v4479, %v4475
    %v4660 = vpack.c.b16 %v4484, %v4480
    %v4661 = vpack.c.b16 %v4485, %v4481
    %v4662 = vpack.c.b16 %v4486, %v4482
    %v4663 = vpack.c.b16 %v4487, %v4483
    %v4664 = vpack.c.b16 %v4492, %v4488
    %v4665 = vpack.c.b16 %v4493, %v4489
    %v4666 = vpack.c.b16 %v4494, %v4490
    %v4667 = vpack.c.b16 %v4495, %v4491
    %v4668 = vpack.c.b16 %v4500, %v4496
    %v4669 = vpack.c.b16 %v4501, %v4497
    %v4670 = vpack.c.b16 %v4502, %v4498
    %v4671 = vpack.c.b16 %v4503, %v4499
    %v4672 = vpack.c.b16 %v4508, %v4504
    %v4673 = vpack.c.b16 %v4509, %v4505
    %v4674 = vpack.c.b16 %v4510, %v4506
    %v4675 = vpack.c.b16 %v4511, %v4507
    %v4676 = vpack.c.b16 %v4516, %v4512
    %v4677 = vpack.c.b16 %v4517, %v4513
    %v4678 = vpack.c.b16 %v4518, %v4514
    %v4679 = vpack.c.b16 %v4519, %v4515
    %v4680 = vpack.c.b16 %v4524, %v4520
    %v4681 = vpack.c.b16 %v4525, %v4521
    %v4682 = vpack.c.b16 %v4526, %v4522
    %v4683 = vpack.c.b16 %v4527, %v4523
    %v4684 = vpack.c.b16 %v4532, %v4528
    %v4685 = vpack.c.b16 %v4533, %v4529
    %v4686 = vpack.c.b16 %v4534, %v4530
    %v4687 = vpack.c.b16 %v4535, %v4531
    %v4688 = vpack.c.b16 %v4540, %v4536
    %v4689 = vpack.c.b16 %v4541, %v4537
    %v4690 = vpack.c.b16 %v4542, %v4538
    %v4691 = vpack.c.b16 %v4543, %v4539
    %v4692 = vpack.c.b16 %v4548, %v4544
    %v4693 = vpack.c.b16 %v4549, %v4545
    %v4694 = vpack.c.b16 %v4550, %v4546
    %v4695 = vpack.c.b16 %v4551, %v4547
    %v4696 = vpack.c.b16 %v4556, %v4552
    %v4697 = vpack.c.b16 %v4557, %v4553
    %v4698 = vpack.c.b16 %v4558, %v4554
    %v4699 = vpack.c.b16 %v4559, %v4555
    %v4700 = vpack.c.b16 %v4564, %v4560
    %v4701 = vpack.c.b16 %v4565, %v4561
    %v4702 = vpack.c.b16 %v4566, %v4562
    %v4703 = vpack.c.b16 %v4567, %v4563
    %v4704 = vpack.c.b16 %v4572, %v4568
    %v4705 = vpack.c.b16 %v4573, %v4569
    %v4706 = vpack.c.b16 %v4574, %v4570
    %v4707 = vpack.c.b16 %v4575, %v4571
    %v4708 = vpack.c.b16 %v4580, %v4576
    %v4709 = vpack.c.b16 %v4581, %v4577
    %v4710 = vpack.c.b16 %v4582, %v4578
    %v4711 = vpack.c.b16 %v4583, %v4579
    %4840 = vmatpush.bf16.msra.mxu0 %v4612
    %4841 = vmatpush.bf16.msra.mxu0 %v4608
    %4842 = vmatpush.bf16.msra.mxu0 %v4604
    %4843 = vmatpush.bf16.msra.mxu0 %v4600
    %4844 = vmatpush.bf16.msra.mxu0 %v4596
    %4845 = vmatpush.bf16.msra.mxu0 %v4592
    %4846 = vmatpush.bf16.msra.mxu0 %v4588
    %4847 = vmatpush.bf16.msra.mxu0 %v4584
    %4848 = vmatmul.bf16.gmra.mxu0 %v4056
    %v4849 = vpop.f32.mrf.mxu0
    %v4850 = vadd.f32 %v4192, %v4849
    %v4851 = vpop.f32.mrf.mxu0
    %4852 = vdwg.mxu0
    %4853 = vmatpush.bf16.msra.mxu0 %v4644
    %4854 = vmatpush.bf16.msra.mxu0 %v4640
    %4855 = vmatpush.bf16.msra.mxu0 %v4636
    %4856 = vmatpush.bf16.msra.mxu0 %v4632
    %4857 = vmatpush.bf16.msra.mxu0 %v4628
    %4858 = vmatpush.bf16.msra.mxu0 %v4624
    %4859 = vmatpush.bf16.msra.mxu0 %v4620
    %4860 = vmatpush.bf16.msra.mxu0 %v4616
    %4861 = vmatmul.bf16.gmra.mxu0 %v4057
    %v4862 = vpop.f32.mrf.mxu0
    %v4863 = vadd.f32 %v4850, %v4862
    %v4864 = vpop.f32.mrf.mxu0
    %4865 = vdwg.mxu0
    %4866 = vmatpush.bf16.msra.mxu0 %v4676
    %4867 = vmatpush.bf16.msra.mxu0 %v4672
    %4868 = vmatpush.bf16.msra.mxu0 %v4668
    %4869 = vmatpush.bf16.msra.mxu0 %v4664
    %4870 = vmatpush.bf16.msra.mxu0 %v4660
    %4871 = vmatpush.bf16.msra.mxu0 %v4656
    %4872 = vmatpush.bf16.msra.mxu0 %v4652
    %4873 = vmatpush.bf16.msra.mxu0 %v4648
    %4874 = vmatmul.bf16.gmra.mxu0 %v4058
    %v4875 = vpop.f32.mrf.mxu0
    %v4876 = vadd.f32 %v4863, %v4875
    %v4877 = vpop.f32.mrf.mxu0
    %4878 = vdwg.mxu0
    %4879 = vmatpush.bf16.msra.mxu0 %v4708
    %4880 = vmatpush.bf16.msra.mxu0 %v4704
    %4881 = vmatpush.bf16.msra.mxu0 %v4700
    %4882 = vmatpush.bf16.msra.mxu0 %v4696
    %4883 = vmatpush.bf16.msra.mxu0 %v4692
    %4884 = vmatpush.bf16.msra.mxu0 %v4688
    %4885 = vmatpush.bf16.msra.mxu0 %v4684
    %4886 = vmatpush.bf16.msra.mxu0 %v4680
    %4887 = vmatmul.bf16.gmra.mxu0 %v4059
    %v4888 = vpop.f32.mrf.mxu0
    %v4889 = vadd.f32 %v4876, %v4888
    %v4890 = vpop.f32.mrf.mxu0
    %4891 = vdwg.mxu0
    %4892 = vmatpush.bf16.msra.mxu0 %v4613
    %4893 = vmatpush.bf16.msra.mxu0 %v4609
    %4894 = vmatpush.bf16.msra.mxu0 %v4605
    %4895 = vmatpush.bf16.msra.mxu0 %v4601
    %4896 = vmatpush.bf16.msra.mxu0 %v4597
    %4897 = vmatpush.bf16.msra.mxu0 %v4593
    %4898 = vmatpush.bf16.msra.mxu0 %v4589
    %4899 = vmatpush.bf16.msra.mxu0 %v4585
    %4900 = vmatmul.bf16.gmra.mxu0 %v4056
    %v4901 = vpop.f32.mrf.mxu0
    %v4902 = vadd.f32 %v4193, %v4901
    %v4903 = vpop.f32.mrf.mxu0
    %4904 = vdwg.mxu0
    %4905 = vmatpush.bf16.msra.mxu0 %v4645
    %4906 = vmatpush.bf16.msra.mxu0 %v4641
    %4907 = vmatpush.bf16.msra.mxu0 %v4637
    %4908 = vmatpush.bf16.msra.mxu0 %v4633
    %4909 = vmatpush.bf16.msra.mxu0 %v4629
    %4910 = vmatpush.bf16.msra.mxu0 %v4625
    %4911 = vmatpush.bf16.msra.mxu0 %v4621
    %4912 = vmatpush.bf16.msra.mxu0 %v4617
    %4913 = vmatmul.bf16.gmra.mxu0 %v4057
    %v4914 = vpop.f32.mrf.mxu0
    %v4915 = vadd.f32 %v4902, %v4914
    %v4916 = vpop.f32.mrf.mxu0
    %4917 = vdwg.mxu0
    %4918 = vmatpush.bf16.msra.mxu0 %v4677
    %4919 = vmatpush.bf16.msra.mxu0 %v4673
    %4920 = vmatpush.bf16.msra.mxu0 %v4669
    %4921 = vmatpush.bf16.msra.mxu0 %v4665
    %4922 = vmatpush.bf16.msra.mxu0 %v4661
    %4923 = vmatpush.bf16.msra.mxu0 %v4657
    %4924 = vmatpush.bf16.msra.mxu0 %v4653
    %4925 = vmatpush.bf16.msra.mxu0 %v4649
    %4926 = vmatmul.bf16.gmra.mxu0 %v4058
    %v4927 = vpop.f32.mrf.mxu0
    %v4928 = vadd.f32 %v4915, %v4927
    %v4929 = vpop.f32.mrf.mxu0
    %4930 = vdwg.mxu0
    %4931 = vmatpush.bf16.msra.mxu0 %v4709
    %4932 = vmatpush.bf16.msra.mxu0 %v4705
    %4933 = vmatpush.bf16.msra.mxu0 %v4701
    %4934 = vmatpush.bf16.msra.mxu0 %v4697
    %4935 = vmatpush.bf16.msra.mxu0 %v4693
    %4936 = vmatpush.bf16.msra.mxu0 %v4689
    %4937 = vmatpush.bf16.msra.mxu0 %v4685
    %4938 = vmatpush.bf16.msra.mxu0 %v4681
    %4939 = vmatmul.bf16.gmra.mxu0 %v4059
    %v4940 = vpop.f32.mrf.mxu0
    %v4941 = vadd.f32 %v4928, %v4940
    %v4942 = vpop.f32.mrf.mxu0
    %4943 = vdwg.mxu0
    %4944 = vmatpush.bf16.msra.mxu0 %v4614
    %4945 = vmatpush.bf16.msra.mxu0 %v4610
    %4946 = vmatpush.bf16.msra.mxu0 %v4606
    %4947 = vmatpush.bf16.msra.mxu0 %v4602
    %4948 = vmatpush.bf16.msra.mxu0 %v4598
    %4949 = vmatpush.bf16.msra.mxu0 %v4594
    %4950 = vmatpush.bf16.msra.mxu0 %v4590
    %4951 = vmatpush.bf16.msra.mxu0 %v4586
    %4952 = vmatmul.bf16.gmra.mxu0 %v4056
    %v4953 = vpop.f32.mrf.mxu0
    %v4954 = vadd.f32 %v4194, %v4953
    %v4955 = vpop.f32.mrf.mxu0
    %4956 = vdwg.mxu0
    %4957 = vmatpush.bf16.msra.mxu0 %v4646
    %4958 = vmatpush.bf16.msra.mxu0 %v4642
    %4959 = vmatpush.bf16.msra.mxu0 %v4638
    %4960 = vmatpush.bf16.msra.mxu0 %v4634
    %4961 = vmatpush.bf16.msra.mxu0 %v4630
    %4962 = vmatpush.bf16.msra.mxu0 %v4626
    %4963 = vmatpush.bf16.msra.mxu0 %v4622
    %4964 = vmatpush.bf16.msra.mxu0 %v4618
    %4965 = vmatmul.bf16.gmra.mxu0 %v4057
    %v4966 = vpop.f32.mrf.mxu0
    %v4967 = vadd.f32 %v4954, %v4966
    %v4968 = vpop.f32.mrf.mxu0
    %4969 = vdwg.mxu0
    %4970 = vmatpush.bf16.msra.mxu0 %v4678
    %4971 = vmatpush.bf16.msra.mxu0 %v4674
    %4972 = vmatpush.bf16.msra.mxu0 %v4670
    %4973 = vmatpush.bf16.msra.mxu0 %v4666
    %4974 = vmatpush.bf16.msra.mxu0 %v4662
    %4975 = vmatpush.bf16.msra.mxu0 %v4658
    %4976 = vmatpush.bf16.msra.mxu0 %v4654
    %4977 = vmatpush.bf16.msra.mxu0 %v4650
    %4978 = vmatmul.bf16.gmra.mxu0 %v4058
    %v4979 = vpop.f32.mrf.mxu0
    %v4980 = vadd.f32 %v4967, %v4979
    %v4981 = vpop.f32.mrf.mxu0
    %4982 = vdwg.mxu0
    %4983 = vmatpush.bf16.msra.mxu0 %v4710
    %4984 = vmatpush.bf16.msra.mxu0 %v4706
    %4985 = vmatpush.bf16.msra.mxu0 %v4702
    %4986 = vmatpush.bf16.msra.mxu0 %v4698
    %4987 = vmatpush.bf16.msra.mxu0 %v4694
    %4988 = vmatpush.bf16.msra.mxu0 %v4690
    %4989 = vmatpush.bf16.msra.mxu0 %v4686
    %4990 = vmatpush.bf16.msra.mxu0 %v4682
    %4991 = vmatmul.bf16.gmra.mxu0 %v4059
    %v4992 = vpop.f32.mrf.mxu0
    %v4993 = vadd.f32 %v4980, %v4992
    %v4994 = vpop.f32.mrf.mxu0
    %4995 = vdwg.mxu0
    %4996 = vmatpush.bf16.msra.mxu0 %v4615
    %4997 = vmatpush.bf16.msra.mxu0 %v4611
    %4998 = vmatpush.bf16.msra.mxu0 %v4607
    %4999 = vmatpush.bf16.msra.mxu0 %v4603
    %5000 = vmatpush.bf16.msra.mxu0 %v4599
    %5001 = vmatpush.bf16.msra.mxu0 %v4595
    %5002 = vmatpush.bf16.msra.mxu0 %v4591
    %5003 = vmatpush.bf16.msra.mxu0 %v4587
    %5004 = vmatmul.bf16.gmra.mxu0 %v4056
    %v5005 = vpop.f32.mrf.mxu0
    %v5006 = vadd.f32 %v4195, %v5005
    %v5007 = vpop.f32.mrf.mxu0
    %5008 = vdwg.mxu0
    %5009 = vmatpush.bf16.msra.mxu0 %v4647
    %5010 = vmatpush.bf16.msra.mxu0 %v4643
    %5011 = vmatpush.bf16.msra.mxu0 %v4639
    %5012 = vmatpush.bf16.msra.mxu0 %v4635
    %5013 = vmatpush.bf16.msra.mxu0 %v4631
    %5014 = vmatpush.bf16.msra.mxu0 %v4627
    %5015 = vmatpush.bf16.msra.mxu0 %v4623
    %5016 = vmatpush.bf16.msra.mxu0 %v4619
    %5017 = vmatmul.bf16.gmra.mxu0 %v4057
    %v5018 = vpop.f32.mrf.mxu0
    %v5019 = vadd.f32 %v5006, %v5018
    %v5020 = vpop.f32.mrf.mxu0
    %5021 = vdwg.mxu0
    %5022 = vmatpush.bf16.msra.mxu0 %v4679
    %5023 = vmatpush.bf16.msra.mxu0 %v4675
    %5024 = vmatpush.bf16.msra.mxu0 %v4671
    %5025 = vmatpush.bf16.msra.mxu0 %v4667
    %5026 = vmatpush.bf16.msra.mxu0 %v4663
    %5027 = vmatpush.bf16.msra.mxu0 %v4659
    %5028 = vmatpush.bf16.msra.mxu0 %v4655
    %5029 = vmatpush.bf16.msra.mxu0 %v4651
    %5030 = vmatmul.bf16.gmra.mxu0 %v4058
    %v5031 = vpop.f32.mrf.mxu0
    %v5032 = vadd.f32 %v5019, %v5031
    %v5033 = vpop.f32.mrf.mxu0
    %5034 = vdwg.mxu0
    %5035 = vmatpush.bf16.msra.mxu0 %v4711
    %5036 = vmatpush.bf16.msra.mxu0 %v4707
    %5037 = vmatpush.bf16.msra.mxu0 %v4703
    %5038 = vmatpush.bf16.msra.mxu0 %v4699
    %5039 = vmatpush.bf16.msra.mxu0 %v4695
    %5040 = vmatpush.bf16.msra.mxu0 %v4691
    %5041 = vmatpush.bf16.msra.mxu0 %v4687
    %5042 = vmatpush.bf16.msra.mxu0 %v4683
    %5043 = vmatmul.bf16.gmra.mxu0 %v4059
    %v5044 = vpop.f32.mrf.mxu0
    %v5045 = vadd.f32 %v5032, %v5044
    %v5046 = vpop.f32.mrf.mxu0
    %5047 = vdwg.mxu0
    %v5048 = vmul.f32 %v4889, 0.2
    %v5049 = vmul.f32 %v4941, 0.2
    %v5050 = vmul.f32 %v4993, 0.2
    %v5051 = vmul.f32 %v5045, 0.2
    %v5052 = vmax.f32 %v4889, %v5048
    %v5053 = vmax.f32 %v4941, %v5049
    %v5054 = vmax.f32 %v4993, %v5050
    %v5055 = vmax.f32 %v5045, %v5051
    %v5056 = vpack.c.bf16 %v5052, %v5052
    %v5057 = vpack.c.bf16 %v5053, %v5053
    %v5058 = vpack.c.bf16 %v5054, %v5054
    %v5059 = vpack.c.bf16 %v5055, %v5055
    %s5060 = scalar_lea.vmem [#allocation2], 5120
    %v5061 = vld [vmem:[%s5060] sm:$0xff]
    %v5062 = vld [vmem:[%s5060 + $0x8] sm:$0xff]
    %v5063 = vld [vmem:[%s5060 + $0x10] sm:$0xff]
    %v5064 = vld [vmem:[%s5060 + $0x18] sm:$0xff]
    %v5065 = vld [vmem:[%s5060 + $0x20] sm:$0xff]
    %v5066 = vld [vmem:[%s5060 + $0x28] sm:$0xff]
    %v5067 = vld [vmem:[%s5060 + $0x30] sm:$0xff]
    %v5068 = vld [vmem:[%s5060 + $0x38] sm:$0xff]
    %v5069 = vld [vmem:[%s5060 + $0x40] sm:$0xff]
    %v5070 = vld [vmem:[%s5060 + $0x48] sm:$0xff]
    %v5071 = vld [vmem:[%s5060 + $0x50] sm:$0xff]
    %v5072 = vld [vmem:[%s5060 + $0x58] sm:$0xff]
    %v5073 = vld [vmem:[%s5060 + $0x60] sm:$0xff]
    %v5074 = vld [vmem:[%s5060 + $0x68] sm:$0xff]
    %v5075 = vld [vmem:[%s5060 + $0x70] sm:$0xff]
    %v5076 = vld [vmem:[%s5060 + $0x78] sm:$0xff]
    %v5077 = vld [vmem:[%s5060 + $0x80] sm:$0xff]
    %v5078 = vld [vmem:[%s5060 + $0x88] sm:$0xff]
    %v5079 = vld [vmem:[%s5060 + $0x90] sm:$0xff]
    %v5080 = vld [vmem:[%s5060 + $0x98] sm:$0xff]
    %v5081 = vld [vmem:[%s5060 + $0xa0] sm:$0xff]
    %v5082 = vld [vmem:[%s5060 + $0xa8] sm:$0xff]
    %v5083 = vld [vmem:[%s5060 + $0xb0] sm:$0xff]
    %v5084 = vld [vmem:[%s5060 + $0xb8] sm:$0xff]
    %v5085 = vld [vmem:[%s5060 + $0xc0] sm:$0xff]
    %v5086 = vld [vmem:[%s5060 + $0xc8] sm:$0xff]
    %v5087 = vld [vmem:[%s5060 + $0xd0] sm:$0xff]
    %v5088 = vld [vmem:[%s5060 + $0xd8] sm:$0xff]
    %v5089 = vld [vmem:[%s5060 + $0xe0] sm:$0xff]
    %v5090 = vld [vmem:[%s5060 + $0xe8] sm:$0xff]
    %v5091 = vld [vmem:[%s5060 + $0xf0] sm:$0xff]
    %v5092 = vld [vmem:[%s5060 + $0xf8] sm:$0xff]
    %v5093 = vld [vmem:[%s5060 + $0x100] sm:$0xff]
    %v5094 = vld [vmem:[%s5060 + $0x108] sm:$0xff]
    %v5095 = vld [vmem:[%s5060 + $0x110] sm:$0xff]
    %v5096 = vld [vmem:[%s5060 + $0x118] sm:$0xff]
    %v5097 = vld [vmem:[%s5060 + $0x120] sm:$0xff]
    %v5098 = vld [vmem:[%s5060 + $0x128] sm:$0xff]
    %v5099 = vld [vmem:[%s5060 + $0x130] sm:$0xff]
    %v5100 = vld [vmem:[%s5060 + $0x138] sm:$0xff]
    %v5101 = vld [vmem:[%s5060 + $0x140] sm:$0xff]
    %v5102 = vld [vmem:[%s5060 + $0x148] sm:$0xff]
    %v5103 = vld [vmem:[%s5060 + $0x150] sm:$0xff]
    %v5104 = vld [vmem:[%s5060 + $0x158] sm:$0xff]
    %v5105 = vld [vmem:[%s5060 + $0x160] sm:$0xff]
    %v5106 = vld [vmem:[%s5060 + $0x168] sm:$0xff]
    %v5107 = vld [vmem:[%s5060 + $0x170] sm:$0xff]
    %v5108 = vld [vmem:[%s5060 + $0x178] sm:$0xff]
    %v5109 = vld [vmem:[%s5060 + $0x180] sm:$0xff]
    %v5110 = vld [vmem:[%s5060 + $0x188] sm:$0xff]
    %v5111 = vld [vmem:[%s5060 + $0x190] sm:$0xff]
    %v5112 = vld [vmem:[%s5060 + $0x198] sm:$0xff]
    %v5113 = vld [vmem:[%s5060 + $0x1a0] sm:$0xff]
    %v5114 = vld [vmem:[%s5060 + $0x1a8] sm:$0xff]
    %v5115 = vld [vmem:[%s5060 + $0x1b0] sm:$0xff]
    %v5116 = vld [vmem:[%s5060 + $0x1b8] sm:$0xff]
    %v5117 = vld [vmem:[%s5060 + $0x1c0] sm:$0xff]
    %v5118 = vld [vmem:[%s5060 + $0x1c8] sm:$0xff]
    %v5119 = vld [vmem:[%s5060 + $0x1d0] sm:$0xff]
    %v5120 = vld [vmem:[%s5060 + $0x1d8] sm:$0xff]
    %v5121 = vld [vmem:[%s5060 + $0x1e0] sm:$0xff]
    %v5122 = vld [vmem:[%s5060 + $0x1e8] sm:$0xff]
    %v5123 = vld [vmem:[%s5060 + $0x1f0] sm:$0xff]
    %v5124 = vld [vmem:[%s5060 + $0x1f8] sm:$0xff]
    %v5125 = vld [vmem:[%s5060 + $0x200] sm:$0xff]
    %v5126 = vld [vmem:[%s5060 + $0x208] sm:$0xff]
    %v5127 = vld [vmem:[%s5060 + $0x210] sm:$0xff]
    %v5128 = vld [vmem:[%s5060 + $0x218] sm:$0xff]
    %v5129 = vld [vmem:[%s5060 + $0x220] sm:$0xff]
    %v5130 = vld [vmem:[%s5060 + $0x228] sm:$0xff]
    %v5131 = vld [vmem:[%s5060 + $0x230] sm:$0xff]
    %v5132 = vld [vmem:[%s5060 + $0x238] sm:$0xff]
    %v5133 = vld [vmem:[%s5060 + $0x240] sm:$0xff]
    %v5134 = vld [vmem:[%s5060 + $0x248] sm:$0xff]
    %v5135 = vld [vmem:[%s5060 + $0x250] sm:$0xff]
    %v5136 = vld [vmem:[%s5060 + $0x258] sm:$0xff]
    %v5137 = vld [vmem:[%s5060 + $0x260] sm:$0xff]
    %v5138 = vld [vmem:[%s5060 + $0x268] sm:$0xff]
    %v5139 = vld [vmem:[%s5060 + $0x270] sm:$0xff]
    %v5140 = vld [vmem:[%s5060 + $0x278] sm:$0xff]
    %v5141 = vld [vmem:[%s5060 + $0x280] sm:$0xff]
    %v5142 = vld [vmem:[%s5060 + $0x288] sm:$0xff]
    %v5143 = vld [vmem:[%s5060 + $0x290] sm:$0xff]
    %v5144 = vld [vmem:[%s5060 + $0x298] sm:$0xff]
    %v5145 = vld [vmem:[%s5060 + $0x2a0] sm:$0xff]
    %v5146 = vld [vmem:[%s5060 + $0x2a8] sm:$0xff]
    %v5147 = vld [vmem:[%s5060 + $0x2b0] sm:$0xff]
    %v5148 = vld [vmem:[%s5060 + $0x2b8] sm:$0xff]
    %v5149 = vld [vmem:[%s5060 + $0x2c0] sm:$0xff]
    %v5150 = vld [vmem:[%s5060 + $0x2c8] sm:$0xff]
    %v5151 = vld [vmem:[%s5060 + $0x2d0] sm:$0xff]
    %v5152 = vld [vmem:[%s5060 + $0x2d8] sm:$0xff]
    %v5153 = vld [vmem:[%s5060 + $0x2e0] sm:$0xff]
    %v5154 = vld [vmem:[%s5060 + $0x2e8] sm:$0xff]
    %v5155 = vld [vmem:[%s5060 + $0x2f0] sm:$0xff]
    %v5156 = vld [vmem:[%s5060 + $0x2f8] sm:$0xff]
    %v5157 = vld [vmem:[%s5060 + $0x300] sm:$0xff]
    %v5158 = vld [vmem:[%s5060 + $0x308] sm:$0xff]
    %v5159 = vld [vmem:[%s5060 + $0x310] sm:$0xff]
    %v5160 = vld [vmem:[%s5060 + $0x318] sm:$0xff]
    %v5161 = vld [vmem:[%s5060 + $0x320] sm:$0xff]
    %v5162 = vld [vmem:[%s5060 + $0x328] sm:$0xff]
    %v5163 = vld [vmem:[%s5060 + $0x330] sm:$0xff]
    %v5164 = vld [vmem:[%s5060 + $0x338] sm:$0xff]
    %v5165 = vld [vmem:[%s5060 + $0x340] sm:$0xff]
    %v5166 = vld [vmem:[%s5060 + $0x348] sm:$0xff]
    %v5167 = vld [vmem:[%s5060 + $0x350] sm:$0xff]
    %v5168 = vld [vmem:[%s5060 + $0x358] sm:$0xff]
    %v5169 = vld [vmem:[%s5060 + $0x360] sm:$0xff]
    %v5170 = vld [vmem:[%s5060 + $0x368] sm:$0xff]
    %v5171 = vld [vmem:[%s5060 + $0x370] sm:$0xff]
    %v5172 = vld [vmem:[%s5060 + $0x378] sm:$0xff]
    %v5173 = vld [vmem:[%s5060 + $0x380] sm:$0xff]
    %v5174 = vld [vmem:[%s5060 + $0x388] sm:$0xff]
    %v5175 = vld [vmem:[%s5060 + $0x390] sm:$0xff]
    %v5176 = vld [vmem:[%s5060 + $0x398] sm:$0xff]
    %v5177 = vld [vmem:[%s5060 + $0x3a0] sm:$0xff]
    %v5178 = vld [vmem:[%s5060 + $0x3a8] sm:$0xff]
    %v5179 = vld [vmem:[%s5060 + $0x3b0] sm:$0xff]
    %v5180 = vld [vmem:[%s5060 + $0x3b8] sm:$0xff]
    %v5181 = vld [vmem:[%s5060 + $0x3c0] sm:$0xff]
    %v5182 = vld [vmem:[%s5060 + $0x3c8] sm:$0xff]
    %v5183 = vld [vmem:[%s5060 + $0x3d0] sm:$0xff]
    %v5184 = vld [vmem:[%s5060 + $0x3d8] sm:$0xff]
    %v5185 = vld [vmem:[%s5060 + $0x3e0] sm:$0xff]
    %v5186 = vld [vmem:[%s5060 + $0x3e8] sm:$0xff]
    %v5187 = vld [vmem:[%s5060 + $0x3f0] sm:$0xff]
    %v5188 = vld [vmem:[%s5060 + $0x3f8] sm:$0xff]
    %s5189 = scalar_lea.vmem [#allocation4], 20
    %v5190 = vld [vmem:[%s5189] sm:$0xf]
    %v5192 = vperm.slane %v5190, 0
    %v5193 = vperm.slane %v5190, 1
    %v5194 = vperm.slane %v5190, 2
    %v5195 = vperm.slane %v5190, 3
    %v5328 = vunpack.c.l.b16 %v5061
    %v5329 = vunpack.c.h.b16 %v5061
    %v5330 = vunpack.c.l.b16 %v5062
    %v5331 = vunpack.c.h.b16 %v5062
    %v5332 = vunpack.c.l.b16 %v5063
    %v5333 = vunpack.c.h.b16 %v5063
    %v5334 = vunpack.c.l.b16 %v5064
    %v5335 = vunpack.c.h.b16 %v5064
    %v5336 = vunpack.c.l.b16 %v5065
    %v5337 = vunpack.c.h.b16 %v5065
    %v5338 = vunpack.c.l.b16 %v5066
    %v5339 = vunpack.c.h.b16 %v5066
    %v5340 = vunpack.c.l.b16 %v5067
    %v5341 = vunpack.c.h.b16 %v5067
    %v5342 = vunpack.c.l.b16 %v5068
    %v5343 = vunpack.c.h.b16 %v5068
    %v5344 = vunpack.c.l.b16 %v5069
    %v5345 = vunpack.c.h.b16 %v5069
    %v5346 = vunpack.c.l.b16 %v5070
    %v5347 = vunpack.c.h.b16 %v5070
    %v5348 = vunpack.c.l.b16 %v5071
    %v5349 = vunpack.c.h.b16 %v5071
    %v5350 = vunpack.c.l.b16 %v5072
    %v5351 = vunpack.c.h.b16 %v5072
    %v5352 = vunpack.c.l.b16 %v5073
    %v5353 = vunpack.c.h.b16 %v5073
    %v5354 = vunpack.c.l.b16 %v5074
    %v5355 = vunpack.c.h.b16 %v5074
    %v5356 = vunpack.c.l.b16 %v5075
    %v5357 = vunpack.c.h.b16 %v5075
    %v5358 = vunpack.c.l.b16 %v5076
    %v5359 = vunpack.c.h.b16 %v5076
    %v5360 = vunpack.c.l.b16 %v5077
    %v5361 = vunpack.c.h.b16 %v5077
    %v5362 = vunpack.c.l.b16 %v5078
    %v5363 = vunpack.c.h.b16 %v5078
    %v5364 = vunpack.c.l.b16 %v5079
    %v5365 = vunpack.c.h.b16 %v5079
    %v5366 = vunpack.c.l.b16 %v5080
    %v5367 = vunpack.c.h.b16 %v5080
    %v5368 = vunpack.c.l.b16 %v5081
    %v5369 = vunpack.c.h.b16 %v5081
    %v5370 = vunpack.c.l.b16 %v5082
    %v5371 = vunpack.c.h.b16 %v5082
    %v5372 = vunpack.c.l.b16 %v5083
    %v5373 = vunpack.c.h.b16 %v5083
    %v5374 = vunpack.c.l.b16 %v5084
    %v5375 = vunpack.c.h.b16 %v5084
    %v5376 = vunpack.c.l.b16 %v5085
    %v5377 = vunpack.c.h.b16 %v5085
    %v5378 = vunpack.c.l.b16 %v5086
    %v5379 = vunpack.c.h.b16 %v5086
    %v5380 = vunpack.c.l.b16 %v5087
    %v5381 = vunpack.c.h.b16 %v5087
    %v5382 = vunpack.c.l.b16 %v5088
    %v5383 = vunpack.c.h.b16 %v5088
    %v5384 = vunpack.c.l.b16 %v5089
    %v5385 = vunpack.c.h.b16 %v5089
    %v5386 = vunpack.c.l.b16 %v5090
    %v5387 = vunpack.c.h.b16 %v5090
    %v5388 = vunpack.c.l.b16 %v5091
    %v5389 = vunpack.c.h.b16 %v5091
    %v5390 = vunpack.c.l.b16 %v5092
    %v5391 = vunpack.c.h.b16 %v5092
    %v5392 = vunpack.c.l.b16 %v5093
    %v5393 = vunpack.c.h.b16 %v5093
    %v5394 = vunpack.c.l.b16 %v5094
    %v5395 = vunpack.c.h.b16 %v5094
    %v5396 = vunpack.c.l.b16 %v5095
    %v5397 = vunpack.c.h.b16 %v5095
    %v5398 = vunpack.c.l.b16 %v5096
    %v5399 = vunpack.c.h.b16 %v5096
    %v5400 = vunpack.c.l.b16 %v5097
    %v5401 = vunpack.c.h.b16 %v5097
    %v5402 = vunpack.c.l.b16 %v5098
    %v5403 = vunpack.c.h.b16 %v5098
    %v5404 = vunpack.c.l.b16 %v5099
    %v5405 = vunpack.c.h.b16 %v5099
    %v5406 = vunpack.c.l.b16 %v5100
    %v5407 = vunpack.c.h.b16 %v5100
    %v5408 = vunpack.c.l.b16 %v5101
    %v5409 = vunpack.c.h.b16 %v5101
    %v5410 = vunpack.c.l.b16 %v5102
    %v5411 = vunpack.c.h.b16 %v5102
    %v5412 = vunpack.c.l.b16 %v5103
    %v5413 = vunpack.c.h.b16 %v5103
    %v5414 = vunpack.c.l.b16 %v5104
    %v5415 = vunpack.c.h.b16 %v5104
    %v5416 = vunpack.c.l.b16 %v5105
    %v5417 = vunpack.c.h.b16 %v5105
    %v5418 = vunpack.c.l.b16 %v5106
    %v5419 = vunpack.c.h.b16 %v5106
    %v5420 = vunpack.c.l.b16 %v5107
    %v5421 = vunpack.c.h.b16 %v5107
    %v5422 = vunpack.c.l.b16 %v5108
    %v5423 = vunpack.c.h.b16 %v5108
    %v5424 = vunpack.c.l.b16 %v5109
    %v5425 = vunpack.c.h.b16 %v5109
    %v5426 = vunpack.c.l.b16 %v5110
    %v5427 = vunpack.c.h.b16 %v5110
    %v5428 = vunpack.c.l.b16 %v5111
    %v5429 = vunpack.c.h.b16 %v5111
    %v5430 = vunpack.c.l.b16 %v5112
    %v5431 = vunpack.c.h.b16 %v5112
    %v5432 = vunpack.c.l.b16 %v5113
    %v5433 = vunpack.c.h.b16 %v5113
    %v5434 = vunpack.c.l.b16 %v5114
    %v5435 = vunpack.c.h.b16 %v5114
    %v5436 = vunpack.c.l.b16 %v5115
    %v5437 = vunpack.c.h.b16 %v5115
    %v5438 = vunpack.c.l.b16 %v5116
    %v5439 = vunpack.c.h.b16 %v5116
    %v5440 = vunpack.c.l.b16 %v5117
    %v5441 = vunpack.c.h.b16 %v5117
    %v5442 = vunpack.c.l.b16 %v5118
    %v5443 = vunpack.c.h.b16 %v5118
    %v5444 = vunpack.c.l.b16 %v5119
    %v5445 = vunpack.c.h.b16 %v5119
    %v5446 = vunpack.c.l.b16 %v5120
    %v5447 = vunpack.c.h.b16 %v5120
    %v5448 = vunpack.c.l.b16 %v5121
    %v5449 = vunpack.c.h.b16 %v5121
    %v5450 = vunpack.c.l.b16 %v5122
    %v5451 = vunpack.c.h.b16 %v5122
    %v5452 = vunpack.c.l.b16 %v5123
    %v5453 = vunpack.c.h.b16 %v5123
    %v5454 = vunpack.c.l.b16 %v5124
    %v5455 = vunpack.c.h.b16 %v5124
    %v5456 = vunpack.c.l.b16 %v5125
    %v5457 = vunpack.c.h.b16 %v5125
    %v5458 = vunpack.c.l.b16 %v5126
    %v5459 = vunpack.c.h.b16 %v5126
    %v5460 = vunpack.c.l.b16 %v5127
    %v5461 = vunpack.c.h.b16 %v5127
    %v5462 = vunpack.c.l.b16 %v5128
    %v5463 = vunpack.c.h.b16 %v5128
    %v5464 = vunpack.c.l.b16 %v5129
    %v5465 = vunpack.c.h.b16 %v5129
    %v5466 = vunpack.c.l.b16 %v5130
    %v5467 = vunpack.c.h.b16 %v5130
    %v5468 = vunpack.c.l.b16 %v5131
    %v5469 = vunpack.c.h.b16 %v5131
    %v5470 = vunpack.c.l.b16 %v5132
    %v5471 = vunpack.c.h.b16 %v5132
    %v5472 = vunpack.c.l.b16 %v5133
    %v5473 = vunpack.c.h.b16 %v5133
    %v5474 = vunpack.c.l.b16 %v5134
    %v5475 = vunpack.c.h.b16 %v5134
    %v5476 = vunpack.c.l.b16 %v5135
    %v5477 = vunpack.c.h.b16 %v5135
    %v5478 = vunpack.c.l.b16 %v5136
    %v5479 = vunpack.c.h.b16 %v5136
    %v5480 = vunpack.c.l.b16 %v5137
    %v5481 = vunpack.c.h.b16 %v5137
    %v5482 = vunpack.c.l.b16 %v5138
    %v5483 = vunpack.c.h.b16 %v5138
    %v5484 = vunpack.c.l.b16 %v5139
    %v5485 = vunpack.c.h.b16 %v5139
    %v5486 = vunpack.c.l.b16 %v5140
    %v5487 = vunpack.c.h.b16 %v5140
    %v5488 = vunpack.c.l.b16 %v5141
    %v5489 = vunpack.c.h.b16 %v5141
    %v5490 = vunpack.c.l.b16 %v5142
    %v5491 = vunpack.c.h.b16 %v5142
    %v5492 = vunpack.c.l.b16 %v5143
    %v5493 = vunpack.c.h.b16 %v5143
    %v5494 = vunpack.c.l.b16 %v5144
    %v5495 = vunpack.c.h.b16 %v5144
    %v5496 = vunpack.c.l.b16 %v5145
    %v5497 = vunpack.c.h.b16 %v5145
    %v5498 = vunpack.c.l.b16 %v5146
    %v5499 = vunpack.c.h.b16 %v5146
    %v5500 = vunpack.c.l.b16 %v5147
    %v5501 = vunpack.c.h.b16 %v5147
    %v5502 = vunpack.c.l.b16 %v5148
    %v5503 = vunpack.c.h.b16 %v5148
    %v5504 = vunpack.c.l.b16 %v5149
    %v5505 = vunpack.c.h.b16 %v5149
    %v5506 = vunpack.c.l.b16 %v5150
    %v5507 = vunpack.c.h.b16 %v5150
    %v5508 = vunpack.c.l.b16 %v5151
    %v5509 = vunpack.c.h.b16 %v5151
    %v5510 = vunpack.c.l.b16 %v5152
    %v5511 = vunpack.c.h.b16 %v5152
    %v5512 = vunpack.c.l.b16 %v5153
    %v5513 = vunpack.c.h.b16 %v5153
    %v5514 = vunpack.c.l.b16 %v5154
    %v5515 = vunpack.c.h.b16 %v5154
    %v5516 = vunpack.c.l.b16 %v5155
    %v5517 = vunpack.c.h.b16 %v5155
    %v5518 = vunpack.c.l.b16 %v5156
    %v5519 = vunpack.c.h.b16 %v5156
    %v5520 = vunpack.c.l.b16 %v5157
    %v5521 = vunpack.c.h.b16 %v5157
    %v5522 = vunpack.c.l.b16 %v5158
    %v5523 = vunpack.c.h.b16 %v5158
    %v5524 = vunpack.c.l.b16 %v5159
    %v5525 = vunpack.c.h.b16 %v5159
    %v5526 = vunpack.c.l.b16 %v5160
    %v5527 = vunpack.c.h.b16 %v5160
    %v5528 = vunpack.c.l.b16 %v5161
    %v5529 = vunpack.c.h.b16 %v5161
    %v5530 = vunpack.c.l.b16 %v5162
    %v5531 = vunpack.c.h.b16 %v5162
    %v5532 = vunpack.c.l.b16 %v5163
    %v5533 = vunpack.c.h.b16 %v5163
    %v5534 = vunpack.c.l.b16 %v5164
    %v5535 = vunpack.c.h.b16 %v5164
    %v5536 = vunpack.c.l.b16 %v5165
    %v5537 = vunpack.c.h.b16 %v5165
    %v5538 = vunpack.c.l.b16 %v5166
    %v5539 = vunpack.c.h.b16 %v5166
    %v5540 = vunpack.c.l.b16 %v5167
    %v5541 = vunpack.c.h.b16 %v5167
    %v5542 = vunpack.c.l.b16 %v5168
    %v5543 = vunpack.c.h.b16 %v5168
    %v5544 = vunpack.c.l.b16 %v5169
    %v5545 = vunpack.c.h.b16 %v5169
    %v5546 = vunpack.c.l.b16 %v5170
    %v5547 = vunpack.c.h.b16 %v5170
    %v5548 = vunpack.c.l.b16 %v5171
    %v5549 = vunpack.c.h.b16 %v5171
    %v5550 = vunpack.c.l.b16 %v5172
    %v5551 = vunpack.c.h.b16 %v5172
    %v5552 = vunpack.c.l.b16 %v5173
    %v5553 = vunpack.c.h.b16 %v5173
    %v5554 = vunpack.c.l.b16 %v5174
    %v5555 = vunpack.c.h.b16 %v5174
    %v5556 = vunpack.c.l.b16 %v5175
    %v5557 = vunpack.c.h.b16 %v5175
    %v5558 = vunpack.c.l.b16 %v5176
    %v5559 = vunpack.c.h.b16 %v5176
    %v5560 = vunpack.c.l.b16 %v5177
    %v5561 = vunpack.c.h.b16 %v5177
    %v5562 = vunpack.c.l.b16 %v5178
    %v5563 = vunpack.c.h.b16 %v5178
    %v5564 = vunpack.c.l.b16 %v5179
    %v5565 = vunpack.c.h.b16 %v5179
    %v5566 = vunpack.c.l.b16 %v5180
    %v5567 = vunpack.c.h.b16 %v5180
    %v5568 = vunpack.c.l.b16 %v5181
    %v5569 = vunpack.c.h.b16 %v5181
    %v5570 = vunpack.c.l.b16 %v5182
    %v5571 = vunpack.c.h.b16 %v5182
    %v5572 = vunpack.c.l.b16 %v5183
    %v5573 = vunpack.c.h.b16 %v5183
    %v5574 = vunpack.c.l.b16 %v5184
    %v5575 = vunpack.c.h.b16 %v5184
    %v5576 = vunpack.c.l.b16 %v5185
    %v5577 = vunpack.c.h.b16 %v5185
    %v5578 = vunpack.c.l.b16 %v5186
    %v5579 = vunpack.c.h.b16 %v5186
    %v5580 = vunpack.c.l.b16 %v5187
    %v5581 = vunpack.c.h.b16 %v5187
    %v5582 = vunpack.c.l.b16 %v5188
    %v5583 = vunpack.c.h.b16 %v5188
    %v5584 = vpack.c.b16 %v5332, %v5328
    %v5585 = vpack.c.b16 %v5333, %v5329
    %v5586 = vpack.c.b16 %v5334, %v5330
    %v5587 = vpack.c.b16 %v5335, %v5331
    %v5588 = vpack.c.b16 %v5340, %v5336
    %v5589 = vpack.c.b16 %v5341, %v5337
    %v5590 = vpack.c.b16 %v5342, %v5338
    %v5591 = vpack.c.b16 %v5343, %v5339
    %v5592 = vpack.c.b16 %v5348, %v5344
    %v5593 = vpack.c.b16 %v5349, %v5345
    %v5594 = vpack.c.b16 %v5350, %v5346
    %v5595 = vpack.c.b16 %v5351, %v5347
    %v5596 = vpack.c.b16 %v5356, %v5352
    %v5597 = vpack.c.b16 %v5357, %v5353
    %v5598 = vpack.c.b16 %v5358, %v5354
    %v5599 = vpack.c.b16 %v5359, %v5355
    %v5600 = vpack.c.b16 %v5364, %v5360
    %v5601 = vpack.c.b16 %v5365, %v5361
    %v5602 = vpack.c.b16 %v5366, %v5362
    %v5603 = vpack.c.b16 %v5367, %v5363
    %v5604 = vpack.c.b16 %v5372, %v5368
    %v5605 = vpack.c.b16 %v5373, %v5369
    %v5606 = vpack.c.b16 %v5374, %v5370
    %v5607 = vpack.c.b16 %v5375, %v5371
    %v5608 = vpack.c.b16 %v5380, %v5376
    %v5609 = vpack.c.b16 %v5381, %v5377
    %v5610 = vpack.c.b16 %v5382, %v5378
    %v5611 = vpack.c.b16 %v5383, %v5379
    %v5612 = vpack.c.b16 %v5388, %v5384
    %v5613 = vpack.c.b16 %v5389, %v5385
    %v5614 = vpack.c.b16 %v5390, %v5386
    %v5615 = vpack.c.b16 %v5391, %v5387
    %v5616 = vpack.c.b16 %v5396, %v5392
    %v5617 = vpack.c.b16 %v5397, %v5393
    %v5618 = vpack.c.b16 %v5398, %v5394
    %v5619 = vpack.c.b16 %v5399, %v5395
    %v5620 = vpack.c.b16 %v5404, %v5400
    %v5621 = vpack.c.b16 %v5405, %v5401
    %v5622 = vpack.c.b16 %v5406, %v5402
    %v5623 = vpack.c.b16 %v5407, %v5403
    %v5624 = vpack.c.b16 %v5412, %v5408
    %v5625 = vpack.c.b16 %v5413, %v5409
    %v5626 = vpack.c.b16 %v5414, %v5410
    %v5627 = vpack.c.b16 %v5415, %v5411
    %v5628 = vpack.c.b16 %v5420, %v5416
    %v5629 = vpack.c.b16 %v5421, %v5417
    %v5630 = vpack.c.b16 %v5422, %v5418
    %v5631 = vpack.c.b16 %v5423, %v5419
    %v5632 = vpack.c.b16 %v5428, %v5424
    %v5633 = vpack.c.b16 %v5429, %v5425
    %v5634 = vpack.c.b16 %v5430, %v5426
    %v5635 = vpack.c.b16 %v5431, %v5427
    %v5636 = vpack.c.b16 %v5436, %v5432
    %v5637 = vpack.c.b16 %v5437, %v5433
    %v5638 = vpack.c.b16 %v5438, %v5434
    %v5639 = vpack.c.b16 %v5439, %v5435
    %v5640 = vpack.c.b16 %v5444, %v5440
    %v5641 = vpack.c.b16 %v5445, %v5441
    %v5642 = vpack.c.b16 %v5446, %v5442
    %v5643 = vpack.c.b16 %v5447, %v5443
    %v5644 = vpack.c.b16 %v5452, %v5448
    %v5645 = vpack.c.b16 %v5453, %v5449
    %v5646 = vpack.c.b16 %v5454, %v5450
    %v5647 = vpack.c.b16 %v5455, %v5451
    %v5648 = vpack.c.b16 %v5460, %v5456
    %v5649 = vpack.c.b16 %v5461, %v5457
    %v5650 = vpack.c.b16 %v5462, %v5458
    %v5651 = vpack.c.b16 %v5463, %v5459
    %v5652 = vpack.c.b16 %v5468, %v5464
    %v5653 = vpack.c.b16 %v5469, %v5465
    %v5654 = vpack.c.b16 %v5470, %v5466
    %v5655 = vpack.c.b16 %v5471, %v5467
    %v5656 = vpack.c.b16 %v5476, %v5472
    %v5657 = vpack.c.b16 %v5477, %v5473
    %v5658 = vpack.c.b16 %v5478, %v5474
    %v5659 = vpack.c.b16 %v5479, %v5475
    %v5660 = vpack.c.b16 %v5484, %v5480
    %v5661 = vpack.c.b16 %v5485, %v5481
    %v5662 = vpack.c.b16 %v5486, %v5482
    %v5663 = vpack.c.b16 %v5487, %v5483
    %v5664 = vpack.c.b16 %v5492, %v5488
    %v5665 = vpack.c.b16 %v5493, %v5489
    %v5666 = vpack.c.b16 %v5494, %v5490
    %v5667 = vpack.c.b16 %v5495, %v5491
    %v5668 = vpack.c.b16 %v5500, %v5496
    %v5669 = vpack.c.b16 %v5501, %v5497
    %v5670 = vpack.c.b16 %v5502, %v5498
    %v5671 = vpack.c.b16 %v5503, %v5499
    %v5672 = vpack.c.b16 %v5508, %v5504
    %v5673 = vpack.c.b16 %v5509, %v5505
    %v5674 = vpack.c.b16 %v5510, %v5506
    %v5675 = vpack.c.b16 %v5511, %v5507
    %v5676 = vpack.c.b16 %v5516, %v5512
    %v5677 = vpack.c.b16 %v5517, %v5513
    %v5678 = vpack.c.b16 %v5518, %v5514
    %v5679 = vpack.c.b16 %v5519, %v5515
    %v5680 = vpack.c.b16 %v5524, %v5520
    %v5681 = vpack.c.b16 %v5525, %v5521
    %v5682 = vpack.c.b16 %v5526, %v5522
    %v5683 = vpack.c.b16 %v5527, %v5523
    %v5684 = vpack.c.b16 %v5532, %v5528
    %v5685 = vpack.c.b16 %v5533, %v5529
    %v5686 = vpack.c.b16 %v5534, %v5530
    %v5687 = vpack.c.b16 %v5535, %v5531
    %v5688 = vpack.c.b16 %v5540, %v5536
    %v5689 = vpack.c.b16 %v5541, %v5537
    %v5690 = vpack.c.b16 %v5542, %v5538
    %v5691 = vpack.c.b16 %v5543, %v5539
    %v5692 = vpack.c.b16 %v5548, %v5544
    %v5693 = vpack.c.b16 %v5549, %v5545
    %v5694 = vpack.c.b16 %v5550, %v5546
    %v5695 = vpack.c.b16 %v5551, %v5547
    %v5696 = vpack.c.b16 %v5556, %v5552
    %v5697 = vpack.c.b16 %v5557, %v5553
    %v5698 = vpack.c.b16 %v5558, %v5554
    %v5699 = vpack.c.b16 %v5559, %v5555
    %v5700 = vpack.c.b16 %v5564, %v5560
    %v5701 = vpack.c.b16 %v5565, %v5561
    %v5702 = vpack.c.b16 %v5566, %v5562
    %v5703 = vpack.c.b16 %v5567, %v5563
    %v5704 = vpack.c.b16 %v5572, %v5568
    %v5705 = vpack.c.b16 %v5573, %v5569
    %v5706 = vpack.c.b16 %v5574, %v5570
    %v5707 = vpack.c.b16 %v5575, %v5571
    %v5708 = vpack.c.b16 %v5580, %v5576
    %v5709 = vpack.c.b16 %v5581, %v5577
    %v5710 = vpack.c.b16 %v5582, %v5578
    %v5711 = vpack.c.b16 %v5583, %v5579
    %5840 = vmatpush.bf16.msra.mxu0 %v5612
    %5841 = vmatpush.bf16.msra.mxu0 %v5608
    %5842 = vmatpush.bf16.msra.mxu0 %v5604
    %5843 = vmatpush.bf16.msra.mxu0 %v5600
    %5844 = vmatpush.bf16.msra.mxu0 %v5596
    %5845 = vmatpush.bf16.msra.mxu0 %v5592
    %5846 = vmatpush.bf16.msra.mxu0 %v5588
    %5847 = vmatpush.bf16.msra.mxu0 %v5584
    %5848 = vmatmul.bf16.gmra.mxu0 %v5056
    %v5849 = vpop.f32.mrf.mxu0
    %v5850 = vadd.f32 %v5192, %v5849
    %v5851 = vpop.f32.mrf.mxu0
    %5852 = vdwg.mxu0
    %5853 = vmatpush.bf16.msra.mxu0 %v5644
    %5854 = vmatpush.bf16.msra.mxu0 %v5640
    %5855 = vmatpush.bf16.msra.mxu0 %v5636
    %5856 = vmatpush.bf16.msra.mxu0 %v5632
    %5857 = vmatpush.bf16.msra.mxu0 %v5628
    %5858 = vmatpush.bf16.msra.mxu0 %v5624
    %5859 = vmatpush.bf16.msra.mxu0 %v5620
    %5860 = vmatpush.bf16.msra.mxu0 %v5616
    %5861 = vmatmul.bf16.gmra.mxu0 %v5057
    %v5862 = vpop.f32.mrf.mxu0
    %v5863 = vadd.f32 %v5850, %v5862
    %v5864 = vpop.f32.mrf.mxu0
    %5865 = vdwg.mxu0
    %5866 = vmatpush.bf16.msra.mxu0 %v5676
    %5867 = vmatpush.bf16.msra.mxu0 %v5672
    %5868 = vmatpush.bf16.msra.mxu0 %v5668
    %5869 = vmatpush.bf16.msra.mxu0 %v5664
    %5870 = vmatpush.bf16.msra.mxu0 %v5660
    %5871 = vmatpush.bf16.msra.mxu0 %v5656
    %5872 = vmatpush.bf16.msra.mxu0 %v5652
    %5873 = vmatpush.bf16.msra.mxu0 %v5648
    %5874 = vmatmul.bf16.gmra.mxu0 %v5058
    %v5875 = vpop.f32.mrf.mxu0
    %v5876 = vadd.f32 %v5863, %v5875
    %v5877 = vpop.f32.mrf.mxu0
    %5878 = vdwg.mxu0
    %5879 = vmatpush.bf16.msra.mxu0 %v5708
    %5880 = vmatpush.bf16.msra.mxu0 %v5704
    %5881 = vmatpush.bf16.msra.mxu0 %v5700
    %5882 = vmatpush.bf16.msra.mxu0 %v5696
    %5883 = vmatpush.bf16.msra.mxu0 %v5692
    %5884 = vmatpush.bf16.msra.mxu0 %v5688
    %5885 = vmatpush.bf16.msra.mxu0 %v5684
    %5886 = vmatpush.bf16.msra.mxu0 %v5680
    %5887 = vmatmul.bf16.gmra.mxu0 %v5059
    %v5888 = vpop.f32.mrf.mxu0
    %v5889 = vadd.f32 %v5876, %v5888
    %v5890 = vpop.f32.mrf.mxu0
    %5891 = vdwg.mxu0
    %5892 = vmatpush.bf16.msra.mxu0 %v5613
    %5893 = vmatpush.bf16.msra.mxu0 %v5609
    %5894 = vmatpush.bf16.msra.mxu0 %v5605
    %5895 = vmatpush.bf16.msra.mxu0 %v5601
    %5896 = vmatpush.bf16.msra.mxu0 %v5597
    %5897 = vmatpush.bf16.msra.mxu0 %v5593
    %5898 = vmatpush.bf16.msra.mxu0 %v5589
    %5899 = vmatpush.bf16.msra.mxu0 %v5585
    %5900 = vmatmul.bf16.gmra.mxu0 %v5056
    %v5901 = vpop.f32.mrf.mxu0
    %v5902 = vadd.f32 %v5193, %v5901
    %v5903 = vpop.f32.mrf.mxu0
    %5904 = vdwg.mxu0
    %5905 = vmatpush.bf16.msra.mxu0 %v5645
    %5906 = vmatpush.bf16.msra.mxu0 %v5641
    %5907 = vmatpush.bf16.msra.mxu0 %v5637
    %5908 = vmatpush.bf16.msra.mxu0 %v5633
    %5909 = vmatpush.bf16.msra.mxu0 %v5629
    %5910 = vmatpush.bf16.msra.mxu0 %v5625
    %5911 = vmatpush.bf16.msra.mxu0 %v5621
    %5912 = vmatpush.bf16.msra.mxu0 %v5617
    %5913 = vmatmul.bf16.gmra.mxu0 %v5057
    %v5914 = vpop.f32.mrf.mxu0
    %v5915 = vadd.f32 %v5902, %v5914
    %v5916 = vpop.f32.mrf.mxu0
    %5917 = vdwg.mxu0
    %5918 = vmatpush.bf16.msra.mxu0 %v5677
    %5919 = vmatpush.bf16.msra.mxu0 %v5673
    %5920 = vmatpush.bf16.msra.mxu0 %v5669
    %5921 = vmatpush.bf16.msra.mxu0 %v5665
    %5922 = vmatpush.bf16.msra.mxu0 %v5661
    %5923 = vmatpush.bf16.msra.mxu0 %v5657
    %5924 = vmatpush.bf16.msra.mxu0 %v5653
    %5925 = vmatpush.bf16.msra.mxu0 %v5649
    %5926 = vmatmul.bf16.gmra.mxu0 %v5058
    %v5927 = vpop.f32.mrf.mxu0
    %v5928 = vadd.f32 %v5915, %v5927
    %v5929 = vpop.f32.mrf.mxu0
    %5930 = vdwg.mxu0
    %5931 = vmatpush.bf16.msra.mxu0 %v5709
    %5932 = vmatpush.bf16.msra.mxu0 %v5705
    %5933 = vmatpush.bf16.msra.mxu0 %v5701
    %5934 = vmatpush.bf16.msra.mxu0 %v5697
    %5935 = vmatpush.bf16.msra.mxu0 %v5693
    %5936 = vmatpush.bf16.msra.mxu0 %v5689
    %5937 = vmatpush.bf16.msra.mxu0 %v5685
    %5938 = vmatpush.bf16.msra.mxu0 %v5681
    %5939 = vmatmul.bf16.gmra.mxu0 %v5059
    %v5940 = vpop.f32.mrf.mxu0
    %v5941 = vadd.f32 %v5928, %v5940
    %v5942 = vpop.f32.mrf.mxu0
    %5943 = vdwg.mxu0
    %5944 = vmatpush.bf16.msra.mxu0 %v5614
    %5945 = vmatpush.bf16.msra.mxu0 %v5610
    %5946 = vmatpush.bf16.msra.mxu0 %v5606
    %5947 = vmatpush.bf16.msra.mxu0 %v5602
    %5948 = vmatpush.bf16.msra.mxu0 %v5598
    %5949 = vmatpush.bf16.msra.mxu0 %v5594
    %5950 = vmatpush.bf16.msra.mxu0 %v5590
    %5951 = vmatpush.bf16.msra.mxu0 %v5586
    %5952 = vmatmul.bf16.gmra.mxu0 %v5056
    %v5953 = vpop.f32.mrf.mxu0
    %v5954 = vadd.f32 %v5194, %v5953
    %v5955 = vpop.f32.mrf.mxu0
    %5956 = vdwg.mxu0
    %5957 = vmatpush.bf16.msra.mxu0 %v5646
    %5958 = vmatpush.bf16.msra.mxu0 %v5642
    %5959 = vmatpush.bf16.msra.mxu0 %v5638
    %5960 = vmatpush.bf16.msra.mxu0 %v5634
    %5961 = vmatpush.bf16.msra.mxu0 %v5630
    %5962 = vmatpush.bf16.msra.mxu0 %v5626
    %5963 = vmatpush.bf16.msra.mxu0 %v5622
    %5964 = vmatpush.bf16.msra.mxu0 %v5618
    %5965 = vmatmul.bf16.gmra.mxu0 %v5057
    %v5966 = vpop.f32.mrf.mxu0
    %v5967 = vadd.f32 %v5954, %v5966
    %v5968 = vpop.f32.mrf.mxu0
    %5969 = vdwg.mxu0
    %5970 = vmatpush.bf16.msra.mxu0 %v5678
    %5971 = vmatpush.bf16.msra.mxu0 %v5674
    %5972 = vmatpush.bf16.msra.mxu0 %v5670
    %5973 = vmatpush.bf16.msra.mxu0 %v5666
    %5974 = vmatpush.bf16.msra.mxu0 %v5662
    %5975 = vmatpush.bf16.msra.mxu0 %v5658
    %5976 = vmatpush.bf16.msra.mxu0 %v5654
    %5977 = vmatpush.bf16.msra.mxu0 %v5650
    %5978 = vmatmul.bf16.gmra.mxu0 %v5058
    %v5979 = vpop.f32.mrf.mxu0
    %v5980 = vadd.f32 %v5967, %v5979
    %v5981 = vpop.f32.mrf.mxu0
    %5982 = vdwg.mxu0
    %5983 = vmatpush.bf16.msra.mxu0 %v5710
    %5984 = vmatpush.bf16.msra.mxu0 %v5706
    %5985 = vmatpush.bf16.msra.mxu0 %v5702
    %5986 = vmatpush.bf16.msra.mxu0 %v5698
    %5987 = vmatpush.bf16.msra.mxu0 %v5694
    %5988 = vmatpush.bf16.msra.mxu0 %v5690
    %5989 = vmatpush.bf16.msra.mxu0 %v5686
    %5990 = vmatpush.bf16.msra.mxu0 %v5682
    %5991 = vmatmul.bf16.gmra.mxu0 %v5059
    %v5992 = vpop.f32.mrf.mxu0
    %v5993 = vadd.f32 %v5980, %v5992
    %v5994 = vpop.f32.mrf.mxu0
    %5995 = vdwg.mxu0
    %5996 = vmatpush.bf16.msra.mxu0 %v5615
    %5997 = vmatpush.bf16.msra.mxu0 %v5611
    %5998 = vmatpush.bf16.msra.mxu0 %v5607
    %5999 = vmatpush.bf16.msra.mxu0 %v5603
    %6000 = vmatpush.bf16.msra.mxu0 %v5599
    %6001 = vmatpush.bf16.msra.mxu0 %v5595
    %6002 = vmatpush.bf16.msra.mxu0 %v5591
    %6003 = vmatpush.bf16.msra.mxu0 %v5587
    %6004 = vmatmul.bf16.gmra.mxu0 %v5056
    %v6005 = vpop.f32.mrf.mxu0
    %v6006 = vadd.f32 %v5195, %v6005
    %v6007 = vpop.f32.mrf.mxu0
    %6008 = vdwg.mxu0
    %6009 = vmatpush.bf16.msra.mxu0 %v5647
    %6010 = vmatpush.bf16.msra.mxu0 %v5643
    %6011 = vmatpush.bf16.msra.mxu0 %v5639
    %6012 = vmatpush.bf16.msra.mxu0 %v5635
    %6013 = vmatpush.bf16.msra.mxu0 %v5631
    %6014 = vmatpush.bf16.msra.mxu0 %v5627
    %6015 = vmatpush.bf16.msra.mxu0 %v5623
    %6016 = vmatpush.bf16.msra.mxu0 %v5619
    %6017 = vmatmul.bf16.gmra.mxu0 %v5057
    %v6018 = vpop.f32.mrf.mxu0
    %v6019 = vadd.f32 %v6006, %v6018
    %v6020 = vpop.f32.mrf.mxu0
    %6021 = vdwg.mxu0
    %6022 = vmatpush.bf16.msra.mxu0 %v5679
    %6023 = vmatpush.bf16.msra.mxu0 %v5675
    %6024 = vmatpush.bf16.msra.mxu0 %v5671
    %6025 = vmatpush.bf16.msra.mxu0 %v5667
    %6026 = vmatpush.bf16.msra.mxu0 %v5663
    %6027 = vmatpush.bf16.msra.mxu0 %v5659
    %6028 = vmatpush.bf16.msra.mxu0 %v5655
    %6029 = vmatpush.bf16.msra.mxu0 %v5651
    %6030 = vmatmul.bf16.gmra.mxu0 %v5058
    %v6031 = vpop.f32.mrf.mxu0
    %v6032 = vadd.f32 %v6019, %v6031
    %v6033 = vpop.f32.mrf.mxu0
    %6034 = vdwg.mxu0
    %6035 = vmatpush.bf16.msra.mxu0 %v5711
    %6036 = vmatpush.bf16.msra.mxu0 %v5707
    %6037 = vmatpush.bf16.msra.mxu0 %v5703
    %6038 = vmatpush.bf16.msra.mxu0 %v5699
    %6039 = vmatpush.bf16.msra.mxu0 %v5695
    %6040 = vmatpush.bf16.msra.mxu0 %v5691
    %6041 = vmatpush.bf16.msra.mxu0 %v5687
    %6042 = vmatpush.bf16.msra.mxu0 %v5683
    %6043 = vmatmul.bf16.gmra.mxu0 %v5059
    %v6044 = vpop.f32.mrf.mxu0
    %v6045 = vadd.f32 %v6032, %v6044
    %v6046 = vpop.f32.mrf.mxu0
    %6047 = vdwg.mxu0
    %v6048 = vmul.f32 %v5889, 0.2
    %v6049 = vmul.f32 %v5941, 0.2
    %v6050 = vmul.f32 %v5993, 0.2
    %v6051 = vmul.f32 %v6045, 0.2
    %v6052 = vmax.f32 %v5889, %v6048
    %v6053 = vmax.f32 %v5941, %v6049
    %v6054 = vmax.f32 %v5993, %v6050
    %v6055 = vmax.f32 %v6045, %v6051
    %v6056 = vpack.c.bf16 %v6052, %v6052
    %v6057 = vpack.c.bf16 %v6053, %v6053
    %v6058 = vpack.c.bf16 %v6054, %v6054
    %v6059 = vpack.c.bf16 %v6055, %v6055
    %s6060 = scalar_lea.vmem [#allocation2], 6144
    %v6061 = vld [vmem:[%s6060] sm:$0xff]
    %v6062 = vld [vmem:[%s6060 + $0x8] sm:$0xff]
    %v6063 = vld [vmem:[%s6060 + $0x10] sm:$0xff]
    %v6064 = vld [vmem:[%s6060 + $0x18] sm:$0xff]
    %v6065 = vld [vmem:[%s6060 + $0x20] sm:$0xff]
    %v6066 = vld [vmem:[%s6060 + $0x28] sm:$0xff]
    %v6067 = vld [vmem:[%s6060 + $0x30] sm:$0xff]
    %v6068 = vld [vmem:[%s6060 + $0x38] sm:$0xff]
    %v6069 = vld [vmem:[%s6060 + $0x40] sm:$0xff]
    %v6070 = vld [vmem:[%s6060 + $0x48] sm:$0xff]
    %v6071 = vld [vmem:[%s6060 + $0x50] sm:$0xff]
    %v6072 = vld [vmem:[%s6060 + $0x58] sm:$0xff]
    %v6073 = vld [vmem:[%s6060 + $0x60] sm:$0xff]
    %v6074 = vld [vmem:[%s6060 + $0x68] sm:$0xff]
    %v6075 = vld [vmem:[%s6060 + $0x70] sm:$0xff]
    %v6076 = vld [vmem:[%s6060 + $0x78] sm:$0xff]
    %v6077 = vld [vmem:[%s6060 + $0x80] sm:$0xff]
    %v6078 = vld [vmem:[%s6060 + $0x88] sm:$0xff]
    %v6079 = vld [vmem:[%s6060 + $0x90] sm:$0xff]
    %v6080 = vld [vmem:[%s6060 + $0x98] sm:$0xff]
    %v6081 = vld [vmem:[%s6060 + $0xa0] sm:$0xff]
    %v6082 = vld [vmem:[%s6060 + $0xa8] sm:$0xff]
    %v6083 = vld [vmem:[%s6060 + $0xb0] sm:$0xff]
    %v6084 = vld [vmem:[%s6060 + $0xb8] sm:$0xff]
    %v6085 = vld [vmem:[%s6060 + $0xc0] sm:$0xff]
    %v6086 = vld [vmem:[%s6060 + $0xc8] sm:$0xff]
    %v6087 = vld [vmem:[%s6060 + $0xd0] sm:$0xff]
    %v6088 = vld [vmem:[%s6060 + $0xd8] sm:$0xff]
    %v6089 = vld [vmem:[%s6060 + $0xe0] sm:$0xff]
    %v6090 = vld [vmem:[%s6060 + $0xe8] sm:$0xff]
    %v6091 = vld [vmem:[%s6060 + $0xf0] sm:$0xff]
    %v6092 = vld [vmem:[%s6060 + $0xf8] sm:$0xff]
    %v6093 = vld [vmem:[%s6060 + $0x100] sm:$0xff]
    %v6094 = vld [vmem:[%s6060 + $0x108] sm:$0xff]
    %v6095 = vld [vmem:[%s6060 + $0x110] sm:$0xff]
    %v6096 = vld [vmem:[%s6060 + $0x118] sm:$0xff]
    %v6097 = vld [vmem:[%s6060 + $0x120] sm:$0xff]
    %v6098 = vld [vmem:[%s6060 + $0x128] sm:$0xff]
    %v6099 = vld [vmem:[%s6060 + $0x130] sm:$0xff]
    %v6100 = vld [vmem:[%s6060 + $0x138] sm:$0xff]
    %v6101 = vld [vmem:[%s6060 + $0x140] sm:$0xff]
    %v6102 = vld [vmem:[%s6060 + $0x148] sm:$0xff]
    %v6103 = vld [vmem:[%s6060 + $0x150] sm:$0xff]
    %v6104 = vld [vmem:[%s6060 + $0x158] sm:$0xff]
    %v6105 = vld [vmem:[%s6060 + $0x160] sm:$0xff]
    %v6106 = vld [vmem:[%s6060 + $0x168] sm:$0xff]
    %v6107 = vld [vmem:[%s6060 + $0x170] sm:$0xff]
    %v6108 = vld [vmem:[%s6060 + $0x178] sm:$0xff]
    %v6109 = vld [vmem:[%s6060 + $0x180] sm:$0xff]
    %v6110 = vld [vmem:[%s6060 + $0x188] sm:$0xff]
    %v6111 = vld [vmem:[%s6060 + $0x190] sm:$0xff]
    %v6112 = vld [vmem:[%s6060 + $0x198] sm:$0xff]
    %v6113 = vld [vmem:[%s6060 + $0x1a0] sm:$0xff]
    %v6114 = vld [vmem:[%s6060 + $0x1a8] sm:$0xff]
    %v6115 = vld [vmem:[%s6060 + $0x1b0] sm:$0xff]
    %v6116 = vld [vmem:[%s6060 + $0x1b8] sm:$0xff]
    %v6117 = vld [vmem:[%s6060 + $0x1c0] sm:$0xff]
    %v6118 = vld [vmem:[%s6060 + $0x1c8] sm:$0xff]
    %v6119 = vld [vmem:[%s6060 + $0x1d0] sm:$0xff]
    %v6120 = vld [vmem:[%s6060 + $0x1d8] sm:$0xff]
    %v6121 = vld [vmem:[%s6060 + $0x1e0] sm:$0xff]
    %v6122 = vld [vmem:[%s6060 + $0x1e8] sm:$0xff]
    %v6123 = vld [vmem:[%s6060 + $0x1f0] sm:$0xff]
    %v6124 = vld [vmem:[%s6060 + $0x1f8] sm:$0xff]
    %v6125 = vld [vmem:[%s6060 + $0x200] sm:$0xff]
    %v6126 = vld [vmem:[%s6060 + $0x208] sm:$0xff]
    %v6127 = vld [vmem:[%s6060 + $0x210] sm:$0xff]
    %v6128 = vld [vmem:[%s6060 + $0x218] sm:$0xff]
    %v6129 = vld [vmem:[%s6060 + $0x220] sm:$0xff]
    %v6130 = vld [vmem:[%s6060 + $0x228] sm:$0xff]
    %v6131 = vld [vmem:[%s6060 + $0x230] sm:$0xff]
    %v6132 = vld [vmem:[%s6060 + $0x238] sm:$0xff]
    %v6133 = vld [vmem:[%s6060 + $0x240] sm:$0xff]
    %v6134 = vld [vmem:[%s6060 + $0x248] sm:$0xff]
    %v6135 = vld [vmem:[%s6060 + $0x250] sm:$0xff]
    %v6136 = vld [vmem:[%s6060 + $0x258] sm:$0xff]
    %v6137 = vld [vmem:[%s6060 + $0x260] sm:$0xff]
    %v6138 = vld [vmem:[%s6060 + $0x268] sm:$0xff]
    %v6139 = vld [vmem:[%s6060 + $0x270] sm:$0xff]
    %v6140 = vld [vmem:[%s6060 + $0x278] sm:$0xff]
    %v6141 = vld [vmem:[%s6060 + $0x280] sm:$0xff]
    %v6142 = vld [vmem:[%s6060 + $0x288] sm:$0xff]
    %v6143 = vld [vmem:[%s6060 + $0x290] sm:$0xff]
    %v6144 = vld [vmem:[%s6060 + $0x298] sm:$0xff]
    %v6145 = vld [vmem:[%s6060 + $0x2a0] sm:$0xff]
    %v6146 = vld [vmem:[%s6060 + $0x2a8] sm:$0xff]
    %v6147 = vld [vmem:[%s6060 + $0x2b0] sm:$0xff]
    %v6148 = vld [vmem:[%s6060 + $0x2b8] sm:$0xff]
    %v6149 = vld [vmem:[%s6060 + $0x2c0] sm:$0xff]
    %v6150 = vld [vmem:[%s6060 + $0x2c8] sm:$0xff]
    %v6151 = vld [vmem:[%s6060 + $0x2d0] sm:$0xff]
    %v6152 = vld [vmem:[%s6060 + $0x2d8] sm:$0xff]
    %v6153 = vld [vmem:[%s6060 + $0x2e0] sm:$0xff]
    %v6154 = vld [vmem:[%s6060 + $0x2e8] sm:$0xff]
    %v6155 = vld [vmem:[%s6060 + $0x2f0] sm:$0xff]
    %v6156 = vld [vmem:[%s6060 + $0x2f8] sm:$0xff]
    %v6157 = vld [vmem:[%s6060 + $0x300] sm:$0xff]
    %v6158 = vld [vmem:[%s6060 + $0x308] sm:$0xff]
    %v6159 = vld [vmem:[%s6060 + $0x310] sm:$0xff]
    %v6160 = vld [vmem:[%s6060 + $0x318] sm:$0xff]
    %v6161 = vld [vmem:[%s6060 + $0x320] sm:$0xff]
    %v6162 = vld [vmem:[%s6060 + $0x328] sm:$0xff]
    %v6163 = vld [vmem:[%s6060 + $0x330] sm:$0xff]
    %v6164 = vld [vmem:[%s6060 + $0x338] sm:$0xff]
    %v6165 = vld [vmem:[%s6060 + $0x340] sm:$0xff]
    %v6166 = vld [vmem:[%s6060 + $0x348] sm:$0xff]
    %v6167 = vld [vmem:[%s6060 + $0x350] sm:$0xff]
    %v6168 = vld [vmem:[%s6060 + $0x358] sm:$0xff]
    %v6169 = vld [vmem:[%s6060 + $0x360] sm:$0xff]
    %v6170 = vld [vmem:[%s6060 + $0x368] sm:$0xff]
    %v6171 = vld [vmem:[%s6060 + $0x370] sm:$0xff]
    %v6172 = vld [vmem:[%s6060 + $0x378] sm:$0xff]
    %v6173 = vld [vmem:[%s6060 + $0x380] sm:$0xff]
    %v6174 = vld [vmem:[%s6060 + $0x388] sm:$0xff]
    %v6175 = vld [vmem:[%s6060 + $0x390] sm:$0xff]
    %v6176 = vld [vmem:[%s6060 + $0x398] sm:$0xff]
    %v6177 = vld [vmem:[%s6060 + $0x3a0] sm:$0xff]
    %v6178 = vld [vmem:[%s6060 + $0x3a8] sm:$0xff]
    %v6179 = vld [vmem:[%s6060 + $0x3b0] sm:$0xff]
    %v6180 = vld [vmem:[%s6060 + $0x3b8] sm:$0xff]
    %v6181 = vld [vmem:[%s6060 + $0x3c0] sm:$0xff]
    %v6182 = vld [vmem:[%s6060 + $0x3c8] sm:$0xff]
    %v6183 = vld [vmem:[%s6060 + $0x3d0] sm:$0xff]
    %v6184 = vld [vmem:[%s6060 + $0x3d8] sm:$0xff]
    %v6185 = vld [vmem:[%s6060 + $0x3e0] sm:$0xff]
    %v6186 = vld [vmem:[%s6060 + $0x3e8] sm:$0xff]
    %v6187 = vld [vmem:[%s6060 + $0x3f0] sm:$0xff]
    %v6188 = vld [vmem:[%s6060 + $0x3f8] sm:$0xff]
    %s6189 = scalar_lea.vmem [#allocation4], 24
    %v6190 = vld [vmem:[%s6189] sm:$0xf]
    %v6192 = vperm.slane %v6190, 0
    %v6193 = vperm.slane %v6190, 1
    %v6194 = vperm.slane %v6190, 2
    %v6195 = vperm.slane %v6190, 3
    %v6328 = vunpack.c.l.b16 %v6061
    %v6329 = vunpack.c.h.b16 %v6061
    %v6330 = vunpack.c.l.b16 %v6062
    %v6331 = vunpack.c.h.b16 %v6062
    %v6332 = vunpack.c.l.b16 %v6063
    %v6333 = vunpack.c.h.b16 %v6063
    %v6334 = vunpack.c.l.b16 %v6064
    %v6335 = vunpack.c.h.b16 %v6064
    %v6336 = vunpack.c.l.b16 %v6065
    %v6337 = vunpack.c.h.b16 %v6065
    %v6338 = vunpack.c.l.b16 %v6066
    %v6339 = vunpack.c.h.b16 %v6066
    %v6340 = vunpack.c.l.b16 %v6067
    %v6341 = vunpack.c.h.b16 %v6067
    %v6342 = vunpack.c.l.b16 %v6068
    %v6343 = vunpack.c.h.b16 %v6068
    %v6344 = vunpack.c.l.b16 %v6069
    %v6345 = vunpack.c.h.b16 %v6069
    %v6346 = vunpack.c.l.b16 %v6070
    %v6347 = vunpack.c.h.b16 %v6070
    %v6348 = vunpack.c.l.b16 %v6071
    %v6349 = vunpack.c.h.b16 %v6071
    %v6350 = vunpack.c.l.b16 %v6072
    %v6351 = vunpack.c.h.b16 %v6072
    %v6352 = vunpack.c.l.b16 %v6073
    %v6353 = vunpack.c.h.b16 %v6073
    %v6354 = vunpack.c.l.b16 %v6074
    %v6355 = vunpack.c.h.b16 %v6074
    %v6356 = vunpack.c.l.b16 %v6075
    %v6357 = vunpack.c.h.b16 %v6075
    %v6358 = vunpack.c.l.b16 %v6076
    %v6359 = vunpack.c.h.b16 %v6076
    %v6360 = vunpack.c.l.b16 %v6077
    %v6361 = vunpack.c.h.b16 %v6077
    %v6362 = vunpack.c.l.b16 %v6078
    %v6363 = vunpack.c.h.b16 %v6078
    %v6364 = vunpack.c.l.b16 %v6079
    %v6365 = vunpack.c.h.b16 %v6079
    %v6366 = vunpack.c.l.b16 %v6080
    %v6367 = vunpack.c.h.b16 %v6080
    %v6368 = vunpack.c.l.b16 %v6081
    %v6369 = vunpack.c.h.b16 %v6081
    %v6370 = vunpack.c.l.b16 %v6082
    %v6371 = vunpack.c.h.b16 %v6082
    %v6372 = vunpack.c.l.b16 %v6083
    %v6373 = vunpack.c.h.b16 %v6083
    %v6374 = vunpack.c.l.b16 %v6084
    %v6375 = vunpack.c.h.b16 %v6084
    %v6376 = vunpack.c.l.b16 %v6085
    %v6377 = vunpack.c.h.b16 %v6085
    %v6378 = vunpack.c.l.b16 %v6086
    %v6379 = vunpack.c.h.b16 %v6086
    %v6380 = vunpack.c.l.b16 %v6087
    %v6381 = vunpack.c.h.b16 %v6087
    %v6382 = vunpack.c.l.b16 %v6088
    %v6383 = vunpack.c.h.b16 %v6088
    %v6384 = vunpack.c.l.b16 %v6089
    %v6385 = vunpack.c.h.b16 %v6089
    %v6386 = vunpack.c.l.b16 %v6090
    %v6387 = vunpack.c.h.b16 %v6090
    %v6388 = vunpack.c.l.b16 %v6091
    %v6389 = vunpack.c.h.b16 %v6091
    %v6390 = vunpack.c.l.b16 %v6092
    %v6391 = vunpack.c.h.b16 %v6092
    %v6392 = vunpack.c.l.b16 %v6093
    %v6393 = vunpack.c.h.b16 %v6093
    %v6394 = vunpack.c.l.b16 %v6094
    %v6395 = vunpack.c.h.b16 %v6094
    %v6396 = vunpack.c.l.b16 %v6095
    %v6397 = vunpack.c.h.b16 %v6095
    %v6398 = vunpack.c.l.b16 %v6096
    %v6399 = vunpack.c.h.b16 %v6096
    %v6400 = vunpack.c.l.b16 %v6097
    %v6401 = vunpack.c.h.b16 %v6097
    %v6402 = vunpack.c.l.b16 %v6098
    %v6403 = vunpack.c.h.b16 %v6098
    %v6404 = vunpack.c.l.b16 %v6099
    %v6405 = vunpack.c.h.b16 %v6099
    %v6406 = vunpack.c.l.b16 %v6100
    %v6407 = vunpack.c.h.b16 %v6100
    %v6408 = vunpack.c.l.b16 %v6101
    %v6409 = vunpack.c.h.b16 %v6101
    %v6410 = vunpack.c.l.b16 %v6102
    %v6411 = vunpack.c.h.b16 %v6102
    %v6412 = vunpack.c.l.b16 %v6103
    %v6413 = vunpack.c.h.b16 %v6103
    %v6414 = vunpack.c.l.b16 %v6104
    %v6415 = vunpack.c.h.b16 %v6104
    %v6416 = vunpack.c.l.b16 %v6105
    %v6417 = vunpack.c.h.b16 %v6105
    %v6418 = vunpack.c.l.b16 %v6106
    %v6419 = vunpack.c.h.b16 %v6106
    %v6420 = vunpack.c.l.b16 %v6107
    %v6421 = vunpack.c.h.b16 %v6107
    %v6422 = vunpack.c.l.b16 %v6108
    %v6423 = vunpack.c.h.b16 %v6108
    %v6424 = vunpack.c.l.b16 %v6109
    %v6425 = vunpack.c.h.b16 %v6109
    %v6426 = vunpack.c.l.b16 %v6110
    %v6427 = vunpack.c.h.b16 %v6110
    %v6428 = vunpack.c.l.b16 %v6111
    %v6429 = vunpack.c.h.b16 %v6111
    %v6430 = vunpack.c.l.b16 %v6112
    %v6431 = vunpack.c.h.b16 %v6112
    %v6432 = vunpack.c.l.b16 %v6113
    %v6433 = vunpack.c.h.b16 %v6113
    %v6434 = vunpack.c.l.b16 %v6114
    %v6435 = vunpack.c.h.b16 %v6114
    %v6436 = vunpack.c.l.b16 %v6115
    %v6437 = vunpack.c.h.b16 %v6115
    %v6438 = vunpack.c.l.b16 %v6116
    %v6439 = vunpack.c.h.b16 %v6116
    %v6440 = vunpack.c.l.b16 %v6117
    %v6441 = vunpack.c.h.b16 %v6117
    %v6442 = vunpack.c.l.b16 %v6118
    %v6443 = vunpack.c.h.b16 %v6118
    %v6444 = vunpack.c.l.b16 %v6119
    %v6445 = vunpack.c.h.b16 %v6119
    %v6446 = vunpack.c.l.b16 %v6120
    %v6447 = vunpack.c.h.b16 %v6120
    %v6448 = vunpack.c.l.b16 %v6121
    %v6449 = vunpack.c.h.b16 %v6121
    %v6450 = vunpack.c.l.b16 %v6122
    %v6451 = vunpack.c.h.b16 %v6122
    %v6452 = vunpack.c.l.b16 %v6123
    %v6453 = vunpack.c.h.b16 %v6123
    %v6454 = vunpack.c.l.b16 %v6124
    %v6455 = vunpack.c.h.b16 %v6124
    %v6456 = vunpack.c.l.b16 %v6125
    %v6457 = vunpack.c.h.b16 %v6125
    %v6458 = vunpack.c.l.b16 %v6126
    %v6459 = vunpack.c.h.b16 %v6126
    %v6460 = vunpack.c.l.b16 %v6127
    %v6461 = vunpack.c.h.b16 %v6127
    %v6462 = vunpack.c.l.b16 %v6128
    %v6463 = vunpack.c.h.b16 %v6128
    %v6464 = vunpack.c.l.b16 %v6129
    %v6465 = vunpack.c.h.b16 %v6129
    %v6466 = vunpack.c.l.b16 %v6130
    %v6467 = vunpack.c.h.b16 %v6130
    %v6468 = vunpack.c.l.b16 %v6131
    %v6469 = vunpack.c.h.b16 %v6131
    %v6470 = vunpack.c.l.b16 %v6132
    %v6471 = vunpack.c.h.b16 %v6132
    %v6472 = vunpack.c.l.b16 %v6133
    %v6473 = vunpack.c.h.b16 %v6133
    %v6474 = vunpack.c.l.b16 %v6134
    %v6475 = vunpack.c.h.b16 %v6134
    %v6476 = vunpack.c.l.b16 %v6135
    %v6477 = vunpack.c.h.b16 %v6135
    %v6478 = vunpack.c.l.b16 %v6136
    %v6479 = vunpack.c.h.b16 %v6136
    %v6480 = vunpack.c.l.b16 %v6137
    %v6481 = vunpack.c.h.b16 %v6137
    %v6482 = vunpack.c.l.b16 %v6138
    %v6483 = vunpack.c.h.b16 %v6138
    %v6484 = vunpack.c.l.b16 %v6139
    %v6485 = vunpack.c.h.b16 %v6139
    %v6486 = vunpack.c.l.b16 %v6140
    %v6487 = vunpack.c.h.b16 %v6140
    %v6488 = vunpack.c.l.b16 %v6141
    %v6489 = vunpack.c.h.b16 %v6141
    %v6490 = vunpack.c.l.b16 %v6142
    %v6491 = vunpack.c.h.b16 %v6142
    %v6492 = vunpack.c.l.b16 %v6143
    %v6493 = vunpack.c.h.b16 %v6143
    %v6494 = vunpack.c.l.b16 %v6144
    %v6495 = vunpack.c.h.b16 %v6144
    %v6496 = vunpack.c.l.b16 %v6145
    %v6497 = vunpack.c.h.b16 %v6145
    %v6498 = vunpack.c.l.b16 %v6146
    %v6499 = vunpack.c.h.b16 %v6146
    %v6500 = vunpack.c.l.b16 %v6147
    %v6501 = vunpack.c.h.b16 %v6147
    %v6502 = vunpack.c.l.b16 %v6148
    %v6503 = vunpack.c.h.b16 %v6148
    %v6504 = vunpack.c.l.b16 %v6149
    %v6505 = vunpack.c.h.b16 %v6149
    %v6506 = vunpack.c.l.b16 %v6150
    %v6507 = vunpack.c.h.b16 %v6150
    %v6508 = vunpack.c.l.b16 %v6151
    %v6509 = vunpack.c.h.b16 %v6151
    %v6510 = vunpack.c.l.b16 %v6152
    %v6511 = vunpack.c.h.b16 %v6152
    %v6512 = vunpack.c.l.b16 %v6153
    %v6513 = vunpack.c.h.b16 %v6153
    %v6514 = vunpack.c.l.b16 %v6154
    %v6515 = vunpack.c.h.b16 %v6154
    %v6516 = vunpack.c.l.b16 %v6155
    %v6517 = vunpack.c.h.b16 %v6155
    %v6518 = vunpack.c.l.b16 %v6156
    %v6519 = vunpack.c.h.b16 %v6156
    %v6520 = vunpack.c.l.b16 %v6157
    %v6521 = vunpack.c.h.b16 %v6157
    %v6522 = vunpack.c.l.b16 %v6158
    %v6523 = vunpack.c.h.b16 %v6158
    %v6524 = vunpack.c.l.b16 %v6159
    %v6525 = vunpack.c.h.b16 %v6159
    %v6526 = vunpack.c.l.b16 %v6160
    %v6527 = vunpack.c.h.b16 %v6160
    %v6528 = vunpack.c.l.b16 %v6161
    %v6529 = vunpack.c.h.b16 %v6161
    %v6530 = vunpack.c.l.b16 %v6162
    %v6531 = vunpack.c.h.b16 %v6162
    %v6532 = vunpack.c.l.b16 %v6163
    %v6533 = vunpack.c.h.b16 %v6163
    %v6534 = vunpack.c.l.b16 %v6164
    %v6535 = vunpack.c.h.b16 %v6164
    %v6536 = vunpack.c.l.b16 %v6165
    %v6537 = vunpack.c.h.b16 %v6165
    %v6538 = vunpack.c.l.b16 %v6166
    %v6539 = vunpack.c.h.b16 %v6166
    %v6540 = vunpack.c.l.b16 %v6167
    %v6541 = vunpack.c.h.b16 %v6167
    %v6542 = vunpack.c.l.b16 %v6168
    %v6543 = vunpack.c.h.b16 %v6168
    %v6544 = vunpack.c.l.b16 %v6169
    %v6545 = vunpack.c.h.b16 %v6169
    %v6546 = vunpack.c.l.b16 %v6170
    %v6547 = vunpack.c.h.b16 %v6170
    %v6548 = vunpack.c.l.b16 %v6171
    %v6549 = vunpack.c.h.b16 %v6171
    %v6550 = vunpack.c.l.b16 %v6172
    %v6551 = vunpack.c.h.b16 %v6172
    %v6552 = vunpack.c.l.b16 %v6173
    %v6553 = vunpack.c.h.b16 %v6173
    %v6554 = vunpack.c.l.b16 %v6174
    %v6555 = vunpack.c.h.b16 %v6174
    %v6556 = vunpack.c.l.b16 %v6175
    %v6557 = vunpack.c.h.b16 %v6175
    %v6558 = vunpack.c.l.b16 %v6176
    %v6559 = vunpack.c.h.b16 %v6176
    %v6560 = vunpack.c.l.b16 %v6177
    %v6561 = vunpack.c.h.b16 %v6177
    %v6562 = vunpack.c.l.b16 %v6178
    %v6563 = vunpack.c.h.b16 %v6178
    %v6564 = vunpack.c.l.b16 %v6179
    %v6565 = vunpack.c.h.b16 %v6179
    %v6566 = vunpack.c.l.b16 %v6180
    %v6567 = vunpack.c.h.b16 %v6180
    %v6568 = vunpack.c.l.b16 %v6181
    %v6569 = vunpack.c.h.b16 %v6181
    %v6570 = vunpack.c.l.b16 %v6182
    %v6571 = vunpack.c.h.b16 %v6182
    %v6572 = vunpack.c.l.b16 %v6183
    %v6573 = vunpack.c.h.b16 %v6183
    %v6574 = vunpack.c.l.b16 %v6184
    %v6575 = vunpack.c.h.b16 %v6184
    %v6576 = vunpack.c.l.b16 %v6185
    %v6577 = vunpack.c.h.b16 %v6185
    %v6578 = vunpack.c.l.b16 %v6186
    %v6579 = vunpack.c.h.b16 %v6186
    %v6580 = vunpack.c.l.b16 %v6187
    %v6581 = vunpack.c.h.b16 %v6187
    %v6582 = vunpack.c.l.b16 %v6188
    %v6583 = vunpack.c.h.b16 %v6188
    %v6584 = vpack.c.b16 %v6332, %v6328
    %v6585 = vpack.c.b16 %v6333, %v6329
    %v6586 = vpack.c.b16 %v6334, %v6330
    %v6587 = vpack.c.b16 %v6335, %v6331
    %v6588 = vpack.c.b16 %v6340, %v6336
    %v6589 = vpack.c.b16 %v6341, %v6337
    %v6590 = vpack.c.b16 %v6342, %v6338
    %v6591 = vpack.c.b16 %v6343, %v6339
    %v6592 = vpack.c.b16 %v6348, %v6344
    %v6593 = vpack.c.b16 %v6349, %v6345
    %v6594 = vpack.c.b16 %v6350, %v6346
    %v6595 = vpack.c.b16 %v6351, %v6347
    %v6596 = vpack.c.b16 %v6356, %v6352
    %v6597 = vpack.c.b16 %v6357, %v6353
    %v6598 = vpack.c.b16 %v6358, %v6354
    %v6599 = vpack.c.b16 %v6359, %v6355
    %v6600 = vpack.c.b16 %v6364, %v6360
    %v6601 = vpack.c.b16 %v6365, %v6361
    %v6602 = vpack.c.b16 %v6366, %v6362
    %v6603 = vpack.c.b16 %v6367, %v6363
    %v6604 = vpack.c.b16 %v6372, %v6368
    %v6605 = vpack.c.b16 %v6373, %v6369
    %v6606 = vpack.c.b16 %v6374, %v6370
    %v6607 = vpack.c.b16 %v6375, %v6371
    %v6608 = vpack.c.b16 %v6380, %v6376
    %v6609 = vpack.c.b16 %v6381, %v6377
    %v6610 = vpack.c.b16 %v6382, %v6378
    %v6611 = vpack.c.b16 %v6383, %v6379
    %v6612 = vpack.c.b16 %v6388, %v6384
    %v6613 = vpack.c.b16 %v6389, %v6385
    %v6614 = vpack.c.b16 %v6390, %v6386
    %v6615 = vpack.c.b16 %v6391, %v6387
    %v6616 = vpack.c.b16 %v6396, %v6392
    %v6617 = vpack.c.b16 %v6397, %v6393
    %v6618 = vpack.c.b16 %v6398, %v6394
    %v6619 = vpack.c.b16 %v6399, %v6395
    %v6620 = vpack.c.b16 %v6404, %v6400
    %v6621 = vpack.c.b16 %v6405, %v6401
    %v6622 = vpack.c.b16 %v6406, %v6402
    %v6623 = vpack.c.b16 %v6407, %v6403
    %v6624 = vpack.c.b16 %v6412, %v6408
    %v6625 = vpack.c.b16 %v6413, %v6409
    %v6626 = vpack.c.b16 %v6414, %v6410
    %v6627 = vpack.c.b16 %v6415, %v6411
    %v6628 = vpack.c.b16 %v6420, %v6416
    %v6629 = vpack.c.b16 %v6421, %v6417
    %v6630 = vpack.c.b16 %v6422, %v6418
    %v6631 = vpack.c.b16 %v6423, %v6419
    %v6632 = vpack.c.b16 %v6428, %v6424
    %v6633 = vpack.c.b16 %v6429, %v6425
    %v6634 = vpack.c.b16 %v6430, %v6426
    %v6635 = vpack.c.b16 %v6431, %v6427
    %v6636 = vpack.c.b16 %v6436, %v6432
    %v6637 = vpack.c.b16 %v6437, %v6433
    %v6638 = vpack.c.b16 %v6438, %v6434
    %v6639 = vpack.c.b16 %v6439, %v6435
    %v6640 = vpack.c.b16 %v6444, %v6440
    %v6641 = vpack.c.b16 %v6445, %v6441
    %v6642 = vpack.c.b16 %v6446, %v6442
    %v6643 = vpack.c.b16 %v6447, %v6443
    %v6644 = vpack.c.b16 %v6452, %v6448
    %v6645 = vpack.c.b16 %v6453, %v6449
    %v6646 = vpack.c.b16 %v6454, %v6450
    %v6647 = vpack.c.b16 %v6455, %v6451
    %v6648 = vpack.c.b16 %v6460, %v6456
    %v6649 = vpack.c.b16 %v6461, %v6457
    %v6650 = vpack.c.b16 %v6462, %v6458
    %v6651 = vpack.c.b16 %v6463, %v6459
    %v6652 = vpack.c.b16 %v6468, %v6464
    %v6653 = vpack.c.b16 %v6469, %v6465
    %v6654 = vpack.c.b16 %v6470, %v6466
    %v6655 = vpack.c.b16 %v6471, %v6467
    %v6656 = vpack.c.b16 %v6476, %v6472
    %v6657 = vpack.c.b16 %v6477, %v6473
    %v6658 = vpack.c.b16 %v6478, %v6474
    %v6659 = vpack.c.b16 %v6479, %v6475
    %v6660 = vpack.c.b16 %v6484, %v6480
    %v6661 = vpack.c.b16 %v6485, %v6481
    %v6662 = vpack.c.b16 %v6486, %v6482
    %v6663 = vpack.c.b16 %v6487, %v6483
    %v6664 = vpack.c.b16 %v6492, %v6488
    %v6665 = vpack.c.b16 %v6493, %v6489
    %v6666 = vpack.c.b16 %v6494, %v6490
    %v6667 = vpack.c.b16 %v6495, %v6491
    %v6668 = vpack.c.b16 %v6500, %v6496
    %v6669 = vpack.c.b16 %v6501, %v6497
    %v6670 = vpack.c.b16 %v6502, %v6498
    %v6671 = vpack.c.b16 %v6503, %v6499
    %v6672 = vpack.c.b16 %v6508, %v6504
    %v6673 = vpack.c.b16 %v6509, %v6505
    %v6674 = vpack.c.b16 %v6510, %v6506
    %v6675 = vpack.c.b16 %v6511, %v6507
    %v6676 = vpack.c.b16 %v6516, %v6512
    %v6677 = vpack.c.b16 %v6517, %v6513
    %v6678 = vpack.c.b16 %v6518, %v6514
    %v6679 = vpack.c.b16 %v6519, %v6515
    %v6680 = vpack.c.b16 %v6524, %v6520
    %v6681 = vpack.c.b16 %v6525, %v6521
    %v6682 = vpack.c.b16 %v6526, %v6522
    %v6683 = vpack.c.b16 %v6527, %v6523
    %v6684 = vpack.c.b16 %v6532, %v6528
    %v6685 = vpack.c.b16 %v6533, %v6529
    %v6686 = vpack.c.b16 %v6534, %v6530
    %v6687 = vpack.c.b16 %v6535, %v6531
    %v6688 = vpack.c.b16 %v6540, %v6536
    %v6689 = vpack.c.b16 %v6541, %v6537
    %v6690 = vpack.c.b16 %v6542, %v6538
    %v6691 = vpack.c.b16 %v6543, %v6539
    %v6692 = vpack.c.b16 %v6548, %v6544
    %v6693 = vpack.c.b16 %v6549, %v6545
    %v6694 = vpack.c.b16 %v6550, %v6546
    %v6695 = vpack.c.b16 %v6551, %v6547
    %v6696 = vpack.c.b16 %v6556, %v6552
    %v6697 = vpack.c.b16 %v6557, %v6553
    %v6698 = vpack.c.b16 %v6558, %v6554
    %v6699 = vpack.c.b16 %v6559, %v6555
    %v6700 = vpack.c.b16 %v6564, %v6560
    %v6701 = vpack.c.b16 %v6565, %v6561
    %v6702 = vpack.c.b16 %v6566, %v6562
    %v6703 = vpack.c.b16 %v6567, %v6563
    %v6704 = vpack.c.b16 %v6572, %v6568
    %v6705 = vpack.c.b16 %v6573, %v6569
    %v6706 = vpack.c.b16 %v6574, %v6570
    %v6707 = vpack.c.b16 %v6575, %v6571
    %v6708 = vpack.c.b16 %v6580, %v6576
    %v6709 = vpack.c.b16 %v6581, %v6577
    %v6710 = vpack.c.b16 %v6582, %v6578
    %v6711 = vpack.c.b16 %v6583, %v6579
    %6840 = vmatpush.bf16.msra.mxu0 %v6612
    %6841 = vmatpush.bf16.msra.mxu0 %v6608
    %6842 = vmatpush.bf16.msra.mxu0 %v6604
    %6843 = vmatpush.bf16.msra.mxu0 %v6600
    %6844 = vmatpush.bf16.msra.mxu0 %v6596
    %6845 = vmatpush.bf16.msra.mxu0 %v6592
    %6846 = vmatpush.bf16.msra.mxu0 %v6588
    %6847 = vmatpush.bf16.msra.mxu0 %v6584
    %6848 = vmatmul.bf16.gmra.mxu0 %v6056
    %v6849 = vpop.f32.mrf.mxu0
    %v6850 = vadd.f32 %v6192, %v6849
    %v6851 = vpop.f32.mrf.mxu0
    %6852 = vdwg.mxu0
    %6853 = vmatpush.bf16.msra.mxu0 %v6644
    %6854 = vmatpush.bf16.msra.mxu0 %v6640
    %6855 = vmatpush.bf16.msra.mxu0 %v6636
    %6856 = vmatpush.bf16.msra.mxu0 %v6632
    %6857 = vmatpush.bf16.msra.mxu0 %v6628
    %6858 = vmatpush.bf16.msra.mxu0 %v6624
    %6859 = vmatpush.bf16.msra.mxu0 %v6620
    %6860 = vmatpush.bf16.msra.mxu0 %v6616
    %6861 = vmatmul.bf16.gmra.mxu0 %v6057
    %v6862 = vpop.f32.mrf.mxu0
    %v6863 = vadd.f32 %v6850, %v6862
    %v6864 = vpop.f32.mrf.mxu0
    %6865 = vdwg.mxu0
    %6866 = vmatpush.bf16.msra.mxu0 %v6676
    %6867 = vmatpush.bf16.msra.mxu0 %v6672
    %6868 = vmatpush.bf16.msra.mxu0 %v6668
    %6869 = vmatpush.bf16.msra.mxu0 %v6664
    %6870 = vmatpush.bf16.msra.mxu0 %v6660
    %6871 = vmatpush.bf16.msra.mxu0 %v6656
    %6872 = vmatpush.bf16.msra.mxu0 %v6652
    %6873 = vmatpush.bf16.msra.mxu0 %v6648
    %6874 = vmatmul.bf16.gmra.mxu0 %v6058
    %v6875 = vpop.f32.mrf.mxu0
    %v6876 = vadd.f32 %v6863, %v6875
    %v6877 = vpop.f32.mrf.mxu0
    %6878 = vdwg.mxu0
    %6879 = vmatpush.bf16.msra.mxu0 %v6708
    %6880 = vmatpush.bf16.msra.mxu0 %v6704
    %6881 = vmatpush.bf16.msra.mxu0 %v6700
    %6882 = vmatpush.bf16.msra.mxu0 %v6696
    %6883 = vmatpush.bf16.msra.mxu0 %v6692
    %6884 = vmatpush.bf16.msra.mxu0 %v6688
    %6885 = vmatpush.bf16.msra.mxu0 %v6684
    %6886 = vmatpush.bf16.msra.mxu0 %v6680
    %6887 = vmatmul.bf16.gmra.mxu0 %v6059
    %v6888 = vpop.f32.mrf.mxu0
    %v6889 = vadd.f32 %v6876, %v6888
    %v6890 = vpop.f32.mrf.mxu0
    %6891 = vdwg.mxu0
    %6892 = vmatpush.bf16.msra.mxu0 %v6613
    %6893 = vmatpush.bf16.msra.mxu0 %v6609
    %6894 = vmatpush.bf16.msra.mxu0 %v6605
    %6895 = vmatpush.bf16.msra.mxu0 %v6601
    %6896 = vmatpush.bf16.msra.mxu0 %v6597
    %6897 = vmatpush.bf16.msra.mxu0 %v6593
    %6898 = vmatpush.bf16.msra.mxu0 %v6589
    %6899 = vmatpush.bf16.msra.mxu0 %v6585
    %6900 = vmatmul.bf16.gmra.mxu0 %v6056
    %v6901 = vpop.f32.mrf.mxu0
    %v6902 = vadd.f32 %v6193, %v6901
    %v6903 = vpop.f32.mrf.mxu0
    %6904 = vdwg.mxu0
    %6905 = vmatpush.bf16.msra.mxu0 %v6645
    %6906 = vmatpush.bf16.msra.mxu0 %v6641
    %6907 = vmatpush.bf16.msra.mxu0 %v6637
    %6908 = vmatpush.bf16.msra.mxu0 %v6633
    %6909 = vmatpush.bf16.msra.mxu0 %v6629
    %6910 = vmatpush.bf16.msra.mxu0 %v6625
    %6911 = vmatpush.bf16.msra.mxu0 %v6621
    %6912 = vmatpush.bf16.msra.mxu0 %v6617
    %6913 = vmatmul.bf16.gmra.mxu0 %v6057
    %v6914 = vpop.f32.mrf.mxu0
    %v6915 = vadd.f32 %v6902, %v6914
    %v6916 = vpop.f32.mrf.mxu0
    %6917 = vdwg.mxu0
    %6918 = vmatpush.bf16.msra.mxu0 %v6677
    %6919 = vmatpush.bf16.msra.mxu0 %v6673
    %6920 = vmatpush.bf16.msra.mxu0 %v6669
    %6921 = vmatpush.bf16.msra.mxu0 %v6665
    %6922 = vmatpush.bf16.msra.mxu0 %v6661
    %6923 = vmatpush.bf16.msra.mxu0 %v6657
    %6924 = vmatpush.bf16.msra.mxu0 %v6653
    %6925 = vmatpush.bf16.msra.mxu0 %v6649
    %6926 = vmatmul.bf16.gmra.mxu0 %v6058
    %v6927 = vpop.f32.mrf.mxu0
    %v6928 = vadd.f32 %v6915, %v6927
    %v6929 = vpop.f32.mrf.mxu0
    %6930 = vdwg.mxu0
    %6931 = vmatpush.bf16.msra.mxu0 %v6709
    %6932 = vmatpush.bf16.msra.mxu0 %v6705
    %6933 = vmatpush.bf16.msra.mxu0 %v6701
    %6934 = vmatpush.bf16.msra.mxu0 %v6697
    %6935 = vmatpush.bf16.msra.mxu0 %v6693
    %6936 = vmatpush.bf16.msra.mxu0 %v6689
    %6937 = vmatpush.bf16.msra.mxu0 %v6685
    %6938 = vmatpush.bf16.msra.mxu0 %v6681
    %6939 = vmatmul.bf16.gmra.mxu0 %v6059
    %v6940 = vpop.f32.mrf.mxu0
    %v6941 = vadd.f32 %v6928, %v6940
    %v6942 = vpop.f32.mrf.mxu0
    %6943 = vdwg.mxu0
    %6944 = vmatpush.bf16.msra.mxu0 %v6614
    %6945 = vmatpush.bf16.msra.mxu0 %v6610
    %6946 = vmatpush.bf16.msra.mxu0 %v6606
    %6947 = vmatpush.bf16.msra.mxu0 %v6602
    %6948 = vmatpush.bf16.msra.mxu0 %v6598
    %6949 = vmatpush.bf16.msra.mxu0 %v6594
    %6950 = vmatpush.bf16.msra.mxu0 %v6590
    %6951 = vmatpush.bf16.msra.mxu0 %v6586
    %6952 = vmatmul.bf16.gmra.mxu0 %v6056
    %v6953 = vpop.f32.mrf.mxu0
    %v6954 = vadd.f32 %v6194, %v6953
    %v6955 = vpop.f32.mrf.mxu0
    %6956 = vdwg.mxu0
    %6957 = vmatpush.bf16.msra.mxu0 %v6646
    %6958 = vmatpush.bf16.msra.mxu0 %v6642
    %6959 = vmatpush.bf16.msra.mxu0 %v6638
    %6960 = vmatpush.bf16.msra.mxu0 %v6634
    %6961 = vmatpush.bf16.msra.mxu0 %v6630
    %6962 = vmatpush.bf16.msra.mxu0 %v6626
    %6963 = vmatpush.bf16.msra.mxu0 %v6622
    %6964 = vmatpush.bf16.msra.mxu0 %v6618
    %6965 = vmatmul.bf16.gmra.mxu0 %v6057
    %v6966 = vpop.f32.mrf.mxu0
    %v6967 = vadd.f32 %v6954, %v6966
    %v6968 = vpop.f32.mrf.mxu0
    %6969 = vdwg.mxu0
    %6970 = vmatpush.bf16.msra.mxu0 %v6678
    %6971 = vmatpush.bf16.msra.mxu0 %v6674
    %6972 = vmatpush.bf16.msra.mxu0 %v6670
    %6973 = vmatpush.bf16.msra.mxu0 %v6666
    %6974 = vmatpush.bf16.msra.mxu0 %v6662
    %6975 = vmatpush.bf16.msra.mxu0 %v6658
    %6976 = vmatpush.bf16.msra.mxu0 %v6654
    %6977 = vmatpush.bf16.msra.mxu0 %v6650
    %6978 = vmatmul.bf16.gmra.mxu0 %v6058
    %v6979 = vpop.f32.mrf.mxu0
    %v6980 = vadd.f32 %v6967, %v6979
    %v6981 = vpop.f32.mrf.mxu0
    %6982 = vdwg.mxu0
    %6983 = vmatpush.bf16.msra.mxu0 %v6710
    %6984 = vmatpush.bf16.msra.mxu0 %v6706
    %6985 = vmatpush.bf16.msra.mxu0 %v6702
    %6986 = vmatpush.bf16.msra.mxu0 %v6698
    %6987 = vmatpush.bf16.msra.mxu0 %v6694
    %6988 = vmatpush.bf16.msra.mxu0 %v6690
    %6989 = vmatpush.bf16.msra.mxu0 %v6686
    %6990 = vmatpush.bf16.msra.mxu0 %v6682
    %6991 = vmatmul.bf16.gmra.mxu0 %v6059
    %v6992 = vpop.f32.mrf.mxu0
    %v6993 = vadd.f32 %v6980, %v6992
    %v6994 = vpop.f32.mrf.mxu0
    %6995 = vdwg.mxu0
    %6996 = vmatpush.bf16.msra.mxu0 %v6615
    %6997 = vmatpush.bf16.msra.mxu0 %v6611
    %6998 = vmatpush.bf16.msra.mxu0 %v6607
    %6999 = vmatpush.bf16.msra.mxu0 %v6603
    %7000 = vmatpush.bf16.msra.mxu0 %v6599
    %7001 = vmatpush.bf16.msra.mxu0 %v6595
    %7002 = vmatpush.bf16.msra.mxu0 %v6591
    %7003 = vmatpush.bf16.msra.mxu0 %v6587
    %7004 = vmatmul.bf16.gmra.mxu0 %v6056
    %v7005 = vpop.f32.mrf.mxu0
    %v7006 = vadd.f32 %v6195, %v7005
    %v7007 = vpop.f32.mrf.mxu0
    %7008 = vdwg.mxu0
    %7009 = vmatpush.bf16.msra.mxu0 %v6647
    %7010 = vmatpush.bf16.msra.mxu0 %v6643
    %7011 = vmatpush.bf16.msra.mxu0 %v6639
    %7012 = vmatpush.bf16.msra.mxu0 %v6635
    %7013 = vmatpush.bf16.msra.mxu0 %v6631
    %7014 = vmatpush.bf16.msra.mxu0 %v6627
    %7015 = vmatpush.bf16.msra.mxu0 %v6623
    %7016 = vmatpush.bf16.msra.mxu0 %v6619
    %7017 = vmatmul.bf16.gmra.mxu0 %v6057
    %v7018 = vpop.f32.mrf.mxu0
    %v7019 = vadd.f32 %v7006, %v7018
    %v7020 = vpop.f32.mrf.mxu0
    %7021 = vdwg.mxu0
    %7022 = vmatpush.bf16.msra.mxu0 %v6679
    %7023 = vmatpush.bf16.msra.mxu0 %v6675
    %7024 = vmatpush.bf16.msra.mxu0 %v6671
    %7025 = vmatpush.bf16.msra.mxu0 %v6667
    %7026 = vmatpush.bf16.msra.mxu0 %v6663
    %7027 = vmatpush.bf16.msra.mxu0 %v6659
    %7028 = vmatpush.bf16.msra.mxu0 %v6655
    %7029 = vmatpush.bf16.msra.mxu0 %v6651
    %7030 = vmatmul.bf16.gmra.mxu0 %v6058
    %v7031 = vpop.f32.mrf.mxu0
    %v7032 = vadd.f32 %v7019, %v7031
    %v7033 = vpop.f32.mrf.mxu0
    %7034 = vdwg.mxu0
    %7035 = vmatpush.bf16.msra.mxu0 %v6711
    %7036 = vmatpush.bf16.msra.mxu0 %v6707
    %7037 = vmatpush.bf16.msra.mxu0 %v6703
    %7038 = vmatpush.bf16.msra.mxu0 %v6699
    %7039 = vmatpush.bf16.msra.mxu0 %v6695
    %7040 = vmatpush.bf16.msra.mxu0 %v6691
    %7041 = vmatpush.bf16.msra.mxu0 %v6687
    %7042 = vmatpush.bf16.msra.mxu0 %v6683
    %7043 = vmatmul.bf16.gmra.mxu0 %v6059
    %v7044 = vpop.f32.mrf.mxu0
    %v7045 = vadd.f32 %v7032, %v7044
    %v7046 = vpop.f32.mrf.mxu0
    %7047 = vdwg.mxu0
    %v7048 = vmul.f32 %v6889, 0.2
    %v7049 = vmul.f32 %v6941, 0.2
    %v7050 = vmul.f32 %v6993, 0.2
    %v7051 = vmul.f32 %v7045, 0.2
    %v7052 = vmax.f32 %v6889, %v7048
    %v7053 = vmax.f32 %v6941, %v7049
    %v7054 = vmax.f32 %v6993, %v7050
    %v7055 = vmax.f32 %v7045, %v7051
    %v7056 = vpack.c.bf16 %v7052, %v7052
    %v7057 = vpack.c.bf16 %v7053, %v7053
    %v7058 = vpack.c.bf16 %v7054, %v7054
    %v7059 = vpack.c.bf16 %v7055, %v7055
    %s7060 = scalar_lea.vmem [#allocation2], 7168
    %v7061 = vld [vmem:[%s7060] sm:$0xff]
    %v7062 = vld [vmem:[%s7060 + $0x8] sm:$0xff]
    %v7063 = vld [vmem:[%s7060 + $0x10] sm:$0xff]
    %v7064 = vld [vmem:[%s7060 + $0x18] sm:$0xff]
    %v7065 = vld [vmem:[%s7060 + $0x20] sm:$0xff]
    %v7066 = vld [vmem:[%s7060 + $0x28] sm:$0xff]
    %v7067 = vld [vmem:[%s7060 + $0x30] sm:$0xff]
    %v7068 = vld [vmem:[%s7060 + $0x38] sm:$0xff]
    %v7069 = vld [vmem:[%s7060 + $0x40] sm:$0xff]
    %v7070 = vld [vmem:[%s7060 + $0x48] sm:$0xff]
    %v7071 = vld [vmem:[%s7060 + $0x50] sm:$0xff]
    %v7072 = vld [vmem:[%s7060 + $0x58] sm:$0xff]
    %v7073 = vld [vmem:[%s7060 + $0x60] sm:$0xff]
    %v7074 = vld [vmem:[%s7060 + $0x68] sm:$0xff]
    %v7075 = vld [vmem:[%s7060 + $0x70] sm:$0xff]
    %v7076 = vld [vmem:[%s7060 + $0x78] sm:$0xff]
    %v7077 = vld [vmem:[%s7060 + $0x80] sm:$0xff]
    %v7078 = vld [vmem:[%s7060 + $0x88] sm:$0xff]
    %v7079 = vld [vmem:[%s7060 + $0x90] sm:$0xff]
    %v7080 = vld [vmem:[%s7060 + $0x98] sm:$0xff]
    %v7081 = vld [vmem:[%s7060 + $0xa0] sm:$0xff]
    %v7082 = vld [vmem:[%s7060 + $0xa8] sm:$0xff]
    %v7083 = vld [vmem:[%s7060 + $0xb0] sm:$0xff]
    %v7084 = vld [vmem:[%s7060 + $0xb8] sm:$0xff]
    %v7085 = vld [vmem:[%s7060 + $0xc0] sm:$0xff]
    %v7086 = vld [vmem:[%s7060 + $0xc8] sm:$0xff]
    %v7087 = vld [vmem:[%s7060 + $0xd0] sm:$0xff]
    %v7088 = vld [vmem:[%s7060 + $0xd8] sm:$0xff]
    %v7089 = vld [vmem:[%s7060 + $0xe0] sm:$0xff]
    %v7090 = vld [vmem:[%s7060 + $0xe8] sm:$0xff]
    %v7091 = vld [vmem:[%s7060 + $0xf0] sm:$0xff]
    %v7092 = vld [vmem:[%s7060 + $0xf8] sm:$0xff]
    %v7093 = vld [vmem:[%s7060 + $0x100] sm:$0xff]
    %v7094 = vld [vmem:[%s7060 + $0x108] sm:$0xff]
    %v7095 = vld [vmem:[%s7060 + $0x110] sm:$0xff]
    %v7096 = vld [vmem:[%s7060 + $0x118] sm:$0xff]
    %v7097 = vld [vmem:[%s7060 + $0x120] sm:$0xff]
    %v7098 = vld [vmem:[%s7060 + $0x128] sm:$0xff]
    %v7099 = vld [vmem:[%s7060 + $0x130] sm:$0xff]
    %v7100 = vld [vmem:[%s7060 + $0x138] sm:$0xff]
    %v7101 = vld [vmem:[%s7060 + $0x140] sm:$0xff]
    %v7102 = vld [vmem:[%s7060 + $0x148] sm:$0xff]
    %v7103 = vld [vmem:[%s7060 + $0x150] sm:$0xff]
    %v7104 = vld [vmem:[%s7060 + $0x158] sm:$0xff]
    %v7105 = vld [vmem:[%s7060 + $0x160] sm:$0xff]
    %v7106 = vld [vmem:[%s7060 + $0x168] sm:$0xff]
    %v7107 = vld [vmem:[%s7060 + $0x170] sm:$0xff]
    %v7108 = vld [vmem:[%s7060 + $0x178] sm:$0xff]
    %v7109 = vld [vmem:[%s7060 + $0x180] sm:$0xff]
    %v7110 = vld [vmem:[%s7060 + $0x188] sm:$0xff]
    %v7111 = vld [vmem:[%s7060 + $0x190] sm:$0xff]
    %v7112 = vld [vmem:[%s7060 + $0x198] sm:$0xff]
    %v7113 = vld [vmem:[%s7060 + $0x1a0] sm:$0xff]
    %v7114 = vld [vmem:[%s7060 + $0x1a8] sm:$0xff]
    %v7115 = vld [vmem:[%s7060 + $0x1b0] sm:$0xff]
    %v7116 = vld [vmem:[%s7060 + $0x1b8] sm:$0xff]
    %v7117 = vld [vmem:[%s7060 + $0x1c0] sm:$0xff]
    %v7118 = vld [vmem:[%s7060 + $0x1c8] sm:$0xff]
    %v7119 = vld [vmem:[%s7060 + $0x1d0] sm:$0xff]
    %v7120 = vld [vmem:[%s7060 + $0x1d8] sm:$0xff]
    %v7121 = vld [vmem:[%s7060 + $0x1e0] sm:$0xff]
    %v7122 = vld [vmem:[%s7060 + $0x1e8] sm:$0xff]
    %v7123 = vld [vmem:[%s7060 + $0x1f0] sm:$0xff]
    %v7124 = vld [vmem:[%s7060 + $0x1f8] sm:$0xff]
    %v7125 = vld [vmem:[%s7060 + $0x200] sm:$0xff]
    %v7126 = vld [vmem:[%s7060 + $0x208] sm:$0xff]
    %v7127 = vld [vmem:[%s7060 + $0x210] sm:$0xff]
    %v7128 = vld [vmem:[%s7060 + $0x218] sm:$0xff]
    %v7129 = vld [vmem:[%s7060 + $0x220] sm:$0xff]
    %v7130 = vld [vmem:[%s7060 + $0x228] sm:$0xff]
    %v7131 = vld [vmem:[%s7060 + $0x230] sm:$0xff]
    %v7132 = vld [vmem:[%s7060 + $0x238] sm:$0xff]
    %v7133 = vld [vmem:[%s7060 + $0x240] sm:$0xff]
    %v7134 = vld [vmem:[%s7060 + $0x248] sm:$0xff]
    %v7135 = vld [vmem:[%s7060 + $0x250] sm:$0xff]
    %v7136 = vld [vmem:[%s7060 + $0x258] sm:$0xff]
    %v7137 = vld [vmem:[%s7060 + $0x260] sm:$0xff]
    %v7138 = vld [vmem:[%s7060 + $0x268] sm:$0xff]
    %v7139 = vld [vmem:[%s7060 + $0x270] sm:$0xff]
    %v7140 = vld [vmem:[%s7060 + $0x278] sm:$0xff]
    %v7141 = vld [vmem:[%s7060 + $0x280] sm:$0xff]
    %v7142 = vld [vmem:[%s7060 + $0x288] sm:$0xff]
    %v7143 = vld [vmem:[%s7060 + $0x290] sm:$0xff]
    %v7144 = vld [vmem:[%s7060 + $0x298] sm:$0xff]
    %v7145 = vld [vmem:[%s7060 + $0x2a0] sm:$0xff]
    %v7146 = vld [vmem:[%s7060 + $0x2a8] sm:$0xff]
    %v7147 = vld [vmem:[%s7060 + $0x2b0] sm:$0xff]
    %v7148 = vld [vmem:[%s7060 + $0x2b8] sm:$0xff]
    %v7149 = vld [vmem:[%s7060 + $0x2c0] sm:$0xff]
    %v7150 = vld [vmem:[%s7060 + $0x2c8] sm:$0xff]
    %v7151 = vld [vmem:[%s7060 + $0x2d0] sm:$0xff]
    %v7152 = vld [vmem:[%s7060 + $0x2d8] sm:$0xff]
    %v7153 = vld [vmem:[%s7060 + $0x2e0] sm:$0xff]
    %v7154 = vld [vmem:[%s7060 + $0x2e8] sm:$0xff]
    %v7155 = vld [vmem:[%s7060 + $0x2f0] sm:$0xff]
    %v7156 = vld [vmem:[%s7060 + $0x2f8] sm:$0xff]
    %v7157 = vld [vmem:[%s7060 + $0x300] sm:$0xff]
    %v7158 = vld [vmem:[%s7060 + $0x308] sm:$0xff]
    %v7159 = vld [vmem:[%s7060 + $0x310] sm:$0xff]
    %v7160 = vld [vmem:[%s7060 + $0x318] sm:$0xff]
    %v7161 = vld [vmem:[%s7060 + $0x320] sm:$0xff]
    %v7162 = vld [vmem:[%s7060 + $0x328] sm:$0xff]
    %v7163 = vld [vmem:[%s7060 + $0x330] sm:$0xff]
    %v7164 = vld [vmem:[%s7060 + $0x338] sm:$0xff]
    %v7165 = vld [vmem:[%s7060 + $0x340] sm:$0xff]
    %v7166 = vld [vmem:[%s7060 + $0x348] sm:$0xff]
    %v7167 = vld [vmem:[%s7060 + $0x350] sm:$0xff]
    %v7168 = vld [vmem:[%s7060 + $0x358] sm:$0xff]
    %v7169 = vld [vmem:[%s7060 + $0x360] sm:$0xff]
    %v7170 = vld [vmem:[%s7060 + $0x368] sm:$0xff]
    %v7171 = vld [vmem:[%s7060 + $0x370] sm:$0xff]
    %v7172 = vld [vmem:[%s7060 + $0x378] sm:$0xff]
    %v7173 = vld [vmem:[%s7060 + $0x380] sm:$0xff]
    %v7174 = vld [vmem:[%s7060 + $0x388] sm:$0xff]
    %v7175 = vld [vmem:[%s7060 + $0x390] sm:$0xff]
    %v7176 = vld [vmem:[%s7060 + $0x398] sm:$0xff]
    %v7177 = vld [vmem:[%s7060 + $0x3a0] sm:$0xff]
    %v7178 = vld [vmem:[%s7060 + $0x3a8] sm:$0xff]
    %v7179 = vld [vmem:[%s7060 + $0x3b0] sm:$0xff]
    %v7180 = vld [vmem:[%s7060 + $0x3b8] sm:$0xff]
    %v7181 = vld [vmem:[%s7060 + $0x3c0] sm:$0xff]
    %v7182 = vld [vmem:[%s7060 + $0x3c8] sm:$0xff]
    %v7183 = vld [vmem:[%s7060 + $0x3d0] sm:$0xff]
    %v7184 = vld [vmem:[%s7060 + $0x3d8] sm:$0xff]
    %v7185 = vld [vmem:[%s7060 + $0x3e0] sm:$0xff]
    %v7186 = vld [vmem:[%s7060 + $0x3e8] sm:$0xff]
    %v7187 = vld [vmem:[%s7060 + $0x3f0] sm:$0xff]
    %v7188 = vld [vmem:[%s7060 + $0x3f8] sm:$0xff]
    %s7189 = scalar_lea.vmem [#allocation4], 28
    %v7190 = vld [vmem:[%s7189] sm:$0xf]
    %v7192 = vperm.slane %v7190, 0
    %v7193 = vperm.slane %v7190, 1
    %v7194 = vperm.slane %v7190, 2
    %v7195 = vperm.slane %v7190, 3
    %v7328 = vunpack.c.l.b16 %v7061
    %v7329 = vunpack.c.h.b16 %v7061
    %v7330 = vunpack.c.l.b16 %v7062
    %v7331 = vunpack.c.h.b16 %v7062
    %v7332 = vunpack.c.l.b16 %v7063
    %v7333 = vunpack.c.h.b16 %v7063
    %v7334 = vunpack.c.l.b16 %v7064
    %v7335 = vunpack.c.h.b16 %v7064
    %v7336 = vunpack.c.l.b16 %v7065
    %v7337 = vunpack.c.h.b16 %v7065
    %v7338 = vunpack.c.l.b16 %v7066
    %v7339 = vunpack.c.h.b16 %v7066
    %v7340 = vunpack.c.l.b16 %v7067
    %v7341 = vunpack.c.h.b16 %v7067
    %v7342 = vunpack.c.l.b16 %v7068
    %v7343 = vunpack.c.h.b16 %v7068
    %v7344 = vunpack.c.l.b16 %v7069
    %v7345 = vunpack.c.h.b16 %v7069
    %v7346 = vunpack.c.l.b16 %v7070
    %v7347 = vunpack.c.h.b16 %v7070
    %v7348 = vunpack.c.l.b16 %v7071
    %v7349 = vunpack.c.h.b16 %v7071
    %v7350 = vunpack.c.l.b16 %v7072
    %v7351 = vunpack.c.h.b16 %v7072
    %v7352 = vunpack.c.l.b16 %v7073
    %v7353 = vunpack.c.h.b16 %v7073
    %v7354 = vunpack.c.l.b16 %v7074
    %v7355 = vunpack.c.h.b16 %v7074
    %v7356 = vunpack.c.l.b16 %v7075
    %v7357 = vunpack.c.h.b16 %v7075
    %v7358 = vunpack.c.l.b16 %v7076
    %v7359 = vunpack.c.h.b16 %v7076
    %v7360 = vunpack.c.l.b16 %v7077
    %v7361 = vunpack.c.h.b16 %v7077
    %v7362 = vunpack.c.l.b16 %v7078
    %v7363 = vunpack.c.h.b16 %v7078
    %v7364 = vunpack.c.l.b16 %v7079
    %v7365 = vunpack.c.h.b16 %v7079
    %v7366 = vunpack.c.l.b16 %v7080
    %v7367 = vunpack.c.h.b16 %v7080
    %v7368 = vunpack.c.l.b16 %v7081
    %v7369 = vunpack.c.h.b16 %v7081
    %v7370 = vunpack.c.l.b16 %v7082
    %v7371 = vunpack.c.h.b16 %v7082
    %v7372 = vunpack.c.l.b16 %v7083
    %v7373 = vunpack.c.h.b16 %v7083
    %v7374 = vunpack.c.l.b16 %v7084
    %v7375 = vunpack.c.h.b16 %v7084
    %v7376 = vunpack.c.l.b16 %v7085
    %v7377 = vunpack.c.h.b16 %v7085
    %v7378 = vunpack.c.l.b16 %v7086
    %v7379 = vunpack.c.h.b16 %v7086
    %v7380 = vunpack.c.l.b16 %v7087
    %v7381 = vunpack.c.h.b16 %v7087
    %v7382 = vunpack.c.l.b16 %v7088
    %v7383 = vunpack.c.h.b16 %v7088
    %v7384 = vunpack.c.l.b16 %v7089
    %v7385 = vunpack.c.h.b16 %v7089
    %v7386 = vunpack.c.l.b16 %v7090
    %v7387 = vunpack.c.h.b16 %v7090
    %v7388 = vunpack.c.l.b16 %v7091
    %v7389 = vunpack.c.h.b16 %v7091
    %v7390 = vunpack.c.l.b16 %v7092
    %v7391 = vunpack.c.h.b16 %v7092
    %v7392 = vunpack.c.l.b16 %v7093
    %v7393 = vunpack.c.h.b16 %v7093
    %v7394 = vunpack.c.l.b16 %v7094
    %v7395 = vunpack.c.h.b16 %v7094
    %v7396 = vunpack.c.l.b16 %v7095
    %v7397 = vunpack.c.h.b16 %v7095
    %v7398 = vunpack.c.l.b16 %v7096
    %v7399 = vunpack.c.h.b16 %v7096
    %v7400 = vunpack.c.l.b16 %v7097
    %v7401 = vunpack.c.h.b16 %v7097
    %v7402 = vunpack.c.l.b16 %v7098
    %v7403 = vunpack.c.h.b16 %v7098
    %v7404 = vunpack.c.l.b16 %v7099
    %v7405 = vunpack.c.h.b16 %v7099
    %v7406 = vunpack.c.l.b16 %v7100
    %v7407 = vunpack.c.h.b16 %v7100
    %v7408 = vunpack.c.l.b16 %v7101
    %v7409 = vunpack.c.h.b16 %v7101
    %v7410 = vunpack.c.l.b16 %v7102
    %v7411 = vunpack.c.h.b16 %v7102
    %v7412 = vunpack.c.l.b16 %v7103
    %v7413 = vunpack.c.h.b16 %v7103
    %v7414 = vunpack.c.l.b16 %v7104
    %v7415 = vunpack.c.h.b16 %v7104
    %v7416 = vunpack.c.l.b16 %v7105
    %v7417 = vunpack.c.h.b16 %v7105
    %v7418 = vunpack.c.l.b16 %v7106
    %v7419 = vunpack.c.h.b16 %v7106
    %v7420 = vunpack.c.l.b16 %v7107
    %v7421 = vunpack.c.h.b16 %v7107
    %v7422 = vunpack.c.l.b16 %v7108
    %v7423 = vunpack.c.h.b16 %v7108
    %v7424 = vunpack.c.l.b16 %v7109
    %v7425 = vunpack.c.h.b16 %v7109
    %v7426 = vunpack.c.l.b16 %v7110
    %v7427 = vunpack.c.h.b16 %v7110
    %v7428 = vunpack.c.l.b16 %v7111
    %v7429 = vunpack.c.h.b16 %v7111
    %v7430 = vunpack.c.l.b16 %v7112
    %v7431 = vunpack.c.h.b16 %v7112
    %v7432 = vunpack.c.l.b16 %v7113
    %v7433 = vunpack.c.h.b16 %v7113
    %v7434 = vunpack.c.l.b16 %v7114
    %v7435 = vunpack.c.h.b16 %v7114
    %v7436 = vunpack.c.l.b16 %v7115
    %v7437 = vunpack.c.h.b16 %v7115
    %v7438 = vunpack.c.l.b16 %v7116
    %v7439 = vunpack.c.h.b16 %v7116
    %v7440 = vunpack.c.l.b16 %v7117
    %v7441 = vunpack.c.h.b16 %v7117
    %v7442 = vunpack.c.l.b16 %v7118
    %v7443 = vunpack.c.h.b16 %v7118
    %v7444 = vunpack.c.l.b16 %v7119
    %v7445 = vunpack.c.h.b16 %v7119
    %v7446 = vunpack.c.l.b16 %v7120
    %v7447 = vunpack.c.h.b16 %v7120
    %v7448 = vunpack.c.l.b16 %v7121
    %v7449 = vunpack.c.h.b16 %v7121
    %v7450 = vunpack.c.l.b16 %v7122
    %v7451 = vunpack.c.h.b16 %v7122
    %v7452 = vunpack.c.l.b16 %v7123
    %v7453 = vunpack.c.h.b16 %v7123
    %v7454 = vunpack.c.l.b16 %v7124
    %v7455 = vunpack.c.h.b16 %v7124
    %v7456 = vunpack.c.l.b16 %v7125
    %v7457 = vunpack.c.h.b16 %v7125
    %v7458 = vunpack.c.l.b16 %v7126
    %v7459 = vunpack.c.h.b16 %v7126
    %v7460 = vunpack.c.l.b16 %v7127
    %v7461 = vunpack.c.h.b16 %v7127
    %v7462 = vunpack.c.l.b16 %v7128
    %v7463 = vunpack.c.h.b16 %v7128
    %v7464 = vunpack.c.l.b16 %v7129
    %v7465 = vunpack.c.h.b16 %v7129
    %v7466 = vunpack.c.l.b16 %v7130
    %v7467 = vunpack.c.h.b16 %v7130
    %v7468 = vunpack.c.l.b16 %v7131
    %v7469 = vunpack.c.h.b16 %v7131
    %v7470 = vunpack.c.l.b16 %v7132
    %v7471 = vunpack.c.h.b16 %v7132
    %v7472 = vunpack.c.l.b16 %v7133
    %v7473 = vunpack.c.h.b16 %v7133
    %v7474 = vunpack.c.l.b16 %v7134
    %v7475 = vunpack.c.h.b16 %v7134
    %v7476 = vunpack.c.l.b16 %v7135
    %v7477 = vunpack.c.h.b16 %v7135
    %v7478 = vunpack.c.l.b16 %v7136
    %v7479 = vunpack.c.h.b16 %v7136
    %v7480 = vunpack.c.l.b16 %v7137
    %v7481 = vunpack.c.h.b16 %v7137
    %v7482 = vunpack.c.l.b16 %v7138
    %v7483 = vunpack.c.h.b16 %v7138
    %v7484 = vunpack.c.l.b16 %v7139
    %v7485 = vunpack.c.h.b16 %v7139
    %v7486 = vunpack.c.l.b16 %v7140
    %v7487 = vunpack.c.h.b16 %v7140
    %v7488 = vunpack.c.l.b16 %v7141
    %v7489 = vunpack.c.h.b16 %v7141
    %v7490 = vunpack.c.l.b16 %v7142
    %v7491 = vunpack.c.h.b16 %v7142
    %v7492 = vunpack.c.l.b16 %v7143
    %v7493 = vunpack.c.h.b16 %v7143
    %v7494 = vunpack.c.l.b16 %v7144
    %v7495 = vunpack.c.h.b16 %v7144
    %v7496 = vunpack.c.l.b16 %v7145
    %v7497 = vunpack.c.h.b16 %v7145
    %v7498 = vunpack.c.l.b16 %v7146
    %v7499 = vunpack.c.h.b16 %v7146
    %v7500 = vunpack.c.l.b16 %v7147
    %v7501 = vunpack.c.h.b16 %v7147
    %v7502 = vunpack.c.l.b16 %v7148
    %v7503 = vunpack.c.h.b16 %v7148
    %v7504 = vunpack.c.l.b16 %v7149
    %v7505 = vunpack.c.h.b16 %v7149
    %v7506 = vunpack.c.l.b16 %v7150
    %v7507 = vunpack.c.h.b16 %v7150
    %v7508 = vunpack.c.l.b16 %v7151
    %v7509 = vunpack.c.h.b16 %v7151
    %v7510 = vunpack.c.l.b16 %v7152
    %v7511 = vunpack.c.h.b16 %v7152
    %v7512 = vunpack.c.l.b16 %v7153
    %v7513 = vunpack.c.h.b16 %v7153
    %v7514 = vunpack.c.l.b16 %v7154
    %v7515 = vunpack.c.h.b16 %v7154
    %v7516 = vunpack.c.l.b16 %v7155
    %v7517 = vunpack.c.h.b16 %v7155
    %v7518 = vunpack.c.l.b16 %v7156
    %v7519 = vunpack.c.h.b16 %v7156
    %v7520 = vunpack.c.l.b16 %v7157
    %v7521 = vunpack.c.h.b16 %v7157
    %v7522 = vunpack.c.l.b16 %v7158
    %v7523 = vunpack.c.h.b16 %v7158
    %v7524 = vunpack.c.l.b16 %v7159
    %v7525 = vunpack.c.h.b16 %v7159
    %v7526 = vunpack.c.l.b16 %v7160
    %v7527 = vunpack.c.h.b16 %v7160
    %v7528 = vunpack.c.l.b16 %v7161
    %v7529 = vunpack.c.h.b16 %v7161
    %v7530 = vunpack.c.l.b16 %v7162
    %v7531 = vunpack.c.h.b16 %v7162
    %v7532 = vunpack.c.l.b16 %v7163
    %v7533 = vunpack.c.h.b16 %v7163
    %v7534 = vunpack.c.l.b16 %v7164
    %v7535 = vunpack.c.h.b16 %v7164
    %v7536 = vunpack.c.l.b16 %v7165
    %v7537 = vunpack.c.h.b16 %v7165
    %v7538 = vunpack.c.l.b16 %v7166
    %v7539 = vunpack.c.h.b16 %v7166
    %v7540 = vunpack.c.l.b16 %v7167
    %v7541 = vunpack.c.h.b16 %v7167
    %v7542 = vunpack.c.l.b16 %v7168
    %v7543 = vunpack.c.h.b16 %v7168
    %v7544 = vunpack.c.l.b16 %v7169
    %v7545 = vunpack.c.h.b16 %v7169
    %v7546 = vunpack.c.l.b16 %v7170
    %v7547 = vunpack.c.h.b16 %v7170
    %v7548 = vunpack.c.l.b16 %v7171
    %v7549 = vunpack.c.h.b16 %v7171
    %v7550 = vunpack.c.l.b16 %v7172
    %v7551 = vunpack.c.h.b16 %v7172
    %v7552 = vunpack.c.l.b16 %v7173
    %v7553 = vunpack.c.h.b16 %v7173
    %v7554 = vunpack.c.l.b16 %v7174
    %v7555 = vunpack.c.h.b16 %v7174
    %v7556 = vunpack.c.l.b16 %v7175
    %v7557 = vunpack.c.h.b16 %v7175
    %v7558 = vunpack.c.l.b16 %v7176
    %v7559 = vunpack.c.h.b16 %v7176
    %v7560 = vunpack.c.l.b16 %v7177
    %v7561 = vunpack.c.h.b16 %v7177
    %v7562 = vunpack.c.l.b16 %v7178
    %v7563 = vunpack.c.h.b16 %v7178
    %v7564 = vunpack.c.l.b16 %v7179
    %v7565 = vunpack.c.h.b16 %v7179
    %v7566 = vunpack.c.l.b16 %v7180
    %v7567 = vunpack.c.h.b16 %v7180
    %v7568 = vunpack.c.l.b16 %v7181
    %v7569 = vunpack.c.h.b16 %v7181
    %v7570 = vunpack.c.l.b16 %v7182
    %v7571 = vunpack.c.h.b16 %v7182
    %v7572 = vunpack.c.l.b16 %v7183
    %v7573 = vunpack.c.h.b16 %v7183
    %v7574 = vunpack.c.l.b16 %v7184
    %v7575 = vunpack.c.h.b16 %v7184
    %v7576 = vunpack.c.l.b16 %v7185
    %v7577 = vunpack.c.h.b16 %v7185
    %v7578 = vunpack.c.l.b16 %v7186
    %v7579 = vunpack.c.h.b16 %v7186
    %v7580 = vunpack.c.l.b16 %v7187
    %v7581 = vunpack.c.h.b16 %v7187
    %v7582 = vunpack.c.l.b16 %v7188
    %v7583 = vunpack.c.h.b16 %v7188
    %v7584 = vpack.c.b16 %v7332, %v7328
    %v7585 = vpack.c.b16 %v7333, %v7329
    %v7586 = vpack.c.b16 %v7334, %v7330
    %v7587 = vpack.c.b16 %v7335, %v7331
    %v7588 = vpack.c.b16 %v7340, %v7336
    %v7589 = vpack.c.b16 %v7341, %v7337
    %v7590 = vpack.c.b16 %v7342, %v7338
    %v7591 = vpack.c.b16 %v7343, %v7339
    %v7592 = vpack.c.b16 %v7348, %v7344
    %v7593 = vpack.c.b16 %v7349, %v7345
    %v7594 = vpack.c.b16 %v7350, %v7346
    %v7595 = vpack.c.b16 %v7351, %v7347
    %v7596 = vpack.c.b16 %v7356, %v7352
    %v7597 = vpack.c.b16 %v7357, %v7353
    %v7598 = vpack.c.b16 %v7358, %v7354
    %v7599 = vpack.c.b16 %v7359, %v7355
    %v7600 = vpack.c.b16 %v7364, %v7360
    %v7601 = vpack.c.b16 %v7365, %v7361
    %v7602 = vpack.c.b16 %v7366, %v7362
    %v7603 = vpack.c.b16 %v7367, %v7363
    %v7604 = vpack.c.b16 %v7372, %v7368
    %v7605 = vpack.c.b16 %v7373, %v7369
    %v7606 = vpack.c.b16 %v7374, %v7370
    %v7607 = vpack.c.b16 %v7375, %v7371
    %v7608 = vpack.c.b16 %v7380, %v7376
    %v7609 = vpack.c.b16 %v7381, %v7377
    %v7610 = vpack.c.b16 %v7382, %v7378
    %v7611 = vpack.c.b16 %v7383, %v7379
    %v7612 = vpack.c.b16 %v7388, %v7384
    %v7613 = vpack.c.b16 %v7389, %v7385
    %v7614 = vpack.c.b16 %v7390, %v7386
    %v7615 = vpack.c.b16 %v7391, %v7387
    %v7616 = vpack.c.b16 %v7396, %v7392
    %v7617 = vpack.c.b16 %v7397, %v7393
    %v7618 = vpack.c.b16 %v7398, %v7394
    %v7619 = vpack.c.b16 %v7399, %v7395
    %v7620 = vpack.c.b16 %v7404, %v7400
    %v7621 = vpack.c.b16 %v7405, %v7401
    %v7622 = vpack.c.b16 %v7406, %v7402
    %v7623 = vpack.c.b16 %v7407, %v7403
    %v7624 = vpack.c.b16 %v7412, %v7408
    %v7625 = vpack.c.b16 %v7413, %v7409
    %v7626 = vpack.c.b16 %v7414, %v7410
    %v7627 = vpack.c.b16 %v7415, %v7411
    %v7628 = vpack.c.b16 %v7420, %v7416
    %v7629 = vpack.c.b16 %v7421, %v7417
    %v7630 = vpack.c.b16 %v7422, %v7418
    %v7631 = vpack.c.b16 %v7423, %v7419
    %v7632 = vpack.c.b16 %v7428, %v7424
    %v7633 = vpack.c.b16 %v7429, %v7425
    %v7634 = vpack.c.b16 %v7430, %v7426
    %v7635 = vpack.c.b16 %v7431, %v7427
    %v7636 = vpack.c.b16 %v7436, %v7432
    %v7637 = vpack.c.b16 %v7437, %v7433
    %v7638 = vpack.c.b16 %v7438, %v7434
    %v7639 = vpack.c.b16 %v7439, %v7435
    %v7640 = vpack.c.b16 %v7444, %v7440
    %v7641 = vpack.c.b16 %v7445, %v7441
    %v7642 = vpack.c.b16 %v7446, %v7442
    %v7643 = vpack.c.b16 %v7447, %v7443
    %v7644 = vpack.c.b16 %v7452, %v7448
    %v7645 = vpack.c.b16 %v7453, %v7449
    %v7646 = vpack.c.b16 %v7454, %v7450
    %v7647 = vpack.c.b16 %v7455, %v7451
    %v7648 = vpack.c.b16 %v7460, %v7456
    %v7649 = vpack.c.b16 %v7461, %v7457
    %v7650 = vpack.c.b16 %v7462, %v7458
    %v7651 = vpack.c.b16 %v7463, %v7459
    %v7652 = vpack.c.b16 %v7468, %v7464
    %v7653 = vpack.c.b16 %v7469, %v7465
    %v7654 = vpack.c.b16 %v7470, %v7466
    %v7655 = vpack.c.b16 %v7471, %v7467
    %v7656 = vpack.c.b16 %v7476, %v7472
    %v7657 = vpack.c.b16 %v7477, %v7473
    %v7658 = vpack.c.b16 %v7478, %v7474
    %v7659 = vpack.c.b16 %v7479, %v7475
    %v7660 = vpack.c.b16 %v7484, %v7480
    %v7661 = vpack.c.b16 %v7485, %v7481
    %v7662 = vpack.c.b16 %v7486, %v7482
    %v7663 = vpack.c.b16 %v7487, %v7483
    %v7664 = vpack.c.b16 %v7492, %v7488
    %v7665 = vpack.c.b16 %v7493, %v7489
    %v7666 = vpack.c.b16 %v7494, %v7490
    %v7667 = vpack.c.b16 %v7495, %v7491
    %v7668 = vpack.c.b16 %v7500, %v7496
    %v7669 = vpack.c.b16 %v7501, %v7497
    %v7670 = vpack.c.b16 %v7502, %v7498
    %v7671 = vpack.c.b16 %v7503, %v7499
    %v7672 = vpack.c.b16 %v7508, %v7504
    %v7673 = vpack.c.b16 %v7509, %v7505
    %v7674 = vpack.c.b16 %v7510, %v7506
    %v7675 = vpack.c.b16 %v7511, %v7507
    %v7676 = vpack.c.b16 %v7516, %v7512
    %v7677 = vpack.c.b16 %v7517, %v7513
    %v7678 = vpack.c.b16 %v7518, %v7514
    %v7679 = vpack.c.b16 %v7519, %v7515
    %v7680 = vpack.c.b16 %v7524, %v7520
    %v7681 = vpack.c.b16 %v7525, %v7521
    %v7682 = vpack.c.b16 %v7526, %v7522
    %v7683 = vpack.c.b16 %v7527, %v7523
    %v7684 = vpack.c.b16 %v7532, %v7528
    %v7685 = vpack.c.b16 %v7533, %v7529
    %v7686 = vpack.c.b16 %v7534, %v7530
    %v7687 = vpack.c.b16 %v7535, %v7531
    %v7688 = vpack.c.b16 %v7540, %v7536
    %v7689 = vpack.c.b16 %v7541, %v7537
    %v7690 = vpack.c.b16 %v7542, %v7538
    %v7691 = vpack.c.b16 %v7543, %v7539
    %v7692 = vpack.c.b16 %v7548, %v7544
    %v7693 = vpack.c.b16 %v7549, %v7545
    %v7694 = vpack.c.b16 %v7550, %v7546
    %v7695 = vpack.c.b16 %v7551, %v7547
    %v7696 = vpack.c.b16 %v7556, %v7552
    %v7697 = vpack.c.b16 %v7557, %v7553
    %v7698 = vpack.c.b16 %v7558, %v7554
    %v7699 = vpack.c.b16 %v7559, %v7555
    %v7700 = vpack.c.b16 %v7564, %v7560
    %v7701 = vpack.c.b16 %v7565, %v7561
    %v7702 = vpack.c.b16 %v7566, %v7562
    %v7703 = vpack.c.b16 %v7567, %v7563
    %v7704 = vpack.c.b16 %v7572, %v7568
    %v7705 = vpack.c.b16 %v7573, %v7569
    %v7706 = vpack.c.b16 %v7574, %v7570
    %v7707 = vpack.c.b16 %v7575, %v7571
    %v7708 = vpack.c.b16 %v7580, %v7576
    %v7709 = vpack.c.b16 %v7581, %v7577
    %v7710 = vpack.c.b16 %v7582, %v7578
    %v7711 = vpack.c.b16 %v7583, %v7579
    %7840 = vmatpush.bf16.msra.mxu0 %v7612
    %7841 = vmatpush.bf16.msra.mxu0 %v7608
    %7842 = vmatpush.bf16.msra.mxu0 %v7604
    %7843 = vmatpush.bf16.msra.mxu0 %v7600
    %7844 = vmatpush.bf16.msra.mxu0 %v7596
    %7845 = vmatpush.bf16.msra.mxu0 %v7592
    %7846 = vmatpush.bf16.msra.mxu0 %v7588
    %7847 = vmatpush.bf16.msra.mxu0 %v7584
    %7848 = vmatmul.bf16.gmra.mxu0 %v7056
    %v7849 = vpop.f32.mrf.mxu0
    %v7850 = vadd.f32 %v7192, %v7849
    %v7851 = vpop.f32.mrf.mxu0
    %7852 = vdwg.mxu0
    %7853 = vmatpush.bf16.msra.mxu0 %v7644
    %7854 = vmatpush.bf16.msra.mxu0 %v7640
    %7855 = vmatpush.bf16.msra.mxu0 %v7636
    %7856 = vmatpush.bf16.msra.mxu0 %v7632
    %7857 = vmatpush.bf16.msra.mxu0 %v7628
    %7858 = vmatpush.bf16.msra.mxu0 %v7624
    %7859 = vmatpush.bf16.msra.mxu0 %v7620
    %7860 = vmatpush.bf16.msra.mxu0 %v7616
    %7861 = vmatmul.bf16.gmra.mxu0 %v7057
    %v7862 = vpop.f32.mrf.mxu0
    %v7863 = vadd.f32 %v7850, %v7862
    %v7864 = vpop.f32.mrf.mxu0
    %7865 = vdwg.mxu0
    %7866 = vmatpush.bf16.msra.mxu0 %v7676
    %7867 = vmatpush.bf16.msra.mxu0 %v7672
    %7868 = vmatpush.bf16.msra.mxu0 %v7668
    %7869 = vmatpush.bf16.msra.mxu0 %v7664
    %7870 = vmatpush.bf16.msra.mxu0 %v7660
    %7871 = vmatpush.bf16.msra.mxu0 %v7656
    %7872 = vmatpush.bf16.msra.mxu0 %v7652
    %7873 = vmatpush.bf16.msra.mxu0 %v7648
    %7874 = vmatmul.bf16.gmra.mxu0 %v7058
    %v7875 = vpop.f32.mrf.mxu0
    %v7876 = vadd.f32 %v7863, %v7875
    %v7877 = vpop.f32.mrf.mxu0
    %7878 = vdwg.mxu0
    %7879 = vmatpush.bf16.msra.mxu0 %v7708
    %7880 = vmatpush.bf16.msra.mxu0 %v7704
    %7881 = vmatpush.bf16.msra.mxu0 %v7700
    %7882 = vmatpush.bf16.msra.mxu0 %v7696
    %7883 = vmatpush.bf16.msra.mxu0 %v7692
    %7884 = vmatpush.bf16.msra.mxu0 %v7688
    %7885 = vmatpush.bf16.msra.mxu0 %v7684
    %7886 = vmatpush.bf16.msra.mxu0 %v7680
    %7887 = vmatmul.bf16.gmra.mxu0 %v7059
    %v7888 = vpop.f32.mrf.mxu0
    %v7889 = vadd.f32 %v7876, %v7888
    %v7890 = vpop.f32.mrf.mxu0
    %7891 = vdwg.mxu0
    %7892 = vmatpush.bf16.msra.mxu0 %v7613
    %7893 = vmatpush.bf16.msra.mxu0 %v7609
    %7894 = vmatpush.bf16.msra.mxu0 %v7605
    %7895 = vmatpush.bf16.msra.mxu0 %v7601
    %7896 = vmatpush.bf16.msra.mxu0 %v7597
    %7897 = vmatpush.bf16.msra.mxu0 %v7593
    %7898 = vmatpush.bf16.msra.mxu0 %v7589
    %7899 = vmatpush.bf16.msra.mxu0 %v7585
    %7900 = vmatmul.bf16.gmra.mxu0 %v7056
    %v7901 = vpop.f32.mrf.mxu0
    %v7902 = vadd.f32 %v7193, %v7901
    %v7903 = vpop.f32.mrf.mxu0
    %7904 = vdwg.mxu0
    %7905 = vmatpush.bf16.msra.mxu0 %v7645
    %7906 = vmatpush.bf16.msra.mxu0 %v7641
    %7907 = vmatpush.bf16.msra.mxu0 %v7637
    %7908 = vmatpush.bf16.msra.mxu0 %v7633
    %7909 = vmatpush.bf16.msra.mxu0 %v7629
    %7910 = vmatpush.bf16.msra.mxu0 %v7625
    %7911 = vmatpush.bf16.msra.mxu0 %v7621
    %7912 = vmatpush.bf16.msra.mxu0 %v7617
    %7913 = vmatmul.bf16.gmra.mxu0 %v7057
    %v7914 = vpop.f32.mrf.mxu0
    %v7915 = vadd.f32 %v7902, %v7914
    %v7916 = vpop.f32.mrf.mxu0
    %7917 = vdwg.mxu0
    %7918 = vmatpush.bf16.msra.mxu0 %v7677
    %7919 = vmatpush.bf16.msra.mxu0 %v7673
    %7920 = vmatpush.bf16.msra.mxu0 %v7669
    %7921 = vmatpush.bf16.msra.mxu0 %v7665
    %7922 = vmatpush.bf16.msra.mxu0 %v7661
    %7923 = vmatpush.bf16.msra.mxu0 %v7657
    %7924 = vmatpush.bf16.msra.mxu0 %v7653
    %7925 = vmatpush.bf16.msra.mxu0 %v7649
    %7926 = vmatmul.bf16.gmra.mxu0 %v7058
    %v7927 = vpop.f32.mrf.mxu0
    %v7928 = vadd.f32 %v7915, %v7927
    %v7929 = vpop.f32.mrf.mxu0
    %7930 = vdwg.mxu0
    %7931 = vmatpush.bf16.msra.mxu0 %v7709
    %7932 = vmatpush.bf16.msra.mxu0 %v7705
    %7933 = vmatpush.bf16.msra.mxu0 %v7701
    %7934 = vmatpush.bf16.msra.mxu0 %v7697
    %7935 = vmatpush.bf16.msra.mxu0 %v7693
    %7936 = vmatpush.bf16.msra.mxu0 %v7689
    %7937 = vmatpush.bf16.msra.mxu0 %v7685
    %7938 = vmatpush.bf16.msra.mxu0 %v7681
    %7939 = vmatmul.bf16.gmra.mxu0 %v7059
    %v7940 = vpop.f32.mrf.mxu0
    %v7941 = vadd.f32 %v7928, %v7940
    %v7942 = vpop.f32.mrf.mxu0
    %7943 = vdwg.mxu0
    %7944 = vmatpush.bf16.msra.mxu0 %v7614
    %7945 = vmatpush.bf16.msra.mxu0 %v7610
    %7946 = vmatpush.bf16.msra.mxu0 %v7606
    %7947 = vmatpush.bf16.msra.mxu0 %v7602
    %7948 = vmatpush.bf16.msra.mxu0 %v7598
    %7949 = vmatpush.bf16.msra.mxu0 %v7594
    %7950 = vmatpush.bf16.msra.mxu0 %v7590
    %7951 = vmatpush.bf16.msra.mxu0 %v7586
    %7952 = vmatmul.bf16.gmra.mxu0 %v7056
    %v7953 = vpop.f32.mrf.mxu0
    %v7954 = vadd.f32 %v7194, %v7953
    %v7955 = vpop.f32.mrf.mxu0
    %7956 = vdwg.mxu0
    %7957 = vmatpush.bf16.msra.mxu0 %v7646
    %7958 = vmatpush.bf16.msra.mxu0 %v7642
    %7959 = vmatpush.bf16.msra.mxu0 %v7638
    %7960 = vmatpush.bf16.msra.mxu0 %v7634
    %7961 = vmatpush.bf16.msra.mxu0 %v7630
    %7962 = vmatpush.bf16.msra.mxu0 %v7626
    %7963 = vmatpush.bf16.msra.mxu0 %v7622
    %7964 = vmatpush.bf16.msra.mxu0 %v7618
    %7965 = vmatmul.bf16.gmra.mxu0 %v7057
    %v7966 = vpop.f32.mrf.mxu0
    %v7967 = vadd.f32 %v7954, %v7966
    %v7968 = vpop.f32.mrf.mxu0
    %7969 = vdwg.mxu0
    %7970 = vmatpush.bf16.msra.mxu0 %v7678
    %7971 = vmatpush.bf16.msra.mxu0 %v7674
    %7972 = vmatpush.bf16.msra.mxu0 %v7670
    %7973 = vmatpush.bf16.msra.mxu0 %v7666
    %7974 = vmatpush.bf16.msra.mxu0 %v7662
    %7975 = vmatpush.bf16.msra.mxu0 %v7658
    %7976 = vmatpush.bf16.msra.mxu0 %v7654
    %7977 = vmatpush.bf16.msra.mxu0 %v7650
    %7978 = vmatmul.bf16.gmra.mxu0 %v7058
    %v7979 = vpop.f32.mrf.mxu0
    %v7980 = vadd.f32 %v7967, %v7979
    %v7981 = vpop.f32.mrf.mxu0
    %7982 = vdwg.mxu0
    %7983 = vmatpush.bf16.msra.mxu0 %v7710
    %7984 = vmatpush.bf16.msra.mxu0 %v7706
    %7985 = vmatpush.bf16.msra.mxu0 %v7702
    %7986 = vmatpush.bf16.msra.mxu0 %v7698
    %7987 = vmatpush.bf16.msra.mxu0 %v7694
    %7988 = vmatpush.bf16.msra.mxu0 %v7690
    %7989 = vmatpush.bf16.msra.mxu0 %v7686
    %7990 = vmatpush.bf16.msra.mxu0 %v7682
    %7991 = vmatmul.bf16.gmra.mxu0 %v7059
    %v7992 = vpop.f32.mrf.mxu0
    %v7993 = vadd.f32 %v7980, %v7992
    %v7994 = vpop.f32.mrf.mxu0
    %7995 = vdwg.mxu0
    %7996 = vmatpush.bf16.msra.mxu0 %v7615
    %7997 = vmatpush.bf16.msra.mxu0 %v7611
    %7998 = vmatpush.bf16.msra.mxu0 %v7607
    %7999 = vmatpush.bf16.msra.mxu0 %v7603
    %8000 = vmatpush.bf16.msra.mxu0 %v7599
    %8001 = vmatpush.bf16.msra.mxu0 %v7595
    %8002 = vmatpush.bf16.msra.mxu0 %v7591
    %8003 = vmatpush.bf16.msra.mxu0 %v7587
    %8004 = vmatmul.bf16.gmra.mxu0 %v7056
    %v8005 = vpop.f32.mrf.mxu0
    %v8006 = vadd.f32 %v7195, %v8005
    %v8007 = vpop.f32.mrf.mxu0
    %8008 = vdwg.mxu0
    %8009 = vmatpush.bf16.msra.mxu0 %v7647
    %8010 = vmatpush.bf16.msra.mxu0 %v7643
    %8011 = vmatpush.bf16.msra.mxu0 %v7639
    %8012 = vmatpush.bf16.msra.mxu0 %v7635
    %8013 = vmatpush.bf16.msra.mxu0 %v7631
    %8014 = vmatpush.bf16.msra.mxu0 %v7627
    %8015 = vmatpush.bf16.msra.mxu0 %v7623
    %8016 = vmatpush.bf16.msra.mxu0 %v7619
    %8017 = vmatmul.bf16.gmra.mxu0 %v7057
    %v8018 = vpop.f32.mrf.mxu0
    %v8019 = vadd.f32 %v8006, %v8018
    %v8020 = vpop.f32.mrf.mxu0
    %8021 = vdwg.mxu0
    %8022 = vmatpush.bf16.msra.mxu0 %v7679
    %8023 = vmatpush.bf16.msra.mxu0 %v7675
    %8024 = vmatpush.bf16.msra.mxu0 %v7671
    %8025 = vmatpush.bf16.msra.mxu0 %v7667
    %8026 = vmatpush.bf16.msra.mxu0 %v7663
    %8027 = vmatpush.bf16.msra.mxu0 %v7659
    %8028 = vmatpush.bf16.msra.mxu0 %v7655
    %8029 = vmatpush.bf16.msra.mxu0 %v7651
    %8030 = vmatmul.bf16.gmra.mxu0 %v7058
    %v8031 = vpop.f32.mrf.mxu0
    %v8032 = vadd.f32 %v8019, %v8031
    %v8033 = vpop.f32.mrf.mxu0
    %8034 = vdwg.mxu0
    %8035 = vmatpush.bf16.msra.mxu0 %v7711
    %8036 = vmatpush.bf16.msra.mxu0 %v7707
    %8037 = vmatpush.bf16.msra.mxu0 %v7703
    %8038 = vmatpush.bf16.msra.mxu0 %v7699
    %8039 = vmatpush.bf16.msra.mxu0 %v7695
    %8040 = vmatpush.bf16.msra.mxu0 %v7691
    %8041 = vmatpush.bf16.msra.mxu0 %v7687
    %8042 = vmatpush.bf16.msra.mxu0 %v7683
    %8043 = vmatmul.bf16.gmra.mxu0 %v7059
    %v8044 = vpop.f32.mrf.mxu0
    %v8045 = vadd.f32 %v8032, %v8044
    %v8046 = vpop.f32.mrf.mxu0
    %8047 = vdwg.mxu0
    %v8048 = vmul.f32 %v7889, 0.2
    %v8049 = vmul.f32 %v7941, 0.2
    %v8050 = vmul.f32 %v7993, 0.2
    %v8051 = vmul.f32 %v8045, 0.2
    %v8052 = vmax.f32 %v7889, %v8048
    %v8053 = vmax.f32 %v7941, %v8049
    %v8054 = vmax.f32 %v7993, %v8050
    %v8055 = vmax.f32 %v8045, %v8051
    %8056 = vst [vmem:[%s3] sm:$0xff] %v8052
    %8057 = vst [vmem:[%s3 + $0x8] sm:$0xff] %v8053
    %8058 = vst [vmem:[%s3 + $0x10] sm:$0xff] %v8054
    %8059 = vst [vmem:[%s3 + $0x18] sm:$0xff] %v8055
    // Predicated region
    $region22: #{mapping_forward.1} parent=1 // pred_check
      _
    $region23: #{mapping_forward.1} parent=1 // pred_check_branch
      %8061 = sbr.rel (0) target = $region25
    $region24: #{mapping_forward.1} parent=1 // pred_region
      _
    $region25: #{mapping_forward.1} parent=1 // pred_fallthru
      _
    // Predicated region
    $region26: #{mapping_forward.1} parent=1 // pred_check
      _
    $region27: #{mapping_forward.1} parent=1 // pred_check_branch
      %8063 = sbr.rel (0) target = $region29
    $region28: #{mapping_forward.1} parent=1 // pred_region
      _
    $region29: #{mapping_forward.1} parent=1 // pred_fallthru
      _
    %8064 = vsyncpa [#allocation3], 1
    %8065 = vsyncpa [#allocation5], 1

</llo_original>
